<compile_context>
chip_gen: v5e
topology: v5e:2x2
jax: 0.10.0
libtpu: 0.0.40
codegen_flags: <defaults>
</compile_context>

<pallas_src>
import functools

import jax
import jax.numpy as jnp
from jax.experimental import pallas as pl
from jax.experimental.pallas import tpu as pltpu

D_MODEL = 128
NHEAD = 8
NUM_LAYERS = 2
DIM_FF = 256
LN_EPS = 1e-5
DEFAULT_B_TILE = 32          # stacked M = 32*8 = 256 rows -> fills v6e/v7x MXU


# ---------------------------------------------------------------------------
# Shared math (pure jnp) — used both inside the Pallas kernel and by the
# pure-JAX reference so numerics match bit-for-bit (modulo approx reciprocal).
# ---------------------------------------------------------------------------
def _bf16_dot(a, w):
    """a @ w with bf16 operands and f32 accumulation (MXU-native)."""
    return jax.lax.dot_general(
        a.astype(jnp.bfloat16), w.astype(jnp.bfloat16),
        dimension_numbers=(((a.ndim - 1,), (0,)), ((), ())),
        preferred_element_type=jnp.float32)


def _layer_norm(x, gamma, beta):
    mean = jnp.mean(x, axis=-1, keepdims=True)
    var = jnp.mean(jnp.square(x - mean), axis=-1, keepdims=True)
    return (x - mean) * jax.lax.rsqrt(var + LN_EPS) * gamma + beta


def _forward_core(x2, pe2, w_emb, b_emb, layer_ws, layer_vecs, head_w, head_vec,
                  *, bt, seq_len, recip):
    """Full forward on one batch tile.

    x2 : (bt*seq_len, input)  f32      pe2: (bt*seq_len, d_model) f32
    Returns (bt, d_model) f32 of sigmoid outputs — probability is column 0.
    """
    D, F, H = D_MODEL, DIM_FF, NHEAD
    HD = D // H
    M = bt * seq_len

    h = _bf16_dot(x2, w_emb) + b_emb + pe2                       # (M, D) f32

    for (wqkv, wo, wff1, wff2), vecs in zip(layer_ws, layer_vecs):
        bqkv = vecs[0:1, :]
        bo, bff1, bff2 = vecs[1:2, :D], vecs[2:3, :F], vecs[3:4, :D]
        ln1_g, ln1_b = vecs[4:5, :D], vecs[5:6, :D]
        ln2_g, ln2_b = vecs[6:7, :D], vecs[7:8, :D]

        # ---- multi-head self-attention (q pre-scaled by 1/sqrt(HD) at init) ----
        qkv = _bf16_dot(h, wqkv) + bqkv                          # (M, 3D) f32
        q = qkv[:, 0 * D:1 * D].reshape(bt, seq_len, D)
        k = qkv[:, 1 * D:2 * D].reshape(bt, seq_len, D)
        v = qkv[:, 2 * D:3 * D].reshape(bt, seq_len, D)
        heads = []
        # TODO(synk): heads stay a static loop — Mosaic has no general 4-D
        # transpose to fold (head, seq) into one dot_general batch dim; each
        # head is still batched over the bt sequences of the tile.
        for hh in range(H):
            sl = slice(hh * HD, (hh + 1) * HD)
            qh = q[:, :, sl].astype(jnp.bfloat16)
            kh = k[:, :, sl].astype(jnp.bfloat16)
            vh = v[:, :, sl].astype(jnp.bfloat16)
            s = jax.lax.dot_general(                             # (bt, L, L)
                qh, kh, dimension_numbers=(((2,), (2,)), ((0,), (0,))),
                preferred_element_type=jnp.float32)
            p = jnp.exp(s - jnp.max(s, axis=-1, keepdims=True))
            o = jax.lax.dot_general(                             # (bt, L, HD)
                p.astype(jnp.bfloat16), vh,
                dimension_numbers=(((2,), (1,)), ((0,), (0,))),
                preferred_element_type=jnp.float32)
            # deferred softmax normalization (reciprocal on EUP in the kernel)
            heads.append(o * recip(jnp.sum(p, axis=-1, keepdims=True)))
        attn = jnp.concatenate(heads, axis=-1).reshape(M, D)

        # ---- post-norm residual blocks (dropout is identity in eval) ----
        h = _layer_norm(h + _bf16_dot(attn, wo) + bo, ln1_g, ln1_b)
        f = jnp.maximum(_bf16_dot(h, wff1) + bff1, 0.0)
        h = _layer_norm(h + _bf16_dot(f, wff2) + bff2, ln2_g, ln2_b)

    pooled = jnp.mean(h.reshape(bt, seq_len, D), axis=1)         # (bt, D)
    z = jnp.maximum(_bf16_dot(pooled, head_w[0]) + head_vec[0:1, :], 0.0)
    z = _bf16_dot(z, head_w[1]) + head_vec[1:2, :]               # col 0 = logit
    return jax.nn.sigmoid(z)                                     # (bt, D)


def positional_encoding(seq_len, d_model):
    pos = jnp.arange(seq_len, dtype=jnp.float32)[:, None]
    div = jnp.exp(jnp.arange(0, d_model, 2, dtype=jnp.float32)
                  * (-jnp.log(10000.0) / d_model))
    pe = jnp.zeros((seq_len, d_model), jnp.float32)
    pe = pe.at[:, 0::2].set(jnp.sin(pos * div))
    pe = pe.at[:, 1::2].set(jnp.cos(pos * div))
    return pe


# ---------------------------------------------------------------------------
# Pallas kernel — one grid step per batch tile, full forward fused.
# ---------------------------------------------------------------------------
def transformer_detector_kernel(b_tile, seq_len,
                                x_ref, pe_ref, w_emb_ref, b_emb_ref,
                                w_a_ref, w_b_ref, vec_ref,
                                head_w_ref, head_vec_ref, o_ref):
    D = D_MODEL
    layer_ws, layer_vs = [], []
    for l in range(NUM_LAYERS):
        wa = w_a_ref[l]                           # (D, 3D + D + DIM_FF) bf16 slab
        layer_ws.append((wa[:, 0:3 * D],          # wqkv
                         wa[:, 3 * D:4 * D],      # wo
                         wa[:, 4 * D:],           # wff1
                         w_b_ref[l]))             # wff2
        layer_vs.append(vec_ref[l])               # (8, 3D) f32 bias/LN slab
    probs = _forward_core(
        x_ref[...], pe_ref[...], w_emb_ref[...], b_emb_ref[...],
        layer_ws, layer_vs, head_w_ref[...], head_vec_ref[...],
        bt=b_tile, seq_len=seq_len,
        recip=lambda t: pl.reciprocal(t, approx=True))
    o_ref[0] = probs                              # (b_tile, 128) lane-dense store


def transformer_detector_forward(x, packed, *, b_tile=DEFAULT_B_TILE):
    """x: (B, L, input_size) or (B, input_size) f32 -> (B,) f32 probabilities."""
    if x.ndim == 2:
        x = x[:, None, :]                         # matches torch unsqueeze(1)
    B, L, in_dim = x.shape

    b_tile = max(1, min(b_tile, B))
    num_tiles = pl.cdiv(B, b_tile)
    if num_tiles > 1 and num_tiles % 2:           # even grid -> both v7x TCs busy
        num_tiles += 1
    B_pad = num_tiles * b_tile
    if B_pad != B:
        x = jnp.pad(x, ((0, B_pad - B), (0, 0), (0, 0)))

    x2 = x.reshape(B_pad * L, in_dim)             # flattened rows (host-side)
    pe2 = jnp.tile(positional_encoding(L, D_MODEL), (b_tile, 1))   # (b_tile*L, D)
    m_rows = b_tile * L

    kern = functools.partial(transformer_detector_kernel, b_tile, L)
    args = (x2, pe2, packed["w_emb"], packed["b_emb"], packed["w_a"],
            packed["w_b"], packed["layer_vecs"], packed["head_w"],
            packed["head_vec"])

    def build(single_buffer):
        def inv(shape):
            nd = len(shape)
            imap = lambda t, _nd=nd: (0,) * _nd
            if single_buffer:                     # invariant -> one VMEM buffer
                return pl.BlockSpec(shape, imap, pipeline_mode=pl.Buffered(1))
            return pl.BlockSpec(shape, imap)

        in_specs = [
            pl.BlockSpec((m_rows, in_dim), lambda t: (t, 0)),     # x tile
            inv(pe2.shape),
            inv(packed["w_emb"].shape), inv(packed["b_emb"].shape),
            inv(packed["w_a"].shape), inv(packed["w_b"].shape),
            inv(packed["layer_vecs"].shape),
            inv(packed["head_w"].shape), inv(packed["head_vec"].shape),
        ]
        return pl.pallas_call(
            kern,
            out_shape=jax.ShapeDtypeStruct((num_tiles, b_tile, 128), jnp.float32),
            grid_spec=pltpu.PrefetchScalarGridSpec(
                num_scalar_prefetch=0,
                grid=(num_tiles,),
                in_specs=in_specs,
                out_specs=pl.BlockSpec((1, b_tile, 128), lambda t: (t, 0, 0)),
            ),
            compiler_params=pltpu.CompilerParams(
                dimension_semantics=("parallel",)),
        )

    try:
        out = jax.block_until_ready(build(True)(*args))
    except Exception:
        # pipeline_mode / Buffered(1) unsupported on this JAX: fall back to
        # default double-buffered invariant inputs (correctness unchanged).
        out = jax.block_until_ready(build(False)(*args))
    return out.reshape(B_pad, 128)[:B, 0]


# ---------------------------------------------------------------------------
# Parameter init (weights stored transposed (in, out), bf16; biases/LN f32)
# and packing into a few DMA-friendly slabs.
# ---------------------------------------------------------------------------
def init_params(key, input_size, d_model=D_MODEL, num_layers=NUM_LAYERS,
                dim_ff=DIM_FF):
    keys = iter(jax.random.split(key, 64))

    def lin(fan_in, fan_out):
        bound = 1.0 / (fan_in ** 0.5)
        w = jax.random.uniform(next(keys), (fan_in, fan_out), jnp.float32,
                               -bound, bound).astype(jnp.bfloat16)
        b = jax.random.uniform(next(keys), (1, fan_out), jnp.float32, -bound, bound)
        return w, b

    w_emb, b_emb = lin(input_size, d_model)
    scale = 1.0 / ((d_model // NHEAD) ** 0.5)     # folded into q at init (free)
    layers = []
    for _ in range(num_layers):
        wqkv, bqkv = lin(d_model, 3 * d_model)
        wqkv = wqkv.at[:, :d_model].multiply(scale)
        bqkv = bqkv.at[:, :d_model].multiply(scale)
        wo, bo = lin(d_model, d_model)
        wff1, bff1 = lin(d_model, dim_ff)
        wff2, bff2 = lin(dim_ff, d_model)
        layers.append(dict(
            wqkv=wqkv, bqkv=bqkv, wo=wo, bo=bo,
            wff1=wff1, bff1=bff1, wff2=wff2, bff2=bff2,
            ln1_g=jnp.ones((1, d_model), jnp.float32),
            ln1_b=jnp.zeros((1, d_model), jnp.float32),
            ln2_g=jnp.ones((1, d_model), jnp.float32),
            ln2_b=jnp.zeros((1, d_model), jnp.float32)))
    wf1, bf1 = lin(d_model, 128)
    wf2, bf2 = lin(128, 1)
    return dict(w_emb=w_emb, b_emb=b_emb, layers=layers,
                head=dict(wf1=wf1, bf1=bf1, wf2=wf2, bf2=bf2))


def pack_params(params):
    """Pack the ~28 small tensors into a few slabs (fewer DMAs / VMEM windows)."""
    D = D_MODEL

    def row(v, width=3 * D):
        v = jnp.asarray(v, jnp.float32).reshape(-1)
        return jnp.pad(v, (0, width - v.shape[0]))

    w_a, w_b, vec = [], [], []
    for lp in params["layers"]:
        w_a.append(jnp.concatenate([lp["wqkv"], lp["wo"], lp["wff1"]], axis=1))
        w_b.append(lp["wff2"])
        vec.append(jnp.stack([row(lp["bqkv"]), row(lp["bo"]), row(lp["bff1"]),
                              row(lp["bff2"]), row(lp["ln1_g"]), row(lp["ln1_b"]),
                              row(lp["ln2_g"]), row(lp["ln2_b"])]))
    hp = params["head"]
    head_w = jnp.stack([hp["wf1"], jnp.pad(hp["wf2"], ((0, 0), (0, D - 1)))])
    head_vec = jnp.stack([row(hp["bf1"], D), row(hp["bf2"], D)])
    return dict(w_emb=params["w_emb"], b_emb=params["b_emb"],
                w_a=jnp.stack(w_a),              # (NL, 128, 768) bf16
                w_b=jnp.stack(w_b),              # (NL, 256, 128) bf16
                layer_vecs=jnp.stack(vec),       # (NL,   8, 384) f32
                head_w=head_w,                   # (2, 128, 128)  bf16
                head_vec=head_vec)               # (2, 128)       f32


def reference_forward(x, packed):
    """Pure-JAX reference using the same bf16-dot math as the kernel."""
    if x.ndim == 2:
        x = x[:, None, :]
    B, L, in_dim = x.shape
    D = D_MODEL
    layer_ws, layer_vs = [], []
    for l in range(NUM_LAYERS):
        wa = packed["w_a"][l]
        layer_ws.append((wa[:, 0:3 * D], wa[:, 3 * D:4 * D], wa[:, 4 * D:],
                         packed["w_b"][l]))
        layer_vs.append(packed["layer_vecs"][l])
    probs = _forward_core(
        x.reshape(B * L, in_dim), jnp.tile(positional_encoding(L, D), (B, 1)),
        packed["w_emb"], packed["b_emb"], layer_ws, layer_vs,
        packed["head_w"], packed["head_vec"],
        bt=B, seq_len=L, recip=lambda t: 1.0 / t)
    return probs[:, 0]


if __name__ == "__main__":
    key = jax.random.PRNGKey(0)
    k_x, k_x2, k_p = jax.random.split(key, 3)

    batch, seq_len, input_size = 2, 8, 16
    x = jax.random.normal(k_x, (batch, seq_len, input_size), dtype=jnp.float32)
    params = init_params(k_p, input_size)
    packed = pack_params(params)

    out = jax.block_until_ready(transformer_detector_forward(x, packed))
    ref = reference_forward(x, packed)
    assert out.shape == (batch,)
    assert bool(jnp.all(jnp.isfinite(out)))
    assert jnp.allclose(out, ref, atol=5e-3, rtol=5e-3), (out, ref)

    # Exercise batch padding + multi-tile even grid (B=5, tile of 2 -> 4 tiles).
    x5 = jax.random.normal(k_x2, (5, seq_len, input_size), dtype=jnp.float32)
    out5 = jax.block_until_ready(
        transformer_detector_forward(x5, packed, b_tile=2))
    ref5 = reference_forward(x5, packed)
    assert out5.shape == (5,)
    assert bool(jnp.all(jnp.isfinite(out5)))
    assert jnp.allclose(out5, ref5, atol=5e-3, rtol=5e-3), (out5, ref5)

    print("KERNEL_OK")
</pallas_src>

<mosaic_0001>
module attributes {stable_mosaic.version = 11 : i64} {
  func.func @transformer_detector_kernel(%arg0: i32, %arg1: memref<16x16xf32, #tpu.memory_space<vmem>>, %arg2: memref<16x128xf32, #tpu.memory_space<vmem>>, %arg3: memref<16x128xbf16, #tpu.memory_space<vmem>>, %arg4: memref<1x128xf32, #tpu.memory_space<vmem>>, %arg5: memref<2x128x768xbf16, #tpu.memory_space<vmem>>, %arg6: memref<2x256x128xbf16, #tpu.memory_space<vmem>>, %arg7: memref<2x8x384xf32, #tpu.memory_space<vmem>>, %arg8: memref<2x128x128xbf16, #tpu.memory_space<vmem>>, %arg9: memref<2x128xf32, #tpu.memory_space<vmem>>, %arg10: memref<1x2x128xf32, #tpu.memory_space<vmem>>) attributes {dimension_semantics = [#tpu.dimension_semantics<parallel>], iteration_bounds = array<i64: 1>, scalar_prefetch = 0 : i64, scratch_operands = 0 : i64, tpu.core_type = #tpu.core_type<tc>, window_params = [{transform_indices = @transform_0, window_bounds = array<i64: 16, 16>}, {pipeline_mode = #tpu.pipeline_mode<synchronous>, transform_indices = @transform_1, window_bounds = array<i64: 16, 128>}, {pipeline_mode = #tpu.pipeline_mode<synchronous>, transform_indices = @transform_2, window_bounds = array<i64: 16, 128>}, {pipeline_mode = #tpu.pipeline_mode<synchronous>, transform_indices = @transform_3, window_bounds = array<i64: 1, 128>}, {pipeline_mode = #tpu.pipeline_mode<synchronous>, transform_indices = @transform_4, window_bounds = array<i64: 2, 128, 768>}, {pipeline_mode = #tpu.pipeline_mode<synchronous>, transform_indices = @transform_5, window_bounds = array<i64: 2, 256, 128>}, {pipeline_mode = #tpu.pipeline_mode<synchronous>, transform_indices = @transform_6, window_bounds = array<i64: 2, 8, 384>}, {pipeline_mode = #tpu.pipeline_mode<synchronous>, transform_indices = @transform_7, window_bounds = array<i64: 2, 128, 128>}, {pipeline_mode = #tpu.pipeline_mode<synchronous>, transform_indices = @transform_8, window_bounds = array<i64: 2, 128>}, {transform_indices = @transform_9, window_bounds = array<i64: 1, 2, 128>}]} {
    %c0 = arith.constant 0 : index
    %c0_0 = arith.constant 0 : index
    %c0_1 = arith.constant 0 : index
    %0 = vector.load %arg5[%c0, %c0_0, %c0_1] : memref<2x128x768xbf16, #tpu.memory_space<vmem>>, vector<1x128x768xbf16>
    %1 = vector.shape_cast %0 : vector<1x128x768xbf16> to vector<128x768xbf16>
    %2 = vector.extract_strided_slice %1 {offsets = [0, 0], sizes = [128, 384], strides = [1, 1]} : vector<128x768xbf16> to vector<128x384xbf16>
    %3 = vector.extract_strided_slice %1 {offsets = [0, 384], sizes = [128, 128], strides = [1, 1]} : vector<128x768xbf16> to vector<128x128xbf16>
    %4 = vector.extract_strided_slice %1 {offsets = [0, 512], sizes = [128, 256], strides = [1, 1]} : vector<128x768xbf16> to vector<128x256xbf16>
    %c0_2 = arith.constant 0 : index
    %c0_3 = arith.constant 0 : index
    %c0_4 = arith.constant 0 : index
    %5 = vector.load %arg6[%c0_2, %c0_3, %c0_4] : memref<2x256x128xbf16, #tpu.memory_space<vmem>>, vector<1x256x128xbf16>
    %6 = vector.shape_cast %5 : vector<1x256x128xbf16> to vector<256x128xbf16>
    %c0_5 = arith.constant 0 : index
    %c0_6 = arith.constant 0 : index
    %c0_7 = arith.constant 0 : index
    %7 = vector.load %arg7[%c0_5, %c0_6, %c0_7] : memref<2x8x384xf32, #tpu.memory_space<vmem>>, vector<1x8x384xf32>
    %8 = vector.shape_cast %7 : vector<1x8x384xf32> to vector<8x384xf32>
    %c1 = arith.constant 1 : index
    %c0_8 = arith.constant 0 : index
    %c0_9 = arith.constant 0 : index
    %9 = vector.load %arg5[%c1, %c0_8, %c0_9] : memref<2x128x768xbf16, #tpu.memory_space<vmem>>, vector<1x128x768xbf16>
    %10 = vector.shape_cast %9 : vector<1x128x768xbf16> to vector<128x768xbf16>
    %11 = vector.extract_strided_slice %10 {offsets = [0, 0], sizes = [128, 384], strides = [1, 1]} : vector<128x768xbf16> to vector<128x384xbf16>
    %12 = vector.extract_strided_slice %10 {offsets = [0, 384], sizes = [128, 128], strides = [1, 1]} : vector<128x768xbf16> to vector<128x128xbf16>
    %13 = vector.extract_strided_slice %10 {offsets = [0, 512], sizes = [128, 256], strides = [1, 1]} : vector<128x768xbf16> to vector<128x256xbf16>
    %c1_10 = arith.constant 1 : index
    %c0_11 = arith.constant 0 : index
    %c0_12 = arith.constant 0 : index
    %14 = vector.load %arg6[%c1_10, %c0_11, %c0_12] : memref<2x256x128xbf16, #tpu.memory_space<vmem>>, vector<1x256x128xbf16>
    %15 = vector.shape_cast %14 : vector<1x256x128xbf16> to vector<256x128xbf16>
    %c1_13 = arith.constant 1 : index
    %c0_14 = arith.constant 0 : index
    %c0_15 = arith.constant 0 : index
    %16 = vector.load %arg7[%c1_13, %c0_14, %c0_15] : memref<2x8x384xf32, #tpu.memory_space<vmem>>, vector<1x8x384xf32>
    %17 = vector.shape_cast %16 : vector<1x8x384xf32> to vector<8x384xf32>
    %c0_16 = arith.constant 0 : index
    %c0_17 = arith.constant 0 : index
    %18 = vector.load %arg1[%c0_16, %c0_17] : memref<16x16xf32, #tpu.memory_space<vmem>>, vector<16x16xf32>
    %c0_18 = arith.constant 0 : index
    %c0_19 = arith.constant 0 : index
    %19 = vector.load %arg2[%c0_18, %c0_19] : memref<16x128xf32, #tpu.memory_space<vmem>>, vector<16x128xf32>
    %c0_20 = arith.constant 0 : index
    %c0_21 = arith.constant 0 : index
    %20 = vector.load %arg3[%c0_20, %c0_21] : memref<16x128xbf16, #tpu.memory_space<vmem>>, vector<16x128xbf16>
    %c0_22 = arith.constant 0 : index
    %c0_23 = arith.constant 0 : index
    %21 = vector.load %arg4[%c0_22, %c0_23] : memref<1x128xf32, #tpu.memory_space<vmem>>, vector<1x128xf32>
    %c0_24 = arith.constant 0 : index
    %c0_25 = arith.constant 0 : index
    %c0_26 = arith.constant 0 : index
    %22 = vector.load %arg8[%c0_24, %c0_25, %c0_26] : memref<2x128x128xbf16, #tpu.memory_space<vmem>>, vector<2x128x128xbf16>
    %c0_27 = arith.constant 0 : index
    %c0_28 = arith.constant 0 : index
    %23 = vector.load %arg9[%c0_27, %c0_28] : memref<2x128xf32, #tpu.memory_space<vmem>>, vector<2x128xf32>
    %24 = arith.truncf %18 : vector<16x16xf32> to vector<16x16xbf16>
    %cst = arith.constant dense<0.000000e+00> : vector<16x128xf32>
    %25 = tpu.matmul %24, %20, %cst {dimension_numbers = #tpu.dot_dimension_numbers<[1], [0], [0], [1], [0, 0, 1, 1], [], []>} : vector<16x16xbf16>, vector<16x128xbf16>, vector<16x128xf32> -> vector<16x128xf32>
    %26 = vector.broadcast %21 : vector<1x128xf32> to vector<16x128xf32>
    %27 = arith.addf %25, %26 : vector<16x128xf32>
    %28 = arith.addf %27, %19 : vector<16x128xf32>
    %29 = vector.extract_strided_slice %8 {offsets = [0, 0], sizes = [1, 384], strides = [1, 1]} : vector<8x384xf32> to vector<1x384xf32>
    %30 = vector.extract_strided_slice %8 {offsets = [1, 0], sizes = [1, 128], strides = [1, 1]} : vector<8x384xf32> to vector<1x128xf32>
    %31 = vector.extract_strided_slice %8 {offsets = [2, 0], sizes = [1, 256], strides = [1, 1]} : vector<8x384xf32> to vector<1x256xf32>
    %32 = vector.extract_strided_slice %8 {offsets = [3, 0], sizes = [1, 128], strides = [1, 1]} : vector<8x384xf32> to vector<1x128xf32>
    %33 = vector.extract_strided_slice %8 {offsets = [4, 0], sizes = [1, 128], strides = [1, 1]} : vector<8x384xf32> to vector<1x128xf32>
    %34 = vector.extract_strided_slice %8 {offsets = [5, 0], sizes = [1, 128], strides = [1, 1]} : vector<8x384xf32> to vector<1x128xf32>
    %35 = vector.extract_strided_slice %8 {offsets = [6, 0], sizes = [1, 128], strides = [1, 1]} : vector<8x384xf32> to vector<1x128xf32>
    %36 = vector.extract_strided_slice %8 {offsets = [7, 0], sizes = [1, 128], strides = [1, 1]} : vector<8x384xf32> to vector<1x128xf32>
    %37 = arith.truncf %28 : vector<16x128xf32> to vector<16x128xbf16>
    %cst_29 = arith.constant dense<0.000000e+00> : vector<16x384xf32>
    %38 = tpu.matmul %37, %2, %cst_29 {dimension_numbers = #tpu.dot_dimension_numbers<[1], [0], [0], [1], [0, 0, 1, 1], [], []>} : vector<16x128xbf16>, vector<128x384xbf16>, vector<16x384xf32> -> vector<16x384xf32>
    %39 = vector.broadcast %29 : vector<1x384xf32> to vector<16x384xf32>
    %40 = arith.addf %38, %39 : vector<16x384xf32>
    %41 = vector.extract_strided_slice %40 {offsets = [0, 0], sizes = [16, 128], strides = [1, 1]} : vector<16x384xf32> to vector<16x128xf32>
    %42 = vector.shape_cast %41 : vector<16x128xf32> to vector<2x8x128xf32>
    %43 = vector.extract_strided_slice %40 {offsets = [0, 128], sizes = [16, 128], strides = [1, 1]} : vector<16x384xf32> to vector<16x128xf32>
    %44 = vector.shape_cast %43 : vector<16x128xf32> to vector<2x8x128xf32>
    %45 = vector.extract_strided_slice %40 {offsets = [0, 256], sizes = [16, 128], strides = [1, 1]} : vector<16x384xf32> to vector<16x128xf32>
    %46 = vector.shape_cast %45 : vector<16x128xf32> to vector<2x8x128xf32>
    %47 = vector.extract_strided_slice %42 {offsets = [0, 0, 0], sizes = [2, 8, 16], strides = [1, 1, 1]} : vector<2x8x128xf32> to vector<2x8x16xf32>
    %48 = arith.truncf %47 : vector<2x8x16xf32> to vector<2x8x16xbf16>
    %49 = vector.extract_strided_slice %44 {offsets = [0, 0, 0], sizes = [2, 8, 16], strides = [1, 1, 1]} : vector<2x8x128xf32> to vector<2x8x16xf32>
    %50 = arith.truncf %49 : vector<2x8x16xf32> to vector<2x8x16xbf16>
    %51 = vector.extract_strided_slice %46 {offsets = [0, 0, 0], sizes = [2, 8, 16], strides = [1, 1, 1]} : vector<2x8x128xf32> to vector<2x8x16xf32>
    %52 = arith.truncf %51 : vector<2x8x16xf32> to vector<2x8x16xbf16>
    %cst_30 = arith.constant dense<0.000000e+00> : vector<2x8x8xf32>
    %53 = tpu.matmul %48, %50, %cst_30 {dimension_numbers = #tpu.dot_dimension_numbers<[2], [2], [1], [1], [0, 0, 0, 1, 1, 1], [0], [0]>} : vector<2x8x16xbf16>, vector<2x8x16xbf16>, vector<2x8x8xf32> -> vector<2x8x8xf32>
    %cst_31 = arith.constant dense<0xFF800000> : vector<2x8xf32>
    %54 = vector.multi_reduction <maximumf>, %53, %cst_31 [2] : vector<2x8x8xf32> to vector<2x8xf32>
    %55 = vector.shape_cast %54 : vector<2x8xf32> to vector<2x8x1xf32>
    %56 = vector.broadcast %55 : vector<2x8x1xf32> to vector<2x8x8xf32>
    %57 = arith.subf %53, %56 : vector<2x8x8xf32>
    %58 = math.exp %57 : vector<2x8x8xf32>
    %59 = arith.truncf %58 : vector<2x8x8xf32> to vector<2x8x8xbf16>
    %cst_32 = arith.constant dense<0.000000e+00> : vector<2x8x16xf32>
    %60 = tpu.matmul %59, %52, %cst_32 {dimension_numbers = #tpu.dot_dimension_numbers<[2], [1], [1], [2], [0, 0, 0, 1, 1, 2], [0], [0]>} : vector<2x8x8xbf16>, vector<2x8x16xbf16>, vector<2x8x16xf32> -> vector<2x8x16xf32>
    %cst_33 = arith.constant dense<0.000000e+00> : vector<2x8xf32>
    %61 = vector.multi_reduction <add>, %58, %cst_33 [2] : vector<2x8x8xf32> to vector<2x8xf32>
    %62 = vector.shape_cast %61 : vector<2x8xf32> to vector<2x8x1xf32>
    %63 = tpu.reciprocal %62 {approx = true} : vector<2x8x1xf32> -> vector<2x8x1xf32>
    %64 = vector.broadcast %63 : vector<2x8x1xf32> to vector<2x8x16xf32>
    %65 = arith.mulf %60, %64 : vector<2x8x16xf32>
    %66 = vector.extract_strided_slice %42 {offsets = [0, 0, 16], sizes = [2, 8, 16], strides = [1, 1, 1]} : vector<2x8x128xf32> to vector<2x8x16xf32>
    %67 = arith.truncf %66 : vector<2x8x16xf32> to vector<2x8x16xbf16>
    %68 = vector.extract_strided_slice %44 {offsets = [0, 0, 16], sizes = [2, 8, 16], strides = [1, 1, 1]} : vector<2x8x128xf32> to vector<2x8x16xf32>
    %69 = arith.truncf %68 : vector<2x8x16xf32> to vector<2x8x16xbf16>
    %70 = vector.extract_strided_slice %46 {offsets = [0, 0, 16], sizes = [2, 8, 16], strides = [1, 1, 1]} : vector<2x8x128xf32> to vector<2x8x16xf32>
    %71 = arith.truncf %70 : vector<2x8x16xf32> to vector<2x8x16xbf16>
    %cst_34 = arith.constant dense<0.000000e+00> : vector<2x8x8xf32>
    %72 = tpu.matmul %67, %69, %cst_34 {dimension_numbers = #tpu.dot_dimension_numbers<[2], [2], [1], [1], [0, 0, 0, 1, 1, 1], [0], [0]>} : vector<2x8x16xbf16>, vector<2x8x16xbf16>, vector<2x8x8xf32> -> vector<2x8x8xf32>
    %cst_35 = arith.constant dense<0xFF800000> : vector<2x8xf32>
    %73 = vector.multi_reduction <maximumf>, %72, %cst_35 [2] : vector<2x8x8xf32> to vector<2x8xf32>
    %74 = vector.shape_cast %73 : vector<2x8xf32> to vector<2x8x1xf32>
    %75 = vector.broadcast %74 : vector<2x8x1xf32> to vector<2x8x8xf32>
    %76 = arith.subf %72, %75 : vector<2x8x8xf32>
    %77 = math.exp %76 : vector<2x8x8xf32>
    %78 = arith.truncf %77 : vector<2x8x8xf32> to vector<2x8x8xbf16>
    %cst_36 = arith.constant dense<0.000000e+00> : vector<2x8x16xf32>
    %79 = tpu.matmul %78, %71, %cst_36 {dimension_numbers = #tpu.dot_dimension_numbers<[2], [1], [1], [2], [0, 0, 0, 1, 1, 2], [0], [0]>} : vector<2x8x8xbf16>, vector<2x8x16xbf16>, vector<2x8x16xf32> -> vector<2x8x16xf32>
    %cst_37 = arith.constant dense<0.000000e+00> : vector<2x8xf32>
    %80 = vector.multi_reduction <add>, %77, %cst_37 [2] : vector<2x8x8xf32> to vector<2x8xf32>
    %81 = vector.shape_cast %80 : vector<2x8xf32> to vector<2x8x1xf32>
    %82 = tpu.reciprocal %81 {approx = true} : vector<2x8x1xf32> -> vector<2x8x1xf32>
    %83 = vector.broadcast %82 : vector<2x8x1xf32> to vector<2x8x16xf32>
    %84 = arith.mulf %79, %83 : vector<2x8x16xf32>
    %85 = vector.extract_strided_slice %42 {offsets = [0, 0, 32], sizes = [2, 8, 16], strides = [1, 1, 1]} : vector<2x8x128xf32> to vector<2x8x16xf32>
    %86 = arith.truncf %85 : vector<2x8x16xf32> to vector<2x8x16xbf16>
    %87 = vector.extract_strided_slice %44 {offsets = [0, 0, 32], sizes = [2, 8, 16], strides = [1, 1, 1]} : vector<2x8x128xf32> to vector<2x8x16xf32>
    %88 = arith.truncf %87 : vector<2x8x16xf32> to vector<2x8x16xbf16>
    %89 = vector.extract_strided_slice %46 {offsets = [0, 0, 32], sizes = [2, 8, 16], strides = [1, 1, 1]} : vector<2x8x128xf32> to vector<2x8x16xf32>
    %90 = arith.truncf %89 : vector<2x8x16xf32> to vector<2x8x16xbf16>
    %cst_38 = arith.constant dense<0.000000e+00> : vector<2x8x8xf32>
    %91 = tpu.matmul %86, %88, %cst_38 {dimension_numbers = #tpu.dot_dimension_numbers<[2], [2], [1], [1], [0, 0, 0, 1, 1, 1], [0], [0]>} : vector<2x8x16xbf16>, vector<2x8x16xbf16>, vector<2x8x8xf32> -> vector<2x8x8xf32>
    %cst_39 = arith.constant dense<0xFF800000> : vector<2x8xf32>
    %92 = vector.multi_reduction <maximumf>, %91, %cst_39 [2] : vector<2x8x8xf32> to vector<2x8xf32>
    %93 = vector.shape_cast %92 : vector<2x8xf32> to vector<2x8x1xf32>
    %94 = vector.broadcast %93 : vector<2x8x1xf32> to vector<2x8x8xf32>
    %95 = arith.subf %91, %94 : vector<2x8x8xf32>
    %96 = math.exp %95 : vector<2x8x8xf32>
    %97 = arith.truncf %96 : vector<2x8x8xf32> to vector<2x8x8xbf16>
    %cst_40 = arith.constant dense<0.000000e+00> : vector<2x8x16xf32>
    %98 = tpu.matmul %97, %90, %cst_40 {dimension_numbers = #tpu.dot_dimension_numbers<[2], [1], [1], [2], [0, 0, 0, 1, 1, 2], [0], [0]>} : vector<2x8x8xbf16>, vector<2x8x16xbf16>, vector<2x8x16xf32> -> vector<2x8x16xf32>
    %cst_41 = arith.constant dense<0.000000e+00> : vector<2x8xf32>
    %99 = vector.multi_reduction <add>, %96, %cst_41 [2] : vector<2x8x8xf32> to vector<2x8xf32>
    %100 = vector.shape_cast %99 : vector<2x8xf32> to vector<2x8x1xf32>
    %101 = tpu.reciprocal %100 {approx = true} : vector<2x8x1xf32> -> vector<2x8x1xf32>
    %102 = vector.broadcast %101 : vector<2x8x1xf32> to vector<2x8x16xf32>
    %103 = arith.mulf %98, %102 : vector<2x8x16xf32>
    %104 = vector.extract_strided_slice %42 {offsets = [0, 0, 48], sizes = [2, 8, 16], strides = [1, 1, 1]} : vector<2x8x128xf32> to vector<2x8x16xf32>
    %105 = arith.truncf %104 : vector<2x8x16xf32> to vector<2x8x16xbf16>
    %106 = vector.extract_strided_slice %44 {offsets = [0, 0, 48], sizes = [2, 8, 16], strides = [1, 1, 1]} : vector<2x8x128xf32> to vector<2x8x16xf32>
    %107 = arith.truncf %106 : vector<2x8x16xf32> to vector<2x8x16xbf16>
    %108 = vector.extract_strided_slice %46 {offsets = [0, 0, 48], sizes = [2, 8, 16], strides = [1, 1, 1]} : vector<2x8x128xf32> to vector<2x8x16xf32>
    %109 = arith.truncf %108 : vector<2x8x16xf32> to vector<2x8x16xbf16>
    %cst_42 = arith.constant dense<0.000000e+00> : vector<2x8x8xf32>
    %110 = tpu.matmul %105, %107, %cst_42 {dimension_numbers = #tpu.dot_dimension_numbers<[2], [2], [1], [1], [0, 0, 0, 1, 1, 1], [0], [0]>} : vector<2x8x16xbf16>, vector<2x8x16xbf16>, vector<2x8x8xf32> -> vector<2x8x8xf32>
    %cst_43 = arith.constant dense<0xFF800000> : vector<2x8xf32>
    %111 = vector.multi_reduction <maximumf>, %110, %cst_43 [2] : vector<2x8x8xf32> to vector<2x8xf32>
    %112 = vector.shape_cast %111 : vector<2x8xf32> to vector<2x8x1xf32>
    %113 = vector.broadcast %112 : vector<2x8x1xf32> to vector<2x8x8xf32>
    %114 = arith.subf %110, %113 : vector<2x8x8xf32>
    %115 = math.exp %114 : vector<2x8x8xf32>
    %116 = arith.truncf %115 : vector<2x8x8xf32> to vector<2x8x8xbf16>
    %cst_44 = arith.constant dense<0.000000e+00> : vector<2x8x16xf32>
    %117 = tpu.matmul %116, %109, %cst_44 {dimension_numbers = #tpu.dot_dimension_numbers<[2], [1], [1], [2], [0, 0, 0, 1, 1, 2], [0], [0]>} : vector<2x8x8xbf16>, vector<2x8x16xbf16>, vector<2x8x16xf32> -> vector<2x8x16xf32>
    %cst_45 = arith.constant dense<0.000000e+00> : vector<2x8xf32>
    %118 = vector.multi_reduction <add>, %115, %cst_45 [2] : vector<2x8x8xf32> to vector<2x8xf32>
    %119 = vector.shape_cast %118 : vector<2x8xf32> to vector<2x8x1xf32>
    %120 = tpu.reciprocal %119 {approx = true} : vector<2x8x1xf32> -> vector<2x8x1xf32>
    %121 = vector.broadcast %120 : vector<2x8x1xf32> to vector<2x8x16xf32>
    %122 = arith.mulf %117, %121 : vector<2x8x16xf32>
    %123 = vector.extract_strided_slice %42 {offsets = [0, 0, 64], sizes = [2, 8, 16], strides = [1, 1, 1]} : vector<2x8x128xf32> to vector<2x8x16xf32>
    %124 = arith.truncf %123 : vector<2x8x16xf32> to vector<2x8x16xbf16>
    %125 = vector.extract_strided_slice %44 {offsets = [0, 0, 64], sizes = [2, 8, 16], strides = [1, 1, 1]} : vector<2x8x128xf32> to vector<2x8x16xf32>
    %126 = arith.truncf %125 : vector<2x8x16xf32> to vector<2x8x16xbf16>
    %127 = vector.extract_strided_slice %46 {offsets = [0, 0, 64], sizes = [2, 8, 16], strides = [1, 1, 1]} : vector<2x8x128xf32> to vector<2x8x16xf32>
    %128 = arith.truncf %127 : vector<2x8x16xf32> to vector<2x8x16xbf16>
    %cst_46 = arith.constant dense<0.000000e+00> : vector<2x8x8xf32>
    %129 = tpu.matmul %124, %126, %cst_46 {dimension_numbers = #tpu.dot_dimension_numbers<[2], [2], [1], [1], [0, 0, 0, 1, 1, 1], [0], [0]>} : vector<2x8x16xbf16>, vector<2x8x16xbf16>, vector<2x8x8xf32> -> vector<2x8x8xf32>
    %cst_47 = arith.constant dense<0xFF800000> : vector<2x8xf32>
    %130 = vector.multi_reduction <maximumf>, %129, %cst_47 [2] : vector<2x8x8xf32> to vector<2x8xf32>
    %131 = vector.shape_cast %130 : vector<2x8xf32> to vector<2x8x1xf32>
    %132 = vector.broadcast %131 : vector<2x8x1xf32> to vector<2x8x8xf32>
    %133 = arith.subf %129, %132 : vector<2x8x8xf32>
    %134 = math.exp %133 : vector<2x8x8xf32>
    %135 = arith.truncf %134 : vector<2x8x8xf32> to vector<2x8x8xbf16>
    %cst_48 = arith.constant dense<0.000000e+00> : vector<2x8x16xf32>
    %136 = tpu.matmul %135, %128, %cst_48 {dimension_numbers = #tpu.dot_dimension_numbers<[2], [1], [1], [2], [0, 0, 0, 1, 1, 2], [0], [0]>} : vector<2x8x8xbf16>, vector<2x8x16xbf16>, vector<2x8x16xf32> -> vector<2x8x16xf32>
    %cst_49 = arith.constant dense<0.000000e+00> : vector<2x8xf32>
    %137 = vector.multi_reduction <add>, %134, %cst_49 [2] : vector<2x8x8xf32> to vector<2x8xf32>
    %138 = vector.shape_cast %137 : vector<2x8xf32> to vector<2x8x1xf32>
    %139 = tpu.reciprocal %138 {approx = true} : vector<2x8x1xf32> -> vector<2x8x1xf32>
    %140 = vector.broadcast %139 : vector<2x8x1xf32> to vector<2x8x16xf32>
    %141 = arith.mulf %136, %140 : vector<2x8x16xf32>
    %142 = vector.extract_strided_slice %42 {offsets = [0, 0, 80], sizes = [2, 8, 16], strides = [1, 1, 1]} : vector<2x8x128xf32> to vector<2x8x16xf32>
    %143 = arith.truncf %142 : vector<2x8x16xf32> to vector<2x8x16xbf16>
    %144 = vector.extract_strided_slice %44 {offsets = [0, 0, 80], sizes = [2, 8, 16], strides = [1, 1, 1]} : vector<2x8x128xf32> to vector<2x8x16xf32>
    %145 = arith.truncf %144 : vector<2x8x16xf32> to vector<2x8x16xbf16>
    %146 = vector.extract_strided_slice %46 {offsets = [0, 0, 80], sizes = [2, 8, 16], strides = [1, 1, 1]} : vector<2x8x128xf32> to vector<2x8x16xf32>
    %147 = arith.truncf %146 : vector<2x8x16xf32> to vector<2x8x16xbf16>
    %cst_50 = arith.constant dense<0.000000e+00> : vector<2x8x8xf32>
    %148 = tpu.matmul %143, %145, %cst_50 {dimension_numbers = #tpu.dot_dimension_numbers<[2], [2], [1], [1], [0, 0, 0, 1, 1, 1], [0], [0]>} : vector<2x8x16xbf16>, vector<2x8x16xbf16>, vector<2x8x8xf32> -> vector<2x8x8xf32>
    %cst_51 = arith.constant dense<0xFF800000> : vector<2x8xf32>
    %149 = vector.multi_reduction <maximumf>, %148, %cst_51 [2] : vector<2x8x8xf32> to vector<2x8xf32>
    %150 = vector.shape_cast %149 : vector<2x8xf32> to vector<2x8x1xf32>
    %151 = vector.broadcast %150 : vector<2x8x1xf32> to vector<2x8x8xf32>
    %152 = arith.subf %148, %151 : vector<2x8x8xf32>
    %153 = math.exp %152 : vector<2x8x8xf32>
    %154 = arith.truncf %153 : vector<2x8x8xf32> to vector<2x8x8xbf16>
    %cst_52 = arith.constant dense<0.000000e+00> : vector<2x8x16xf32>
    %155 = tpu.matmul %154, %147, %cst_52 {dimension_numbers = #tpu.dot_dimension_numbers<[2], [1], [1], [2], [0, 0, 0, 1, 1, 2], [0], [0]>} : vector<2x8x8xbf16>, vector<2x8x16xbf16>, vector<2x8x16xf32> -> vector<2x8x16xf32>
    %cst_53 = arith.constant dense<0.000000e+00> : vector<2x8xf32>
    %156 = vector.multi_reduction <add>, %153, %cst_53 [2] : vector<2x8x8xf32> to vector<2x8xf32>
    %157 = vector.shape_cast %156 : vector<2x8xf32> to vector<2x8x1xf32>
    %158 = tpu.reciprocal %157 {approx = true} : vector<2x8x1xf32> -> vector<2x8x1xf32>
    %159 = vector.broadcast %158 : vector<2x8x1xf32> to vector<2x8x16xf32>
    %160 = arith.mulf %155, %159 : vector<2x8x16xf32>
    %161 = vector.extract_strided_slice %42 {offsets = [0, 0, 96], sizes = [2, 8, 16], strides = [1, 1, 1]} : vector<2x8x128xf32> to vector<2x8x16xf32>
    %162 = arith.truncf %161 : vector<2x8x16xf32> to vector<2x8x16xbf16>
    %163 = vector.extract_strided_slice %44 {offsets = [0, 0, 96], sizes = [2, 8, 16], strides = [1, 1, 1]} : vector<2x8x128xf32> to vector<2x8x16xf32>
    %164 = arith.truncf %163 : vector<2x8x16xf32> to vector<2x8x16xbf16>
    %165 = vector.extract_strided_slice %46 {offsets = [0, 0, 96], sizes = [2, 8, 16], strides = [1, 1, 1]} : vector<2x8x128xf32> to vector<2x8x16xf32>
    %166 = arith.truncf %165 : vector<2x8x16xf32> to vector<2x8x16xbf16>
    %cst_54 = arith.constant dense<0.000000e+00> : vector<2x8x8xf32>
    %167 = tpu.matmul %162, %164, %cst_54 {dimension_numbers = #tpu.dot_dimension_numbers<[2], [2], [1], [1], [0, 0, 0, 1, 1, 1], [0], [0]>} : vector<2x8x16xbf16>, vector<2x8x16xbf16>, vector<2x8x8xf32> -> vector<2x8x8xf32>
    %cst_55 = arith.constant dense<0xFF800000> : vector<2x8xf32>
    %168 = vector.multi_reduction <maximumf>, %167, %cst_55 [2] : vector<2x8x8xf32> to vector<2x8xf32>
    %169 = vector.shape_cast %168 : vector<2x8xf32> to vector<2x8x1xf32>
    %170 = vector.broadcast %169 : vector<2x8x1xf32> to vector<2x8x8xf32>
    %171 = arith.subf %167, %170 : vector<2x8x8xf32>
    %172 = math.exp %171 : vector<2x8x8xf32>
    %173 = arith.truncf %172 : vector<2x8x8xf32> to vector<2x8x8xbf16>
    %cst_56 = arith.constant dense<0.000000e+00> : vector<2x8x16xf32>
    %174 = tpu.matmul %173, %166, %cst_56 {dimension_numbers = #tpu.dot_dimension_numbers<[2], [1], [1], [2], [0, 0, 0, 1, 1, 2], [0], [0]>} : vector<2x8x8xbf16>, vector<2x8x16xbf16>, vector<2x8x16xf32> -> vector<2x8x16xf32>
    %cst_57 = arith.constant dense<0.000000e+00> : vector<2x8xf32>
    %175 = vector.multi_reduction <add>, %172, %cst_57 [2] : vector<2x8x8xf32> to vector<2x8xf32>
    %176 = vector.shape_cast %175 : vector<2x8xf32> to vector<2x8x1xf32>
    %177 = tpu.reciprocal %176 {approx = true} : vector<2x8x1xf32> -> vector<2x8x1xf32>
    %178 = vector.broadcast %177 : vector<2x8x1xf32> to vector<2x8x16xf32>
    %179 = arith.mulf %174, %178 : vector<2x8x16xf32>
    %180 = vector.extract_strided_slice %42 {offsets = [0, 0, 112], sizes = [2, 8, 16], strides = [1, 1, 1]} : vector<2x8x128xf32> to vector<2x8x16xf32>
    %181 = arith.truncf %180 : vector<2x8x16xf32> to vector<2x8x16xbf16>
    %182 = vector.extract_strided_slice %44 {offsets = [0, 0, 112], sizes = [2, 8, 16], strides = [1, 1, 1]} : vector<2x8x128xf32> to vector<2x8x16xf32>
    %183 = arith.truncf %182 : vector<2x8x16xf32> to vector<2x8x16xbf16>
    %184 = vector.extract_strided_slice %46 {offsets = [0, 0, 112], sizes = [2, 8, 16], strides = [1, 1, 1]} : vector<2x8x128xf32> to vector<2x8x16xf32>
    %185 = arith.truncf %184 : vector<2x8x16xf32> to vector<2x8x16xbf16>
    %cst_58 = arith.constant dense<0.000000e+00> : vector<2x8x8xf32>
    %186 = tpu.matmul %181, %183, %cst_58 {dimension_numbers = #tpu.dot_dimension_numbers<[2], [2], [1], [1], [0, 0, 0, 1, 1, 1], [0], [0]>} : vector<2x8x16xbf16>, vector<2x8x16xbf16>, vector<2x8x8xf32> -> vector<2x8x8xf32>
    %cst_59 = arith.constant dense<0xFF800000> : vector<2x8xf32>
    %187 = vector.multi_reduction <maximumf>, %186, %cst_59 [2] : vector<2x8x8xf32> to vector<2x8xf32>
    %188 = vector.shape_cast %187 : vector<2x8xf32> to vector<2x8x1xf32>
    %189 = vector.broadcast %188 : vector<2x8x1xf32> to vector<2x8x8xf32>
    %190 = arith.subf %186, %189 : vector<2x8x8xf32>
    %191 = math.exp %190 : vector<2x8x8xf32>
    %192 = arith.truncf %191 : vector<2x8x8xf32> to vector<2x8x8xbf16>
    %cst_60 = arith.constant dense<0.000000e+00> : vector<2x8x16xf32>
    %193 = tpu.matmul %192, %185, %cst_60 {dimension_numbers = #tpu.dot_dimension_numbers<[2], [1], [1], [2], [0, 0, 0, 1, 1, 2], [0], [0]>} : vector<2x8x8xbf16>, vector<2x8x16xbf16>, vector<2x8x16xf32> -> vector<2x8x16xf32>
    %cst_61 = arith.constant dense<0.000000e+00> : vector<2x8xf32>
    %194 = vector.multi_reduction <add>, %191, %cst_61 [2] : vector<2x8x8xf32> to vector<2x8xf32>
    %195 = vector.shape_cast %194 : vector<2x8xf32> to vector<2x8x1xf32>
    %196 = tpu.reciprocal %195 {approx = true} : vector<2x8x1xf32> -> vector<2x8x1xf32>
    %197 = vector.broadcast %196 : vector<2x8x1xf32> to vector<2x8x16xf32>
    %198 = arith.mulf %193, %197 : vector<2x8x16xf32>
    %199 = tpu.concatenate %65, %84, %103, %122, %141, %160, %179, %198 in 2 : vector<2x8x16xf32>, vector<2x8x16xf32>, vector<2x8x16xf32>, vector<2x8x16xf32>, vector<2x8x16xf32>, vector<2x8x16xf32>, vector<2x8x16xf32>, vector<2x8x16xf32> -> vector<2x8x128xf32>
    %200 = vector.shape_cast %199 : vector<2x8x128xf32> to vector<16x128xf32>
    %201 = arith.truncf %200 : vector<16x128xf32> to vector<16x128xbf16>
    %cst_62 = arith.constant dense<0.000000e+00> : vector<16x128xf32>
    %202 = tpu.matmul %201, %3, %cst_62 {dimension_numbers = #tpu.dot_dimension_numbers<[1], [0], [0], [1], [0, 0, 1, 1], [], []>} : vector<16x128xbf16>, vector<128x128xbf16>, vector<16x128xf32> -> vector<16x128xf32>
    %203 = arith.addf %28, %202 : vector<16x128xf32>
    %204 = vector.broadcast %30 : vector<1x128xf32> to vector<16x128xf32>
    %205 = arith.addf %203, %204 : vector<16x128xf32>
    %cst_63 = arith.constant dense<0.000000e+00> : vector<16xf32>
    %206 = vector.multi_reduction <add>, %205, %cst_63 [1] : vector<16x128xf32> to vector<16xf32>
    %207 = vector.shape_cast %206 : vector<16xf32> to vector<16x1xf32>
    %cst_64 = arith.constant 1.280000e+02 : f32
    %208 = vector.broadcast %cst_64 : f32 to vector<16x1xf32>
    %209 = arith.divf %207, %208 : vector<16x1xf32>
    %210 = vector.broadcast %209 : vector<16x1xf32> to vector<16x128xf32>
    %211 = arith.subf %205, %210 : vector<16x128xf32>
    %212 = arith.mulf %211, %211 : vector<16x128xf32>
    %cst_65 = arith.constant dense<0.000000e+00> : vector<16xf32>
    %213 = vector.multi_reduction <add>, %212, %cst_65 [1] : vector<16x128xf32> to vector<16xf32>
    %214 = vector.shape_cast %213 : vector<16xf32> to vector<16x1xf32>
    %cst_66 = arith.constant 1.280000e+02 : f32
    %215 = vector.broadcast %cst_66 : f32 to vector<16x1xf32>
    %216 = arith.divf %214, %215 : vector<16x1xf32>
    %217 = vector.broadcast %209 : vector<16x1xf32> to vector<16x128xf32>
    %218 = arith.subf %205, %217 : vector<16x128xf32>
    %cst_67 = arith.constant 9.99999974E-6 : f32
    %219 = vector.broadcast %cst_67 : f32 to vector<16x1xf32>
    %220 = arith.addf %216, %219 : vector<16x1xf32>
    %221 = math.rsqrt %220 : vector<16x1xf32>
    %222 = vector.broadcast %221 : vector<16x1xf32> to vector<16x128xf32>
    %223 = arith.mulf %218, %222 : vector<16x128xf32>
    %224 = vector.broadcast %33 : vector<1x128xf32> to vector<16x128xf32>
    %225 = arith.mulf %223, %224 : vector<16x128xf32>
    %226 = vector.broadcast %34 : vector<1x128xf32> to vector<16x128xf32>
    %227 = arith.addf %225, %226 : vector<16x128xf32>
    %228 = arith.truncf %227 : vector<16x128xf32> to vector<16x128xbf16>
    %cst_68 = arith.constant dense<0.000000e+00> : vector<16x256xf32>
    %229 = tpu.matmul %228, %4, %cst_68 {dimension_numbers = #tpu.dot_dimension_numbers<[1], [0], [0], [1], [0, 0, 1, 1], [], []>} : vector<16x128xbf16>, vector<128x256xbf16>, vector<16x256xf32> -> vector<16x256xf32>
    %230 = vector.broadcast %31 : vector<1x256xf32> to vector<16x256xf32>
    %231 = arith.addf %229, %230 : vector<16x256xf32>
    %cst_69 = arith.constant 0.000000e+00 : f32
    %232 = vector.broadcast %cst_69 : f32 to vector<16x256xf32>
    %233 = arith.maximumf %231, %232 : vector<16x256xf32>
    %234 = arith.truncf %233 : vector<16x256xf32> to vector<16x256xbf16>
    %cst_70 = arith.constant dense<0.000000e+00> : vector<16x128xf32>
    %235 = tpu.matmul %234, %6, %cst_70 {dimension_numbers = #tpu.dot_dimension_numbers<[1], [0], [0], [1], [0, 0, 1, 1], [], []>} : vector<16x256xbf16>, vector<256x128xbf16>, vector<16x128xf32> -> vector<16x128xf32>
    %236 = arith.addf %227, %235 : vector<16x128xf32>
    %237 = vector.broadcast %32 : vector<1x128xf32> to vector<16x128xf32>
    %238 = arith.addf %236, %237 : vector<16x128xf32>
    %cst_71 = arith.constant dense<0.000000e+00> : vector<16xf32>
    %239 = vector.multi_reduction <add>, %238, %cst_71 [1] : vector<16x128xf32> to vector<16xf32>
    %240 = vector.shape_cast %239 : vector<16xf32> to vector<16x1xf32>
    %cst_72 = arith.constant 1.280000e+02 : f32
    %241 = vector.broadcast %cst_72 : f32 to vector<16x1xf32>
    %242 = arith.divf %240, %241 : vector<16x1xf32>
    %243 = vector.broadcast %242 : vector<16x1xf32> to vector<16x128xf32>
    %244 = arith.subf %238, %243 : vector<16x128xf32>
    %245 = arith.mulf %244, %244 : vector<16x128xf32>
    %cst_73 = arith.constant dense<0.000000e+00> : vector<16xf32>
    %246 = vector.multi_reduction <add>, %245, %cst_73 [1] : vector<16x128xf32> to vector<16xf32>
    %247 = vector.shape_cast %246 : vector<16xf32> to vector<16x1xf32>
    %cst_74 = arith.constant 1.280000e+02 : f32
    %248 = vector.broadcast %cst_74 : f32 to vector<16x1xf32>
    %249 = arith.divf %247, %248 : vector<16x1xf32>
    %250 = vector.broadcast %242 : vector<16x1xf32> to vector<16x128xf32>
    %251 = arith.subf %238, %250 : vector<16x128xf32>
    %cst_75 = arith.constant 9.99999974E-6 : f32
    %252 = vector.broadcast %cst_75 : f32 to vector<16x1xf32>
    %253 = arith.addf %249, %252 : vector<16x1xf32>
    %254 = math.rsqrt %253 : vector<16x1xf32>
    %255 = vector.broadcast %254 : vector<16x1xf32> to vector<16x128xf32>
    %256 = arith.mulf %251, %255 : vector<16x128xf32>
    %257 = vector.broadcast %35 : vector<1x128xf32> to vector<16x128xf32>
    %258 = arith.mulf %256, %257 : vector<16x128xf32>
    %259 = vector.broadcast %36 : vector<1x128xf32> to vector<16x128xf32>
    %260 = arith.addf %258, %259 : vector<16x128xf32>
    %261 = vector.extract_strided_slice %17 {offsets = [0, 0], sizes = [1, 384], strides = [1, 1]} : vector<8x384xf32> to vector<1x384xf32>
    %262 = vector.extract_strided_slice %17 {offsets = [1, 0], sizes = [1, 128], strides = [1, 1]} : vector<8x384xf32> to vector<1x128xf32>
    %263 = vector.extract_strided_slice %17 {offsets = [2, 0], sizes = [1, 256], strides = [1, 1]} : vector<8x384xf32> to vector<1x256xf32>
    %264 = vector.extract_strided_slice %17 {offsets = [3, 0], sizes = [1, 128], strides = [1, 1]} : vector<8x384xf32> to vector<1x128xf32>
    %265 = vector.extract_strided_slice %17 {offsets = [4, 0], sizes = [1, 128], strides = [1, 1]} : vector<8x384xf32> to vector<1x128xf32>
    %266 = vector.extract_strided_slice %17 {offsets = [5, 0], sizes = [1, 128], strides = [1, 1]} : vector<8x384xf32> to vector<1x128xf32>
    %267 = vector.extract_strided_slice %17 {offsets = [6, 0], sizes = [1, 128], strides = [1, 1]} : vector<8x384xf32> to vector<1x128xf32>
    %268 = vector.extract_strided_slice %17 {offsets = [7, 0], sizes = [1, 128], strides = [1, 1]} : vector<8x384xf32> to vector<1x128xf32>
    %269 = arith.truncf %260 : vector<16x128xf32> to vector<16x128xbf16>
    %cst_76 = arith.constant dense<0.000000e+00> : vector<16x384xf32>
    %270 = tpu.matmul %269, %11, %cst_76 {dimension_numbers = #tpu.dot_dimension_numbers<[1], [0], [0], [1], [0, 0, 1, 1], [], []>} : vector<16x128xbf16>, vector<128x384xbf16>, vector<16x384xf32> -> vector<16x384xf32>
    %271 = vector.broadcast %261 : vector<1x384xf32> to vector<16x384xf32>
    %272 = arith.addf %270, %271 : vector<16x384xf32>
    %273 = vector.extract_strided_slice %272 {offsets = [0, 0], sizes = [16, 128], strides = [1, 1]} : vector<16x384xf32> to vector<16x128xf32>
    %274 = vector.shape_cast %273 : vector<16x128xf32> to vector<2x8x128xf32>
    %275 = vector.extract_strided_slice %272 {offsets = [0, 128], sizes = [16, 128], strides = [1, 1]} : vector<16x384xf32> to vector<16x128xf32>
    %276 = vector.shape_cast %275 : vector<16x128xf32> to vector<2x8x128xf32>
    %277 = vector.extract_strided_slice %272 {offsets = [0, 256], sizes = [16, 128], strides = [1, 1]} : vector<16x384xf32> to vector<16x128xf32>
    %278 = vector.shape_cast %277 : vector<16x128xf32> to vector<2x8x128xf32>
    %279 = vector.extract_strided_slice %274 {offsets = [0, 0, 0], sizes = [2, 8, 16], strides = [1, 1, 1]} : vector<2x8x128xf32> to vector<2x8x16xf32>
    %280 = arith.truncf %279 : vector<2x8x16xf32> to vector<2x8x16xbf16>
    %281 = vector.extract_strided_slice %276 {offsets = [0, 0, 0], sizes = [2, 8, 16], strides = [1, 1, 1]} : vector<2x8x128xf32> to vector<2x8x16xf32>
    %282 = arith.truncf %281 : vector<2x8x16xf32> to vector<2x8x16xbf16>
    %283 = vector.extract_strided_slice %278 {offsets = [0, 0, 0], sizes = [2, 8, 16], strides = [1, 1, 1]} : vector<2x8x128xf32> to vector<2x8x16xf32>
    %284 = arith.truncf %283 : vector<2x8x16xf32> to vector<2x8x16xbf16>
    %cst_77 = arith.constant dense<0.000000e+00> : vector<2x8x8xf32>
    %285 = tpu.matmul %280, %282, %cst_77 {dimension_numbers = #tpu.dot_dimension_numbers<[2], [2], [1], [1], [0, 0, 0, 1, 1, 1], [0], [0]>} : vector<2x8x16xbf16>, vector<2x8x16xbf16>, vector<2x8x8xf32> -> vector<2x8x8xf32>
    %cst_78 = arith.constant dense<0xFF800000> : vector<2x8xf32>
    %286 = vector.multi_reduction <maximumf>, %285, %cst_78 [2] : vector<2x8x8xf32> to vector<2x8xf32>
    %287 = vector.shape_cast %286 : vector<2x8xf32> to vector<2x8x1xf32>
    %288 = vector.broadcast %287 : vector<2x8x1xf32> to vector<2x8x8xf32>
    %289 = arith.subf %285, %288 : vector<2x8x8xf32>
    %290 = math.exp %289 : vector<2x8x8xf32>
    %291 = arith.truncf %290 : vector<2x8x8xf32> to vector<2x8x8xbf16>
    %cst_79 = arith.constant dense<0.000000e+00> : vector<2x8x16xf32>
    %292 = tpu.matmul %291, %284, %cst_79 {dimension_numbers = #tpu.dot_dimension_numbers<[2], [1], [1], [2], [0, 0, 0, 1, 1, 2], [0], [0]>} : vector<2x8x8xbf16>, vector<2x8x16xbf16>, vector<2x8x16xf32> -> vector<2x8x16xf32>
    %cst_80 = arith.constant dense<0.000000e+00> : vector<2x8xf32>
    %293 = vector.multi_reduction <add>, %290, %cst_80 [2] : vector<2x8x8xf32> to vector<2x8xf32>
    %294 = vector.shape_cast %293 : vector<2x8xf32> to vector<2x8x1xf32>
    %295 = tpu.reciprocal %294 {approx = true} : vector<2x8x1xf32> -> vector<2x8x1xf32>
    %296 = vector.broadcast %295 : vector<2x8x1xf32> to vector<2x8x16xf32>
    %297 = arith.mulf %292, %296 : vector<2x8x16xf32>
    %298 = vector.extract_strided_slice %274 {offsets = [0, 0, 16], sizes = [2, 8, 16], strides = [1, 1, 1]} : vector<2x8x128xf32> to vector<2x8x16xf32>
    %299 = arith.truncf %298 : vector<2x8x16xf32> to vector<2x8x16xbf16>
    %300 = vector.extract_strided_slice %276 {offsets = [0, 0, 16], sizes = [2, 8, 16], strides = [1, 1, 1]} : vector<2x8x128xf32> to vector<2x8x16xf32>
    %301 = arith.truncf %300 : vector<2x8x16xf32> to vector<2x8x16xbf16>
    %302 = vector.extract_strided_slice %278 {offsets = [0, 0, 16], sizes = [2, 8, 16], strides = [1, 1, 1]} : vector<2x8x128xf32> to vector<2x8x16xf32>
    %303 = arith.truncf %302 : vector<2x8x16xf32> to vector<2x8x16xbf16>
    %cst_81 = arith.constant dense<0.000000e+00> : vector<2x8x8xf32>
    %304 = tpu.matmul %299, %301, %cst_81 {dimension_numbers = #tpu.dot_dimension_numbers<[2], [2], [1], [1], [0, 0, 0, 1, 1, 1], [0], [0]>} : vector<2x8x16xbf16>, vector<2x8x16xbf16>, vector<2x8x8xf32> -> vector<2x8x8xf32>
    %cst_82 = arith.constant dense<0xFF800000> : vector<2x8xf32>
    %305 = vector.multi_reduction <maximumf>, %304, %cst_82 [2] : vector<2x8x8xf32> to vector<2x8xf32>
    %306 = vector.shape_cast %305 : vector<2x8xf32> to vector<2x8x1xf32>
    %307 = vector.broadcast %306 : vector<2x8x1xf32> to vector<2x8x8xf32>
    %308 = arith.subf %304, %307 : vector<2x8x8xf32>
    %309 = math.exp %308 : vector<2x8x8xf32>
    %310 = arith.truncf %309 : vector<2x8x8xf32> to vector<2x8x8xbf16>
    %cst_83 = arith.constant dense<0.000000e+00> : vector<2x8x16xf32>
    %311 = tpu.matmul %310, %303, %cst_83 {dimension_numbers = #tpu.dot_dimension_numbers<[2], [1], [1], [2], [0, 0, 0, 1, 1, 2], [0], [0]>} : vector<2x8x8xbf16>, vector<2x8x16xbf16>, vector<2x8x16xf32> -> vector<2x8x16xf32>
    %cst_84 = arith.constant dense<0.000000e+00> : vector<2x8xf32>
    %312 = vector.multi_reduction <add>, %309, %cst_84 [2] : vector<2x8x8xf32> to vector<2x8xf32>
    %313 = vector.shape_cast %312 : vector<2x8xf32> to vector<2x8x1xf32>
    %314 = tpu.reciprocal %313 {approx = true} : vector<2x8x1xf32> -> vector<2x8x1xf32>
    %315 = vector.broadcast %314 : vector<2x8x1xf32> to vector<2x8x16xf32>
    %316 = arith.mulf %311, %315 : vector<2x8x16xf32>
    %317 = vector.extract_strided_slice %274 {offsets = [0, 0, 32], sizes = [2, 8, 16], strides = [1, 1, 1]} : vector<2x8x128xf32> to vector<2x8x16xf32>
    %318 = arith.truncf %317 : vector<2x8x16xf32> to vector<2x8x16xbf16>
    %319 = vector.extract_strided_slice %276 {offsets = [0, 0, 32], sizes = [2, 8, 16], strides = [1, 1, 1]} : vector<2x8x128xf32> to vector<2x8x16xf32>
    %320 = arith.truncf %319 : vector<2x8x16xf32> to vector<2x8x16xbf16>
    %321 = vector.extract_strided_slice %278 {offsets = [0, 0, 32], sizes = [2, 8, 16], strides = [1, 1, 1]} : vector<2x8x128xf32> to vector<2x8x16xf32>
    %322 = arith.truncf %321 : vector<2x8x16xf32> to vector<2x8x16xbf16>
    %cst_85 = arith.constant dense<0.000000e+00> : vector<2x8x8xf32>
    %323 = tpu.matmul %318, %320, %cst_85 {dimension_numbers = #tpu.dot_dimension_numbers<[2], [2], [1], [1], [0, 0, 0, 1, 1, 1], [0], [0]>} : vector<2x8x16xbf16>, vector<2x8x16xbf16>, vector<2x8x8xf32> -> vector<2x8x8xf32>
    %cst_86 = arith.constant dense<0xFF800000> : vector<2x8xf32>
    %324 = vector.multi_reduction <maximumf>, %323, %cst_86 [2] : vector<2x8x8xf32> to vector<2x8xf32>
    %325 = vector.shape_cast %324 : vector<2x8xf32> to vector<2x8x1xf32>
    %326 = vector.broadcast %325 : vector<2x8x1xf32> to vector<2x8x8xf32>
    %327 = arith.subf %323, %326 : vector<2x8x8xf32>
    %328 = math.exp %327 : vector<2x8x8xf32>
    %329 = arith.truncf %328 : vector<2x8x8xf32> to vector<2x8x8xbf16>
    %cst_87 = arith.constant dense<0.000000e+00> : vector<2x8x16xf32>
    %330 = tpu.matmul %329, %322, %cst_87 {dimension_numbers = #tpu.dot_dimension_numbers<[2], [1], [1], [2], [0, 0, 0, 1, 1, 2], [0], [0]>} : vector<2x8x8xbf16>, vector<2x8x16xbf16>, vector<2x8x16xf32> -> vector<2x8x16xf32>
    %cst_88 = arith.constant dense<0.000000e+00> : vector<2x8xf32>
    %331 = vector.multi_reduction <add>, %328, %cst_88 [2] : vector<2x8x8xf32> to vector<2x8xf32>
    %332 = vector.shape_cast %331 : vector<2x8xf32> to vector<2x8x1xf32>
    %333 = tpu.reciprocal %332 {approx = true} : vector<2x8x1xf32> -> vector<2x8x1xf32>
    %334 = vector.broadcast %333 : vector<2x8x1xf32> to vector<2x8x16xf32>
    %335 = arith.mulf %330, %334 : vector<2x8x16xf32>
    %336 = vector.extract_strided_slice %274 {offsets = [0, 0, 48], sizes = [2, 8, 16], strides = [1, 1, 1]} : vector<2x8x128xf32> to vector<2x8x16xf32>
    %337 = arith.truncf %336 : vector<2x8x16xf32> to vector<2x8x16xbf16>
    %338 = vector.extract_strided_slice %276 {offsets = [0, 0, 48], sizes = [2, 8, 16], strides = [1, 1, 1]} : vector<2x8x128xf32> to vector<2x8x16xf32>
    %339 = arith.truncf %338 : vector<2x8x16xf32> to vector<2x8x16xbf16>
    %340 = vector.extract_strided_slice %278 {offsets = [0, 0, 48], sizes = [2, 8, 16], strides = [1, 1, 1]} : vector<2x8x128xf32> to vector<2x8x16xf32>
    %341 = arith.truncf %340 : vector<2x8x16xf32> to vector<2x8x16xbf16>
    %cst_89 = arith.constant dense<0.000000e+00> : vector<2x8x8xf32>
    %342 = tpu.matmul %337, %339, %cst_89 {dimension_numbers = #tpu.dot_dimension_numbers<[2], [2], [1], [1], [0, 0, 0, 1, 1, 1], [0], [0]>} : vector<2x8x16xbf16>, vector<2x8x16xbf16>, vector<2x8x8xf32> -> vector<2x8x8xf32>
    %cst_90 = arith.constant dense<0xFF800000> : vector<2x8xf32>
    %343 = vector.multi_reduction <maximumf>, %342, %cst_90 [2] : vector<2x8x8xf32> to vector<2x8xf32>
    %344 = vector.shape_cast %343 : vector<2x8xf32> to vector<2x8x1xf32>
    %345 = vector.broadcast %344 : vector<2x8x1xf32> to vector<2x8x8xf32>
    %346 = arith.subf %342, %345 : vector<2x8x8xf32>
    %347 = math.exp %346 : vector<2x8x8xf32>
    %348 = arith.truncf %347 : vector<2x8x8xf32> to vector<2x8x8xbf16>
    %cst_91 = arith.constant dense<0.000000e+00> : vector<2x8x16xf32>
    %349 = tpu.matmul %348, %341, %cst_91 {dimension_numbers = #tpu.dot_dimension_numbers<[2], [1], [1], [2], [0, 0, 0, 1, 1, 2], [0], [0]>} : vector<2x8x8xbf16>, vector<2x8x16xbf16>, vector<2x8x16xf32> -> vector<2x8x16xf32>
    %cst_92 = arith.constant dense<0.000000e+00> : vector<2x8xf32>
    %350 = vector.multi_reduction <add>, %347, %cst_92 [2] : vector<2x8x8xf32> to vector<2x8xf32>
    %351 = vector.shape_cast %350 : vector<2x8xf32> to vector<2x8x1xf32>
    %352 = tpu.reciprocal %351 {approx = true} : vector<2x8x1xf32> -> vector<2x8x1xf32>
    %353 = vector.broadcast %352 : vector<2x8x1xf32> to vector<2x8x16xf32>
    %354 = arith.mulf %349, %353 : vector<2x8x16xf32>
    %355 = vector.extract_strided_slice %274 {offsets = [0, 0, 64], sizes = [2, 8, 16], strides = [1, 1, 1]} : vector<2x8x128xf32> to vector<2x8x16xf32>
    %356 = arith.truncf %355 : vector<2x8x16xf32> to vector<2x8x16xbf16>
    %357 = vector.extract_strided_slice %276 {offsets = [0, 0, 64], sizes = [2, 8, 16], strides = [1, 1, 1]} : vector<2x8x128xf32> to vector<2x8x16xf32>
    %358 = arith.truncf %357 : vector<2x8x16xf32> to vector<2x8x16xbf16>
    %359 = vector.extract_strided_slice %278 {offsets = [0, 0, 64], sizes = [2, 8, 16], strides = [1, 1, 1]} : vector<2x8x128xf32> to vector<2x8x16xf32>
    %360 = arith.truncf %359 : vector<2x8x16xf32> to vector<2x8x16xbf16>
    %cst_93 = arith.constant dense<0.000000e+00> : vector<2x8x8xf32>
    %361 = tpu.matmul %356, %358, %cst_93 {dimension_numbers = #tpu.dot_dimension_numbers<[2], [2], [1], [1], [0, 0, 0, 1, 1, 1], [0], [0]>} : vector<2x8x16xbf16>, vector<2x8x16xbf16>, vector<2x8x8xf32> -> vector<2x8x8xf32>
    %cst_94 = arith.constant dense<0xFF800000> : vector<2x8xf32>
    %362 = vector.multi_reduction <maximumf>, %361, %cst_94 [2] : vector<2x8x8xf32> to vector<2x8xf32>
    %363 = vector.shape_cast %362 : vector<2x8xf32> to vector<2x8x1xf32>
    %364 = vector.broadcast %363 : vector<2x8x1xf32> to vector<2x8x8xf32>
    %365 = arith.subf %361, %364 : vector<2x8x8xf32>
    %366 = math.exp %365 : vector<2x8x8xf32>
    %367 = arith.truncf %366 : vector<2x8x8xf32> to vector<2x8x8xbf16>
    %cst_95 = arith.constant dense<0.000000e+00> : vector<2x8x16xf32>
    %368 = tpu.matmul %367, %360, %cst_95 {dimension_numbers = #tpu.dot_dimension_numbers<[2], [1], [1], [2], [0, 0, 0, 1, 1, 2], [0], [0]>} : vector<2x8x8xbf16>, vector<2x8x16xbf16>, vector<2x8x16xf32> -> vector<2x8x16xf32>
    %cst_96 = arith.constant dense<0.000000e+00> : vector<2x8xf32>
    %369 = vector.multi_reduction <add>, %366, %cst_96 [2] : vector<2x8x8xf32> to vector<2x8xf32>
    %370 = vector.shape_cast %369 : vector<2x8xf32> to vector<2x8x1xf32>
    %371 = tpu.reciprocal %370 {approx = true} : vector<2x8x1xf32> -> vector<2x8x1xf32>
    %372 = vector.broadcast %371 : vector<2x8x1xf32> to vector<2x8x16xf32>
    %373 = arith.mulf %368, %372 : vector<2x8x16xf32>
    %374 = vector.extract_strided_slice %274 {offsets = [0, 0, 80], sizes = [2, 8, 16], strides = [1, 1, 1]} : vector<2x8x128xf32> to vector<2x8x16xf32>
    %375 = arith.truncf %374 : vector<2x8x16xf32> to vector<2x8x16xbf16>
    %376 = vector.extract_strided_slice %276 {offsets = [0, 0, 80], sizes = [2, 8, 16], strides = [1, 1, 1]} : vector<2x8x128xf32> to vector<2x8x16xf32>
    %377 = arith.truncf %376 : vector<2x8x16xf32> to vector<2x8x16xbf16>
    %378 = vector.extract_strided_slice %278 {offsets = [0, 0, 80], sizes = [2, 8, 16], strides = [1, 1, 1]} : vector<2x8x128xf32> to vector<2x8x16xf32>
    %379 = arith.truncf %378 : vector<2x8x16xf32> to vector<2x8x16xbf16>
    %cst_97 = arith.constant dense<0.000000e+00> : vector<2x8x8xf32>
    %380 = tpu.matmul %375, %377, %cst_97 {dimension_numbers = #tpu.dot_dimension_numbers<[2], [2], [1], [1], [0, 0, 0, 1, 1, 1], [0], [0]>} : vector<2x8x16xbf16>, vector<2x8x16xbf16>, vector<2x8x8xf32> -> vector<2x8x8xf32>
    %cst_98 = arith.constant dense<0xFF800000> : vector<2x8xf32>
    %381 = vector.multi_reduction <maximumf>, %380, %cst_98 [2] : vector<2x8x8xf32> to vector<2x8xf32>
    %382 = vector.shape_cast %381 : vector<2x8xf32> to vector<2x8x1xf32>
    %383 = vector.broadcast %382 : vector<2x8x1xf32> to vector<2x8x8xf32>
    %384 = arith.subf %380, %383 : vector<2x8x8xf32>
    %385 = math.exp %384 : vector<2x8x8xf32>
    %386 = arith.truncf %385 : vector<2x8x8xf32> to vector<2x8x8xbf16>
    %cst_99 = arith.constant dense<0.000000e+00> : vector<2x8x16xf32>
    %387 = tpu.matmul %386, %379, %cst_99 {dimension_numbers = #tpu.dot_dimension_numbers<[2], [1], [1], [2], [0, 0, 0, 1, 1, 2], [0], [0]>} : vector<2x8x8xbf16>, vector<2x8x16xbf16>, vector<2x8x16xf32> -> vector<2x8x16xf32>
    %cst_100 = arith.constant dense<0.000000e+00> : vector<2x8xf32>
    %388 = vector.multi_reduction <add>, %385, %cst_100 [2] : vector<2x8x8xf32> to vector<2x8xf32>
    %389 = vector.shape_cast %388 : vector<2x8xf32> to vector<2x8x1xf32>
    %390 = tpu.reciprocal %389 {approx = true} : vector<2x8x1xf32> -> vector<2x8x1xf32>
    %391 = vector.broadcast %390 : vector<2x8x1xf32> to vector<2x8x16xf32>
    %392 = arith.mulf %387, %391 : vector<2x8x16xf32>
    %393 = vector.extract_strided_slice %274 {offsets = [0, 0, 96], sizes = [2, 8, 16], strides = [1, 1, 1]} : vector<2x8x128xf32> to vector<2x8x16xf32>
    %394 = arith.truncf %393 : vector<2x8x16xf32> to vector<2x8x16xbf16>
    %395 = vector.extract_strided_slice %276 {offsets = [0, 0, 96], sizes = [2, 8, 16], strides = [1, 1, 1]} : vector<2x8x128xf32> to vector<2x8x16xf32>
    %396 = arith.truncf %395 : vector<2x8x16xf32> to vector<2x8x16xbf16>
    %397 = vector.extract_strided_slice %278 {offsets = [0, 0, 96], sizes = [2, 8, 16], strides = [1, 1, 1]} : vector<2x8x128xf32> to vector<2x8x16xf32>
    %398 = arith.truncf %397 : vector<2x8x16xf32> to vector<2x8x16xbf16>
    %cst_101 = arith.constant dense<0.000000e+00> : vector<2x8x8xf32>
    %399 = tpu.matmul %394, %396, %cst_101 {dimension_numbers = #tpu.dot_dimension_numbers<[2], [2], [1], [1], [0, 0, 0, 1, 1, 1], [0], [0]>} : vector<2x8x16xbf16>, vector<2x8x16xbf16>, vector<2x8x8xf32> -> vector<2x8x8xf32>
    %cst_102 = arith.constant dense<0xFF800000> : vector<2x8xf32>
    %400 = vector.multi_reduction <maximumf>, %399, %cst_102 [2] : vector<2x8x8xf32> to vector<2x8xf32>
    %401 = vector.shape_cast %400 : vector<2x8xf32> to vector<2x8x1xf32>
    %402 = vector.broadcast %401 : vector<2x8x1xf32> to vector<2x8x8xf32>
    %403 = arith.subf %399, %402 : vector<2x8x8xf32>
    %404 = math.exp %403 : vector<2x8x8xf32>
    %405 = arith.truncf %404 : vector<2x8x8xf32> to vector<2x8x8xbf16>
    %cst_103 = arith.constant dense<0.000000e+00> : vector<2x8x16xf32>
    %406 = tpu.matmul %405, %398, %cst_103 {dimension_numbers = #tpu.dot_dimension_numbers<[2], [1], [1], [2], [0, 0, 0, 1, 1, 2], [0], [0]>} : vector<2x8x8xbf16>, vector<2x8x16xbf16>, vector<2x8x16xf32> -> vector<2x8x16xf32>
    %cst_104 = arith.constant dense<0.000000e+00> : vector<2x8xf32>
    %407 = vector.multi_reduction <add>, %404, %cst_104 [2] : vector<2x8x8xf32> to vector<2x8xf32>
    %408 = vector.shape_cast %407 : vector<2x8xf32> to vector<2x8x1xf32>
    %409 = tpu.reciprocal %408 {approx = true} : vector<2x8x1xf32> -> vector<2x8x1xf32>
    %410 = vector.broadcast %409 : vector<2x8x1xf32> to vector<2x8x16xf32>
    %411 = arith.mulf %406, %410 : vector<2x8x16xf32>
    %412 = vector.extract_strided_slice %274 {offsets = [0, 0, 112], sizes = [2, 8, 16], strides = [1, 1, 1]} : vector<2x8x128xf32> to vector<2x8x16xf32>
    %413 = arith.truncf %412 : vector<2x8x16xf32> to vector<2x8x16xbf16>
    %414 = vector.extract_strided_slice %276 {offsets = [0, 0, 112], sizes = [2, 8, 16], strides = [1, 1, 1]} : vector<2x8x128xf32> to vector<2x8x16xf32>
    %415 = arith.truncf %414 : vector<2x8x16xf32> to vector<2x8x16xbf16>
    %416 = vector.extract_strided_slice %278 {offsets = [0, 0, 112], sizes = [2, 8, 16], strides = [1, 1, 1]} : vector<2x8x128xf32> to vector<2x8x16xf32>
    %417 = arith.truncf %416 : vector<2x8x16xf32> to vector<2x8x16xbf16>
    %cst_105 = arith.constant dense<0.000000e+00> : vector<2x8x8xf32>
    %418 = tpu.matmul %413, %415, %cst_105 {dimension_numbers = #tpu.dot_dimension_numbers<[2], [2], [1], [1], [0, 0, 0, 1, 1, 1], [0], [0]>} : vector<2x8x16xbf16>, vector<2x8x16xbf16>, vector<2x8x8xf32> -> vector<2x8x8xf32>
    %cst_106 = arith.constant dense<0xFF800000> : vector<2x8xf32>
    %419 = vector.multi_reduction <maximumf>, %418, %cst_106 [2] : vector<2x8x8xf32> to vector<2x8xf32>
    %420 = vector.shape_cast %419 : vector<2x8xf32> to vector<2x8x1xf32>
    %421 = vector.broadcast %420 : vector<2x8x1xf32> to vector<2x8x8xf32>
    %422 = arith.subf %418, %421 : vector<2x8x8xf32>
    %423 = math.exp %422 : vector<2x8x8xf32>
    %424 = arith.truncf %423 : vector<2x8x8xf32> to vector<2x8x8xbf16>
    %cst_107 = arith.constant dense<0.000000e+00> : vector<2x8x16xf32>
    %425 = tpu.matmul %424, %417, %cst_107 {dimension_numbers = #tpu.dot_dimension_numbers<[2], [1], [1], [2], [0, 0, 0, 1, 1, 2], [0], [0]>} : vector<2x8x8xbf16>, vector<2x8x16xbf16>, vector<2x8x16xf32> -> vector<2x8x16xf32>
    %cst_108 = arith.constant dense<0.000000e+00> : vector<2x8xf32>
    %426 = vector.multi_reduction <add>, %423, %cst_108 [2] : vector<2x8x8xf32> to vector<2x8xf32>
    %427 = vector.shape_cast %426 : vector<2x8xf32> to vector<2x8x1xf32>
    %428 = tpu.reciprocal %427 {approx = true} : vector<2x8x1xf32> -> vector<2x8x1xf32>
    %429 = vector.broadcast %428 : vector<2x8x1xf32> to vector<2x8x16xf32>
    %430 = arith.mulf %425, %429 : vector<2x8x16xf32>
    %431 = tpu.concatenate %297, %316, %335, %354, %373, %392, %411, %430 in 2 : vector<2x8x16xf32>, vector<2x8x16xf32>, vector<2x8x16xf32>, vector<2x8x16xf32>, vector<2x8x16xf32>, vector<2x8x16xf32>, vector<2x8x16xf32>, vector<2x8x16xf32> -> vector<2x8x128xf32>
    %432 = vector.shape_cast %431 : vector<2x8x128xf32> to vector<16x128xf32>
    %433 = arith.truncf %432 : vector<16x128xf32> to vector<16x128xbf16>
    %cst_109 = arith.constant dense<0.000000e+00> : vector<16x128xf32>
    %434 = tpu.matmul %433, %12, %cst_109 {dimension_numbers = #tpu.dot_dimension_numbers<[1], [0], [0], [1], [0, 0, 1, 1], [], []>} : vector<16x128xbf16>, vector<128x128xbf16>, vector<16x128xf32> -> vector<16x128xf32>
    %435 = arith.addf %260, %434 : vector<16x128xf32>
    %436 = vector.broadcast %262 : vector<1x128xf32> to vector<16x128xf32>
    %437 = arith.addf %435, %436 : vector<16x128xf32>
    %cst_110 = arith.constant dense<0.000000e+00> : vector<16xf32>
    %438 = vector.multi_reduction <add>, %437, %cst_110 [1] : vector<16x128xf32> to vector<16xf32>
    %439 = vector.shape_cast %438 : vector<16xf32> to vector<16x1xf32>
    %cst_111 = arith.constant 1.280000e+02 : f32
    %440 = vector.broadcast %cst_111 : f32 to vector<16x1xf32>
    %441 = arith.divf %439, %440 : vector<16x1xf32>
    %442 = vector.broadcast %441 : vector<16x1xf32> to vector<16x128xf32>
    %443 = arith.subf %437, %442 : vector<16x128xf32>
    %444 = arith.mulf %443, %443 : vector<16x128xf32>
    %cst_112 = arith.constant dense<0.000000e+00> : vector<16xf32>
    %445 = vector.multi_reduction <add>, %444, %cst_112 [1] : vector<16x128xf32> to vector<16xf32>
    %446 = vector.shape_cast %445 : vector<16xf32> to vector<16x1xf32>
    %cst_113 = arith.constant 1.280000e+02 : f32
    %447 = vector.broadcast %cst_113 : f32 to vector<16x1xf32>
    %448 = arith.divf %446, %447 : vector<16x1xf32>
    %449 = vector.broadcast %441 : vector<16x1xf32> to vector<16x128xf32>
    %450 = arith.subf %437, %449 : vector<16x128xf32>
    %cst_114 = arith.constant 9.99999974E-6 : f32
    %451 = vector.broadcast %cst_114 : f32 to vector<16x1xf32>
    %452 = arith.addf %448, %451 : vector<16x1xf32>
    %453 = math.rsqrt %452 : vector<16x1xf32>
    %454 = vector.broadcast %453 : vector<16x1xf32> to vector<16x128xf32>
    %455 = arith.mulf %450, %454 : vector<16x128xf32>
    %456 = vector.broadcast %265 : vector<1x128xf32> to vector<16x128xf32>
    %457 = arith.mulf %455, %456 : vector<16x128xf32>
    %458 = vector.broadcast %266 : vector<1x128xf32> to vector<16x128xf32>
    %459 = arith.addf %457, %458 : vector<16x128xf32>
    %460 = arith.truncf %459 : vector<16x128xf32> to vector<16x128xbf16>
    %cst_115 = arith.constant dense<0.000000e+00> : vector<16x256xf32>
    %461 = tpu.matmul %460, %13, %cst_115 {dimension_numbers = #tpu.dot_dimension_numbers<[1], [0], [0], [1], [0, 0, 1, 1], [], []>} : vector<16x128xbf16>, vector<128x256xbf16>, vector<16x256xf32> -> vector<16x256xf32>
    %462 = vector.broadcast %263 : vector<1x256xf32> to vector<16x256xf32>
    %463 = arith.addf %461, %462 : vector<16x256xf32>
    %cst_116 = arith.constant 0.000000e+00 : f32
    %464 = vector.broadcast %cst_116 : f32 to vector<16x256xf32>
    %465 = arith.maximumf %463, %464 : vector<16x256xf32>
    %466 = arith.truncf %465 : vector<16x256xf32> to vector<16x256xbf16>
    %cst_117 = arith.constant dense<0.000000e+00> : vector<16x128xf32>
    %467 = tpu.matmul %466, %15, %cst_117 {dimension_numbers = #tpu.dot_dimension_numbers<[1], [0], [0], [1], [0, 0, 1, 1], [], []>} : vector<16x256xbf16>, vector<256x128xbf16>, vector<16x128xf32> -> vector<16x128xf32>
    %468 = arith.addf %459, %467 : vector<16x128xf32>
    %469 = vector.broadcast %264 : vector<1x128xf32> to vector<16x128xf32>
    %470 = arith.addf %468, %469 : vector<16x128xf32>
    %cst_118 = arith.constant dense<0.000000e+00> : vector<16xf32>
    %471 = vector.multi_reduction <add>, %470, %cst_118 [1] : vector<16x128xf32> to vector<16xf32>
    %472 = vector.shape_cast %471 : vector<16xf32> to vector<16x1xf32>
    %cst_119 = arith.constant 1.280000e+02 : f32
    %473 = vector.broadcast %cst_119 : f32 to vector<16x1xf32>
    %474 = arith.divf %472, %473 : vector<16x1xf32>
    %475 = vector.broadcast %474 : vector<16x1xf32> to vector<16x128xf32>
    %476 = arith.subf %470, %475 : vector<16x128xf32>
    %477 = arith.mulf %476, %476 : vector<16x128xf32>
    %cst_120 = arith.constant dense<0.000000e+00> : vector<16xf32>
    %478 = vector.multi_reduction <add>, %477, %cst_120 [1] : vector<16x128xf32> to vector<16xf32>
    %479 = vector.shape_cast %478 : vector<16xf32> to vector<16x1xf32>
    %cst_121 = arith.constant 1.280000e+02 : f32
    %480 = vector.broadcast %cst_121 : f32 to vector<16x1xf32>
    %481 = arith.divf %479, %480 : vector<16x1xf32>
    %482 = vector.broadcast %474 : vector<16x1xf32> to vector<16x128xf32>
    %483 = arith.subf %470, %482 : vector<16x128xf32>
    %cst_122 = arith.constant 9.99999974E-6 : f32
    %484 = vector.broadcast %cst_122 : f32 to vector<16x1xf32>
    %485 = arith.addf %481, %484 : vector<16x1xf32>
    %486 = math.rsqrt %485 : vector<16x1xf32>
    %487 = vector.broadcast %486 : vector<16x1xf32> to vector<16x128xf32>
    %488 = arith.mulf %483, %487 : vector<16x128xf32>
    %489 = vector.broadcast %267 : vector<1x128xf32> to vector<16x128xf32>
    %490 = arith.mulf %488, %489 : vector<16x128xf32>
    %491 = vector.broadcast %268 : vector<1x128xf32> to vector<16x128xf32>
    %492 = arith.addf %490, %491 : vector<16x128xf32>
    %493 = vector.shape_cast %492 : vector<16x128xf32> to vector<2x8x128xf32>
    %cst_123 = arith.constant dense<0.000000e+00> : vector<2x128xf32>
    %494 = vector.multi_reduction <add>, %493, %cst_123 [1] : vector<2x8x128xf32> to vector<2x128xf32>
    %cst_124 = arith.constant 8.000000e+00 : f32
    %495 = vector.broadcast %cst_124 : f32 to vector<2x128xf32>
    %496 = arith.divf %494, %495 : vector<2x128xf32>
    %497 = vector.extract_strided_slice %22 {offsets = [0, 0, 0], sizes = [1, 128, 128], strides = [1, 1, 1]} : vector<2x128x128xbf16> to vector<1x128x128xbf16>
    %498 = vector.shape_cast %497 : vector<1x128x128xbf16> to vector<128x128xbf16>
    %499 = arith.truncf %496 : vector<2x128xf32> to vector<2x128xbf16>
    %cst_125 = arith.constant dense<0.000000e+00> : vector<2x128xf32>
    %500 = tpu.matmul %499, %498, %cst_125 {dimension_numbers = #tpu.dot_dimension_numbers<[1], [0], [0], [1], [0, 0, 1, 1], [], []>} : vector<2x128xbf16>, vector<128x128xbf16>, vector<2x128xf32> -> vector<2x128xf32>
    %501 = vector.extract_strided_slice %23 {offsets = [0, 0], sizes = [1, 128], strides = [1, 1]} : vector<2x128xf32> to vector<1x128xf32>
    %502 = vector.broadcast %501 : vector<1x128xf32> to vector<2x128xf32>
    %503 = arith.addf %500, %502 : vector<2x128xf32>
    %cst_126 = arith.constant 0.000000e+00 : f32
    %504 = vector.broadcast %cst_126 : f32 to vector<2x128xf32>
    %505 = arith.maximumf %503, %504 : vector<2x128xf32>
    %506 = vector.extract_strided_slice %22 {offsets = [1, 0, 0], sizes = [1, 128, 128], strides = [1, 1, 1]} : vector<2x128x128xbf16> to vector<1x128x128xbf16>
    %507 = vector.shape_cast %506 : vector<1x128x128xbf16> to vector<128x128xbf16>
    %508 = arith.truncf %505 : vector<2x128xf32> to vector<2x128xbf16>
    %cst_127 = arith.constant dense<0.000000e+00> : vector<2x128xf32>
    %509 = tpu.matmul %508, %507, %cst_127 {dimension_numbers = #tpu.dot_dimension_numbers<[1], [0], [0], [1], [0, 0, 1, 1], [], []>} : vector<2x128xbf16>, vector<128x128xbf16>, vector<2x128xf32> -> vector<2x128xf32>
    %510 = vector.extract_strided_slice %23 {offsets = [1, 0], sizes = [1, 128], strides = [1, 1]} : vector<2x128xf32> to vector<1x128xf32>
    %511 = vector.broadcast %510 : vector<1x128xf32> to vector<2x128xf32>
    %512 = arith.addf %509, %511 : vector<2x128xf32>
    %513 = arith.negf %512 : vector<2x128xf32>
    %514 = math.exp %513 : vector<2x128xf32>
    %cst_128 = arith.constant 1.000000e+00 : f32
    %515 = vector.broadcast %cst_128 : f32 to vector<2x128xf32>
    %516 = arith.addf %515, %514 : vector<2x128xf32>
    %517 = arith.divf %515, %516 : vector<2x128xf32>
    %c0_129 = arith.constant 0 : index
    %c0_130 = arith.constant 0 : index
    %c0_131 = arith.constant 0 : index
    %518 = vector.load %arg10[%c0_129, %c0_130, %c0_131] : memref<1x2x128xf32, #tpu.memory_space<vmem>>, vector<1x2x128xf32>
    %519 = vector.shape_cast %518 : vector<1x2x128xf32> to vector<2x128xf32>
    %520 = vector.shape_cast %517 : vector<2x128xf32> to vector<1x2x128xf32>
    tpu.vector_store %arg10[%c0_129, %c0_130, %c0_131], %520 {strides = array<i32>} : memref<1x2x128xf32, #tpu.memory_space<vmem>>, vector<1x2x128xf32>,
    return
  }
  func.func @transform_0(%arg0: i32) -> (i32, i32) {
    %c0_i32 = arith.constant 0 : i32
    %c0_i32_0 = arith.constant 0 : i32
    return %arg0, %c0_i32 : i32, i32
  }
  func.func @transform_1(%arg0: i32) -> (i32, i32) {
    %c0_i32 = arith.constant 0 : i32
    %c0_i32_0 = arith.constant 0 : i32
    %c0_i32_1 = arith.constant 0 : i32
    return %c0_i32, %c0_i32_0 : i32, i32
  }
  func.func @transform_2(%arg0: i32) -> (i32, i32) {
    %c0_i32 = arith.constant 0 : i32
    %c0_i32_0 = arith.constant 0 : i32
    %c0_i32_1 = arith.constant 0 : i32
    return %c0_i32, %c0_i32_0 : i32, i32
  }
  func.func @transform_3(%arg0: i32) -> (i32, i32) {
    %c0_i32 = arith.constant 0 : i32
    %c0_i32_0 = arith.constant 0 : i32
    %c0_i32_1 = arith.constant 0 : i32
    return %c0_i32, %c0_i32_0 : i32, i32
  }
  func.func @transform_4(%arg0: i32) -> (i32, i32, i32) {
    %c0_i32 = arith.constant 0 : i32
    %c0_i32_0 = arith.constant 0 : i32
    %c0_i32_1 = arith.constant 0 : i32
    %c0_i32_2 = arith.constant 0 : i32
    return %c0_i32, %c0_i32_0, %c0_i32_1 : i32, i32, i32
  }
  func.func @transform_5(%arg0: i32) -> (i32, i32, i32) {
    %c0_i32 = arith.constant 0 : i32
    %c0_i32_0 = arith.constant 0 : i32
    %c0_i32_1 = arith.constant 0 : i32
    %c0_i32_2 = arith.constant 0 : i32
    return %c0_i32, %c0_i32_0, %c0_i32_1 : i32, i32, i32
  }
  func.func @transform_6(%arg0: i32) -> (i32, i32, i32) {
    %c0_i32 = arith.constant 0 : i32
    %c0_i32_0 = arith.constant 0 : i32
    %c0_i32_1 = arith.constant 0 : i32
    %c0_i32_2 = arith.constant 0 : i32
    return %c0_i32, %c0_i32_0, %c0_i32_1 : i32, i32, i32
  }
  func.func @transform_7(%arg0: i32) -> (i32, i32, i32) {
    %c0_i32 = arith.constant 0 : i32
    %c0_i32_0 = arith.constant 0 : i32
    %c0_i32_1 = arith.constant 0 : i32
    %c0_i32_2 = arith.constant 0 : i32
    return %c0_i32, %c0_i32_0, %c0_i32_1 : i32, i32, i32
  }
  func.func @transform_8(%arg0: i32) -> (i32, i32) {
    %c0_i32 = arith.constant 0 : i32
    %c0_i32_0 = arith.constant 0 : i32
    %c0_i32_1 = arith.constant 0 : i32
    return %c0_i32, %c0_i32_0 : i32, i32
  }
  func.func @transform_9(%arg0: i32) -> (i32, i32, i32) {
    %c0_i32 = arith.constant 0 : i32
    %c0_i32_0 = arith.constant 0 : i32
    %c0_i32_1 = arith.constant 0 : i32
    return %arg0, %c0_i32, %c0_i32_0 : i32, i32, i32
  }
}

module attributes {stable_mosaic.version = 11 : i64} {
  func.func @transformer_detector_kernel(%arg0: i32, %arg1: memref<16x16xf32, #tpu.memory_space<vmem>>, %arg2: memref<16x128xf32, #tpu.memory_space<vmem>>, %arg3: memref<16x128xbf16, #tpu.memory_space<vmem>>, %arg4: memref<1x128xf32, #tpu.memory_space<vmem>>, %arg5: memref<2x128x768xbf16, #tpu.memory_space<vmem>>, %arg6: memref<2x256x128xbf16, #tpu.memory_space<vmem>>, %arg7: memref<2x8x384xf32, #tpu.memory_space<vmem>>, %arg8: memref<2x128x128xbf16, #tpu.memory_space<vmem>>, %arg9: memref<2x128xf32, #tpu.memory_space<vmem>>, %arg10: memref<1x2x128xf32, #tpu.memory_space<vmem>>) attributes {dimension_semantics = [#tpu.dimension_semantics<parallel>], iteration_bounds = array<i64: 1>, scalar_prefetch = 0 : i64, scratch_operands = 0 : i64, tpu.core_type = #tpu.core_type<tc>, window_params = [{transform_indices = @transform_0, window_bounds = array<i64: 16, 16>}, {pipeline_mode = #tpu.pipeline_mode<synchronous>, transform_indices = @transform_1, window_bounds = array<i64: 16, 128>}, {pipeline_mode = #tpu.pipeline_mode<synchronous>, transform_indices = @transform_2, window_bounds = array<i64: 16, 128>}, {pipeline_mode = #tpu.pipeline_mode<synchronous>, transform_indices = @transform_3, window_bounds = array<i64: 1, 128>}, {pipeline_mode = #tpu.pipeline_mode<synchronous>, transform_indices = @transform_4, window_bounds = array<i64: 2, 128, 768>}, {pipeline_mode = #tpu.pipeline_mode<synchronous>, transform_indices = @transform_5, window_bounds = array<i64: 2, 256, 128>}, {pipeline_mode = #tpu.pipeline_mode<synchronous>, transform_indices = @transform_6, window_bounds = array<i64: 2, 8, 384>}, {pipeline_mode = #tpu.pipeline_mode<synchronous>, transform_indices = @transform_7, window_bounds = array<i64: 2, 128, 128>}, {pipeline_mode = #tpu.pipeline_mode<synchronous>, transform_indices = @transform_8, window_bounds = array<i64: 2, 128>}, {transform_indices = @transform_9, window_bounds = array<i64: 1, 2, 128>}]} {
    %c0 = arith.constant 0 : index
    %c0_0 = arith.constant 0 : index
    %c0_1 = arith.constant 0 : index
    %0 = vector.load %arg5[%c0, %c0_0, %c0_1] : memref<2x128x768xbf16, #tpu.memory_space<vmem>>, vector<1x128x768xbf16>
    %1 = vector.shape_cast %0 : vector<1x128x768xbf16> to vector<128x768xbf16>
    %2 = vector.extract_strided_slice %1 {offsets = [0, 0], sizes = [128, 384], strides = [1, 1]} : vector<128x768xbf16> to vector<128x384xbf16>
    %3 = vector.extract_strided_slice %1 {offsets = [0, 384], sizes = [128, 128], strides = [1, 1]} : vector<128x768xbf16> to vector<128x128xbf16>
    %4 = vector.extract_strided_slice %1 {offsets = [0, 512], sizes = [128, 256], strides = [1, 1]} : vector<128x768xbf16> to vector<128x256xbf16>
    %c0_2 = arith.constant 0 : index
    %c0_3 = arith.constant 0 : index
    %c0_4 = arith.constant 0 : index
    %5 = vector.load %arg6[%c0_2, %c0_3, %c0_4] : memref<2x256x128xbf16, #tpu.memory_space<vmem>>, vector<1x256x128xbf16>
    %6 = vector.shape_cast %5 : vector<1x256x128xbf16> to vector<256x128xbf16>
    %c0_5 = arith.constant 0 : index
    %c0_6 = arith.constant 0 : index
    %c0_7 = arith.constant 0 : index
    %7 = vector.load %arg7[%c0_5, %c0_6, %c0_7] : memref<2x8x384xf32, #tpu.memory_space<vmem>>, vector<1x8x384xf32>
    %8 = vector.shape_cast %7 : vector<1x8x384xf32> to vector<8x384xf32>
    %c1 = arith.constant 1 : index
    %c0_8 = arith.constant 0 : index
    %c0_9 = arith.constant 0 : index
    %9 = vector.load %arg5[%c1, %c0_8, %c0_9] : memref<2x128x768xbf16, #tpu.memory_space<vmem>>, vector<1x128x768xbf16>
    %10 = vector.shape_cast %9 : vector<1x128x768xbf16> to vector<128x768xbf16>
    %11 = vector.extract_strided_slice %10 {offsets = [0, 0], sizes = [128, 384], strides = [1, 1]} : vector<128x768xbf16> to vector<128x384xbf16>
    %12 = vector.extract_strided_slice %10 {offsets = [0, 384], sizes = [128, 128], strides = [1, 1]} : vector<128x768xbf16> to vector<128x128xbf16>
    %13 = vector.extract_strided_slice %10 {offsets = [0, 512], sizes = [128, 256], strides = [1, 1]} : vector<128x768xbf16> to vector<128x256xbf16>
    %c1_10 = arith.constant 1 : index
    %c0_11 = arith.constant 0 : index
    %c0_12 = arith.constant 0 : index
    %14 = vector.load %arg6[%c1_10, %c0_11, %c0_12] : memref<2x256x128xbf16, #tpu.memory_space<vmem>>, vector<1x256x128xbf16>
    %15 = vector.shape_cast %14 : vector<1x256x128xbf16> to vector<256x128xbf16>
    %c1_13 = arith.constant 1 : index
    %c0_14 = arith.constant 0 : index
    %c0_15 = arith.constant 0 : index
    %16 = vector.load %arg7[%c1_13, %c0_14, %c0_15] : memref<2x8x384xf32, #tpu.memory_space<vmem>>, vector<1x8x384xf32>
    %17 = vector.shape_cast %16 : vector<1x8x384xf32> to vector<8x384xf32>
    %c0_16 = arith.constant 0 : index
    %c0_17 = arith.constant 0 : index
    %18 = vector.load %arg1[%c0_16, %c0_17] : memref<16x16xf32, #tpu.memory_space<vmem>>, vector<16x16xf32>
    %c0_18 = arith.constant 0 : index
    %c0_19 = arith.constant 0 : index
    %19 = vector.load %arg2[%c0_18, %c0_19] : memref<16x128xf32, #tpu.memory_space<vmem>>, vector<16x128xf32>
    %c0_20 = arith.constant 0 : index
    %c0_21 = arith.constant 0 : index
    %20 = vector.load %arg3[%c0_20, %c0_21] : memref<16x128xbf16, #tpu.memory_space<vmem>>, vector<16x128xbf16>
    %c0_22 = arith.constant 0 : index
    %c0_23 = arith.constant 0 : index
    %21 = vector.load %arg4[%c0_22, %c0_23] : memref<1x128xf32, #tpu.memory_space<vmem>>, vector<1x128xf32>
    %c0_24 = arith.constant 0 : index
    %c0_25 = arith.constant 0 : index
    %c0_26 = arith.constant 0 : index
    %22 = vector.load %arg8[%c0_24, %c0_25, %c0_26] : memref<2x128x128xbf16, #tpu.memory_space<vmem>>, vector<2x128x128xbf16>
    %c0_27 = arith.constant 0 : index
    %c0_28 = arith.constant 0 : index
    %23 = vector.load %arg9[%c0_27, %c0_28] : memref<2x128xf32, #tpu.memory_space<vmem>>, vector<2x128xf32>
    %24 = arith.truncf %18 : vector<16x16xf32> to vector<16x16xbf16>
    %cst = arith.constant dense<0.000000e+00> : vector<16x128xf32>
    %25 = tpu.matmul %24, %20, %cst {dimension_numbers = #tpu.dot_dimension_numbers<[1], [0], [0], [1], [0, 0, 1, 1], [], []>} : vector<16x16xbf16>, vector<16x128xbf16>, vector<16x128xf32> -> vector<16x128xf32>
    %26 = vector.broadcast %21 : vector<1x128xf32> to vector<16x128xf32>
    %27 = arith.addf %25, %26 : vector<16x128xf32>
    %28 = arith.addf %27, %19 : vector<16x128xf32>
    %29 = vector.extract_strided_slice %8 {offsets = [0, 0], sizes = [1, 384], strides = [1, 1]} : vector<8x384xf32> to vector<1x384xf32>
    %30 = vector.extract_strided_slice %8 {offsets = [1, 0], sizes = [1, 128], strides = [1, 1]} : vector<8x384xf32> to vector<1x128xf32>
    %31 = vector.extract_strided_slice %8 {offsets = [2, 0], sizes = [1, 256], strides = [1, 1]} : vector<8x384xf32> to vector<1x256xf32>
    %32 = vector.extract_strided_slice %8 {offsets = [3, 0], sizes = [1, 128], strides = [1, 1]} : vector<8x384xf32> to vector<1x128xf32>
    %33 = vector.extract_strided_slice %8 {offsets = [4, 0], sizes = [1, 128], strides = [1, 1]} : vector<8x384xf32> to vector<1x128xf32>
    %34 = vector.extract_strided_slice %8 {offsets = [5, 0], sizes = [1, 128], strides = [1, 1]} : vector<8x384xf32> to vector<1x128xf32>
    %35 = vector.extract_strided_slice %8 {offsets = [6, 0], sizes = [1, 128], strides = [1, 1]} : vector<8x384xf32> to vector<1x128xf32>
    %36 = vector.extract_strided_slice %8 {offsets = [7, 0], sizes = [1, 128], strides = [1, 1]} : vector<8x384xf32> to vector<1x128xf32>
    %37 = arith.truncf %28 : vector<16x128xf32> to vector<16x128xbf16>
    %cst_29 = arith.constant dense<0.000000e+00> : vector<16x384xf32>
    %38 = tpu.matmul %37, %2, %cst_29 {dimension_numbers = #tpu.dot_dimension_numbers<[1], [0], [0], [1], [0, 0, 1, 1], [], []>} : vector<16x128xbf16>, vector<128x384xbf16>, vector<16x384xf32> -> vector<16x384xf32>
    %39 = vector.broadcast %29 : vector<1x384xf32> to vector<16x384xf32>
    %40 = arith.addf %38, %39 : vector<16x384xf32>
    %41 = vector.extract_strided_slice %40 {offsets = [0, 0], sizes = [16, 128], strides = [1, 1]} : vector<16x384xf32> to vector<16x128xf32>
    %42 = vector.shape_cast %41 : vector<16x128xf32> to vector<2x8x128xf32>
    %43 = vector.extract_strided_slice %40 {offsets = [0, 128], sizes = [16, 128], strides = [1, 1]} : vector<16x384xf32> to vector<16x128xf32>
    %44 = vector.shape_cast %43 : vector<16x128xf32> to vector<2x8x128xf32>
    %45 = vector.extract_strided_slice %40 {offsets = [0, 256], sizes = [16, 128], strides = [1, 1]} : vector<16x384xf32> to vector<16x128xf32>
    %46 = vector.shape_cast %45 : vector<16x128xf32> to vector<2x8x128xf32>
    %47 = vector.extract_strided_slice %42 {offsets = [0, 0, 0], sizes = [2, 8, 16], strides = [1, 1, 1]} : vector<2x8x128xf32> to vector<2x8x16xf32>
    %48 = arith.truncf %47 : vector<2x8x16xf32> to vector<2x8x16xbf16>
    %49 = vector.extract_strided_slice %44 {offsets = [0, 0, 0], sizes = [2, 8, 16], strides = [1, 1, 1]} : vector<2x8x128xf32> to vector<2x8x16xf32>
    %50 = arith.truncf %49 : vector<2x8x16xf32> to vector<2x8x16xbf16>
    %51 = vector.extract_strided_slice %46 {offsets = [0, 0, 0], sizes = [2, 8, 16], strides = [1, 1, 1]} : vector<2x8x128xf32> to vector<2x8x16xf32>
    %52 = arith.truncf %51 : vector<2x8x16xf32> to vector<2x8x16xbf16>
    %cst_30 = arith.constant dense<0.000000e+00> : vector<2x8x8xf32>
    %53 = tpu.matmul %48, %50, %cst_30 {dimension_numbers = #tpu.dot_dimension_numbers<[2], [2], [1], [1], [0, 0, 0, 1, 1, 1], [0], [0]>} : vector<2x8x16xbf16>, vector<2x8x16xbf16>, vector<2x8x8xf32> -> vector<2x8x8xf32>
    %cst_31 = arith.constant dense<0xFF800000> : vector<2x8xf32>
    %54 = vector.multi_reduction <maximumf>, %53, %cst_31 [2] : vector<2x8x8xf32> to vector<2x8xf32>
    %55 = vector.shape_cast %54 : vector<2x8xf32> to vector<2x8x1xf32>
    %56 = vector.broadcast %55 : vector<2x8x1xf32> to vector<2x8x8xf32>
    %57 = arith.subf %53, %56 : vector<2x8x8xf32>
    %58 = math.exp %57 : vector<2x8x8xf32>
    %59 = arith.truncf %58 : vector<2x8x8xf32> to vector<2x8x8xbf16>
    %cst_32 = arith.constant dense<0.000000e+00> : vector<2x8x16xf32>
    %60 = tpu.matmul %59, %52, %cst_32 {dimension_numbers = #tpu.dot_dimension_numbers<[2], [1], [1], [2], [0, 0, 0, 1, 1, 2], [0], [0]>} : vector<2x8x8xbf16>, vector<2x8x16xbf16>, vector<2x8x16xf32> -> vector<2x8x16xf32>
    %cst_33 = arith.constant dense<0.000000e+00> : vector<2x8xf32>
    %61 = vector.multi_reduction <add>, %58, %cst_33 [2] : vector<2x8x8xf32> to vector<2x8xf32>
    %62 = vector.shape_cast %61 : vector<2x8xf32> to vector<2x8x1xf32>
    %63 = tpu.reciprocal %62 {approx = true} : vector<2x8x1xf32> -> vector<2x8x1xf32>
    %64 = vector.broadcast %63 : vector<2x8x1xf32> to vector<2x8x16xf32>
    %65 = arith.mulf %60, %64 : vector<2x8x16xf32>
    %66 = vector.extract_strided_slice %42 {offsets = [0, 0, 16], sizes = [2, 8, 16], strides = [1, 1, 1]} : vector<2x8x128xf32> to vector<2x8x16xf32>
    %67 = arith.truncf %66 : vector<2x8x16xf32> to vector<2x8x16xbf16>
    %68 = vector.extract_strided_slice %44 {offsets = [0, 0, 16], sizes = [2, 8, 16], strides = [1, 1, 1]} : vector<2x8x128xf32> to vector<2x8x16xf32>
    %69 = arith.truncf %68 : vector<2x8x16xf32> to vector<2x8x16xbf16>
    %70 = vector.extract_strided_slice %46 {offsets = [0, 0, 16], sizes = [2, 8, 16], strides = [1, 1, 1]} : vector<2x8x128xf32> to vector<2x8x16xf32>
    %71 = arith.truncf %70 : vector<2x8x16xf32> to vector<2x8x16xbf16>
    %cst_34 = arith.constant dense<0.000000e+00> : vector<2x8x8xf32>
    %72 = tpu.matmul %67, %69, %cst_34 {dimension_numbers = #tpu.dot_dimension_numbers<[2], [2], [1], [1], [0, 0, 0, 1, 1, 1], [0], [0]>} : vector<2x8x16xbf16>, vector<2x8x16xbf16>, vector<2x8x8xf32> -> vector<2x8x8xf32>
    %cst_35 = arith.constant dense<0xFF800000> : vector<2x8xf32>
    %73 = vector.multi_reduction <maximumf>, %72, %cst_35 [2] : vector<2x8x8xf32> to vector<2x8xf32>
    %74 = vector.shape_cast %73 : vector<2x8xf32> to vector<2x8x1xf32>
    %75 = vector.broadcast %74 : vector<2x8x1xf32> to vector<2x8x8xf32>
    %76 = arith.subf %72, %75 : vector<2x8x8xf32>
    %77 = math.exp %76 : vector<2x8x8xf32>
    %78 = arith.truncf %77 : vector<2x8x8xf32> to vector<2x8x8xbf16>
    %cst_36 = arith.constant dense<0.000000e+00> : vector<2x8x16xf32>
    %79 = tpu.matmul %78, %71, %cst_36 {dimension_numbers = #tpu.dot_dimension_numbers<[2], [1], [1], [2], [0, 0, 0, 1, 1, 2], [0], [0]>} : vector<2x8x8xbf16>, vector<2x8x16xbf16>, vector<2x8x16xf32> -> vector<2x8x16xf32>
    %cst_37 = arith.constant dense<0.000000e+00> : vector<2x8xf32>
    %80 = vector.multi_reduction <add>, %77, %cst_37 [2] : vector<2x8x8xf32> to vector<2x8xf32>
    %81 = vector.shape_cast %80 : vector<2x8xf32> to vector<2x8x1xf32>
    %82 = tpu.reciprocal %81 {approx = true} : vector<2x8x1xf32> -> vector<2x8x1xf32>
    %83 = vector.broadcast %82 : vector<2x8x1xf32> to vector<2x8x16xf32>
    %84 = arith.mulf %79, %83 : vector<2x8x16xf32>
    %85 = vector.extract_strided_slice %42 {offsets = [0, 0, 32], sizes = [2, 8, 16], strides = [1, 1, 1]} : vector<2x8x128xf32> to vector<2x8x16xf32>
    %86 = arith.truncf %85 : vector<2x8x16xf32> to vector<2x8x16xbf16>
    %87 = vector.extract_strided_slice %44 {offsets = [0, 0, 32], sizes = [2, 8, 16], strides = [1, 1, 1]} : vector<2x8x128xf32> to vector<2x8x16xf32>
    %88 = arith.truncf %87 : vector<2x8x16xf32> to vector<2x8x16xbf16>
    %89 = vector.extract_strided_slice %46 {offsets = [0, 0, 32], sizes = [2, 8, 16], strides = [1, 1, 1]} : vector<2x8x128xf32> to vector<2x8x16xf32>
    %90 = arith.truncf %89 : vector<2x8x16xf32> to vector<2x8x16xbf16>
    %cst_38 = arith.constant dense<0.000000e+00> : vector<2x8x8xf32>
    %91 = tpu.matmul %86, %88, %cst_38 {dimension_numbers = #tpu.dot_dimension_numbers<[2], [2], [1], [1], [0, 0, 0, 1, 1, 1], [0], [0]>} : vector<2x8x16xbf16>, vector<2x8x16xbf16>, vector<2x8x8xf32> -> vector<2x8x8xf32>
    %cst_39 = arith.constant dense<0xFF800000> : vector<2x8xf32>
    %92 = vector.multi_reduction <maximumf>, %91, %cst_39 [2] : vector<2x8x8xf32> to vector<2x8xf32>
    %93 = vector.shape_cast %92 : vector<2x8xf32> to vector<2x8x1xf32>
    %94 = vector.broadcast %93 : vector<2x8x1xf32> to vector<2x8x8xf32>
    %95 = arith.subf %91, %94 : vector<2x8x8xf32>
    %96 = math.exp %95 : vector<2x8x8xf32>
    %97 = arith.truncf %96 : vector<2x8x8xf32> to vector<2x8x8xbf16>
    %cst_40 = arith.constant dense<0.000000e+00> : vector<2x8x16xf32>
    %98 = tpu.matmul %97, %90, %cst_40 {dimension_numbers = #tpu.dot_dimension_numbers<[2], [1], [1], [2], [0, 0, 0, 1, 1, 2], [0], [0]>} : vector<2x8x8xbf16>, vector<2x8x16xbf16>, vector<2x8x16xf32> -> vector<2x8x16xf32>
    %cst_41 = arith.constant dense<0.000000e+00> : vector<2x8xf32>
    %99 = vector.multi_reduction <add>, %96, %cst_41 [2] : vector<2x8x8xf32> to vector<2x8xf32>
    %100 = vector.shape_cast %99 : vector<2x8xf32> to vector<2x8x1xf32>
    %101 = tpu.reciprocal %100 {approx = true} : vector<2x8x1xf32> -> vector<2x8x1xf32>
    %102 = vector.broadcast %101 : vector<2x8x1xf32> to vector<2x8x16xf32>
    %103 = arith.mulf %98, %102 : vector<2x8x16xf32>
    %104 = vector.extract_strided_slice %42 {offsets = [0, 0, 48], sizes = [2, 8, 16], strides = [1, 1, 1]} : vector<2x8x128xf32> to vector<2x8x16xf32>
    %105 = arith.truncf %104 : vector<2x8x16xf32> to vector<2x8x16xbf16>
    %106 = vector.extract_strided_slice %44 {offsets = [0, 0, 48], sizes = [2, 8, 16], strides = [1, 1, 1]} : vector<2x8x128xf32> to vector<2x8x16xf32>
    %107 = arith.truncf %106 : vector<2x8x16xf32> to vector<2x8x16xbf16>
    %108 = vector.extract_strided_slice %46 {offsets = [0, 0, 48], sizes = [2, 8, 16], strides = [1, 1, 1]} : vector<2x8x128xf32> to vector<2x8x16xf32>
    %109 = arith.truncf %108 : vector<2x8x16xf32> to vector<2x8x16xbf16>
    %cst_42 = arith.constant dense<0.000000e+00> : vector<2x8x8xf32>
    %110 = tpu.matmul %105, %107, %cst_42 {dimension_numbers = #tpu.dot_dimension_numbers<[2], [2], [1], [1], [0, 0, 0, 1, 1, 1], [0], [0]>} : vector<2x8x16xbf16>, vector<2x8x16xbf16>, vector<2x8x8xf32> -> vector<2x8x8xf32>
    %cst_43 = arith.constant dense<0xFF800000> : vector<2x8xf32>
    %111 = vector.multi_reduction <maximumf>, %110, %cst_43 [2] : vector<2x8x8xf32> to vector<2x8xf32>
    %112 = vector.shape_cast %111 : vector<2x8xf32> to vector<2x8x1xf32>
    %113 = vector.broadcast %112 : vector<2x8x1xf32> to vector<2x8x8xf32>
    %114 = arith.subf %110, %113 : vector<2x8x8xf32>
    %115 = math.exp %114 : vector<2x8x8xf32>
    %116 = arith.truncf %115 : vector<2x8x8xf32> to vector<2x8x8xbf16>
    %cst_44 = arith.constant dense<0.000000e+00> : vector<2x8x16xf32>
    %117 = tpu.matmul %116, %109, %cst_44 {dimension_numbers = #tpu.dot_dimension_numbers<[2], [1], [1], [2], [0, 0, 0, 1, 1, 2], [0], [0]>} : vector<2x8x8xbf16>, vector<2x8x16xbf16>, vector<2x8x16xf32> -> vector<2x8x16xf32>
    %cst_45 = arith.constant dense<0.000000e+00> : vector<2x8xf32>
    %118 = vector.multi_reduction <add>, %115, %cst_45 [2] : vector<2x8x8xf32> to vector<2x8xf32>
    %119 = vector.shape_cast %118 : vector<2x8xf32> to vector<2x8x1xf32>
    %120 = tpu.reciprocal %119 {approx = true} : vector<2x8x1xf32> -> vector<2x8x1xf32>
    %121 = vector.broadcast %120 : vector<2x8x1xf32> to vector<2x8x16xf32>
    %122 = arith.mulf %117, %121 : vector<2x8x16xf32>
    %123 = vector.extract_strided_slice %42 {offsets = [0, 0, 64], sizes = [2, 8, 16], strides = [1, 1, 1]} : vector<2x8x128xf32> to vector<2x8x16xf32>
    %124 = arith.truncf %123 : vector<2x8x16xf32> to vector<2x8x16xbf16>
    %125 = vector.extract_strided_slice %44 {offsets = [0, 0, 64], sizes = [2, 8, 16], strides = [1, 1, 1]} : vector<2x8x128xf32> to vector<2x8x16xf32>
    %126 = arith.truncf %125 : vector<2x8x16xf32> to vector<2x8x16xbf16>
    %127 = vector.extract_strided_slice %46 {offsets = [0, 0, 64], sizes = [2, 8, 16], strides = [1, 1, 1]} : vector<2x8x128xf32> to vector<2x8x16xf32>
    %128 = arith.truncf %127 : vector<2x8x16xf32> to vector<2x8x16xbf16>
    %cst_46 = arith.constant dense<0.000000e+00> : vector<2x8x8xf32>
    %129 = tpu.matmul %124, %126, %cst_46 {dimension_numbers = #tpu.dot_dimension_numbers<[2], [2], [1], [1], [0, 0, 0, 1, 1, 1], [0], [0]>} : vector<2x8x16xbf16>, vector<2x8x16xbf16>, vector<2x8x8xf32> -> vector<2x8x8xf32>
    %cst_47 = arith.constant dense<0xFF800000> : vector<2x8xf32>
    %130 = vector.multi_reduction <maximumf>, %129, %cst_47 [2] : vector<2x8x8xf32> to vector<2x8xf32>
    %131 = vector.shape_cast %130 : vector<2x8xf32> to vector<2x8x1xf32>
    %132 = vector.broadcast %131 : vector<2x8x1xf32> to vector<2x8x8xf32>
    %133 = arith.subf %129, %132 : vector<2x8x8xf32>
    %134 = math.exp %133 : vector<2x8x8xf32>
    %135 = arith.truncf %134 : vector<2x8x8xf32> to vector<2x8x8xbf16>
    %cst_48 = arith.constant dense<0.000000e+00> : vector<2x8x16xf32>
    %136 = tpu.matmul %135, %128, %cst_48 {dimension_numbers = #tpu.dot_dimension_numbers<[2], [1], [1], [2], [0, 0, 0, 1, 1, 2], [0], [0]>} : vector<2x8x8xbf16>, vector<2x8x16xbf16>, vector<2x8x16xf32> -> vector<2x8x16xf32>
    %cst_49 = arith.constant dense<0.000000e+00> : vector<2x8xf32>
    %137 = vector.multi_reduction <add>, %134, %cst_49 [2] : vector<2x8x8xf32> to vector<2x8xf32>
    %138 = vector.shape_cast %137 : vector<2x8xf32> to vector<2x8x1xf32>
    %139 = tpu.reciprocal %138 {approx = true} : vector<2x8x1xf32> -> vector<2x8x1xf32>
    %140 = vector.broadcast %139 : vector<2x8x1xf32> to vector<2x8x16xf32>
    %141 = arith.mulf %136, %140 : vector<2x8x16xf32>
    %142 = vector.extract_strided_slice %42 {offsets = [0, 0, 80], sizes = [2, 8, 16], strides = [1, 1, 1]} : vector<2x8x128xf32> to vector<2x8x16xf32>
    %143 = arith.truncf %142 : vector<2x8x16xf32> to vector<2x8x16xbf16>
    %144 = vector.extract_strided_slice %44 {offsets = [0, 0, 80], sizes = [2, 8, 16], strides = [1, 1, 1]} : vector<2x8x128xf32> to vector<2x8x16xf32>
    %145 = arith.truncf %144 : vector<2x8x16xf32> to vector<2x8x16xbf16>
    %146 = vector.extract_strided_slice %46 {offsets = [0, 0, 80], sizes = [2, 8, 16], strides = [1, 1, 1]} : vector<2x8x128xf32> to vector<2x8x16xf32>
    %147 = arith.truncf %146 : vector<2x8x16xf32> to vector<2x8x16xbf16>
    %cst_50 = arith.constant dense<0.000000e+00> : vector<2x8x8xf32>
    %148 = tpu.matmul %143, %145, %cst_50 {dimension_numbers = #tpu.dot_dimension_numbers<[2], [2], [1], [1], [0, 0, 0, 1, 1, 1], [0], [0]>} : vector<2x8x16xbf16>, vector<2x8x16xbf16>, vector<2x8x8xf32> -> vector<2x8x8xf32>
    %cst_51 = arith.constant dense<0xFF800000> : vector<2x8xf32>
    %149 = vector.multi_reduction <maximumf>, %148, %cst_51 [2] : vector<2x8x8xf32> to vector<2x8xf32>
    %150 = vector.shape_cast %149 : vector<2x8xf32> to vector<2x8x1xf32>
    %151 = vector.broadcast %150 : vector<2x8x1xf32> to vector<2x8x8xf32>
    %152 = arith.subf %148, %151 : vector<2x8x8xf32>
    %153 = math.exp %152 : vector<2x8x8xf32>
    %154 = arith.truncf %153 : vector<2x8x8xf32> to vector<2x8x8xbf16>
    %cst_52 = arith.constant dense<0.000000e+00> : vector<2x8x16xf32>
    %155 = tpu.matmul %154, %147, %cst_52 {dimension_numbers = #tpu.dot_dimension_numbers<[2], [1], [1], [2], [0, 0, 0, 1, 1, 2], [0], [0]>} : vector<2x8x8xbf16>, vector<2x8x16xbf16>, vector<2x8x16xf32> -> vector<2x8x16xf32>
    %cst_53 = arith.constant dense<0.000000e+00> : vector<2x8xf32>
    %156 = vector.multi_reduction <add>, %153, %cst_53 [2] : vector<2x8x8xf32> to vector<2x8xf32>
    %157 = vector.shape_cast %156 : vector<2x8xf32> to vector<2x8x1xf32>
    %158 = tpu.reciprocal %157 {approx = true} : vector<2x8x1xf32> -> vector<2x8x1xf32>
    %159 = vector.broadcast %158 : vector<2x8x1xf32> to vector<2x8x16xf32>
    %160 = arith.mulf %155, %159 : vector<2x8x16xf32>
    %161 = vector.extract_strided_slice %42 {offsets = [0, 0, 96], sizes = [2, 8, 16], strides = [1, 1, 1]} : vector<2x8x128xf32> to vector<2x8x16xf32>
    %162 = arith.truncf %161 : vector<2x8x16xf32> to vector<2x8x16xbf16>
    %163 = vector.extract_strided_slice %44 {offsets = [0, 0, 96], sizes = [2, 8, 16], strides = [1, 1, 1]} : vector<2x8x128xf32> to vector<2x8x16xf32>
    %164 = arith.truncf %163 : vector<2x8x16xf32> to vector<2x8x16xbf16>
    %165 = vector.extract_strided_slice %46 {offsets = [0, 0, 96], sizes = [2, 8, 16], strides = [1, 1, 1]} : vector<2x8x128xf32> to vector<2x8x16xf32>
    %166 = arith.truncf %165 : vector<2x8x16xf32> to vector<2x8x16xbf16>
    %cst_54 = arith.constant dense<0.000000e+00> : vector<2x8x8xf32>
    %167 = tpu.matmul %162, %164, %cst_54 {dimension_numbers = #tpu.dot_dimension_numbers<[2], [2], [1], [1], [0, 0, 0, 1, 1, 1], [0], [0]>} : vector<2x8x16xbf16>, vector<2x8x16xbf16>, vector<2x8x8xf32> -> vector<2x8x8xf32>
    %cst_55 = arith.constant dense<0xFF800000> : vector<2x8xf32>
    %168 = vector.multi_reduction <maximumf>, %167, %cst_55 [2] : vector<2x8x8xf32> to vector<2x8xf32>
    %169 = vector.shape_cast %168 : vector<2x8xf32> to vector<2x8x1xf32>
    %170 = vector.broadcast %169 : vector<2x8x1xf32> to vector<2x8x8xf32>
    %171 = arith.subf %167, %170 : vector<2x8x8xf32>
    %172 = math.exp %171 : vector<2x8x8xf32>
    %173 = arith.truncf %172 : vector<2x8x8xf32> to vector<2x8x8xbf16>
    %cst_56 = arith.constant dense<0.000000e+00> : vector<2x8x16xf32>
    %174 = tpu.matmul %173, %166, %cst_56 {dimension_numbers = #tpu.dot_dimension_numbers<[2], [1], [1], [2], [0, 0, 0, 1, 1, 2], [0], [0]>} : vector<2x8x8xbf16>, vector<2x8x16xbf16>, vector<2x8x16xf32> -> vector<2x8x16xf32>
    %cst_57 = arith.constant dense<0.000000e+00> : vector<2x8xf32>
    %175 = vector.multi_reduction <add>, %172, %cst_57 [2] : vector<2x8x8xf32> to vector<2x8xf32>
    %176 = vector.shape_cast %175 : vector<2x8xf32> to vector<2x8x1xf32>
    %177 = tpu.reciprocal %176 {approx = true} : vector<2x8x1xf32> -> vector<2x8x1xf32>
    %178 = vector.broadcast %177 : vector<2x8x1xf32> to vector<2x8x16xf32>
    %179 = arith.mulf %174, %178 : vector<2x8x16xf32>
    %180 = vector.extract_strided_slice %42 {offsets = [0, 0, 112], sizes = [2, 8, 16], strides = [1, 1, 1]} : vector<2x8x128xf32> to vector<2x8x16xf32>
    %181 = arith.truncf %180 : vector<2x8x16xf32> to vector<2x8x16xbf16>
    %182 = vector.extract_strided_slice %44 {offsets = [0, 0, 112], sizes = [2, 8, 16], strides = [1, 1, 1]} : vector<2x8x128xf32> to vector<2x8x16xf32>
    %183 = arith.truncf %182 : vector<2x8x16xf32> to vector<2x8x16xbf16>
    %184 = vector.extract_strided_slice %46 {offsets = [0, 0, 112], sizes = [2, 8, 16], strides = [1, 1, 1]} : vector<2x8x128xf32> to vector<2x8x16xf32>
    %185 = arith.truncf %184 : vector<2x8x16xf32> to vector<2x8x16xbf16>
    %cst_58 = arith.constant dense<0.000000e+00> : vector<2x8x8xf32>
    %186 = tpu.matmul %181, %183, %cst_58 {dimension_numbers = #tpu.dot_dimension_numbers<[2], [2], [1], [1], [0, 0, 0, 1, 1, 1], [0], [0]>} : vector<2x8x16xbf16>, vector<2x8x16xbf16>, vector<2x8x8xf32> -> vector<2x8x8xf32>
    %cst_59 = arith.constant dense<0xFF800000> : vector<2x8xf32>
    %187 = vector.multi_reduction <maximumf>, %186, %cst_59 [2] : vector<2x8x8xf32> to vector<2x8xf32>
    %188 = vector.shape_cast %187 : vector<2x8xf32> to vector<2x8x1xf32>
    %189 = vector.broadcast %188 : vector<2x8x1xf32> to vector<2x8x8xf32>
    %190 = arith.subf %186, %189 : vector<2x8x8xf32>
    %191 = math.exp %190 : vector<2x8x8xf32>
    %192 = arith.truncf %191 : vector<2x8x8xf32> to vector<2x8x8xbf16>
    %cst_60 = arith.constant dense<0.000000e+00> : vector<2x8x16xf32>
    %193 = tpu.matmul %192, %185, %cst_60 {dimension_numbers = #tpu.dot_dimension_numbers<[2], [1], [1], [2], [0, 0, 0, 1, 1, 2], [0], [0]>} : vector<2x8x8xbf16>, vector<2x8x16xbf16>, vector<2x8x16xf32> -> vector<2x8x16xf32>
    %cst_61 = arith.constant dense<0.000000e+00> : vector<2x8xf32>
    %194 = vector.multi_reduction <add>, %191, %cst_61 [2] : vector<2x8x8xf32> to vector<2x8xf32>
    %195 = vector.shape_cast %194 : vector<2x8xf32> to vector<2x8x1xf32>
    %196 = tpu.reciprocal %195 {approx = true} : vector<2x8x1xf32> -> vector<2x8x1xf32>
    %197 = vector.broadcast %196 : vector<2x8x1xf32> to vector<2x8x16xf32>
    %198 = arith.mulf %193, %197 : vector<2x8x16xf32>
    %199 = tpu.concatenate %65, %84, %103, %122, %141, %160, %179, %198 in 2 : vector<2x8x16xf32>, vector<2x8x16xf32>, vector<2x8x16xf32>, vector<2x8x16xf32>, vector<2x8x16xf32>, vector<2x8x16xf32>, vector<2x8x16xf32>, vector<2x8x16xf32> -> vector<2x8x128xf32>
    %200 = vector.shape_cast %199 : vector<2x8x128xf32> to vector<16x128xf32>
    %201 = arith.truncf %200 : vector<16x128xf32> to vector<16x128xbf16>
    %cst_62 = arith.constant dense<0.000000e+00> : vector<16x128xf32>
    %202 = tpu.matmul %201, %3, %cst_62 {dimension_numbers = #tpu.dot_dimension_numbers<[1], [0], [0], [1], [0, 0, 1, 1], [], []>} : vector<16x128xbf16>, vector<128x128xbf16>, vector<16x128xf32> -> vector<16x128xf32>
    %203 = arith.addf %28, %202 : vector<16x128xf32>
    %204 = vector.broadcast %30 : vector<1x128xf32> to vector<16x128xf32>
    %205 = arith.addf %203, %204 : vector<16x128xf32>
    %cst_63 = arith.constant dense<0.000000e+00> : vector<16xf32>
    %206 = vector.multi_reduction <add>, %205, %cst_63 [1] : vector<16x128xf32> to vector<16xf32>
    %207 = vector.shape_cast %206 : vector<16xf32> to vector<16x1xf32>
    %cst_64 = arith.constant 1.280000e+02 : f32
    %208 = vector.broadcast %cst_64 : f32 to vector<16x1xf32>
    %209 = arith.divf %207, %208 : vector<16x1xf32>
    %210 = vector.broadcast %209 : vector<16x1xf32> to vector<16x128xf32>
    %211 = arith.subf %205, %210 : vector<16x128xf32>
    %212 = arith.mulf %211, %211 : vector<16x128xf32>
    %cst_65 = arith.constant dense<0.000000e+00> : vector<16xf32>
    %213 = vector.multi_reduction <add>, %212, %cst_65 [1] : vector<16x128xf32> to vector<16xf32>
    %214 = vector.shape_cast %213 : vector<16xf32> to vector<16x1xf32>
    %cst_66 = arith.constant 1.280000e+02 : f32
    %215 = vector.broadcast %cst_66 : f32 to vector<16x1xf32>
    %216 = arith.divf %214, %215 : vector<16x1xf32>
    %217 = vector.broadcast %209 : vector<16x1xf32> to vector<16x128xf32>
    %218 = arith.subf %205, %217 : vector<16x128xf32>
    %cst_67 = arith.constant 9.99999974E-6 : f32
    %219 = vector.broadcast %cst_67 : f32 to vector<16x1xf32>
    %220 = arith.addf %216, %219 : vector<16x1xf32>
    %221 = math.rsqrt %220 : vector<16x1xf32>
    %222 = vector.broadcast %221 : vector<16x1xf32> to vector<16x128xf32>
    %223 = arith.mulf %218, %222 : vector<16x128xf32>
    %224 = vector.broadcast %33 : vector<1x128xf32> to vector<16x128xf32>
    %225 = arith.mulf %223, %224 : vector<16x128xf32>
    %226 = vector.broadcast %34 : vector<1x128xf32> to vector<16x128xf32>
    %227 = arith.addf %225, %226 : vector<16x128xf32>
    %228 = arith.truncf %227 : vector<16x128xf32> to vector<16x128xbf16>
    %cst_68 = arith.constant dense<0.000000e+00> : vector<16x256xf32>
    %229 = tpu.matmul %228, %4, %cst_68 {dimension_numbers = #tpu.dot_dimension_numbers<[1], [0], [0], [1], [0, 0, 1, 1], [], []>} : vector<16x128xbf16>, vector<128x256xbf16>, vector<16x256xf32> -> vector<16x256xf32>
    %230 = vector.broadcast %31 : vector<1x256xf32> to vector<16x256xf32>
    %231 = arith.addf %229, %230 : vector<16x256xf32>
    %cst_69 = arith.constant 0.000000e+00 : f32
    %232 = vector.broadcast %cst_69 : f32 to vector<16x256xf32>
    %233 = arith.maximumf %231, %232 : vector<16x256xf32>
    %234 = arith.truncf %233 : vector<16x256xf32> to vector<16x256xbf16>
    %cst_70 = arith.constant dense<0.000000e+00> : vector<16x128xf32>
    %235 = tpu.matmul %234, %6, %cst_70 {dimension_numbers = #tpu.dot_dimension_numbers<[1], [0], [0], [1], [0, 0, 1, 1], [], []>} : vector<16x256xbf16>, vector<256x128xbf16>, vector<16x128xf32> -> vector<16x128xf32>
    %236 = arith.addf %227, %235 : vector<16x128xf32>
    %237 = vector.broadcast %32 : vector<1x128xf32> to vector<16x128xf32>
    %238 = arith.addf %236, %237 : vector<16x128xf32>
    %cst_71 = arith.constant dense<0.000000e+00> : vector<16xf32>
    %239 = vector.multi_reduction <add>, %238, %cst_71 [1] : vector<16x128xf32> to vector<16xf32>
    %240 = vector.shape_cast %239 : vector<16xf32> to vector<16x1xf32>
    %cst_72 = arith.constant 1.280000e+02 : f32
    %241 = vector.broadcast %cst_72 : f32 to vector<16x1xf32>
    %242 = arith.divf %240, %241 : vector<16x1xf32>
    %243 = vector.broadcast %242 : vector<16x1xf32> to vector<16x128xf32>
    %244 = arith.subf %238, %243 : vector<16x128xf32>
    %245 = arith.mulf %244, %244 : vector<16x128xf32>
    %cst_73 = arith.constant dense<0.000000e+00> : vector<16xf32>
    %246 = vector.multi_reduction <add>, %245, %cst_73 [1] : vector<16x128xf32> to vector<16xf32>
    %247 = vector.shape_cast %246 : vector<16xf32> to vector<16x1xf32>
    %cst_74 = arith.constant 1.280000e+02 : f32
    %248 = vector.broadcast %cst_74 : f32 to vector<16x1xf32>
    %249 = arith.divf %247, %248 : vector<16x1xf32>
    %250 = vector.broadcast %242 : vector<16x1xf32> to vector<16x128xf32>
    %251 = arith.subf %238, %250 : vector<16x128xf32>
    %cst_75 = arith.constant 9.99999974E-6 : f32
    %252 = vector.broadcast %cst_75 : f32 to vector<16x1xf32>
    %253 = arith.addf %249, %252 : vector<16x1xf32>
    %254 = math.rsqrt %253 : vector<16x1xf32>
    %255 = vector.broadcast %254 : vector<16x1xf32> to vector<16x128xf32>
    %256 = arith.mulf %251, %255 : vector<16x128xf32>
    %257 = vector.broadcast %35 : vector<1x128xf32> to vector<16x128xf32>
    %258 = arith.mulf %256, %257 : vector<16x128xf32>
    %259 = vector.broadcast %36 : vector<1x128xf32> to vector<16x128xf32>
    %260 = arith.addf %258, %259 : vector<16x128xf32>
    %261 = vector.extract_strided_slice %17 {offsets = [0, 0], sizes = [1, 384], strides = [1, 1]} : vector<8x384xf32> to vector<1x384xf32>
    %262 = vector.extract_strided_slice %17 {offsets = [1, 0], sizes = [1, 128], strides = [1, 1]} : vector<8x384xf32> to vector<1x128xf32>
    %263 = vector.extract_strided_slice %17 {offsets = [2, 0], sizes = [1, 256], strides = [1, 1]} : vector<8x384xf32> to vector<1x256xf32>
    %264 = vector.extract_strided_slice %17 {offsets = [3, 0], sizes = [1, 128], strides = [1, 1]} : vector<8x384xf32> to vector<1x128xf32>
    %265 = vector.extract_strided_slice %17 {offsets = [4, 0], sizes = [1, 128], strides = [1, 1]} : vector<8x384xf32> to vector<1x128xf32>
    %266 = vector.extract_strided_slice %17 {offsets = [5, 0], sizes = [1, 128], strides = [1, 1]} : vector<8x384xf32> to vector<1x128xf32>
    %267 = vector.extract_strided_slice %17 {offsets = [6, 0], sizes = [1, 128], strides = [1, 1]} : vector<8x384xf32> to vector<1x128xf32>
    %268 = vector.extract_strided_slice %17 {offsets = [7, 0], sizes = [1, 128], strides = [1, 1]} : vector<8x384xf32> to vector<1x128xf32>
    %269 = arith.truncf %260 : vector<16x128xf32> to vector<16x128xbf16>
    %cst_76 = arith.constant dense<0.000000e+00> : vector<16x384xf32>
    %270 = tpu.matmul %269, %11, %cst_76 {dimension_numbers = #tpu.dot_dimension_numbers<[1], [0], [0], [1], [0, 0, 1, 1], [], []>} : vector<16x128xbf16>, vector<128x384xbf16>, vector<16x384xf32> -> vector<16x384xf32>
    %271 = vector.broadcast %261 : vector<1x384xf32> to vector<16x384xf32>
    %272 = arith.addf %270, %271 : vector<16x384xf32>
    %273 = vector.extract_strided_slice %272 {offsets = [0, 0], sizes = [16, 128], strides = [1, 1]} : vector<16x384xf32> to vector<16x128xf32>
    %274 = vector.shape_cast %273 : vector<16x128xf32> to vector<2x8x128xf32>
    %275 = vector.extract_strided_slice %272 {offsets = [0, 128], sizes = [16, 128], strides = [1, 1]} : vector<16x384xf32> to vector<16x128xf32>
    %276 = vector.shape_cast %275 : vector<16x128xf32> to vector<2x8x128xf32>
    %277 = vector.extract_strided_slice %272 {offsets = [0, 256], sizes = [16, 128], strides = [1, 1]} : vector<16x384xf32> to vector<16x128xf32>
    %278 = vector.shape_cast %277 : vector<16x128xf32> to vector<2x8x128xf32>
    %279 = vector.extract_strided_slice %274 {offsets = [0, 0, 0], sizes = [2, 8, 16], strides = [1, 1, 1]} : vector<2x8x128xf32> to vector<2x8x16xf32>
    %280 = arith.truncf %279 : vector<2x8x16xf32> to vector<2x8x16xbf16>
    %281 = vector.extract_strided_slice %276 {offsets = [0, 0, 0], sizes = [2, 8, 16], strides = [1, 1, 1]} : vector<2x8x128xf32> to vector<2x8x16xf32>
    %282 = arith.truncf %281 : vector<2x8x16xf32> to vector<2x8x16xbf16>
    %283 = vector.extract_strided_slice %278 {offsets = [0, 0, 0], sizes = [2, 8, 16], strides = [1, 1, 1]} : vector<2x8x128xf32> to vector<2x8x16xf32>
    %284 = arith.truncf %283 : vector<2x8x16xf32> to vector<2x8x16xbf16>
    %cst_77 = arith.constant dense<0.000000e+00> : vector<2x8x8xf32>
    %285 = tpu.matmul %280, %282, %cst_77 {dimension_numbers = #tpu.dot_dimension_numbers<[2], [2], [1], [1], [0, 0, 0, 1, 1, 1], [0], [0]>} : vector<2x8x16xbf16>, vector<2x8x16xbf16>, vector<2x8x8xf32> -> vector<2x8x8xf32>
    %cst_78 = arith.constant dense<0xFF800000> : vector<2x8xf32>
    %286 = vector.multi_reduction <maximumf>, %285, %cst_78 [2] : vector<2x8x8xf32> to vector<2x8xf32>
    %287 = vector.shape_cast %286 : vector<2x8xf32> to vector<2x8x1xf32>
    %288 = vector.broadcast %287 : vector<2x8x1xf32> to vector<2x8x8xf32>
    %289 = arith.subf %285, %288 : vector<2x8x8xf32>
    %290 = math.exp %289 : vector<2x8x8xf32>
    %291 = arith.truncf %290 : vector<2x8x8xf32> to vector<2x8x8xbf16>
    %cst_79 = arith.constant dense<0.000000e+00> : vector<2x8x16xf32>
    %292 = tpu.matmul %291, %284, %cst_79 {dimension_numbers = #tpu.dot_dimension_numbers<[2], [1], [1], [2], [0, 0, 0, 1, 1, 2], [0], [0]>} : vector<2x8x8xbf16>, vector<2x8x16xbf16>, vector<2x8x16xf32> -> vector<2x8x16xf32>
    %cst_80 = arith.constant dense<0.000000e+00> : vector<2x8xf32>
    %293 = vector.multi_reduction <add>, %290, %cst_80 [2] : vector<2x8x8xf32> to vector<2x8xf32>
    %294 = vector.shape_cast %293 : vector<2x8xf32> to vector<2x8x1xf32>
    %295 = tpu.reciprocal %294 {approx = true} : vector<2x8x1xf32> -> vector<2x8x1xf32>
    %296 = vector.broadcast %295 : vector<2x8x1xf32> to vector<2x8x16xf32>
    %297 = arith.mulf %292, %296 : vector<2x8x16xf32>
    %298 = vector.extract_strided_slice %274 {offsets = [0, 0, 16], sizes = [2, 8, 16], strides = [1, 1, 1]} : vector<2x8x128xf32> to vector<2x8x16xf32>
    %299 = arith.truncf %298 : vector<2x8x16xf32> to vector<2x8x16xbf16>
    %300 = vector.extract_strided_slice %276 {offsets = [0, 0, 16], sizes = [2, 8, 16], strides = [1, 1, 1]} : vector<2x8x128xf32> to vector<2x8x16xf32>
    %301 = arith.truncf %300 : vector<2x8x16xf32> to vector<2x8x16xbf16>
    %302 = vector.extract_strided_slice %278 {offsets = [0, 0, 16], sizes = [2, 8, 16], strides = [1, 1, 1]} : vector<2x8x128xf32> to vector<2x8x16xf32>
    %303 = arith.truncf %302 : vector<2x8x16xf32> to vector<2x8x16xbf16>
    %cst_81 = arith.constant dense<0.000000e+00> : vector<2x8x8xf32>
    %304 = tpu.matmul %299, %301, %cst_81 {dimension_numbers = #tpu.dot_dimension_numbers<[2], [2], [1], [1], [0, 0, 0, 1, 1, 1], [0], [0]>} : vector<2x8x16xbf16>, vector<2x8x16xbf16>, vector<2x8x8xf32> -> vector<2x8x8xf32>
    %cst_82 = arith.constant dense<0xFF800000> : vector<2x8xf32>
    %305 = vector.multi_reduction <maximumf>, %304, %cst_82 [2] : vector<2x8x8xf32> to vector<2x8xf32>
    %306 = vector.shape_cast %305 : vector<2x8xf32> to vector<2x8x1xf32>
    %307 = vector.broadcast %306 : vector<2x8x1xf32> to vector<2x8x8xf32>
    %308 = arith.subf %304, %307 : vector<2x8x8xf32>
    %309 = math.exp %308 : vector<2x8x8xf32>
    %310 = arith.truncf %309 : vector<2x8x8xf32> to vector<2x8x8xbf16>
    %cst_83 = arith.constant dense<0.000000e+00> : vector<2x8x16xf32>
    %311 = tpu.matmul %310, %303, %cst_83 {dimension_numbers = #tpu.dot_dimension_numbers<[2], [1], [1], [2], [0, 0, 0, 1, 1, 2], [0], [0]>} : vector<2x8x8xbf16>, vector<2x8x16xbf16>, vector<2x8x16xf32> -> vector<2x8x16xf32>
    %cst_84 = arith.constant dense<0.000000e+00> : vector<2x8xf32>
    %312 = vector.multi_reduction <add>, %309, %cst_84 [2] : vector<2x8x8xf32> to vector<2x8xf32>
    %313 = vector.shape_cast %312 : vector<2x8xf32> to vector<2x8x1xf32>
    %314 = tpu.reciprocal %313 {approx = true} : vector<2x8x1xf32> -> vector<2x8x1xf32>
    %315 = vector.broadcast %314 : vector<2x8x1xf32> to vector<2x8x16xf32>
    %316 = arith.mulf %311, %315 : vector<2x8x16xf32>
    %317 = vector.extract_strided_slice %274 {offsets = [0, 0, 32], sizes = [2, 8, 16], strides = [1, 1, 1]} : vector<2x8x128xf32> to vector<2x8x16xf32>
    %318 = arith.truncf %317 : vector<2x8x16xf32> to vector<2x8x16xbf16>
    %319 = vector.extract_strided_slice %276 {offsets = [0, 0, 32], sizes = [2, 8, 16], strides = [1, 1, 1]} : vector<2x8x128xf32> to vector<2x8x16xf32>
    %320 = arith.truncf %319 : vector<2x8x16xf32> to vector<2x8x16xbf16>
    %321 = vector.extract_strided_slice %278 {offsets = [0, 0, 32], sizes = [2, 8, 16], strides = [1, 1, 1]} : vector<2x8x128xf32> to vector<2x8x16xf32>
    %322 = arith.truncf %321 : vector<2x8x16xf32> to vector<2x8x16xbf16>
    %cst_85 = arith.constant dense<0.000000e+00> : vector<2x8x8xf32>
    %323 = tpu.matmul %318, %320, %cst_85 {dimension_numbers = #tpu.dot_dimension_numbers<[2], [2], [1], [1], [0, 0, 0, 1, 1, 1], [0], [0]>} : vector<2x8x16xbf16>, vector<2x8x16xbf16>, vector<2x8x8xf32> -> vector<2x8x8xf32>
    %cst_86 = arith.constant dense<0xFF800000> : vector<2x8xf32>
    %324 = vector.multi_reduction <maximumf>, %323, %cst_86 [2] : vector<2x8x8xf32> to vector<2x8xf32>
    %325 = vector.shape_cast %324 : vector<2x8xf32> to vector<2x8x1xf32>
    %326 = vector.broadcast %325 : vector<2x8x1xf32> to vector<2x8x8xf32>
    %327 = arith.subf %323, %326 : vector<2x8x8xf32>
    %328 = math.exp %327 : vector<2x8x8xf32>
    %329 = arith.truncf %328 : vector<2x8x8xf32> to vector<2x8x8xbf16>
    %cst_87 = arith.constant dense<0.000000e+00> : vector<2x8x16xf32>
    %330 = tpu.matmul %329, %322, %cst_87 {dimension_numbers = #tpu.dot_dimension_numbers<[2], [1], [1], [2], [0, 0, 0, 1, 1, 2], [0], [0]>} : vector<2x8x8xbf16>, vector<2x8x16xbf16>, vector<2x8x16xf32> -> vector<2x8x16xf32>
    %cst_88 = arith.constant dense<0.000000e+00> : vector<2x8xf32>
    %331 = vector.multi_reduction <add>, %328, %cst_88 [2] : vector<2x8x8xf32> to vector<2x8xf32>
    %332 = vector.shape_cast %331 : vector<2x8xf32> to vector<2x8x1xf32>
    %333 = tpu.reciprocal %332 {approx = true} : vector<2x8x1xf32> -> vector<2x8x1xf32>
    %334 = vector.broadcast %333 : vector<2x8x1xf32> to vector<2x8x16xf32>
    %335 = arith.mulf %330, %334 : vector<2x8x16xf32>
    %336 = vector.extract_strided_slice %274 {offsets = [0, 0, 48], sizes = [2, 8, 16], strides = [1, 1, 1]} : vector<2x8x128xf32> to vector<2x8x16xf32>
    %337 = arith.truncf %336 : vector<2x8x16xf32> to vector<2x8x16xbf16>
    %338 = vector.extract_strided_slice %276 {offsets = [0, 0, 48], sizes = [2, 8, 16], strides = [1, 1, 1]} : vector<2x8x128xf32> to vector<2x8x16xf32>
    %339 = arith.truncf %338 : vector<2x8x16xf32> to vector<2x8x16xbf16>
    %340 = vector.extract_strided_slice %278 {offsets = [0, 0, 48], sizes = [2, 8, 16], strides = [1, 1, 1]} : vector<2x8x128xf32> to vector<2x8x16xf32>
    %341 = arith.truncf %340 : vector<2x8x16xf32> to vector<2x8x16xbf16>
    %cst_89 = arith.constant dense<0.000000e+00> : vector<2x8x8xf32>
    %342 = tpu.matmul %337, %339, %cst_89 {dimension_numbers = #tpu.dot_dimension_numbers<[2], [2], [1], [1], [0, 0, 0, 1, 1, 1], [0], [0]>} : vector<2x8x16xbf16>, vector<2x8x16xbf16>, vector<2x8x8xf32> -> vector<2x8x8xf32>
    %cst_90 = arith.constant dense<0xFF800000> : vector<2x8xf32>
    %343 = vector.multi_reduction <maximumf>, %342, %cst_90 [2] : vector<2x8x8xf32> to vector<2x8xf32>
    %344 = vector.shape_cast %343 : vector<2x8xf32> to vector<2x8x1xf32>
    %345 = vector.broadcast %344 : vector<2x8x1xf32> to vector<2x8x8xf32>
    %346 = arith.subf %342, %345 : vector<2x8x8xf32>
    %347 = math.exp %346 : vector<2x8x8xf32>
    %348 = arith.truncf %347 : vector<2x8x8xf32> to vector<2x8x8xbf16>
    %cst_91 = arith.constant dense<0.000000e+00> : vector<2x8x16xf32>
    %349 = tpu.matmul %348, %341, %cst_91 {dimension_numbers = #tpu.dot_dimension_numbers<[2], [1], [1], [2], [0, 0, 0, 1, 1, 2], [0], [0]>} : vector<2x8x8xbf16>, vector<2x8x16xbf16>, vector<2x8x16xf32> -> vector<2x8x16xf32>
    %cst_92 = arith.constant dense<0.000000e+00> : vector<2x8xf32>
    %350 = vector.multi_reduction <add>, %347, %cst_92 [2] : vector<2x8x8xf32> to vector<2x8xf32>
    %351 = vector.shape_cast %350 : vector<2x8xf32> to vector<2x8x1xf32>
    %352 = tpu.reciprocal %351 {approx = true} : vector<2x8x1xf32> -> vector<2x8x1xf32>
    %353 = vector.broadcast %352 : vector<2x8x1xf32> to vector<2x8x16xf32>
    %354 = arith.mulf %349, %353 : vector<2x8x16xf32>
    %355 = vector.extract_strided_slice %274 {offsets = [0, 0, 64], sizes = [2, 8, 16], strides = [1, 1, 1]} : vector<2x8x128xf32> to vector<2x8x16xf32>
    %356 = arith.truncf %355 : vector<2x8x16xf32> to vector<2x8x16xbf16>
    %357 = vector.extract_strided_slice %276 {offsets = [0, 0, 64], sizes = [2, 8, 16], strides = [1, 1, 1]} : vector<2x8x128xf32> to vector<2x8x16xf32>
    %358 = arith.truncf %357 : vector<2x8x16xf32> to vector<2x8x16xbf16>
    %359 = vector.extract_strided_slice %278 {offsets = [0, 0, 64], sizes = [2, 8, 16], strides = [1, 1, 1]} : vector<2x8x128xf32> to vector<2x8x16xf32>
    %360 = arith.truncf %359 : vector<2x8x16xf32> to vector<2x8x16xbf16>
    %cst_93 = arith.constant dense<0.000000e+00> : vector<2x8x8xf32>
    %361 = tpu.matmul %356, %358, %cst_93 {dimension_numbers = #tpu.dot_dimension_numbers<[2], [2], [1], [1], [0, 0, 0, 1, 1, 1], [0], [0]>} : vector<2x8x16xbf16>, vector<2x8x16xbf16>, vector<2x8x8xf32> -> vector<2x8x8xf32>
    %cst_94 = arith.constant dense<0xFF800000> : vector<2x8xf32>
    %362 = vector.multi_reduction <maximumf>, %361, %cst_94 [2] : vector<2x8x8xf32> to vector<2x8xf32>
    %363 = vector.shape_cast %362 : vector<2x8xf32> to vector<2x8x1xf32>
    %364 = vector.broadcast %363 : vector<2x8x1xf32> to vector<2x8x8xf32>
    %365 = arith.subf %361, %364 : vector<2x8x8xf32>
    %366 = math.exp %365 : vector<2x8x8xf32>
    %367 = arith.truncf %366 : vector<2x8x8xf32> to vector<2x8x8xbf16>
    %cst_95 = arith.constant dense<0.000000e+00> : vector<2x8x16xf32>
    %368 = tpu.matmul %367, %360, %cst_95 {dimension_numbers = #tpu.dot_dimension_numbers<[2], [1], [1], [2], [0, 0, 0, 1, 1, 2], [0], [0]>} : vector<2x8x8xbf16>, vector<2x8x16xbf16>, vector<2x8x16xf32> -> vector<2x8x16xf32>
    %cst_96 = arith.constant dense<0.000000e+00> : vector<2x8xf32>
    %369 = vector.multi_reduction <add>, %366, %cst_96 [2] : vector<2x8x8xf32> to vector<2x8xf32>
    %370 = vector.shape_cast %369 : vector<2x8xf32> to vector<2x8x1xf32>
    %371 = tpu.reciprocal %370 {approx = true} : vector<2x8x1xf32> -> vector<2x8x1xf32>
    %372 = vector.broadcast %371 : vector<2x8x1xf32> to vector<2x8x16xf32>
    %373 = arith.mulf %368, %372 : vector<2x8x16xf32>
    %374 = vector.extract_strided_slice %274 {offsets = [0, 0, 80], sizes = [2, 8, 16], strides = [1, 1, 1]} : vector<2x8x128xf32> to vector<2x8x16xf32>
    %375 = arith.truncf %374 : vector<2x8x16xf32> to vector<2x8x16xbf16>
    %376 = vector.extract_strided_slice %276 {offsets = [0, 0, 80], sizes = [2, 8, 16], strides = [1, 1, 1]} : vector<2x8x128xf32> to vector<2x8x16xf32>
    %377 = arith.truncf %376 : vector<2x8x16xf32> to vector<2x8x16xbf16>
    %378 = vector.extract_strided_slice %278 {offsets = [0, 0, 80], sizes = [2, 8, 16], strides = [1, 1, 1]} : vector<2x8x128xf32> to vector<2x8x16xf32>
    %379 = arith.truncf %378 : vector<2x8x16xf32> to vector<2x8x16xbf16>
    %cst_97 = arith.constant dense<0.000000e+00> : vector<2x8x8xf32>
    %380 = tpu.matmul %375, %377, %cst_97 {dimension_numbers = #tpu.dot_dimension_numbers<[2], [2], [1], [1], [0, 0, 0, 1, 1, 1], [0], [0]>} : vector<2x8x16xbf16>, vector<2x8x16xbf16>, vector<2x8x8xf32> -> vector<2x8x8xf32>
    %cst_98 = arith.constant dense<0xFF800000> : vector<2x8xf32>
    %381 = vector.multi_reduction <maximumf>, %380, %cst_98 [2] : vector<2x8x8xf32> to vector<2x8xf32>
    %382 = vector.shape_cast %381 : vector<2x8xf32> to vector<2x8x1xf32>
    %383 = vector.broadcast %382 : vector<2x8x1xf32> to vector<2x8x8xf32>
    %384 = arith.subf %380, %383 : vector<2x8x8xf32>
    %385 = math.exp %384 : vector<2x8x8xf32>
    %386 = arith.truncf %385 : vector<2x8x8xf32> to vector<2x8x8xbf16>
    %cst_99 = arith.constant dense<0.000000e+00> : vector<2x8x16xf32>
    %387 = tpu.matmul %386, %379, %cst_99 {dimension_numbers = #tpu.dot_dimension_numbers<[2], [1], [1], [2], [0, 0, 0, 1, 1, 2], [0], [0]>} : vector<2x8x8xbf16>, vector<2x8x16xbf16>, vector<2x8x16xf32> -> vector<2x8x16xf32>
    %cst_100 = arith.constant dense<0.000000e+00> : vector<2x8xf32>
    %388 = vector.multi_reduction <add>, %385, %cst_100 [2] : vector<2x8x8xf32> to vector<2x8xf32>
    %389 = vector.shape_cast %388 : vector<2x8xf32> to vector<2x8x1xf32>
    %390 = tpu.reciprocal %389 {approx = true} : vector<2x8x1xf32> -> vector<2x8x1xf32>
    %391 = vector.broadcast %390 : vector<2x8x1xf32> to vector<2x8x16xf32>
    %392 = arith.mulf %387, %391 : vector<2x8x16xf32>
    %393 = vector.extract_strided_slice %274 {offsets = [0, 0, 96], sizes = [2, 8, 16], strides = [1, 1, 1]} : vector<2x8x128xf32> to vector<2x8x16xf32>
    %394 = arith.truncf %393 : vector<2x8x16xf32> to vector<2x8x16xbf16>
    %395 = vector.extract_strided_slice %276 {offsets = [0, 0, 96], sizes = [2, 8, 16], strides = [1, 1, 1]} : vector<2x8x128xf32> to vector<2x8x16xf32>
    %396 = arith.truncf %395 : vector<2x8x16xf32> to vector<2x8x16xbf16>
    %397 = vector.extract_strided_slice %278 {offsets = [0, 0, 96], sizes = [2, 8, 16], strides = [1, 1, 1]} : vector<2x8x128xf32> to vector<2x8x16xf32>
    %398 = arith.truncf %397 : vector<2x8x16xf32> to vector<2x8x16xbf16>
    %cst_101 = arith.constant dense<0.000000e+00> : vector<2x8x8xf32>
    %399 = tpu.matmul %394, %396, %cst_101 {dimension_numbers = #tpu.dot_dimension_numbers<[2], [2], [1], [1], [0, 0, 0, 1, 1, 1], [0], [0]>} : vector<2x8x16xbf16>, vector<2x8x16xbf16>, vector<2x8x8xf32> -> vector<2x8x8xf32>
    %cst_102 = arith.constant dense<0xFF800000> : vector<2x8xf32>
    %400 = vector.multi_reduction <maximumf>, %399, %cst_102 [2] : vector<2x8x8xf32> to vector<2x8xf32>
    %401 = vector.shape_cast %400 : vector<2x8xf32> to vector<2x8x1xf32>
    %402 = vector.broadcast %401 : vector<2x8x1xf32> to vector<2x8x8xf32>
    %403 = arith.subf %399, %402 : vector<2x8x8xf32>
    %404 = math.exp %403 : vector<2x8x8xf32>
    %405 = arith.truncf %404 : vector<2x8x8xf32> to vector<2x8x8xbf16>
    %cst_103 = arith.constant dense<0.000000e+00> : vector<2x8x16xf32>
    %406 = tpu.matmul %405, %398, %cst_103 {dimension_numbers = #tpu.dot_dimension_numbers<[2], [1], [1], [2], [0, 0, 0, 1, 1, 2], [0], [0]>} : vector<2x8x8xbf16>, vector<2x8x16xbf16>, vector<2x8x16xf32> -> vector<2x8x16xf32>
    %cst_104 = arith.constant dense<0.000000e+00> : vector<2x8xf32>
    %407 = vector.multi_reduction <add>, %404, %cst_104 [2] : vector<2x8x8xf32> to vector<2x8xf32>
    %408 = vector.shape_cast %407 : vector<2x8xf32> to vector<2x8x1xf32>
    %409 = tpu.reciprocal %408 {approx = true} : vector<2x8x1xf32> -> vector<2x8x1xf32>
    %410 = vector.broadcast %409 : vector<2x8x1xf32> to vector<2x8x16xf32>
    %411 = arith.mulf %406, %410 : vector<2x8x16xf32>
    %412 = vector.extract_strided_slice %274 {offsets = [0, 0, 112], sizes = [2, 8, 16], strides = [1, 1, 1]} : vector<2x8x128xf32> to vector<2x8x16xf32>
    %413 = arith.truncf %412 : vector<2x8x16xf32> to vector<2x8x16xbf16>
    %414 = vector.extract_strided_slice %276 {offsets = [0, 0, 112], sizes = [2, 8, 16], strides = [1, 1, 1]} : vector<2x8x128xf32> to vector<2x8x16xf32>
    %415 = arith.truncf %414 : vector<2x8x16xf32> to vector<2x8x16xbf16>
    %416 = vector.extract_strided_slice %278 {offsets = [0, 0, 112], sizes = [2, 8, 16], strides = [1, 1, 1]} : vector<2x8x128xf32> to vector<2x8x16xf32>
    %417 = arith.truncf %416 : vector<2x8x16xf32> to vector<2x8x16xbf16>
    %cst_105 = arith.constant dense<0.000000e+00> : vector<2x8x8xf32>
    %418 = tpu.matmul %413, %415, %cst_105 {dimension_numbers = #tpu.dot_dimension_numbers<[2], [2], [1], [1], [0, 0, 0, 1, 1, 1], [0], [0]>} : vector<2x8x16xbf16>, vector<2x8x16xbf16>, vector<2x8x8xf32> -> vector<2x8x8xf32>
    %cst_106 = arith.constant dense<0xFF800000> : vector<2x8xf32>
    %419 = vector.multi_reduction <maximumf>, %418, %cst_106 [2] : vector<2x8x8xf32> to vector<2x8xf32>
    %420 = vector.shape_cast %419 : vector<2x8xf32> to vector<2x8x1xf32>
    %421 = vector.broadcast %420 : vector<2x8x1xf32> to vector<2x8x8xf32>
    %422 = arith.subf %418, %421 : vector<2x8x8xf32>
    %423 = math.exp %422 : vector<2x8x8xf32>
    %424 = arith.truncf %423 : vector<2x8x8xf32> to vector<2x8x8xbf16>
    %cst_107 = arith.constant dense<0.000000e+00> : vector<2x8x16xf32>
    %425 = tpu.matmul %424, %417, %cst_107 {dimension_numbers = #tpu.dot_dimension_numbers<[2], [1], [1], [2], [0, 0, 0, 1, 1, 2], [0], [0]>} : vector<2x8x8xbf16>, vector<2x8x16xbf16>, vector<2x8x16xf32> -> vector<2x8x16xf32>
    %cst_108 = arith.constant dense<0.000000e+00> : vector<2x8xf32>
    %426 = vector.multi_reduction <add>, %423, %cst_108 [2] : vector<2x8x8xf32> to vector<2x8xf32>
    %427 = vector.shape_cast %426 : vector<2x8xf32> to vector<2x8x1xf32>
    %428 = tpu.reciprocal %427 {approx = true} : vector<2x8x1xf32> -> vector<2x8x1xf32>
    %429 = vector.broadcast %428 : vector<2x8x1xf32> to vector<2x8x16xf32>
    %430 = arith.mulf %425, %429 : vector<2x8x16xf32>
    %431 = tpu.concatenate %297, %316, %335, %354, %373, %392, %411, %430 in 2 : vector<2x8x16xf32>, vector<2x8x16xf32>, vector<2x8x16xf32>, vector<2x8x16xf32>, vector<2x8x16xf32>, vector<2x8x16xf32>, vector<2x8x16xf32>, vector<2x8x16xf32> -> vector<2x8x128xf32>
    %432 = vector.shape_cast %431 : vector<2x8x128xf32> to vector<16x128xf32>
    %433 = arith.truncf %432 : vector<16x128xf32> to vector<16x128xbf16>
    %cst_109 = arith.constant dense<0.000000e+00> : vector<16x128xf32>
    %434 = tpu.matmul %433, %12, %cst_109 {dimension_numbers = #tpu.dot_dimension_numbers<[1], [0], [0], [1], [0, 0, 1, 1], [], []>} : vector<16x128xbf16>, vector<128x128xbf16>, vector<16x128xf32> -> vector<16x128xf32>
    %435 = arith.addf %260, %434 : vector<16x128xf32>
    %436 = vector.broadcast %262 : vector<1x128xf32> to vector<16x128xf32>
    %437 = arith.addf %435, %436 : vector<16x128xf32>
    %cst_110 = arith.constant dense<0.000000e+00> : vector<16xf32>
    %438 = vector.multi_reduction <add>, %437, %cst_110 [1] : vector<16x128xf32> to vector<16xf32>
    %439 = vector.shape_cast %438 : vector<16xf32> to vector<16x1xf32>
    %cst_111 = arith.constant 1.280000e+02 : f32
    %440 = vector.broadcast %cst_111 : f32 to vector<16x1xf32>
    %441 = arith.divf %439, %440 : vector<16x1xf32>
    %442 = vector.broadcast %441 : vector<16x1xf32> to vector<16x128xf32>
    %443 = arith.subf %437, %442 : vector<16x128xf32>
    %444 = arith.mulf %443, %443 : vector<16x128xf32>
    %cst_112 = arith.constant dense<0.000000e+00> : vector<16xf32>
    %445 = vector.multi_reduction <add>, %444, %cst_112 [1] : vector<16x128xf32> to vector<16xf32>
    %446 = vector.shape_cast %445 : vector<16xf32> to vector<16x1xf32>
    %cst_113 = arith.constant 1.280000e+02 : f32
    %447 = vector.broadcast %cst_113 : f32 to vector<16x1xf32>
    %448 = arith.divf %446, %447 : vector<16x1xf32>
    %449 = vector.broadcast %441 : vector<16x1xf32> to vector<16x128xf32>
    %450 = arith.subf %437, %449 : vector<16x128xf32>
    %cst_114 = arith.constant 9.99999974E-6 : f32
    %451 = vector.broadcast %cst_114 : f32 to vector<16x1xf32>
    %452 = arith.addf %448, %451 : vector<16x1xf32>
    %453 = math.rsqrt %452 : vector<16x1xf32>
    %454 = vector.broadcast %453 : vector<16x1xf32> to vector<16x128xf32>
    %455 = arith.mulf %450, %454 : vector<16x128xf32>
    %456 = vector.broadcast %265 : vector<1x128xf32> to vector<16x128xf32>
    %457 = arith.mulf %455, %456 : vector<16x128xf32>
    %458 = vector.broadcast %266 : vector<1x128xf32> to vector<16x128xf32>
    %459 = arith.addf %457, %458 : vector<16x128xf32>
    %460 = arith.truncf %459 : vector<16x128xf32> to vector<16x128xbf16>
    %cst_115 = arith.constant dense<0.000000e+00> : vector<16x256xf32>
    %461 = tpu.matmul %460, %13, %cst_115 {dimension_numbers = #tpu.dot_dimension_numbers<[1], [0], [0], [1], [0, 0, 1, 1], [], []>} : vector<16x128xbf16>, vector<128x256xbf16>, vector<16x256xf32> -> vector<16x256xf32>
    %462 = vector.broadcast %263 : vector<1x256xf32> to vector<16x256xf32>
    %463 = arith.addf %461, %462 : vector<16x256xf32>
    %cst_116 = arith.constant 0.000000e+00 : f32
    %464 = vector.broadcast %cst_116 : f32 to vector<16x256xf32>
    %465 = arith.maximumf %463, %464 : vector<16x256xf32>
    %466 = arith.truncf %465 : vector<16x256xf32> to vector<16x256xbf16>
    %cst_117 = arith.constant dense<0.000000e+00> : vector<16x128xf32>
    %467 = tpu.matmul %466, %15, %cst_117 {dimension_numbers = #tpu.dot_dimension_numbers<[1], [0], [0], [1], [0, 0, 1, 1], [], []>} : vector<16x256xbf16>, vector<256x128xbf16>, vector<16x128xf32> -> vector<16x128xf32>
    %468 = arith.addf %459, %467 : vector<16x128xf32>
    %469 = vector.broadcast %264 : vector<1x128xf32> to vector<16x128xf32>
    %470 = arith.addf %468, %469 : vector<16x128xf32>
    %cst_118 = arith.constant dense<0.000000e+00> : vector<16xf32>
    %471 = vector.multi_reduction <add>, %470, %cst_118 [1] : vector<16x128xf32> to vector<16xf32>
    %472 = vector.shape_cast %471 : vector<16xf32> to vector<16x1xf32>
    %cst_119 = arith.constant 1.280000e+02 : f32
    %473 = vector.broadcast %cst_119 : f32 to vector<16x1xf32>
    %474 = arith.divf %472, %473 : vector<16x1xf32>
    %475 = vector.broadcast %474 : vector<16x1xf32> to vector<16x128xf32>
    %476 = arith.subf %470, %475 : vector<16x128xf32>
    %477 = arith.mulf %476, %476 : vector<16x128xf32>
    %cst_120 = arith.constant dense<0.000000e+00> : vector<16xf32>
    %478 = vector.multi_reduction <add>, %477, %cst_120 [1] : vector<16x128xf32> to vector<16xf32>
    %479 = vector.shape_cast %478 : vector<16xf32> to vector<16x1xf32>
    %cst_121 = arith.constant 1.280000e+02 : f32
    %480 = vector.broadcast %cst_121 : f32 to vector<16x1xf32>
    %481 = arith.divf %479, %480 : vector<16x1xf32>
    %482 = vector.broadcast %474 : vector<16x1xf32> to vector<16x128xf32>
    %483 = arith.subf %470, %482 : vector<16x128xf32>
    %cst_122 = arith.constant 9.99999974E-6 : f32
    %484 = vector.broadcast %cst_122 : f32 to vector<16x1xf32>
    %485 = arith.addf %481, %484 : vector<16x1xf32>
    %486 = math.rsqrt %485 : vector<16x1xf32>
    %487 = vector.broadcast %486 : vector<16x1xf32> to vector<16x128xf32>
    %488 = arith.mulf %483, %487 : vector<16x128xf32>
    %489 = vector.broadcast %267 : vector<1x128xf32> to vector<16x128xf32>
    %490 = arith.mulf %488, %489 : vector<16x128xf32>
    %491 = vector.broadcast %268 : vector<1x128xf32> to vector<16x128xf32>
    %492 = arith.addf %490, %491 : vector<16x128xf32>
    %493 = vector.shape_cast %492 : vector<16x128xf32> to vector<2x8x128xf32>
    %cst_123 = arith.constant dense<0.000000e+00> : vector<2x128xf32>
    %494 = vector.multi_reduction <add>, %493, %cst_123 [1] : vector<2x8x128xf32> to vector<2x128xf32>
    %cst_124 = arith.constant 8.000000e+00 : f32
    %495 = vector.broadcast %cst_124 : f32 to vector<2x128xf32>
    %496 = arith.divf %494, %495 : vector<2x128xf32>
    %497 = vector.extract_strided_slice %22 {offsets = [0, 0, 0], sizes = [1, 128, 128], strides = [1, 1, 1]} : vector<2x128x128xbf16> to vector<1x128x128xbf16>
    %498 = vector.shape_cast %497 : vector<1x128x128xbf16> to vector<128x128xbf16>
    %499 = arith.truncf %496 : vector<2x128xf32> to vector<2x128xbf16>
    %cst_125 = arith.constant dense<0.000000e+00> : vector<2x128xf32>
    %500 = tpu.matmul %499, %498, %cst_125 {dimension_numbers = #tpu.dot_dimension_numbers<[1], [0], [0], [1], [0, 0, 1, 1], [], []>} : vector<2x128xbf16>, vector<128x128xbf16>, vector<2x128xf32> -> vector<2x128xf32>
    %501 = vector.extract_strided_slice %23 {offsets = [0, 0], sizes = [1, 128], strides = [1, 1]} : vector<2x128xf32> to vector<1x128xf32>
    %502 = vector.broadcast %501 : vector<1x128xf32> to vector<2x128xf32>
    %503 = arith.addf %500, %502 : vector<2x128xf32>
    %cst_126 = arith.constant 0.000000e+00 : f32
    %504 = vector.broadcast %cst_126 : f32 to vector<2x128xf32>
    %505 = arith.maximumf %503, %504 : vector<2x128xf32>
    %506 = vector.extract_strided_slice %22 {offsets = [1, 0, 0], sizes = [1, 128, 128], strides = [1, 1, 1]} : vector<2x128x128xbf16> to vector<1x128x128xbf16>
    %507 = vector.shape_cast %506 : vector<1x128x128xbf16> to vector<128x128xbf16>
    %508 = arith.truncf %505 : vector<2x128xf32> to vector<2x128xbf16>
    %cst_127 = arith.constant dense<0.000000e+00> : vector<2x128xf32>
    %509 = tpu.matmul %508, %507, %cst_127 {dimension_numbers = #tpu.dot_dimension_numbers<[1], [0], [0], [1], [0, 0, 1, 1], [], []>} : vector<2x128xbf16>, vector<128x128xbf16>, vector<2x128xf32> -> vector<2x128xf32>
    %510 = vector.extract_strided_slice %23 {offsets = [1, 0], sizes = [1, 128], strides = [1, 1]} : vector<2x128xf32> to vector<1x128xf32>
    %511 = vector.broadcast %510 : vector<1x128xf32> to vector<2x128xf32>
    %512 = arith.addf %509, %511 : vector<2x128xf32>
    %513 = arith.negf %512 : vector<2x128xf32>
    %514 = math.exp %513 : vector<2x128xf32>
    %cst_128 = arith.constant 1.000000e+00 : f32
    %515 = vector.broadcast %cst_128 : f32 to vector<2x128xf32>
    %516 = arith.addf %515, %514 : vector<2x128xf32>
    %517 = arith.divf %515, %516 : vector<2x128xf32>
    %c0_129 = arith.constant 0 : index
    %c0_130 = arith.constant 0 : index
    %c0_131 = arith.constant 0 : index
    %518 = vector.load %arg10[%c0_129, %c0_130, %c0_131] : memref<1x2x128xf32, #tpu.memory_space<vmem>>, vector<1x2x128xf32>
    %519 = vector.shape_cast %518 : vector<1x2x128xf32> to vector<2x128xf32>
    %520 = vector.shape_cast %517 : vector<2x128xf32> to vector<1x2x128xf32>
    tpu.vector_store %arg10[%c0_129, %c0_130, %c0_131], %520 {strides = array<i32>} : memref<1x2x128xf32, #tpu.memory_space<vmem>>, vector<1x2x128xf32>,
    return
  }
  func.func @transform_0(%arg0: i32) -> (i32, i32) {
    %c0_i32 = arith.constant 0 : i32
    %c0_i32_0 = arith.constant 0 : i32
    return %arg0, %c0_i32 : i32, i32
  }
  func.func @transform_1(%arg0: i32) -> (i32, i32) {
    %c0_i32 = arith.constant 0 : i32
    %c0_i32_0 = arith.constant 0 : i32
    %c0_i32_1 = arith.constant 0 : i32
    return %c0_i32, %c0_i32_0 : i32, i32
  }
  func.func @transform_2(%arg0: i32) -> (i32, i32) {
    %c0_i32 = arith.constant 0 : i32
    %c0_i32_0 = arith.constant 0 : i32
    %c0_i32_1 = arith.constant 0 : i32
    return %c0_i32, %c0_i32_0 : i32, i32
  }
  func.func @transform_3(%arg0: i32) -> (i32, i32) {
    %c0_i32 = arith.constant 0 : i32
    %c0_i32_0 = arith.constant 0 : i32
    %c0_i32_1 = arith.constant 0 : i32
    return %c0_i32, %c0_i32_0 : i32, i32
  }
  func.func @transform_4(%arg0: i32) -> (i32, i32, i32) {
    %c0_i32 = arith.constant 0 : i32
    %c0_i32_0 = arith.constant 0 : i32
    %c0_i32_1 = arith.constant 0 : i32
    %c0_i32_2 = arith.constant 0 : i32
    return %c0_i32, %c0_i32_0, %c0_i32_1 : i32, i32, i32
  }
  func.func @transform_5(%arg0: i32) -> (i32, i32, i32) {
    %c0_i32 = arith.constant 0 : i32
    %c0_i32_0 = arith.constant 0 : i32
    %c0_i32_1 = arith.constant 0 : i32
    %c0_i32_2 = arith.constant 0 : i32
    return %c0_i32, %c0_i32_0, %c0_i32_1 : i32, i32, i32
  }
  func.func @transform_6(%arg0: i32) -> (i32, i32, i32) {
    %c0_i32 = arith.constant 0 : i32
    %c0_i32_0 = arith.constant 0 : i32
    %c0_i32_1 = arith.constant 0 : i32
    %c0_i32_2 = arith.constant 0 : i32
    return %c0_i32, %c0_i32_0, %c0_i32_1 : i32, i32, i32
  }
  func.func @transform_7(%arg0: i32) -> (i32, i32, i32) {
    %c0_i32 = arith.constant 0 : i32
    %c0_i32_0 = arith.constant 0 : i32
    %c0_i32_1 = arith.constant 0 : i32
    %c0_i32_2 = arith.constant 0 : i32
    return %c0_i32, %c0_i32_0, %c0_i32_1 : i32, i32, i32
  }
  func.func @transform_8(%arg0: i32) -> (i32, i32) {
    %c0_i32 = arith.constant 0 : i32
    %c0_i32_0 = arith.constant 0 : i32
    %c0_i32_1 = arith.constant 0 : i32
    return %c0_i32, %c0_i32_0 : i32, i32
  }
  func.func @transform_9(%arg0: i32) -> (i32, i32, i32) {
    %c0_i32 = arith.constant 0 : i32
    %c0_i32_0 = arith.constant 0 : i32
    %c0_i32_1 = arith.constant 0 : i32
    return %arg0, %c0_i32, %c0_i32_0 : i32, i32, i32
  }
}

</mosaic_0001>

<llo_original>
// kernel: tpu_custom_call.1
$region0: #{tpu_custom_call.1}
  #allocation0 [shape = 'u32[]', space=smem, size = 0x4, offset = 0x4, fixed_abs, tag = 'smem constant byte address 0x4 - core index']
  #allocation1 [shape = 'u32[72,128]{1,0:T(1,128)}', space=vmem, size = 0x9000, scoped, tag = 'internal scratch']
  %s0 = inlined_call_operand.hbm [shape: f32[16,16], index: 0, kind: input, shape index: {}]
  %s1 = inlined_call_operand.hbm [shape: f32[16,128], index: 1, kind: input, shape index: {}]
  %s2 = inlined_call_operand.hbm [shape: bf16[16,128], index: 2, kind: input, shape index: {}]
  %s3 = inlined_call_operand.vmem [shape: f32[1,128], index: 3, kind: input, shape index: {}]
  %s4 = inlined_call_operand.hbm [shape: bf16[2,128,768], index: 4, kind: input, shape index: {}]
  %s5 = inlined_call_operand.hbm [shape: bf16[2,256,128], index: 5, kind: input, shape index: {}]
  %s6 = inlined_call_operand.hbm [shape: f32[2,8,384], index: 6, kind: input, shape index: {}]
  %s7 = inlined_call_operand.hbm [shape: bf16[2,128,128], index: 7, kind: input, shape index: {}]
  %s8 = inlined_call_operand.vmem [shape: f32[2,128], index: 8, kind: input, shape index: {}]
  %s9 = inlined_call_operand.hbm [shape: f32[1,2,128], index: 9, kind: output, shape index: {}]
  %s10 = sld [smem:[#allocation0]]
  $region74: #{tpu_custom_call.1} parent=0
    _
  %s12 = ssub.s32 1, %s10
  %s13 = scalar_select 0, %s12, %s10
  $region1: #{tpu_custom_call.1} parent=0
    #allocation2 [shape = 'u8[8192]{0}', space=vmem, size = 0x2000, scoped, tag = 'input window, operand 0, single buffered']
    #allocation3 [shape = 's32[1]{0}', space=sflag, size = 0x4, scoped, tag = 'scoped memory for tpu_custom_call.1']
    #allocation4 [shape = 's32[1]{0}', space=sflag, size = 0x4, scoped, tag = 'scoped memory for tpu_custom_call.1']
    #allocation5 [shape = 'u8[8192]{0}', space=vmem, size = 0x2000, scoped, tag = 'input window, operand 1, single buffered']
    #allocation6 [shape = 's32[1]{0}', space=sflag, size = 0x4, scoped, tag = 'scoped memory for tpu_custom_call.1']
    #allocation7 [shape = 'u8[4096]{0}', space=vmem, size = 0x1000, scoped, tag = 'input window, operand 2, single buffered']
    #allocation8 [shape = 'u8[393216]{0}', space=vmem, size = 0x60000, scoped, tag = 'input window, operand 4, single buffered']
    #allocation9 [shape = 's32[1]{0}', space=sflag, size = 0x4, scoped, tag = 'scoped memory for tpu_custom_call.1']
    #allocation10 [shape = 'u8[131072]{0}', space=vmem, size = 0x20000, scoped, tag = 'input window, operand 5, single buffered']
    #allocation11 [shape = 'u8[24576]{0}', space=vmem, size = 0x6000, scoped, tag = 'input window, operand 6, single buffered']
    #allocation12 [shape = 's32[1]{0}', space=sflag, size = 0x4, scoped, tag = 'scoped memory for tpu_custom_call.1']
    #allocation13 [shape = 'u8[65536]{0}', space=vmem, size = 0x10000, scoped, tag = 'input window, operand 7, single buffered']
    #allocation14 [shape = 'u8[1024]{0}', space=vmem, size = 0x400, scoped, tag = 'output window, operand 0, single buffered']
    %14 = vsyncpa [#allocation3], 0
    %15 = vsyncpa [#allocation6], 0
    %16 = vsyncpa [#allocation9], 0
    %17 = vsyncpa [#allocation12], 0
    %18 = vsyncpa [#allocation4], 0
    // Predicated region
    $region2: #{tpu_custom_call.1} parent=1 // pred_check
      _
    $region3: #{tpu_custom_call.1} parent=1 // pred_check_branch
      %20 = sbr.rel (0) target = $region5
    $region4: #{tpu_custom_call.1} parent=1 // pred_region
      %22 = vsyncadd [#allocation3], 0
      %s23 = sshll.u32 %s0, 4
      %s24 = int_to_ptr.hbm [resolvable:$true] %s23
      %s25 = sshll.u32 [#allocation2], 4
      %s26 = int_to_ptr.vmem [resolvable:$true] %s25
      %31 = dma.hbm_to_vmem [thread:$0]  %s24, 256, %s26, [#allocation3], 128, 128, 8
    $region5: #{tpu_custom_call.1} parent=1 // pred_fallthru
      _
    // Predicated region
    $region6: #{tpu_custom_call.1} parent=1 // pred_check
      _
    $region7: #{tpu_custom_call.1} parent=1 // pred_check_branch
      %33 = sbr.rel (0) target = $region9
    $region8: #{tpu_custom_call.1} parent=1 // pred_region
      %35 = vsyncadd [#allocation6], 0
      %s36 = sshll.u32 %s1, 4
      %s37 = int_to_ptr.hbm [resolvable:$true] %s36
      %s38 = sshll.u32 [#allocation5], 4
      %s39 = int_to_ptr.vmem [resolvable:$true] %s38
      %44 = dma.hbm_to_vmem [thread:$0]  %s37, 256, %s39, [#allocation6], 128, 128, 8
    $region9: #{tpu_custom_call.1} parent=1 // pred_fallthru
      _
    // Predicated region
    $region10: #{tpu_custom_call.1} parent=1 // pred_check
      _
    $region11: #{tpu_custom_call.1} parent=1 // pred_check_branch
      %46 = sbr.rel (0) target = $region13
    $region12: #{tpu_custom_call.1} parent=1 // pred_region
      %48 = vsyncadd [#allocation6], 0
      %s49 = sshll.u32 %s2, 4
      %s50 = int_to_ptr.hbm [resolvable:$true] %s49
      %s51 = sshll.u32 [#allocation7], 4
      %s52 = int_to_ptr.vmem [resolvable:$true] %s51
      %57 = dma.hbm_to_vmem [thread:$0]  %s50, 128, %s52, [#allocation6], 64, 64, 4
    $region13: #{tpu_custom_call.1} parent=1 // pred_fallthru
      _
    // Predicated region
    $region14: #{tpu_custom_call.1} parent=1 // pred_check
      _
    $region15: #{tpu_custom_call.1} parent=1 // pred_check_branch
      %59 = sbr.rel (0) target = $region17
    $region16: #{tpu_custom_call.1} parent=1 // pred_region
      _
    $region17: #{tpu_custom_call.1} parent=1 // pred_fallthru
      _
    // Predicated region
    $region18: #{tpu_custom_call.1} parent=1 // pred_check
      _
    $region19: #{tpu_custom_call.1} parent=1 // pred_check_branch
      %61 = sbr.rel (0) target = $region21
    $region20: #{tpu_custom_call.1} parent=1 // pred_region
      %63 = vsyncadd [#allocation9], 0
      %s64 = sshll.u32 %s4, 4
      %s65 = int_to_ptr.hbm [resolvable:$true] %s64
      %s66 = sshll.u32 [#allocation8], 4
      %s67 = int_to_ptr.vmem [resolvable:$true] %s66
      %72 = dma.hbm_to_vmem [thread:$0]  %s65, 12288, %s67, [#allocation9], 384, 384, 24
    $region21: #{tpu_custom_call.1} parent=1 // pred_fallthru
      _
    // Predicated region
    $region22: #{tpu_custom_call.1} parent=1 // pred_check
      _
    $region23: #{tpu_custom_call.1} parent=1 // pred_check_branch
      %74 = sbr.rel (0) target = $region25
    $region24: #{tpu_custom_call.1} parent=1 // pred_region
      %76 = vsyncadd [#allocation9], 0
      %s77 = sshll.u32 %s5, 4
      %s78 = int_to_ptr.hbm [resolvable:$true] %s77
      %s79 = sshll.u32 [#allocation10], 4
      %s80 = int_to_ptr.vmem [resolvable:$true] %s79
      %85 = dma.hbm_to_vmem [thread:$0]  %s78, 4096, %s80, [#allocation9], 64, 64, 4
    $region25: #{tpu_custom_call.1} parent=1 // pred_fallthru
      _
    // Predicated region
    $region26: #{tpu_custom_call.1} parent=1 // pred_check
      _
    $region27: #{tpu_custom_call.1} parent=1 // pred_check_branch
      %87 = sbr.rel (0) target = $region29
    $region28: #{tpu_custom_call.1} parent=1 // pred_region
      %89 = vsyncadd [#allocation12], 0
      %s90 = sshll.u32 %s6, 4
      %s91 = int_to_ptr.hbm [resolvable:$true] %s90
      %s92 = sshll.u32 [#allocation11], 4
      %s93 = int_to_ptr.vmem [resolvable:$true] %s92
      %98 = dma.hbm_to_vmem [thread:$0]  %s91, 768, %s93, [#allocation12], 384, 384, 24
    $region29: #{tpu_custom_call.1} parent=1 // pred_fallthru
      _
    // Predicated region
    $region30: #{tpu_custom_call.1} parent=1 // pred_check
      _
    $region31: #{tpu_custom_call.1} parent=1 // pred_check_branch
      %100 = sbr.rel (0) target = $region33
    $region32: #{tpu_custom_call.1} parent=1 // pred_region
      %102 = vsyncadd [#allocation12], 0
      %s103 = sshll.u32 %s7, 4
      %s104 = int_to_ptr.hbm [resolvable:$true] %s103
      %s105 = sshll.u32 [#allocation13], 4
      %s106 = int_to_ptr.vmem [resolvable:$true] %s105
      %111 = dma.hbm_to_vmem [thread:$0]  %s104, 2048, %s106, [#allocation12], 64, 64, 4
    $region33: #{tpu_custom_call.1} parent=1 // pred_fallthru
      _
    // Predicated region
    $region34: #{tpu_custom_call.1} parent=1 // pred_check
      _
    $region35: #{tpu_custom_call.1} parent=1 // pred_check_branch
      %113 = sbr.rel (0) target = $region37
    $region36: #{tpu_custom_call.1} parent=1 // pred_region
      _
    $region37: #{tpu_custom_call.1} parent=1 // pred_fallthru
      _
    // Predicated region
    $region38: #{tpu_custom_call.1} parent=1 // pred_check
      _
    $region39: #{tpu_custom_call.1} parent=1 // pred_check_branch
      %115 = sbr.rel (0) target = $region41
    $region40: #{tpu_custom_call.1} parent=1 // pred_region
      %117 = dma.done [#allocation3], 256
    $region41: #{tpu_custom_call.1} parent=1 // pred_fallthru
      _
    // Predicated region
    $region42: #{tpu_custom_call.1} parent=1 // pred_check
      _
    $region43: #{tpu_custom_call.1} parent=1 // pred_check_branch
      %119 = sbr.rel (0) target = $region45
    $region44: #{tpu_custom_call.1} parent=1 // pred_region
      %121 = dma.done [#allocation6], 256
    $region45: #{tpu_custom_call.1} parent=1 // pred_fallthru
      _
    // Predicated region
    $region46: #{tpu_custom_call.1} parent=1 // pred_check
      _
    $region47: #{tpu_custom_call.1} parent=1 // pred_check_branch
      %123 = sbr.rel (0) target = $region49
    $region48: #{tpu_custom_call.1} parent=1 // pred_region
      %125 = dma.done [#allocation6], 128
    $region49: #{tpu_custom_call.1} parent=1 // pred_fallthru
      _
    // Predicated region
    $region50: #{tpu_custom_call.1} parent=1 // pred_check
      _
    $region51: #{tpu_custom_call.1} parent=1 // pred_check_branch
      %127 = sbr.rel (0) target = $region53
    $region52: #{tpu_custom_call.1} parent=1 // pred_region
      %129 = dma.done [#allocation9], 12288
    $region53: #{tpu_custom_call.1} parent=1 // pred_fallthru
      _
    // Predicated region
    $region54: #{tpu_custom_call.1} parent=1 // pred_check
      _
    $region55: #{tpu_custom_call.1} parent=1 // pred_check_branch
      %131 = sbr.rel (0) target = $region57
    $region56: #{tpu_custom_call.1} parent=1 // pred_region
      %133 = dma.done [#allocation9], 4096
    $region57: #{tpu_custom_call.1} parent=1 // pred_fallthru
      _
    // Predicated region
    $region58: #{tpu_custom_call.1} parent=1 // pred_check
      _
    $region59: #{tpu_custom_call.1} parent=1 // pred_check_branch
      %135 = sbr.rel (0) target = $region61
    $region60: #{tpu_custom_call.1} parent=1 // pred_region
      %137 = dma.done [#allocation12], 768
    $region61: #{tpu_custom_call.1} parent=1 // pred_fallthru
      _
    // Predicated region
    $region62: #{tpu_custom_call.1} parent=1 // pred_check
      _
    $region63: #{tpu_custom_call.1} parent=1 // pred_check_branch
      %139 = sbr.rel (0) target = $region65
    $region64: #{tpu_custom_call.1} parent=1 // pred_region
      %141 = dma.done [#allocation12], 2048
    $region65: #{tpu_custom_call.1} parent=1 // pred_fallthru
      _
    %v143 = vld [vmem:[#allocation8] sm:$0xff]
    %v144 = vld [vmem:[#allocation8 + $0x8] sm:$0xff]
    %v145 = vld [vmem:[#allocation8 + $0x10] sm:$0xff]
    %v146 = vld [vmem:[#allocation8 + $0x18] sm:$0xff]
    %v147 = vld [vmem:[#allocation8 + $0x20] sm:$0xff]
    %v148 = vld [vmem:[#allocation8 + $0x28] sm:$0xff]
    %v149 = vld [vmem:[#allocation8 + $0x30] sm:$0xff]
    %v150 = vld [vmem:[#allocation8 + $0x38] sm:$0xff]
    %v151 = vld [vmem:[#allocation8 + $0x40] sm:$0xff]
    %v152 = vld [vmem:[#allocation8 + $0x48] sm:$0xff]
    %v153 = vld [vmem:[#allocation8 + $0x50] sm:$0xff]
    %v154 = vld [vmem:[#allocation8 + $0x58] sm:$0xff]
    %v155 = vld [vmem:[#allocation8 + $0x60] sm:$0xff]
    %v156 = vld [vmem:[#allocation8 + $0x68] sm:$0xff]
    %v157 = vld [vmem:[#allocation8 + $0x70] sm:$0xff]
    %v158 = vld [vmem:[#allocation8 + $0x78] sm:$0xff]
    %v159 = vld [vmem:[#allocation8 + $0x80] sm:$0xff]
    %v160 = vld [vmem:[#allocation8 + $0x88] sm:$0xff]
    %v161 = vld [vmem:[#allocation8 + $0x90] sm:$0xff]
    %v162 = vld [vmem:[#allocation8 + $0x98] sm:$0xff]
    %v163 = vld [vmem:[#allocation8 + $0xa0] sm:$0xff]
    %v164 = vld [vmem:[#allocation8 + $0xa8] sm:$0xff]
    %v165 = vld [vmem:[#allocation8 + $0xb0] sm:$0xff]
    %v166 = vld [vmem:[#allocation8 + $0xb8] sm:$0xff]
    %v167 = vld [vmem:[#allocation8 + $0xc0] sm:$0xff]
    %v168 = vld [vmem:[#allocation8 + $0xc8] sm:$0xff]
    %v169 = vld [vmem:[#allocation8 + $0xd0] sm:$0xff]
    %v170 = vld [vmem:[#allocation8 + $0xd8] sm:$0xff]
    %v171 = vld [vmem:[#allocation8 + $0xe0] sm:$0xff]
    %v172 = vld [vmem:[#allocation8 + $0xe8] sm:$0xff]
    %v173 = vld [vmem:[#allocation8 + $0xf0] sm:$0xff]
    %v174 = vld [vmem:[#allocation8 + $0xf8] sm:$0xff]
    %v175 = vld [vmem:[#allocation8 + $0x100] sm:$0xff]
    %v176 = vld [vmem:[#allocation8 + $0x108] sm:$0xff]
    %v177 = vld [vmem:[#allocation8 + $0x110] sm:$0xff]
    %v178 = vld [vmem:[#allocation8 + $0x118] sm:$0xff]
    %v179 = vld [vmem:[#allocation8 + $0x120] sm:$0xff]
    %v180 = vld [vmem:[#allocation8 + $0x128] sm:$0xff]
    %v181 = vld [vmem:[#allocation8 + $0x130] sm:$0xff]
    %v182 = vld [vmem:[#allocation8 + $0x138] sm:$0xff]
    %v183 = vld [vmem:[#allocation8 + $0x140] sm:$0xff]
    %v184 = vld [vmem:[#allocation8 + $0x148] sm:$0xff]
    %v185 = vld [vmem:[#allocation8 + $0x150] sm:$0xff]
    %v186 = vld [vmem:[#allocation8 + $0x158] sm:$0xff]
    %v187 = vld [vmem:[#allocation8 + $0x160] sm:$0xff]
    %v188 = vld [vmem:[#allocation8 + $0x168] sm:$0xff]
    %v189 = vld [vmem:[#allocation8 + $0x170] sm:$0xff]
    %v190 = vld [vmem:[#allocation8 + $0x178] sm:$0xff]
    %v191 = vld [vmem:[#allocation10] sm:$0xf]
    %v192 = vld [vmem:[#allocation10 + $0x4] sm:$0xf]
    %v193 = vld [vmem:[#allocation10 + $0x8] sm:$0xf]
    %v194 = vld [vmem:[#allocation10 + $0xc] sm:$0xf]
    %v195 = vld [vmem:[#allocation10 + $0x10] sm:$0xf]
    %v196 = vld [vmem:[#allocation10 + $0x14] sm:$0xf]
    %v197 = vld [vmem:[#allocation10 + $0x18] sm:$0xf]
    %v198 = vld [vmem:[#allocation10 + $0x1c] sm:$0xf]
    %v199 = vld [vmem:[#allocation10 + $0x20] sm:$0xf]
    %v200 = vld [vmem:[#allocation10 + $0x24] sm:$0xf]
    %v201 = vld [vmem:[#allocation10 + $0x28] sm:$0xf]
    %v202 = vld [vmem:[#allocation10 + $0x2c] sm:$0xf]
    %v203 = vld [vmem:[#allocation10 + $0x30] sm:$0xf]
    %v204 = vld [vmem:[#allocation10 + $0x34] sm:$0xf]
    %v205 = vld [vmem:[#allocation10 + $0x38] sm:$0xf]
    %v206 = vld [vmem:[#allocation10 + $0x3c] sm:$0xf]
    %v207 = vld [vmem:[#allocation10 + $0x40] sm:$0xf]
    %v208 = vld [vmem:[#allocation10 + $0x44] sm:$0xf]
    %v209 = vld [vmem:[#allocation10 + $0x48] sm:$0xf]
    %v210 = vld [vmem:[#allocation10 + $0x4c] sm:$0xf]
    %v211 = vld [vmem:[#allocation10 + $0x50] sm:$0xf]
    %v212 = vld [vmem:[#allocation10 + $0x54] sm:$0xf]
    %v213 = vld [vmem:[#allocation10 + $0x58] sm:$0xf]
    %v214 = vld [vmem:[#allocation10 + $0x5c] sm:$0xf]
    %v215 = vld [vmem:[#allocation10 + $0x60] sm:$0xf]
    %v216 = vld [vmem:[#allocation10 + $0x64] sm:$0xf]
    %v217 = vld [vmem:[#allocation10 + $0x68] sm:$0xf]
    %v218 = vld [vmem:[#allocation10 + $0x6c] sm:$0xf]
    %v219 = vld [vmem:[#allocation10 + $0x70] sm:$0xf]
    %v220 = vld [vmem:[#allocation10 + $0x74] sm:$0xf]
    %v221 = vld [vmem:[#allocation10 + $0x78] sm:$0xf]
    %v222 = vld [vmem:[#allocation10 + $0x7c] sm:$0xf]
    %v223 = vld [vmem:[#allocation11] sm:$0xff]
    %v224 = vld [vmem:[#allocation11 + $0x8] sm:$0xff]
    %v225 = vld [vmem:[#allocation11 + $0x10] sm:$0xff]
    %s226 = scalar_lea.vmem [#allocation8], 384
    %v227 = vld [vmem:[%s226] sm:$0xff]
    %v228 = vld [vmem:[%s226 + $0x8] sm:$0xff]
    %v229 = vld [vmem:[%s226 + $0x10] sm:$0xff]
    %v230 = vld [vmem:[%s226 + $0x18] sm:$0xff]
    %v231 = vld [vmem:[%s226 + $0x20] sm:$0xff]
    %v232 = vld [vmem:[%s226 + $0x28] sm:$0xff]
    %v233 = vld [vmem:[%s226 + $0x30] sm:$0xff]
    %v234 = vld [vmem:[%s226 + $0x38] sm:$0xff]
    %v235 = vld [vmem:[%s226 + $0x40] sm:$0xff]
    %v236 = vld [vmem:[%s226 + $0x48] sm:$0xff]
    %v237 = vld [vmem:[%s226 + $0x50] sm:$0xff]
    %v238 = vld [vmem:[%s226 + $0x58] sm:$0xff]
    %v239 = vld [vmem:[%s226 + $0x60] sm:$0xff]
    %v240 = vld [vmem:[%s226 + $0x68] sm:$0xff]
    %v241 = vld [vmem:[%s226 + $0x70] sm:$0xff]
    %v242 = vld [vmem:[%s226 + $0x78] sm:$0xff]
    %v243 = vld [vmem:[%s226 + $0x80] sm:$0xff]
    %v244 = vld [vmem:[%s226 + $0x88] sm:$0xff]
    %v245 = vld [vmem:[%s226 + $0x90] sm:$0xff]
    %v246 = vld [vmem:[%s226 + $0x98] sm:$0xff]
    %v247 = vld [vmem:[%s226 + $0xa0] sm:$0xff]
    %v248 = vld [vmem:[%s226 + $0xa8] sm:$0xff]
    %v249 = vld [vmem:[%s226 + $0xb0] sm:$0xff]
    %v250 = vld [vmem:[%s226 + $0xb8] sm:$0xff]
    %v251 = vld [vmem:[%s226 + $0xc0] sm:$0xff]
    %v252 = vld [vmem:[%s226 + $0xc8] sm:$0xff]
    %v253 = vld [vmem:[%s226 + $0xd0] sm:$0xff]
    %v254 = vld [vmem:[%s226 + $0xd8] sm:$0xff]
    %v255 = vld [vmem:[%s226 + $0xe0] sm:$0xff]
    %v256 = vld [vmem:[%s226 + $0xe8] sm:$0xff]
    %v257 = vld [vmem:[%s226 + $0xf0] sm:$0xff]
    %v258 = vld [vmem:[%s226 + $0xf8] sm:$0xff]
    %v259 = vld [vmem:[%s226 + $0x100] sm:$0xff]
    %v260 = vld [vmem:[%s226 + $0x108] sm:$0xff]
    %v261 = vld [vmem:[%s226 + $0x110] sm:$0xff]
    %v262 = vld [vmem:[%s226 + $0x118] sm:$0xff]
    %v263 = vld [vmem:[%s226 + $0x120] sm:$0xff]
    %v264 = vld [vmem:[%s226 + $0x128] sm:$0xff]
    %v265 = vld [vmem:[%s226 + $0x130] sm:$0xff]
    %v266 = vld [vmem:[%s226 + $0x138] sm:$0xff]
    %v267 = vld [vmem:[%s226 + $0x140] sm:$0xff]
    %v268 = vld [vmem:[%s226 + $0x148] sm:$0xff]
    %v269 = vld [vmem:[%s226 + $0x150] sm:$0xff]
    %v270 = vld [vmem:[%s226 + $0x158] sm:$0xff]
    %v271 = vld [vmem:[%s226 + $0x160] sm:$0xff]
    %v272 = vld [vmem:[%s226 + $0x168] sm:$0xff]
    %v273 = vld [vmem:[%s226 + $0x170] sm:$0xff]
    %v274 = vld [vmem:[%s226 + $0x178] sm:$0xff]
    %s275 = scalar_lea.vmem [#allocation10], 128
    %v276 = vld [vmem:[%s275] sm:$0xf]
    %v277 = vld [vmem:[%s275 + $0x4] sm:$0xf]
    %v278 = vld [vmem:[%s275 + $0x8] sm:$0xf]
    %v279 = vld [vmem:[%s275 + $0xc] sm:$0xf]
    %v280 = vld [vmem:[%s275 + $0x10] sm:$0xf]
    %v281 = vld [vmem:[%s275 + $0x14] sm:$0xf]
    %v282 = vld [vmem:[%s275 + $0x18] sm:$0xf]
    %v283 = vld [vmem:[%s275 + $0x1c] sm:$0xf]
    %v284 = vld [vmem:[%s275 + $0x20] sm:$0xf]
    %v285 = vld [vmem:[%s275 + $0x24] sm:$0xf]
    %v286 = vld [vmem:[%s275 + $0x28] sm:$0xf]
    %v287 = vld [vmem:[%s275 + $0x2c] sm:$0xf]
    %v288 = vld [vmem:[%s275 + $0x30] sm:$0xf]
    %v289 = vld [vmem:[%s275 + $0x34] sm:$0xf]
    %v290 = vld [vmem:[%s275 + $0x38] sm:$0xf]
    %v291 = vld [vmem:[%s275 + $0x3c] sm:$0xf]
    %v292 = vld [vmem:[%s275 + $0x40] sm:$0xf]
    %v293 = vld [vmem:[%s275 + $0x44] sm:$0xf]
    %v294 = vld [vmem:[%s275 + $0x48] sm:$0xf]
    %v295 = vld [vmem:[%s275 + $0x4c] sm:$0xf]
    %v296 = vld [vmem:[%s275 + $0x50] sm:$0xf]
    %v297 = vld [vmem:[%s275 + $0x54] sm:$0xf]
    %v298 = vld [vmem:[%s275 + $0x58] sm:$0xf]
    %v299 = vld [vmem:[%s275 + $0x5c] sm:$0xf]
    %v300 = vld [vmem:[%s275 + $0x60] sm:$0xf]
    %v301 = vld [vmem:[%s275 + $0x64] sm:$0xf]
    %v302 = vld [vmem:[%s275 + $0x68] sm:$0xf]
    %v303 = vld [vmem:[%s275 + $0x6c] sm:$0xf]
    %v304 = vld [vmem:[%s275 + $0x70] sm:$0xf]
    %v305 = vld [vmem:[%s275 + $0x74] sm:$0xf]
    %v306 = vld [vmem:[%s275 + $0x78] sm:$0xf]
    %v307 = vld [vmem:[%s275 + $0x7c] sm:$0xf]
    %s308 = scalar_lea.vmem [#allocation11], 24
    %v309 = vld [vmem:[%s308] sm:$0xff]
    %v310 = vld [vmem:[%s308 + $0x8] sm:$0xff]
    %v311 = vld [vmem:[%s308 + $0x10] sm:$0xff]
    %v312 = vld [vmem:[#allocation2] sm:$0xff]
    %v313 = vld [vmem:[#allocation2 + $0x8] sm:$0xff]
    %v314 = vld [vmem:[#allocation5] sm:$0xff]
    %v315 = vld [vmem:[#allocation5 + $0x8] sm:$0xff]
    %v316 = vld [vmem:[#allocation7] sm:$0xf]
    %v317 = vld [vmem:[#allocation7 + $0x4] sm:$0xf]
    %v318 = vld [vmem:[%s3] sm:$0x1]
    %v319 = vld [vmem:[#allocation13] sm:$0xf]
    %v320 = vld [vmem:[#allocation13 + $0x4] sm:$0xf]
    %v321 = vld [vmem:[#allocation13 + $0x8] sm:$0xf]
    %v322 = vld [vmem:[#allocation13 + $0xc] sm:$0xf]
    %v323 = vld [vmem:[#allocation13 + $0x10] sm:$0xf]
    %v324 = vld [vmem:[#allocation13 + $0x14] sm:$0xf]
    %v325 = vld [vmem:[#allocation13 + $0x18] sm:$0xf]
    %v326 = vld [vmem:[#allocation13 + $0x1c] sm:$0xf]
    %v327 = vld [vmem:[#allocation13 + $0x20] sm:$0xf]
    %v328 = vld [vmem:[#allocation13 + $0x24] sm:$0xf]
    %v329 = vld [vmem:[#allocation13 + $0x28] sm:$0xf]
    %v330 = vld [vmem:[#allocation13 + $0x2c] sm:$0xf]
    %v331 = vld [vmem:[#allocation13 + $0x30] sm:$0xf]
    %v332 = vld [vmem:[#allocation13 + $0x34] sm:$0xf]
    %v333 = vld [vmem:[#allocation13 + $0x38] sm:$0xf]
    %v334 = vld [vmem:[#allocation13 + $0x3c] sm:$0xf]
    %v335 = vld [vmem:[#allocation13 + $0x40] sm:$0xf]
    %v336 = vld [vmem:[#allocation13 + $0x44] sm:$0xf]
    %v337 = vld [vmem:[#allocation13 + $0x48] sm:$0xf]
    %v338 = vld [vmem:[#allocation13 + $0x4c] sm:$0xf]
    %v339 = vld [vmem:[#allocation13 + $0x50] sm:$0xf]
    %v340 = vld [vmem:[#allocation13 + $0x54] sm:$0xf]
    %v341 = vld [vmem:[#allocation13 + $0x58] sm:$0xf]
    %v342 = vld [vmem:[#allocation13 + $0x5c] sm:$0xf]
    %v343 = vld [vmem:[#allocation13 + $0x60] sm:$0xf]
    %v344 = vld [vmem:[#allocation13 + $0x64] sm:$0xf]
    %v345 = vld [vmem:[#allocation13 + $0x68] sm:$0xf]
    %v346 = vld [vmem:[#allocation13 + $0x6c] sm:$0xf]
    %v347 = vld [vmem:[#allocation13 + $0x70] sm:$0xf]
    %v348 = vld [vmem:[#allocation13 + $0x74] sm:$0xf]
    %v349 = vld [vmem:[#allocation13 + $0x78] sm:$0xf]
    %v350 = vld [vmem:[#allocation13 + $0x7c] sm:$0xf]
    %v351 = vld [vmem:[%s8] sm:$0x3]
    %v352 = vpack.c.bf16 %v313, %v312
    %v354 = vperm.slane %v318, 0
    %v358 = vunpack.c.l.b16 %v316
    %v359 = vunpack.c.l.b16 %v317
    %v360 = vpack.c.b16 %v359, %v358
    %vm362 = vcmask 130048
    %v364 = vsel %vm362, %v352, 0
    %366 = vmatpush.bf16.msra.mxu0 0
    %367 = vmatpush.bf16.msra.mxu0 0
    %368 = vmatpush.bf16.msra.mxu0 0
    %369 = vmatpush.bf16.msra.mxu0 0
    %370 = vmatpush.bf16.msra.mxu0 0
    %371 = vmatpush.bf16.msra.mxu0 0
    %372 = vmatpush.bf16.msra.mxu0 0
    %373 = vmatpush.bf16.msra.mxu0 %v360
    %374 = vmatmul.bf16.gmra.mxu0 %v364
    %v375 = vpop.f32.mrf.mxu0
    %v376 = vadd.f32 %v354, %v375
    %v377 = vpop.f32.mrf.mxu0
    %v378 = vadd.f32 %v354, %v377
    %379 = vdwg.mxu0
    %v380 = vadd.f32 %v376, %v314
    %v381 = vadd.f32 %v378, %v315
    %v382 = vpack.c.bf16 %v381, %v380
    %v383 = vperm.slane %v223, 0
    %v384 = vperm.slane %v224, 0
    %v385 = vperm.slane %v225, 0
    %v418 = vunpack.c.l.b16 %v143
    %v419 = vunpack.c.h.b16 %v143
    %v420 = vunpack.c.l.b16 %v144
    %v421 = vunpack.c.l.b16 %v146
    %v422 = vunpack.c.h.b16 %v146
    %v423 = vunpack.c.l.b16 %v147
    %v424 = vunpack.c.l.b16 %v149
    %v425 = vunpack.c.h.b16 %v149
    %v426 = vunpack.c.l.b16 %v150
    %v427 = vunpack.c.l.b16 %v152
    %v428 = vunpack.c.h.b16 %v152
    %v429 = vunpack.c.l.b16 %v153
    %v430 = vunpack.c.l.b16 %v155
    %v431 = vunpack.c.h.b16 %v155
    %v432 = vunpack.c.l.b16 %v156
    %v433 = vunpack.c.l.b16 %v158
    %v434 = vunpack.c.h.b16 %v158
    %v435 = vunpack.c.l.b16 %v159
    %v436 = vunpack.c.l.b16 %v161
    %v437 = vunpack.c.h.b16 %v161
    %v438 = vunpack.c.l.b16 %v162
    %v439 = vunpack.c.l.b16 %v164
    %v440 = vunpack.c.h.b16 %v164
    %v441 = vunpack.c.l.b16 %v165
    %v442 = vunpack.c.l.b16 %v167
    %v443 = vunpack.c.h.b16 %v167
    %v444 = vunpack.c.l.b16 %v168
    %v445 = vunpack.c.l.b16 %v170
    %v446 = vunpack.c.h.b16 %v170
    %v447 = vunpack.c.l.b16 %v171
    %v448 = vunpack.c.l.b16 %v173
    %v449 = vunpack.c.h.b16 %v173
    %v450 = vunpack.c.l.b16 %v174
    %v451 = vunpack.c.l.b16 %v176
    %v452 = vunpack.c.h.b16 %v176
    %v453 = vunpack.c.l.b16 %v177
    %v454 = vunpack.c.l.b16 %v179
    %v455 = vunpack.c.h.b16 %v179
    %v456 = vunpack.c.l.b16 %v180
    %v457 = vunpack.c.l.b16 %v182
    %v458 = vunpack.c.h.b16 %v182
    %v459 = vunpack.c.l.b16 %v183
    %v460 = vunpack.c.l.b16 %v185
    %v461 = vunpack.c.h.b16 %v185
    %v462 = vunpack.c.l.b16 %v186
    %v463 = vunpack.c.l.b16 %v188
    %v464 = vunpack.c.h.b16 %v188
    %v465 = vunpack.c.l.b16 %v189
    %v466 = vpack.c.b16 %v421, %v418
    %v467 = vpack.c.b16 %v422, %v419
    %v468 = vpack.c.b16 %v423, %v420
    %v469 = vpack.c.b16 %v427, %v424
    %v470 = vpack.c.b16 %v428, %v425
    %v471 = vpack.c.b16 %v429, %v426
    %v472 = vpack.c.b16 %v433, %v430
    %v473 = vpack.c.b16 %v434, %v431
    %v474 = vpack.c.b16 %v435, %v432
    %v475 = vpack.c.b16 %v439, %v436
    %v476 = vpack.c.b16 %v440, %v437
    %v477 = vpack.c.b16 %v441, %v438
    %v478 = vpack.c.b16 %v445, %v442
    %v479 = vpack.c.b16 %v446, %v443
    %v480 = vpack.c.b16 %v447, %v444
    %v481 = vpack.c.b16 %v451, %v448
    %v482 = vpack.c.b16 %v452, %v449
    %v483 = vpack.c.b16 %v453, %v450
    %v484 = vpack.c.b16 %v457, %v454
    %v485 = vpack.c.b16 %v458, %v455
    %v486 = vpack.c.b16 %v459, %v456
    %v487 = vpack.c.b16 %v463, %v460
    %v488 = vpack.c.b16 %v464, %v461
    %v489 = vpack.c.b16 %v465, %v462
    %514 = vmatpush.bf16.msra.mxu0 %v487
    %515 = vmatpush.bf16.msra.mxu0 %v484
    %516 = vmatpush.bf16.msra.mxu0 %v481
    %517 = vmatpush.bf16.msra.mxu0 %v478
    %518 = vmatpush.bf16.msra.mxu0 %v475
    %519 = vmatpush.bf16.msra.mxu0 %v472
    %520 = vmatpush.bf16.msra.mxu0 %v469
    %521 = vmatpush.bf16.msra.mxu0 %v466
    %522 = vmatmul.bf16.gmra.mxu0 %v382
    %v523 = vpop.f32.mrf.mxu0
    %v524 = vadd.f32 %v383, %v523
    %v525 = vpop.f32.mrf.mxu0
    %v526 = vadd.f32 %v383, %v525
    %527 = vdwg.mxu0
    %528 = vmatpush.bf16.msra.mxu0 %v488
    %529 = vmatpush.bf16.msra.mxu0 %v485
    %530 = vmatpush.bf16.msra.mxu0 %v482
    %531 = vmatpush.bf16.msra.mxu0 %v479
    %532 = vmatpush.bf16.msra.mxu0 %v476
    %533 = vmatpush.bf16.msra.mxu0 %v473
    %534 = vmatpush.bf16.msra.mxu0 %v470
    %535 = vmatpush.bf16.msra.mxu0 %v467
    %536 = vmatmul.bf16.gmra.mxu0 %v382
    %v537 = vpop.f32.mrf.mxu0
    %v538 = vadd.f32 %v384, %v537
    %v539 = vpop.f32.mrf.mxu0
    %v540 = vadd.f32 %v384, %v539
    %541 = vdwg.mxu0
    %542 = vmatpush.bf16.msra.mxu0 %v489
    %543 = vmatpush.bf16.msra.mxu0 %v486
    %544 = vmatpush.bf16.msra.mxu0 %v483
    %545 = vmatpush.bf16.msra.mxu0 %v480
    %546 = vmatpush.bf16.msra.mxu0 %v477
    %547 = vmatpush.bf16.msra.mxu0 %v474
    %548 = vmatpush.bf16.msra.mxu0 %v471
    %549 = vmatpush.bf16.msra.mxu0 %v468
    %550 = vmatmul.bf16.gmra.mxu0 %v382
    %v551 = vpop.f32.mrf.mxu0
    %v552 = vadd.f32 %v385, %v551
    %v553 = vpop.f32.mrf.mxu0
    %v554 = vadd.f32 %v385, %v553
    %555 = vdwg.mxu0
    %v556 = vpack.c.bf16 %v524, %v524
    %v557 = vpack.c.bf16 %v526, %v526
    %v558 = vpack.c.bf16 %v538, %v538
    %v559 = vpack.c.bf16 %v540, %v540
    %v560 = vpack.c.bf16 %v552, %v552
    %v561 = vpack.c.bf16 %v554, %v554
    %v563 = vsel %vm362, %v556, 0
    %v566 = vsel %vm362, %v558, 0
    %568 = vmatpush.bf16.xpose.msra.mxu0 0
    %569 = vmatpush.bf16.xpose.msra.mxu0 0
    %570 = vmatpush.bf16.xpose.msra.mxu0 0
    %571 = vmatpush.bf16.xpose.msra.mxu0 0
    %572 = vmatpush.bf16.xpose.msra.mxu0 0
    %573 = vmatpush.bf16.xpose.msra.mxu0 0
    %574 = vmatpush.bf16.xpose.msra.mxu0 0
    %575 = vmatpush.bf16.xpose.msra.mxu0 %v566
    %576 = vmatmul.bf16.gmra.mxu0 %v563
    %v577 = vpop.f32.mrf.mxu0
    %v578 = vadd.f32 0.0, %v577
    %v579 = vpop.f32.mrf.mxu0
    %580 = vdwg.mxu0
    %v582 = vsel %vm362, %v557, 0
    %v585 = vsel %vm362, %v559, 0
    %587 = vmatpush.bf16.xpose.msra.mxu0 0
    %588 = vmatpush.bf16.xpose.msra.mxu0 0
    %589 = vmatpush.bf16.xpose.msra.mxu0 0
    %590 = vmatpush.bf16.xpose.msra.mxu0 0
    %591 = vmatpush.bf16.xpose.msra.mxu0 0
    %592 = vmatpush.bf16.xpose.msra.mxu0 0
    %593 = vmatpush.bf16.xpose.msra.mxu0 0
    %594 = vmatpush.bf16.xpose.msra.mxu0 %v585
    %595 = vmatmul.bf16.gmra.mxu0 %v582
    %v596 = vpop.f32.mrf.mxu0
    %v597 = vadd.f32 0.0, %v596
    %v598 = vpop.f32.mrf.mxu0
    %599 = vdwg.mxu0
    %vm600 = vcmask 64512
    %v601 = vsel %vm600, %v578, -inf
    %602 = vmax.xlane.f32.xlu0 %v601
    %v603 = vpop.xlane.xlu0 %602
    %v604 = vsel %vm600, %v597, -inf
    %605 = vmax.xlane.f32.xlu0 %v604
    %v606 = vpop.xlane.xlu0 %605
    %v607 = vsub.f32 %v578, %v603
    %v608 = vsub.f32 %v597, %v606
    %v609 = vmul.f32 %v607, 1.442695
    %v610 = vpow.pop %v609
    %v611 = vmul.f32 %v608, 1.442695
    %v612 = vpow.pop %v611
    %v613 = vpack.c.bf16 %v610, %v610
    %v614 = vpack.c.bf16 %v612, %v612
    %v616 = vsel %vm600, %v613, 0
    %vm618 = vcmask 1043456
    %v620 = vsel %vm618, %v560, 0
    %622 = vmatpush.bf16.msra.mxu0 0
    %623 = vmatpush.bf16.msra.mxu0 0
    %624 = vmatpush.bf16.msra.mxu0 0
    %625 = vmatpush.bf16.msra.mxu0 0
    %626 = vmatpush.bf16.msra.mxu0 0
    %627 = vmatpush.bf16.msra.mxu0 0
    %628 = vmatpush.bf16.msra.mxu0 0
    %629 = vmatpush.bf16.msra.mxu0 %v620
    %630 = vmatmul.bf16.gmra.mxu0 %v616
    %v631 = vpop.f32.mrf.mxu0
    %v632 = vadd.f32 0.0, %v631
    %v633 = vpop.f32.mrf.mxu0
    %634 = vdwg.mxu0
    %v636 = vsel %vm600, %v614, 0
    %v639 = vsel %vm618, %v561, 0
    %641 = vmatpush.bf16.msra.mxu0 0
    %642 = vmatpush.bf16.msra.mxu0 0
    %643 = vmatpush.bf16.msra.mxu0 0
    %644 = vmatpush.bf16.msra.mxu0 0
    %645 = vmatpush.bf16.msra.mxu0 0
    %646 = vmatpush.bf16.msra.mxu0 0
    %647 = vmatpush.bf16.msra.mxu0 0
    %648 = vmatpush.bf16.msra.mxu0 %v639
    %649 = vmatmul.bf16.gmra.mxu0 %v636
    %v650 = vpop.f32.mrf.mxu0
    %v651 = vadd.f32 0.0, %v650
    %v652 = vpop.f32.mrf.mxu0
    %653 = vdwg.mxu0
    %v654 = vsel %vm600, %v610, 0.0
    %655 = vadd.xlane.f32.xlu0 %v654
    %v656 = vpop.xlane.xlu0 %655
    %v657 = vsel %vm600, %v612, 0.0
    %658 = vadd.xlane.f32.xlu0 %v657
    %v659 = vpop.xlane.xlu0 %658
    %v660 = vrcp.pop %v656
    %v661 = vrcp.pop %v659
    %v662 = vmul.f32 %v632, %v660
    %v663 = vmul.f32 %v651, %v661
    %v665 = vunpack.c.l.b16 %v556
    %v666 = vpack.c.b16 %v665, %v665
    %667 = vrot.lane.b32.xlu0 %v666, 112
    %v668 = vpop.permute.xlu0 %667
    %v670 = vunpack.c.l.b16 %v558
    %v671 = vpack.c.b16 %v670, %v670
    %672 = vrot.lane.b32.xlu0 %v671, 112
    %v673 = vpop.permute.xlu0 %672
    %v675 = vsel %vm362, %v668, 0
    %v678 = vsel %vm362, %v673, 0
    %680 = vmatpush.bf16.xpose.msra.mxu0 0
    %681 = vmatpush.bf16.xpose.msra.mxu0 0
    %682 = vmatpush.bf16.xpose.msra.mxu0 0
    %683 = vmatpush.bf16.xpose.msra.mxu0 0
    %684 = vmatpush.bf16.xpose.msra.mxu0 0
    %685 = vmatpush.bf16.xpose.msra.mxu0 0
    %686 = vmatpush.bf16.xpose.msra.mxu0 0
    %687 = vmatpush.bf16.xpose.msra.mxu0 %v678
    %688 = vmatmul.bf16.gmra.mxu0 %v675
    %v689 = vpop.f32.mrf.mxu0
    %v690 = vadd.f32 0.0, %v689
    %v691 = vpop.f32.mrf.mxu0
    %692 = vdwg.mxu0
    %v694 = vunpack.c.l.b16 %v557
    %v695 = vpack.c.b16 %v694, %v694
    %696 = vrot.lane.b32.xlu0 %v695, 112
    %v697 = vpop.permute.xlu0 %696
    %v699 = vunpack.c.l.b16 %v559
    %v700 = vpack.c.b16 %v699, %v699
    %701 = vrot.lane.b32.xlu0 %v700, 112
    %v702 = vpop.permute.xlu0 %701
    %v704 = vsel %vm362, %v697, 0
    %v707 = vsel %vm362, %v702, 0
    %709 = vmatpush.bf16.xpose.msra.mxu0 0
    %710 = vmatpush.bf16.xpose.msra.mxu0 0
    %711 = vmatpush.bf16.xpose.msra.mxu0 0
    %712 = vmatpush.bf16.xpose.msra.mxu0 0
    %713 = vmatpush.bf16.xpose.msra.mxu0 0
    %714 = vmatpush.bf16.xpose.msra.mxu0 0
    %715 = vmatpush.bf16.xpose.msra.mxu0 0
    %716 = vmatpush.bf16.xpose.msra.mxu0 %v707
    %717 = vmatmul.bf16.gmra.mxu0 %v704
    %v718 = vpop.f32.mrf.mxu0
    %v719 = vadd.f32 0.0, %v718
    %v720 = vpop.f32.mrf.mxu0
    %721 = vdwg.mxu0
    %v722 = vsel %vm600, %v690, -inf
    %723 = vmax.xlane.f32.xlu0 %v722
    %v724 = vpop.xlane.xlu0 %723
    %v725 = vsel %vm600, %v719, -inf
    %726 = vmax.xlane.f32.xlu0 %v725
    %v727 = vpop.xlane.xlu0 %726
    %v728 = vsub.f32 %v690, %v724
    %v729 = vsub.f32 %v719, %v727
    %v730 = vmul.f32 %v728, 1.442695
    %v731 = vpow.pop %v730
    %v732 = vmul.f32 %v729, 1.442695
    %v733 = vpow.pop %v732
    %v734 = vpack.c.bf16 %v731, %v731
    %v735 = vpack.c.bf16 %v733, %v733
    %v737 = vunpack.c.l.b16 %v560
    %v738 = vpack.c.b16 %v737, %v737
    %739 = vrot.lane.b32.xlu0 %v738, 112
    %v740 = vpop.permute.xlu0 %739
    %v742 = vsel %vm600, %v734, 0
    %v745 = vsel %vm618, %v740, 0
    %747 = vmatpush.bf16.msra.mxu0 0
    %748 = vmatpush.bf16.msra.mxu0 0
    %749 = vmatpush.bf16.msra.mxu0 0
    %750 = vmatpush.bf16.msra.mxu0 0
    %751 = vmatpush.bf16.msra.mxu0 0
    %752 = vmatpush.bf16.msra.mxu0 0
    %753 = vmatpush.bf16.msra.mxu0 0
    %754 = vmatpush.bf16.msra.mxu0 %v745
    %755 = vmatmul.bf16.gmra.mxu0 %v742
    %v756 = vpop.f32.mrf.mxu0
    %v757 = vadd.f32 0.0, %v756
    %v758 = vpop.f32.mrf.mxu0
    %759 = vdwg.mxu0
    %v761 = vunpack.c.l.b16 %v561
    %v762 = vpack.c.b16 %v761, %v761
    %763 = vrot.lane.b32.xlu0 %v762, 112
    %v764 = vpop.permute.xlu0 %763
    %v766 = vsel %vm600, %v735, 0
    %v769 = vsel %vm618, %v764, 0
    %771 = vmatpush.bf16.msra.mxu0 0
    %772 = vmatpush.bf16.msra.mxu0 0
    %773 = vmatpush.bf16.msra.mxu0 0
    %774 = vmatpush.bf16.msra.mxu0 0
    %775 = vmatpush.bf16.msra.mxu0 0
    %776 = vmatpush.bf16.msra.mxu0 0
    %777 = vmatpush.bf16.msra.mxu0 0
    %778 = vmatpush.bf16.msra.mxu0 %v769
    %779 = vmatmul.bf16.gmra.mxu0 %v766
    %v780 = vpop.f32.mrf.mxu0
    %v781 = vadd.f32 0.0, %v780
    %v782 = vpop.f32.mrf.mxu0
    %783 = vdwg.mxu0
    %v784 = vsel %vm600, %v731, 0.0
    %785 = vadd.xlane.f32.xlu0 %v784
    %v786 = vpop.xlane.xlu0 %785
    %v787 = vsel %vm600, %v733, 0.0
    %788 = vadd.xlane.f32.xlu0 %v787
    %v789 = vpop.xlane.xlu0 %788
    %v790 = vrcp.pop %v786
    %v791 = vrcp.pop %v789
    %v792 = vmul.f32 %v757, %v790
    %v793 = vmul.f32 %v781, %v791
    %794 = vrot.lane.b32.xlu0 %v666, 96
    %v795 = vpop.permute.xlu0 %794
    %796 = vrot.lane.b32.xlu0 %v671, 96
    %v797 = vpop.permute.xlu0 %796
    %v799 = vsel %vm362, %v795, 0
    %v802 = vsel %vm362, %v797, 0
    %804 = vmatpush.bf16.xpose.msra.mxu0 0
    %805 = vmatpush.bf16.xpose.msra.mxu0 0
    %806 = vmatpush.bf16.xpose.msra.mxu0 0
    %807 = vmatpush.bf16.xpose.msra.mxu0 0
    %808 = vmatpush.bf16.xpose.msra.mxu0 0
    %809 = vmatpush.bf16.xpose.msra.mxu0 0
    %810 = vmatpush.bf16.xpose.msra.mxu0 0
    %811 = vmatpush.bf16.xpose.msra.mxu0 %v802
    %812 = vmatmul.bf16.gmra.mxu0 %v799
    %v813 = vpop.f32.mrf.mxu0
    %v814 = vadd.f32 0.0, %v813
    %v815 = vpop.f32.mrf.mxu0
    %816 = vdwg.mxu0
    %817 = vrot.lane.b32.xlu0 %v695, 96
    %v818 = vpop.permute.xlu0 %817
    %819 = vrot.lane.b32.xlu0 %v700, 96
    %v820 = vpop.permute.xlu0 %819
    %v822 = vsel %vm362, %v818, 0
    %v825 = vsel %vm362, %v820, 0
    %827 = vmatpush.bf16.xpose.msra.mxu0 0
    %828 = vmatpush.bf16.xpose.msra.mxu0 0
    %829 = vmatpush.bf16.xpose.msra.mxu0 0
    %830 = vmatpush.bf16.xpose.msra.mxu0 0
    %831 = vmatpush.bf16.xpose.msra.mxu0 0
    %832 = vmatpush.bf16.xpose.msra.mxu0 0
    %833 = vmatpush.bf16.xpose.msra.mxu0 0
    %834 = vmatpush.bf16.xpose.msra.mxu0 %v825
    %835 = vmatmul.bf16.gmra.mxu0 %v822
    %v836 = vpop.f32.mrf.mxu0
    %v837 = vadd.f32 0.0, %v836
    %v838 = vpop.f32.mrf.mxu0
    %839 = vdwg.mxu0
    %v840 = vsel %vm600, %v814, -inf
    %841 = vmax.xlane.f32.xlu0 %v840
    %v842 = vpop.xlane.xlu0 %841
    %v843 = vsel %vm600, %v837, -inf
    %844 = vmax.xlane.f32.xlu0 %v843
    %v845 = vpop.xlane.xlu0 %844
    %v846 = vsub.f32 %v814, %v842
    %v847 = vsub.f32 %v837, %v845
    %v848 = vmul.f32 %v846, 1.442695
    %v849 = vpow.pop %v848
    %v850 = vmul.f32 %v847, 1.442695
    %v851 = vpow.pop %v850
    %v852 = vpack.c.bf16 %v849, %v849
    %v853 = vpack.c.bf16 %v851, %v851
    %854 = vrot.lane.b32.xlu0 %v738, 96
    %v855 = vpop.permute.xlu0 %854
    %v857 = vsel %vm600, %v852, 0
    %v860 = vsel %vm618, %v855, 0
    %862 = vmatpush.bf16.msra.mxu0 0
    %863 = vmatpush.bf16.msra.mxu0 0
    %864 = vmatpush.bf16.msra.mxu0 0
    %865 = vmatpush.bf16.msra.mxu0 0
    %866 = vmatpush.bf16.msra.mxu0 0
    %867 = vmatpush.bf16.msra.mxu0 0
    %868 = vmatpush.bf16.msra.mxu0 0
    %869 = vmatpush.bf16.msra.mxu0 %v860
    %870 = vmatmul.bf16.gmra.mxu0 %v857
    %v871 = vpop.f32.mrf.mxu0
    %v872 = vadd.f32 0.0, %v871
    %v873 = vpop.f32.mrf.mxu0
    %874 = vdwg.mxu0
    %875 = vrot.lane.b32.xlu0 %v762, 96
    %v876 = vpop.permute.xlu0 %875
    %v878 = vsel %vm600, %v853, 0
    %v881 = vsel %vm618, %v876, 0
    %883 = vmatpush.bf16.msra.mxu0 0
    %884 = vmatpush.bf16.msra.mxu0 0
    %885 = vmatpush.bf16.msra.mxu0 0
    %886 = vmatpush.bf16.msra.mxu0 0
    %887 = vmatpush.bf16.msra.mxu0 0
    %888 = vmatpush.bf16.msra.mxu0 0
    %889 = vmatpush.bf16.msra.mxu0 0
    %890 = vmatpush.bf16.msra.mxu0 %v881
    %891 = vmatmul.bf16.gmra.mxu0 %v878
    %v892 = vpop.f32.mrf.mxu0
    %v893 = vadd.f32 0.0, %v892
    %v894 = vpop.f32.mrf.mxu0
    %895 = vdwg.mxu0
    %v896 = vsel %vm600, %v849, 0.0
    %897 = vadd.xlane.f32.xlu0 %v896
    %v898 = vpop.xlane.xlu0 %897
    %v899 = vsel %vm600, %v851, 0.0
    %900 = vadd.xlane.f32.xlu0 %v899
    %v901 = vpop.xlane.xlu0 %900
    %v902 = vrcp.pop %v898
    %v903 = vrcp.pop %v901
    %v904 = vmul.f32 %v872, %v902
    %v905 = vmul.f32 %v893, %v903
    %906 = vrot.lane.b32.xlu0 %v666, 80
    %v907 = vpop.permute.xlu0 %906
    %908 = vrot.lane.b32.xlu0 %v671, 80
    %v909 = vpop.permute.xlu0 %908
    %v911 = vsel %vm362, %v907, 0
    %v914 = vsel %vm362, %v909, 0
    %916 = vmatpush.bf16.xpose.msra.mxu0 0
    %917 = vmatpush.bf16.xpose.msra.mxu0 0
    %918 = vmatpush.bf16.xpose.msra.mxu0 0
    %919 = vmatpush.bf16.xpose.msra.mxu0 0
    %920 = vmatpush.bf16.xpose.msra.mxu0 0
    %921 = vmatpush.bf16.xpose.msra.mxu0 0
    %922 = vmatpush.bf16.xpose.msra.mxu0 0
    %923 = vmatpush.bf16.xpose.msra.mxu0 %v914
    %924 = vmatmul.bf16.gmra.mxu0 %v911
    %v925 = vpop.f32.mrf.mxu0
    %v926 = vadd.f32 0.0, %v925
    %v927 = vpop.f32.mrf.mxu0
    %928 = vdwg.mxu0
    %929 = vrot.lane.b32.xlu0 %v695, 80
    %v930 = vpop.permute.xlu0 %929
    %931 = vrot.lane.b32.xlu0 %v700, 80
    %v932 = vpop.permute.xlu0 %931
    %v934 = vsel %vm362, %v930, 0
    %v937 = vsel %vm362, %v932, 0
    %939 = vmatpush.bf16.xpose.msra.mxu0 0
    %940 = vmatpush.bf16.xpose.msra.mxu0 0
    %941 = vmatpush.bf16.xpose.msra.mxu0 0
    %942 = vmatpush.bf16.xpose.msra.mxu0 0
    %943 = vmatpush.bf16.xpose.msra.mxu0 0
    %944 = vmatpush.bf16.xpose.msra.mxu0 0
    %945 = vmatpush.bf16.xpose.msra.mxu0 0
    %946 = vmatpush.bf16.xpose.msra.mxu0 %v937
    %947 = vmatmul.bf16.gmra.mxu0 %v934
    %v948 = vpop.f32.mrf.mxu0
    %v949 = vadd.f32 0.0, %v948
    %v950 = vpop.f32.mrf.mxu0
    %951 = vdwg.mxu0
    %v952 = vsel %vm600, %v926, -inf
    %953 = vmax.xlane.f32.xlu0 %v952
    %v954 = vpop.xlane.xlu0 %953
    %v955 = vsel %vm600, %v949, -inf
    %956 = vmax.xlane.f32.xlu0 %v955
    %v957 = vpop.xlane.xlu0 %956
    %v958 = vsub.f32 %v926, %v954
    %v959 = vsub.f32 %v949, %v957
    %v960 = vmul.f32 %v958, 1.442695
    %v961 = vpow.pop %v960
    %v962 = vmul.f32 %v959, 1.442695
    %v963 = vpow.pop %v962
    %v964 = vpack.c.bf16 %v961, %v961
    %v965 = vpack.c.bf16 %v963, %v963
    %966 = vrot.lane.b32.xlu0 %v738, 80
    %v967 = vpop.permute.xlu0 %966
    %v969 = vsel %vm600, %v964, 0
    %v972 = vsel %vm618, %v967, 0
    %974 = vmatpush.bf16.msra.mxu0 0
    %975 = vmatpush.bf16.msra.mxu0 0
    %976 = vmatpush.bf16.msra.mxu0 0
    %977 = vmatpush.bf16.msra.mxu0 0
    %978 = vmatpush.bf16.msra.mxu0 0
    %979 = vmatpush.bf16.msra.mxu0 0
    %980 = vmatpush.bf16.msra.mxu0 0
    %981 = vmatpush.bf16.msra.mxu0 %v972
    %982 = vmatmul.bf16.gmra.mxu0 %v969
    %v983 = vpop.f32.mrf.mxu0
    %v984 = vadd.f32 0.0, %v983
    %v985 = vpop.f32.mrf.mxu0
    %986 = vdwg.mxu0
    %987 = vrot.lane.b32.xlu0 %v762, 80
    %v988 = vpop.permute.xlu0 %987
    %v990 = vsel %vm600, %v965, 0
    %v993 = vsel %vm618, %v988, 0
    %995 = vmatpush.bf16.msra.mxu0 0
    %996 = vmatpush.bf16.msra.mxu0 0
    %997 = vmatpush.bf16.msra.mxu0 0
    %998 = vmatpush.bf16.msra.mxu0 0
    %999 = vmatpush.bf16.msra.mxu0 0
    %1000 = vmatpush.bf16.msra.mxu0 0
    %1001 = vmatpush.bf16.msra.mxu0 0
    %1002 = vmatpush.bf16.msra.mxu0 %v993
    %1003 = vmatmul.bf16.gmra.mxu0 %v990
    %v1004 = vpop.f32.mrf.mxu0
    %v1005 = vadd.f32 0.0, %v1004
    %v1006 = vpop.f32.mrf.mxu0
    %1007 = vdwg.mxu0
    %v1008 = vsel %vm600, %v961, 0.0
    %1009 = vadd.xlane.f32.xlu0 %v1008
    %v1010 = vpop.xlane.xlu0 %1009
    %v1011 = vsel %vm600, %v963, 0.0
    %1012 = vadd.xlane.f32.xlu0 %v1011
    %v1013 = vpop.xlane.xlu0 %1012
    %v1014 = vrcp.pop %v1010
    %v1015 = vrcp.pop %v1013
    %v1016 = vmul.f32 %v984, %v1014
    %v1017 = vmul.f32 %v1005, %v1015
    %1018 = vrot.lane.b32.xlu0 %v666, 64
    %v1019 = vpop.permute.xlu0 %1018
    %1020 = vrot.lane.b32.xlu0 %v671, 64
    %v1021 = vpop.permute.xlu0 %1020
    %v1023 = vsel %vm362, %v1019, 0
    %v1026 = vsel %vm362, %v1021, 0
    %1028 = vmatpush.bf16.xpose.msra.mxu0 0
    %1029 = vmatpush.bf16.xpose.msra.mxu0 0
    %1030 = vmatpush.bf16.xpose.msra.mxu0 0
    %1031 = vmatpush.bf16.xpose.msra.mxu0 0
    %1032 = vmatpush.bf16.xpose.msra.mxu0 0
    %1033 = vmatpush.bf16.xpose.msra.mxu0 0
    %1034 = vmatpush.bf16.xpose.msra.mxu0 0
    %1035 = vmatpush.bf16.xpose.msra.mxu0 %v1026
    %1036 = vmatmul.bf16.gmra.mxu0 %v1023
    %v1037 = vpop.f32.mrf.mxu0
    %v1038 = vadd.f32 0.0, %v1037
    %v1039 = vpop.f32.mrf.mxu0
    %1040 = vdwg.mxu0
    %1041 = vrot.lane.b32.xlu0 %v695, 64
    %v1042 = vpop.permute.xlu0 %1041
    %1043 = vrot.lane.b32.xlu0 %v700, 64
    %v1044 = vpop.permute.xlu0 %1043
    %v1046 = vsel %vm362, %v1042, 0
    %v1049 = vsel %vm362, %v1044, 0
    %1051 = vmatpush.bf16.xpose.msra.mxu0 0
    %1052 = vmatpush.bf16.xpose.msra.mxu0 0
    %1053 = vmatpush.bf16.xpose.msra.mxu0 0
    %1054 = vmatpush.bf16.xpose.msra.mxu0 0
    %1055 = vmatpush.bf16.xpose.msra.mxu0 0
    %1056 = vmatpush.bf16.xpose.msra.mxu0 0
    %1057 = vmatpush.bf16.xpose.msra.mxu0 0
    %1058 = vmatpush.bf16.xpose.msra.mxu0 %v1049
    %1059 = vmatmul.bf16.gmra.mxu0 %v1046
    %v1060 = vpop.f32.mrf.mxu0
    %v1061 = vadd.f32 0.0, %v1060
    %v1062 = vpop.f32.mrf.mxu0
    %1063 = vdwg.mxu0
    %v1064 = vsel %vm600, %v1038, -inf
    %1065 = vmax.xlane.f32.xlu0 %v1064
    %v1066 = vpop.xlane.xlu0 %1065
    %v1067 = vsel %vm600, %v1061, -inf
    %1068 = vmax.xlane.f32.xlu0 %v1067
    %v1069 = vpop.xlane.xlu0 %1068
    %v1070 = vsub.f32 %v1038, %v1066
    %v1071 = vsub.f32 %v1061, %v1069
    %v1072 = vmul.f32 %v1070, 1.442695
    %v1073 = vpow.pop %v1072
    %v1074 = vmul.f32 %v1071, 1.442695
    %v1075 = vpow.pop %v1074
    %v1076 = vpack.c.bf16 %v1073, %v1073
    %v1077 = vpack.c.bf16 %v1075, %v1075
    %1078 = vrot.lane.b32.xlu0 %v738, 64
    %v1079 = vpop.permute.xlu0 %1078
    %v1081 = vsel %vm600, %v1076, 0
    %v1084 = vsel %vm618, %v1079, 0
    %1086 = vmatpush.bf16.msra.mxu0 0
    %1087 = vmatpush.bf16.msra.mxu0 0
    %1088 = vmatpush.bf16.msra.mxu0 0
    %1089 = vmatpush.bf16.msra.mxu0 0
    %1090 = vmatpush.bf16.msra.mxu0 0
    %1091 = vmatpush.bf16.msra.mxu0 0
    %1092 = vmatpush.bf16.msra.mxu0 0
    %1093 = vmatpush.bf16.msra.mxu0 %v1084
    %1094 = vmatmul.bf16.gmra.mxu0 %v1081
    %v1095 = vpop.f32.mrf.mxu0
    %v1096 = vadd.f32 0.0, %v1095
    %v1097 = vpop.f32.mrf.mxu0
    %1098 = vdwg.mxu0
    %1099 = vrot.lane.b32.xlu0 %v762, 64
    %v1100 = vpop.permute.xlu0 %1099
    %v1102 = vsel %vm600, %v1077, 0
    %v1105 = vsel %vm618, %v1100, 0
    %1107 = vmatpush.bf16.msra.mxu0 0
    %1108 = vmatpush.bf16.msra.mxu0 0
    %1109 = vmatpush.bf16.msra.mxu0 0
    %1110 = vmatpush.bf16.msra.mxu0 0
    %1111 = vmatpush.bf16.msra.mxu0 0
    %1112 = vmatpush.bf16.msra.mxu0 0
    %1113 = vmatpush.bf16.msra.mxu0 0
    %1114 = vmatpush.bf16.msra.mxu0 %v1105
    %1115 = vmatmul.bf16.gmra.mxu0 %v1102
    %v1116 = vpop.f32.mrf.mxu0
    %v1117 = vadd.f32 0.0, %v1116
    %v1118 = vpop.f32.mrf.mxu0
    %1119 = vdwg.mxu0
    %v1120 = vsel %vm600, %v1073, 0.0
    %1121 = vadd.xlane.f32.xlu0 %v1120
    %v1122 = vpop.xlane.xlu0 %1121
    %v1123 = vsel %vm600, %v1075, 0.0
    %1124 = vadd.xlane.f32.xlu0 %v1123
    %v1125 = vpop.xlane.xlu0 %1124
    %v1126 = vrcp.pop %v1122
    %v1127 = vrcp.pop %v1125
    %v1128 = vmul.f32 %v1096, %v1126
    %v1129 = vmul.f32 %v1117, %v1127
    %1130 = vrot.lane.b32.xlu0 %v666, 48
    %v1131 = vpop.permute.xlu0 %1130
    %1132 = vrot.lane.b32.xlu0 %v671, 48
    %v1133 = vpop.permute.xlu0 %1132
    %v1135 = vsel %vm362, %v1131, 0
    %v1138 = vsel %vm362, %v1133, 0
    %1140 = vmatpush.bf16.xpose.msra.mxu0 0
    %1141 = vmatpush.bf16.xpose.msra.mxu0 0
    %1142 = vmatpush.bf16.xpose.msra.mxu0 0
    %1143 = vmatpush.bf16.xpose.msra.mxu0 0
    %1144 = vmatpush.bf16.xpose.msra.mxu0 0
    %1145 = vmatpush.bf16.xpose.msra.mxu0 0
    %1146 = vmatpush.bf16.xpose.msra.mxu0 0
    %1147 = vmatpush.bf16.xpose.msra.mxu0 %v1138
    %1148 = vmatmul.bf16.gmra.mxu0 %v1135
    %v1149 = vpop.f32.mrf.mxu0
    %v1150 = vadd.f32 0.0, %v1149
    %v1151 = vpop.f32.mrf.mxu0
    %1152 = vdwg.mxu0
    %1153 = vrot.lane.b32.xlu0 %v695, 48
    %v1154 = vpop.permute.xlu0 %1153
    %1155 = vrot.lane.b32.xlu0 %v700, 48
    %v1156 = vpop.permute.xlu0 %1155
    %v1158 = vsel %vm362, %v1154, 0
    %v1161 = vsel %vm362, %v1156, 0
    %1163 = vmatpush.bf16.xpose.msra.mxu0 0
    %1164 = vmatpush.bf16.xpose.msra.mxu0 0
    %1165 = vmatpush.bf16.xpose.msra.mxu0 0
    %1166 = vmatpush.bf16.xpose.msra.mxu0 0
    %1167 = vmatpush.bf16.xpose.msra.mxu0 0
    %1168 = vmatpush.bf16.xpose.msra.mxu0 0
    %1169 = vmatpush.bf16.xpose.msra.mxu0 0
    %1170 = vmatpush.bf16.xpose.msra.mxu0 %v1161
    %1171 = vmatmul.bf16.gmra.mxu0 %v1158
    %v1172 = vpop.f32.mrf.mxu0
    %v1173 = vadd.f32 0.0, %v1172
    %v1174 = vpop.f32.mrf.mxu0
    %1175 = vdwg.mxu0
    %v1176 = vsel %vm600, %v1150, -inf
    %1177 = vmax.xlane.f32.xlu0 %v1176
    %v1178 = vpop.xlane.xlu0 %1177
    %v1179 = vsel %vm600, %v1173, -inf
    %1180 = vmax.xlane.f32.xlu0 %v1179
    %v1181 = vpop.xlane.xlu0 %1180
    %v1182 = vsub.f32 %v1150, %v1178
    %v1183 = vsub.f32 %v1173, %v1181
    %v1184 = vmul.f32 %v1182, 1.442695
    %v1185 = vpow.pop %v1184
    %v1186 = vmul.f32 %v1183, 1.442695
    %v1187 = vpow.pop %v1186
    %v1188 = vpack.c.bf16 %v1185, %v1185
    %v1189 = vpack.c.bf16 %v1187, %v1187
    %1190 = vrot.lane.b32.xlu0 %v738, 48
    %v1191 = vpop.permute.xlu0 %1190
    %v1193 = vsel %vm600, %v1188, 0
    %v1196 = vsel %vm618, %v1191, 0
    %1198 = vmatpush.bf16.msra.mxu0 0
    %1199 = vmatpush.bf16.msra.mxu0 0
    %1200 = vmatpush.bf16.msra.mxu0 0
    %1201 = vmatpush.bf16.msra.mxu0 0
    %1202 = vmatpush.bf16.msra.mxu0 0
    %1203 = vmatpush.bf16.msra.mxu0 0
    %1204 = vmatpush.bf16.msra.mxu0 0
    %1205 = vmatpush.bf16.msra.mxu0 %v1196
    %1206 = vmatmul.bf16.gmra.mxu0 %v1193
    %v1207 = vpop.f32.mrf.mxu0
    %v1208 = vadd.f32 0.0, %v1207
    %v1209 = vpop.f32.mrf.mxu0
    %1210 = vdwg.mxu0
    %1211 = vrot.lane.b32.xlu0 %v762, 48
    %v1212 = vpop.permute.xlu0 %1211
    %v1214 = vsel %vm600, %v1189, 0
    %v1217 = vsel %vm618, %v1212, 0
    %1219 = vmatpush.bf16.msra.mxu0 0
    %1220 = vmatpush.bf16.msra.mxu0 0
    %1221 = vmatpush.bf16.msra.mxu0 0
    %1222 = vmatpush.bf16.msra.mxu0 0
    %1223 = vmatpush.bf16.msra.mxu0 0
    %1224 = vmatpush.bf16.msra.mxu0 0
    %1225 = vmatpush.bf16.msra.mxu0 0
    %1226 = vmatpush.bf16.msra.mxu0 %v1217
    %1227 = vmatmul.bf16.gmra.mxu0 %v1214
    %v1228 = vpop.f32.mrf.mxu0
    %v1229 = vadd.f32 0.0, %v1228
    %v1230 = vpop.f32.mrf.mxu0
    %1231 = vdwg.mxu0
    %v1232 = vsel %vm600, %v1185, 0.0
    %1233 = vadd.xlane.f32.xlu0 %v1232
    %v1234 = vpop.xlane.xlu0 %1233
    %v1235 = vsel %vm600, %v1187, 0.0
    %1236 = vadd.xlane.f32.xlu0 %v1235
    %v1237 = vpop.xlane.xlu0 %1236
    %v1238 = vrcp.pop %v1234
    %v1239 = vrcp.pop %v1237
    %v1240 = vmul.f32 %v1208, %v1238
    %v1241 = vmul.f32 %v1229, %v1239
    %1242 = vrot.lane.b32.xlu0 %v666, 32
    %v1243 = vpop.permute.xlu0 %1242
    %1244 = vrot.lane.b32.xlu0 %v671, 32
    %v1245 = vpop.permute.xlu0 %1244
    %v1247 = vsel %vm362, %v1243, 0
    %v1250 = vsel %vm362, %v1245, 0
    %1252 = vmatpush.bf16.xpose.msra.mxu0 0
    %1253 = vmatpush.bf16.xpose.msra.mxu0 0
    %1254 = vmatpush.bf16.xpose.msra.mxu0 0
    %1255 = vmatpush.bf16.xpose.msra.mxu0 0
    %1256 = vmatpush.bf16.xpose.msra.mxu0 0
    %1257 = vmatpush.bf16.xpose.msra.mxu0 0
    %1258 = vmatpush.bf16.xpose.msra.mxu0 0
    %1259 = vmatpush.bf16.xpose.msra.mxu0 %v1250
    %1260 = vmatmul.bf16.gmra.mxu0 %v1247
    %v1261 = vpop.f32.mrf.mxu0
    %v1262 = vadd.f32 0.0, %v1261
    %v1263 = vpop.f32.mrf.mxu0
    %1264 = vdwg.mxu0
    %1265 = vrot.lane.b32.xlu0 %v695, 32
    %v1266 = vpop.permute.xlu0 %1265
    %1267 = vrot.lane.b32.xlu0 %v700, 32
    %v1268 = vpop.permute.xlu0 %1267
    %v1270 = vsel %vm362, %v1266, 0
    %v1273 = vsel %vm362, %v1268, 0
    %1275 = vmatpush.bf16.xpose.msra.mxu0 0
    %1276 = vmatpush.bf16.xpose.msra.mxu0 0
    %1277 = vmatpush.bf16.xpose.msra.mxu0 0
    %1278 = vmatpush.bf16.xpose.msra.mxu0 0
    %1279 = vmatpush.bf16.xpose.msra.mxu0 0
    %1280 = vmatpush.bf16.xpose.msra.mxu0 0
    %1281 = vmatpush.bf16.xpose.msra.mxu0 0
    %1282 = vmatpush.bf16.xpose.msra.mxu0 %v1273
    %1283 = vmatmul.bf16.gmra.mxu0 %v1270
    %v1284 = vpop.f32.mrf.mxu0
    %v1285 = vadd.f32 0.0, %v1284
    %v1286 = vpop.f32.mrf.mxu0
    %1287 = vdwg.mxu0
    %v1288 = vsel %vm600, %v1262, -inf
    %1289 = vmax.xlane.f32.xlu0 %v1288
    %v1290 = vpop.xlane.xlu0 %1289
    %v1291 = vsel %vm600, %v1285, -inf
    %1292 = vmax.xlane.f32.xlu0 %v1291
    %v1293 = vpop.xlane.xlu0 %1292
    %v1294 = vsub.f32 %v1262, %v1290
    %v1295 = vsub.f32 %v1285, %v1293
    %v1296 = vmul.f32 %v1294, 1.442695
    %v1297 = vpow.pop %v1296
    %v1298 = vmul.f32 %v1295, 1.442695
    %v1299 = vpow.pop %v1298
    %v1300 = vpack.c.bf16 %v1297, %v1297
    %v1301 = vpack.c.bf16 %v1299, %v1299
    %1302 = vrot.lane.b32.xlu0 %v738, 32
    %v1303 = vpop.permute.xlu0 %1302
    %v1305 = vsel %vm600, %v1300, 0
    %v1308 = vsel %vm618, %v1303, 0
    %1310 = vmatpush.bf16.msra.mxu0 0
    %1311 = vmatpush.bf16.msra.mxu0 0
    %1312 = vmatpush.bf16.msra.mxu0 0
    %1313 = vmatpush.bf16.msra.mxu0 0
    %1314 = vmatpush.bf16.msra.mxu0 0
    %1315 = vmatpush.bf16.msra.mxu0 0
    %1316 = vmatpush.bf16.msra.mxu0 0
    %1317 = vmatpush.bf16.msra.mxu0 %v1308
    %1318 = vmatmul.bf16.gmra.mxu0 %v1305
    %v1319 = vpop.f32.mrf.mxu0
    %v1320 = vadd.f32 0.0, %v1319
    %v1321 = vpop.f32.mrf.mxu0
    %1322 = vdwg.mxu0
    %1323 = vrot.lane.b32.xlu0 %v762, 32
    %v1324 = vpop.permute.xlu0 %1323
    %v1326 = vsel %vm600, %v1301, 0
    %v1329 = vsel %vm618, %v1324, 0
    %1331 = vmatpush.bf16.msra.mxu0 0
    %1332 = vmatpush.bf16.msra.mxu0 0
    %1333 = vmatpush.bf16.msra.mxu0 0
    %1334 = vmatpush.bf16.msra.mxu0 0
    %1335 = vmatpush.bf16.msra.mxu0 0
    %1336 = vmatpush.bf16.msra.mxu0 0
    %1337 = vmatpush.bf16.msra.mxu0 0
    %1338 = vmatpush.bf16.msra.mxu0 %v1329
    %1339 = vmatmul.bf16.gmra.mxu0 %v1326
    %v1340 = vpop.f32.mrf.mxu0
    %v1341 = vadd.f32 0.0, %v1340
    %v1342 = vpop.f32.mrf.mxu0
    %1343 = vdwg.mxu0
    %v1344 = vsel %vm600, %v1297, 0.0
    %1345 = vadd.xlane.f32.xlu0 %v1344
    %v1346 = vpop.xlane.xlu0 %1345
    %v1347 = vsel %vm600, %v1299, 0.0
    %1348 = vadd.xlane.f32.xlu0 %v1347
    %v1349 = vpop.xlane.xlu0 %1348
    %v1350 = vrcp.pop %v1346
    %v1351 = vrcp.pop %v1349
    %v1352 = vmul.f32 %v1320, %v1350
    %v1353 = vmul.f32 %v1341, %v1351
    %1354 = vrot.lane.b32.xlu0 %v666, 16
    %v1355 = vpop.permute.xlu0 %1354
    %1356 = vrot.lane.b32.xlu0 %v671, 16
    %v1357 = vpop.permute.xlu0 %1356
    %v1359 = vsel %vm362, %v1355, 0
    %v1362 = vsel %vm362, %v1357, 0
    %1364 = vmatpush.bf16.xpose.msra.mxu0 0
    %1365 = vmatpush.bf16.xpose.msra.mxu0 0
    %1366 = vmatpush.bf16.xpose.msra.mxu0 0
    %1367 = vmatpush.bf16.xpose.msra.mxu0 0
    %1368 = vmatpush.bf16.xpose.msra.mxu0 0
    %1369 = vmatpush.bf16.xpose.msra.mxu0 0
    %1370 = vmatpush.bf16.xpose.msra.mxu0 0
    %1371 = vmatpush.bf16.xpose.msra.mxu0 %v1362
    %1372 = vmatmul.bf16.gmra.mxu0 %v1359
    %v1373 = vpop.f32.mrf.mxu0
    %v1374 = vadd.f32 0.0, %v1373
    %v1375 = vpop.f32.mrf.mxu0
    %1376 = vdwg.mxu0
    %1377 = vrot.lane.b32.xlu0 %v695, 16
    %v1378 = vpop.permute.xlu0 %1377
    %1379 = vrot.lane.b32.xlu0 %v700, 16
    %v1380 = vpop.permute.xlu0 %1379
    %v1382 = vsel %vm362, %v1378, 0
    %v1385 = vsel %vm362, %v1380, 0
    %1387 = vmatpush.bf16.xpose.msra.mxu0 0
    %1388 = vmatpush.bf16.xpose.msra.mxu0 0
    %1389 = vmatpush.bf16.xpose.msra.mxu0 0
    %1390 = vmatpush.bf16.xpose.msra.mxu0 0
    %1391 = vmatpush.bf16.xpose.msra.mxu0 0
    %1392 = vmatpush.bf16.xpose.msra.mxu0 0
    %1393 = vmatpush.bf16.xpose.msra.mxu0 0
    %1394 = vmatpush.bf16.xpose.msra.mxu0 %v1385
    %1395 = vmatmul.bf16.gmra.mxu0 %v1382
    %v1396 = vpop.f32.mrf.mxu0
    %v1397 = vadd.f32 0.0, %v1396
    %v1398 = vpop.f32.mrf.mxu0
    %1399 = vdwg.mxu0
    %v1400 = vsel %vm600, %v1374, -inf
    %1401 = vmax.xlane.f32.xlu0 %v1400
    %v1402 = vpop.xlane.xlu0 %1401
    %v1403 = vsel %vm600, %v1397, -inf
    %1404 = vmax.xlane.f32.xlu0 %v1403
    %v1405 = vpop.xlane.xlu0 %1404
    %v1406 = vsub.f32 %v1374, %v1402
    %v1407 = vsub.f32 %v1397, %v1405
    %v1408 = vmul.f32 %v1406, 1.442695
    %v1409 = vpow.pop %v1408
    %v1410 = vmul.f32 %v1407, 1.442695
    %v1411 = vpow.pop %v1410
    %v1412 = vpack.c.bf16 %v1409, %v1409
    %v1413 = vpack.c.bf16 %v1411, %v1411
    %1414 = vrot.lane.b32.xlu0 %v738, 16
    %v1415 = vpop.permute.xlu0 %1414
    %v1417 = vsel %vm600, %v1412, 0
    %v1420 = vsel %vm618, %v1415, 0
    %1422 = vmatpush.bf16.msra.mxu0 0
    %1423 = vmatpush.bf16.msra.mxu0 0
    %1424 = vmatpush.bf16.msra.mxu0 0
    %1425 = vmatpush.bf16.msra.mxu0 0
    %1426 = vmatpush.bf16.msra.mxu0 0
    %1427 = vmatpush.bf16.msra.mxu0 0
    %1428 = vmatpush.bf16.msra.mxu0 0
    %1429 = vmatpush.bf16.msra.mxu0 %v1420
    %1430 = vmatmul.bf16.gmra.mxu0 %v1417
    %v1431 = vpop.f32.mrf.mxu0
    %v1432 = vadd.f32 0.0, %v1431
    %v1433 = vpop.f32.mrf.mxu0
    %1434 = vdwg.mxu0
    %1435 = vrot.lane.b32.xlu0 %v762, 16
    %v1436 = vpop.permute.xlu0 %1435
    %v1438 = vsel %vm600, %v1413, 0
    %v1441 = vsel %vm618, %v1436, 0
    %1443 = vmatpush.bf16.msra.mxu0 0
    %1444 = vmatpush.bf16.msra.mxu0 0
    %1445 = vmatpush.bf16.msra.mxu0 0
    %1446 = vmatpush.bf16.msra.mxu0 0
    %1447 = vmatpush.bf16.msra.mxu0 0
    %1448 = vmatpush.bf16.msra.mxu0 0
    %1449 = vmatpush.bf16.msra.mxu0 0
    %1450 = vmatpush.bf16.msra.mxu0 %v1441
    %1451 = vmatmul.bf16.gmra.mxu0 %v1438
    %v1452 = vpop.f32.mrf.mxu0
    %v1453 = vadd.f32 0.0, %v1452
    %v1454 = vpop.f32.mrf.mxu0
    %1455 = vdwg.mxu0
    %v1456 = vsel %vm600, %v1409, 0.0
    %1457 = vadd.xlane.f32.xlu0 %v1456
    %v1458 = vpop.xlane.xlu0 %1457
    %v1459 = vsel %vm600, %v1411, 0.0
    %1460 = vadd.xlane.f32.xlu0 %v1459
    %v1461 = vpop.xlane.xlu0 %1460
    %v1462 = vrcp.pop %v1458
    %v1463 = vrcp.pop %v1461
    %v1464 = vmul.f32 %v1432, %v1462
    %v1465 = vmul.f32 %v1453, %v1463
    %1468 = vrot.lane.b32.xlu0 %v792, 16
    %v1469 = vpop.permute.xlu0 %1468
    %1470 = vrot.lane.b32.xlu0 %v793, 16
    %v1471 = vpop.permute.xlu0 %1470
    %1476 = vrot.lane.b32.xlu0 %v904, 32
    %v1477 = vpop.permute.xlu0 %1476
    %1478 = vrot.lane.b32.xlu0 %v905, 32
    %v1479 = vpop.permute.xlu0 %1478
    %1484 = vrot.lane.b32.xlu0 %v1016, 48
    %v1485 = vpop.permute.xlu0 %1484
    %1486 = vrot.lane.b32.xlu0 %v1017, 48
    %v1487 = vpop.permute.xlu0 %1486
    %1492 = vrot.lane.b32.xlu0 %v1128, 64
    %v1493 = vpop.permute.xlu0 %1492
    %1494 = vrot.lane.b32.xlu0 %v1129, 64
    %v1495 = vpop.permute.xlu0 %1494
    %1500 = vrot.lane.b32.xlu0 %v1240, 80
    %v1501 = vpop.permute.xlu0 %1500
    %1502 = vrot.lane.b32.xlu0 %v1241, 80
    %v1503 = vpop.permute.xlu0 %1502
    %1508 = vrot.lane.b32.xlu0 %v1352, 96
    %v1509 = vpop.permute.xlu0 %1508
    %1510 = vrot.lane.b32.xlu0 %v1353, 96
    %v1511 = vpop.permute.xlu0 %1510
    %1516 = vrot.lane.b32.xlu0 %v1464, 112
    %v1517 = vpop.permute.xlu0 %1516
    %1518 = vrot.lane.b32.xlu0 %v1465, 112
    %v1519 = vpop.permute.xlu0 %1518
    %v1522 = vsel %vm362, %v662, %v1469
    %v1523 = vsel %vm362, %v663, %v1471
    %vm1524 = vcmask 261120
    %v1525 = vsel %vm1524, %v1522, %v1477
    %v1526 = vsel %vm1524, %v1523, %v1479
    %vm1527 = vcmask 392192
    %v1528 = vsel %vm1527, %v1525, %v1485
    %v1529 = vsel %vm1527, %v1526, %v1487
    %vm1530 = vcmask 523264
    %v1531 = vsel %vm1530, %v1528, %v1493
    %v1532 = vsel %vm1530, %v1529, %v1495
    %vm1533 = vcmask 654336
    %v1534 = vsel %vm1533, %v1531, %v1501
    %v1535 = vsel %vm1533, %v1532, %v1503
    %vm1536 = vcmask 785408
    %v1537 = vsel %vm1536, %v1534, %v1509
    %v1538 = vsel %vm1536, %v1535, %v1511
    %vm1539 = vcmask 916480
    %v1540 = vsel %vm1539, %v1537, %v1517
    %v1541 = vsel %vm1539, %v1538, %v1519
    %v1542 = vpack.c.bf16 %v1541, %v1540
    %v1543 = vunpack.c.h.b16 %v144
    %v1544 = vunpack.c.h.b16 %v147
    %v1545 = vunpack.c.h.b16 %v150
    %v1546 = vunpack.c.h.b16 %v153
    %v1547 = vunpack.c.h.b16 %v156
    %v1548 = vunpack.c.h.b16 %v159
    %v1549 = vunpack.c.h.b16 %v162
    %v1550 = vunpack.c.h.b16 %v165
    %v1551 = vunpack.c.h.b16 %v168
    %v1552 = vunpack.c.h.b16 %v171
    %v1553 = vunpack.c.h.b16 %v174
    %v1554 = vunpack.c.h.b16 %v177
    %v1555 = vunpack.c.h.b16 %v180
    %v1556 = vunpack.c.h.b16 %v183
    %v1557 = vunpack.c.h.b16 %v186
    %v1558 = vunpack.c.h.b16 %v189
    %v1559 = vpack.c.b16 %v1544, %v1543
    %v1560 = vpack.c.b16 %v1546, %v1545
    %v1561 = vpack.c.b16 %v1548, %v1547
    %v1562 = vpack.c.b16 %v1550, %v1549
    %v1563 = vpack.c.b16 %v1552, %v1551
    %v1564 = vpack.c.b16 %v1554, %v1553
    %v1565 = vpack.c.b16 %v1556, %v1555
    %v1566 = vpack.c.b16 %v1558, %v1557
    %1575 = vmatpush.bf16.msra.mxu0 %v1566
    %1576 = vmatpush.bf16.msra.mxu0 %v1565
    %1577 = vmatpush.bf16.msra.mxu0 %v1564
    %1578 = vmatpush.bf16.msra.mxu0 %v1563
    %1579 = vmatpush.bf16.msra.mxu0 %v1562
    %1580 = vmatpush.bf16.msra.mxu0 %v1561
    %1581 = vmatpush.bf16.msra.mxu0 %v1560
    %1582 = vmatpush.bf16.msra.mxu0 %v1559
    %1583 = vmatmul.bf16.gmra.mxu0 %v1542
    %v1584 = vpop.f32.mrf.mxu0
    %v1585 = vadd.f32 0.0, %v1584
    %v1586 = vpop.f32.mrf.mxu0
    %v1587 = vadd.f32 0.0, %v1586
    %1588 = vdwg.mxu0
    %v1589 = vadd.f32 %v380, %v1585
    %v1590 = vadd.f32 %v381, %v1587
    %v1591 = vperm.slane %v223, 1
    %v1592 = vadd.f32 %v1589, %v1591
    %v1593 = vadd.f32 %v1590, %v1591
    %1594 = vadd.xlane.f32.xlu0 %v1592
    %v1595 = vpop.xlane.xlu0 %1594
    %1596 = vadd.xlane.f32.xlu0 %v1593
    %v1597 = vpop.xlane.xlu0 %1596
    %v1598 = vrcp.pop 128.0
    %v1599 = vmul.f32 128.0, %v1598
    %v1600 = vsub.f32 1.0, %v1599
    %v1601 = vmul.f32 %v1598, %v1600
    %v1602 = vadd.f32 %v1598, %v1601
    %vm1603 = vweird.f32 %v1598
    %v1604 = vsel %vm1603, %v1598, %v1602
    %v1605 = vmul.f32 %v1595, %v1604
    %v1606 = vmul.f32 %v1597, %v1604
    %v1607 = vsub.f32 %v1592, %v1605
    %v1608 = vsub.f32 %v1593, %v1606
    %v1609 = vmul.f32 %v1607, %v1607
    %v1610 = vmul.f32 %v1608, %v1608
    %1611 = vadd.xlane.f32.xlu0 %v1609
    %v1612 = vpop.xlane.xlu0 %1611
    %1613 = vadd.xlane.f32.xlu0 %v1610
    %v1614 = vpop.xlane.xlu0 %1613
    %v1615 = vmul.f32 %v1612, %v1604
    %v1616 = vmul.f32 %v1614, %v1604
    %v1617 = vadd.f32 %v1615, 1e-05
    %v1618 = vadd.f32 %v1616, 1e-05
    %v1619 = vrsqrt.pop %v1617
    %v1620 = vmul.f32 %v1619, %v1617
    %v1621 = vmul.f32 %v1620, %v1619
    %v1622 = vmul.f32 0.5, %v1621
    %v1623 = vsub.f32 1.5, %v1622
    %v1624 = vmul.f32 %v1619, %v1623
    %vm1625 = vweird.f32 %v1617
    %vm1626 = vweird.f32 %v1619
    %vm1627 = vmor %vm1625, %vm1626
    %v1628 = vsel %vm1627, %v1619, %v1624
    %v1629 = vrsqrt.pop %v1618
    %v1630 = vmul.f32 %v1629, %v1618
    %v1631 = vmul.f32 %v1630, %v1629
    %v1632 = vmul.f32 0.5, %v1631
    %v1633 = vsub.f32 1.5, %v1632
    %v1634 = vmul.f32 %v1629, %v1633
    %vm1635 = vweird.f32 %v1618
    %vm1636 = vweird.f32 %v1629
    %vm1637 = vmor %vm1635, %vm1636
    %v1638 = vsel %vm1637, %v1629, %v1634
    %v1639 = vmul.f32 %v1607, %v1628
    %v1640 = vmul.f32 %v1608, %v1638
    %v1641 = vperm.slane %v223, 4
    %v1642 = vmul.f32 %v1639, %v1641
    %v1643 = vmul.f32 %v1640, %v1641
    %v1644 = vperm.slane %v223, 5
    %v1645 = vadd.f32 %v1642, %v1644
    %v1646 = vadd.f32 %v1643, %v1644
    %v1647 = vpack.c.bf16 %v1646, %v1645
    %v1648 = vperm.slane %v223, 2
    %v1649 = vperm.slane %v224, 2
    %v1666 = vunpack.c.l.b16 %v145
    %v1667 = vunpack.c.h.b16 %v145
    %v1668 = vunpack.c.l.b16 %v148
    %v1669 = vunpack.c.h.b16 %v148
    %v1670 = vunpack.c.l.b16 %v151
    %v1671 = vunpack.c.h.b16 %v151
    %v1672 = vunpack.c.l.b16 %v154
    %v1673 = vunpack.c.h.b16 %v154
    %v1674 = vunpack.c.l.b16 %v157
    %v1675 = vunpack.c.h.b16 %v157
    %v1676 = vunpack.c.l.b16 %v160
    %v1677 = vunpack.c.h.b16 %v160
    %v1678 = vunpack.c.l.b16 %v163
    %v1679 = vunpack.c.h.b16 %v163
    %v1680 = vunpack.c.l.b16 %v166
    %v1681 = vunpack.c.h.b16 %v166
    %v1682 = vunpack.c.l.b16 %v169
    %v1683 = vunpack.c.h.b16 %v169
    %v1684 = vunpack.c.l.b16 %v172
    %v1685 = vunpack.c.h.b16 %v172
    %v1686 = vunpack.c.l.b16 %v175
    %v1687 = vunpack.c.h.b16 %v175
    %v1688 = vunpack.c.l.b16 %v178
    %v1689 = vunpack.c.h.b16 %v178
    %v1690 = vunpack.c.l.b16 %v181
    %v1691 = vunpack.c.h.b16 %v181
    %v1692 = vunpack.c.l.b16 %v184
    %v1693 = vunpack.c.h.b16 %v184
    %v1694 = vunpack.c.l.b16 %v187
    %v1695 = vunpack.c.h.b16 %v187
    %v1696 = vunpack.c.l.b16 %v190
    %v1697 = vunpack.c.h.b16 %v190
    %v1698 = vpack.c.b16 %v1668, %v1666
    %v1699 = vpack.c.b16 %v1669, %v1667
    %v1700 = vpack.c.b16 %v1672, %v1670
    %v1701 = vpack.c.b16 %v1673, %v1671
    %v1702 = vpack.c.b16 %v1676, %v1674
    %v1703 = vpack.c.b16 %v1677, %v1675
    %v1704 = vpack.c.b16 %v1680, %v1678
    %v1705 = vpack.c.b16 %v1681, %v1679
    %v1706 = vpack.c.b16 %v1684, %v1682
    %v1707 = vpack.c.b16 %v1685, %v1683
    %v1708 = vpack.c.b16 %v1688, %v1686
    %v1709 = vpack.c.b16 %v1689, %v1687
    %v1710 = vpack.c.b16 %v1692, %v1690
    %v1711 = vpack.c.b16 %v1693, %v1691
    %v1712 = vpack.c.b16 %v1696, %v1694
    %v1713 = vpack.c.b16 %v1697, %v1695
    %1730 = vmatpush.bf16.msra.mxu0 %v1712
    %1731 = vmatpush.bf16.msra.mxu0 %v1710
    %1732 = vmatpush.bf16.msra.mxu0 %v1708
    %1733 = vmatpush.bf16.msra.mxu0 %v1706
    %1734 = vmatpush.bf16.msra.mxu0 %v1704
    %1735 = vmatpush.bf16.msra.mxu0 %v1702
    %1736 = vmatpush.bf16.msra.mxu0 %v1700
    %1737 = vmatpush.bf16.msra.mxu0 %v1698
    %1738 = vmatmul.bf16.gmra.mxu0 %v1647
    %v1739 = vpop.f32.mrf.mxu0
    %v1740 = vadd.f32 %v1648, %v1739
    %v1741 = vpop.f32.mrf.mxu0
    %v1742 = vadd.f32 %v1648, %v1741
    %1743 = vdwg.mxu0
    %1744 = vmatpush.bf16.msra.mxu0 %v1713
    %1745 = vmatpush.bf16.msra.mxu0 %v1711
    %1746 = vmatpush.bf16.msra.mxu0 %v1709
    %1747 = vmatpush.bf16.msra.mxu0 %v1707
    %1748 = vmatpush.bf16.msra.mxu0 %v1705
    %1749 = vmatpush.bf16.msra.mxu0 %v1703
    %1750 = vmatpush.bf16.msra.mxu0 %v1701
    %1751 = vmatpush.bf16.msra.mxu0 %v1699
    %1752 = vmatmul.bf16.gmra.mxu0 %v1647
    %v1753 = vpop.f32.mrf.mxu0
    %v1754 = vadd.f32 %v1649, %v1753
    %v1755 = vpop.f32.mrf.mxu0
    %v1756 = vadd.f32 %v1649, %v1755
    %1757 = vdwg.mxu0
    %v1758 = vmax.f32 %v1740, 0.0
    %v1759 = vmax.f32 %v1754, 0.0
    %v1760 = vmax.f32 %v1742, 0.0
    %v1761 = vmax.f32 %v1756, 0.0
    %v1762 = vpack.c.bf16 %v1760, %v1758
    %v1763 = vpack.c.bf16 %v1761, %v1759
    %v1796 = vunpack.c.l.b16 %v191
    %v1797 = vunpack.c.l.b16 %v192
    %v1798 = vunpack.c.l.b16 %v193
    %v1799 = vunpack.c.l.b16 %v194
    %v1800 = vunpack.c.l.b16 %v195
    %v1801 = vunpack.c.l.b16 %v196
    %v1802 = vunpack.c.l.b16 %v197
    %v1803 = vunpack.c.l.b16 %v198
    %v1804 = vunpack.c.l.b16 %v199
    %v1805 = vunpack.c.l.b16 %v200
    %v1806 = vunpack.c.l.b16 %v201
    %v1807 = vunpack.c.l.b16 %v202
    %v1808 = vunpack.c.l.b16 %v203
    %v1809 = vunpack.c.l.b16 %v204
    %v1810 = vunpack.c.l.b16 %v205
    %v1811 = vunpack.c.l.b16 %v206
    %v1812 = vunpack.c.l.b16 %v207
    %v1813 = vunpack.c.l.b16 %v208
    %v1814 = vunpack.c.l.b16 %v209
    %v1815 = vunpack.c.l.b16 %v210
    %v1816 = vunpack.c.l.b16 %v211
    %v1817 = vunpack.c.l.b16 %v212
    %v1818 = vunpack.c.l.b16 %v213
    %v1819 = vunpack.c.l.b16 %v214
    %v1820 = vunpack.c.l.b16 %v215
    %v1821 = vunpack.c.l.b16 %v216
    %v1822 = vunpack.c.l.b16 %v217
    %v1823 = vunpack.c.l.b16 %v218
    %v1824 = vunpack.c.l.b16 %v219
    %v1825 = vunpack.c.l.b16 %v220
    %v1826 = vunpack.c.l.b16 %v221
    %v1827 = vunpack.c.l.b16 %v222
    %v1828 = vpack.c.b16 %v1797, %v1796
    %v1829 = vpack.c.b16 %v1799, %v1798
    %v1830 = vpack.c.b16 %v1801, %v1800
    %v1831 = vpack.c.b16 %v1803, %v1802
    %v1832 = vpack.c.b16 %v1805, %v1804
    %v1833 = vpack.c.b16 %v1807, %v1806
    %v1834 = vpack.c.b16 %v1809, %v1808
    %v1835 = vpack.c.b16 %v1811, %v1810
    %v1836 = vpack.c.b16 %v1813, %v1812
    %v1837 = vpack.c.b16 %v1815, %v1814
    %v1838 = vpack.c.b16 %v1817, %v1816
    %v1839 = vpack.c.b16 %v1819, %v1818
    %v1840 = vpack.c.b16 %v1821, %v1820
    %v1841 = vpack.c.b16 %v1823, %v1822
    %v1842 = vpack.c.b16 %v1825, %v1824
    %v1843 = vpack.c.b16 %v1827, %v1826
    %1860 = vmatpush.bf16.msra.mxu0 %v1835
    %1861 = vmatpush.bf16.msra.mxu0 %v1834
    %1862 = vmatpush.bf16.msra.mxu0 %v1833
    %1863 = vmatpush.bf16.msra.mxu0 %v1832
    %1864 = vmatpush.bf16.msra.mxu0 %v1831
    %1865 = vmatpush.bf16.msra.mxu0 %v1830
    %1866 = vmatpush.bf16.msra.mxu0 %v1829
    %1867 = vmatpush.bf16.msra.mxu0 %v1828
    %1868 = vmatmul.bf16.gmra.mxu0 %v1762
    %v1869 = vpop.f32.mrf.mxu0
    %v1870 = vadd.f32 0.0, %v1869
    %v1871 = vpop.f32.mrf.mxu0
    %v1872 = vadd.f32 0.0, %v1871
    %1873 = vdwg.mxu0
    %1874 = vmatpush.bf16.msra.mxu0 %v1843
    %1875 = vmatpush.bf16.msra.mxu0 %v1842
    %1876 = vmatpush.bf16.msra.mxu0 %v1841
    %1877 = vmatpush.bf16.msra.mxu0 %v1840
    %1878 = vmatpush.bf16.msra.mxu0 %v1839
    %1879 = vmatpush.bf16.msra.mxu0 %v1838
    %1880 = vmatpush.bf16.msra.mxu0 %v1837
    %1881 = vmatpush.bf16.msra.mxu0 %v1836
    %1882 = vmatmul.bf16.gmra.mxu0 %v1763
    %v1883 = vpop.f32.mrf.mxu0
    %v1884 = vadd.f32 %v1870, %v1883
    %v1885 = vpop.f32.mrf.mxu0
    %v1886 = vadd.f32 %v1872, %v1885
    %1887 = vdwg.mxu0
    %v1888 = vadd.f32 %v1645, %v1884
    %v1889 = vadd.f32 %v1646, %v1886
    %v1890 = vperm.slane %v223, 3
    %v1891 = vadd.f32 %v1888, %v1890
    %v1892 = vadd.f32 %v1889, %v1890
    %1893 = vadd.xlane.f32.xlu0 %v1891
    %v1894 = vpop.xlane.xlu0 %1893
    %1895 = vadd.xlane.f32.xlu0 %v1892
    %v1896 = vpop.xlane.xlu0 %1895
    %v1897 = vmul.f32 %v1894, %v1604
    %v1898 = vmul.f32 %v1896, %v1604
    %v1899 = vsub.f32 %v1891, %v1897
    %v1900 = vsub.f32 %v1892, %v1898
    %v1901 = vmul.f32 %v1899, %v1899
    %v1902 = vmul.f32 %v1900, %v1900
    %1903 = vadd.xlane.f32.xlu0 %v1901
    %v1904 = vpop.xlane.xlu0 %1903
    %1905 = vadd.xlane.f32.xlu0 %v1902
    %v1906 = vpop.xlane.xlu0 %1905
    %v1907 = vmul.f32 %v1904, %v1604
    %v1908 = vmul.f32 %v1906, %v1604
    %v1909 = vadd.f32 %v1907, 1e-05
    %v1910 = vadd.f32 %v1908, 1e-05
    %v1911 = vrsqrt.pop %v1909
    %v1912 = vmul.f32 %v1911, %v1909
    %v1913 = vmul.f32 %v1912, %v1911
    %v1914 = vmul.f32 0.5, %v1913
    %v1915 = vsub.f32 1.5, %v1914
    %v1916 = vmul.f32 %v1911, %v1915
    %vm1917 = vweird.f32 %v1909
    %vm1918 = vweird.f32 %v1911
    %vm1919 = vmor %vm1917, %vm1918
    %v1920 = vsel %vm1919, %v1911, %v1916
    %v1921 = vrsqrt.pop %v1910
    %v1922 = vmul.f32 %v1921, %v1910
    %v1923 = vmul.f32 %v1922, %v1921
    %v1924 = vmul.f32 0.5, %v1923
    %v1925 = vsub.f32 1.5, %v1924
    %v1926 = vmul.f32 %v1921, %v1925
    %vm1927 = vweird.f32 %v1910
    %vm1928 = vweird.f32 %v1921
    %vm1929 = vmor %vm1927, %vm1928
    %v1930 = vsel %vm1929, %v1921, %v1926
    %v1931 = vmul.f32 %v1899, %v1920
    %v1932 = vmul.f32 %v1900, %v1930
    %v1933 = vperm.slane %v223, 6
    %v1934 = vmul.f32 %v1931, %v1933
    %v1935 = vmul.f32 %v1932, %v1933
    %v1936 = vperm.slane %v223, 7
    %v1937 = vadd.f32 %v1934, %v1936
    %v1938 = vadd.f32 %v1935, %v1936
    %v1939 = vpack.c.bf16 %v1938, %v1937
    %v1940 = vperm.slane %v309, 0
    %v1941 = vperm.slane %v310, 0
    %v1942 = vperm.slane %v311, 0
    %v1975 = vunpack.c.l.b16 %v227
    %v1976 = vunpack.c.h.b16 %v227
    %v1977 = vunpack.c.l.b16 %v228
    %v1978 = vunpack.c.l.b16 %v230
    %v1979 = vunpack.c.h.b16 %v230
    %v1980 = vunpack.c.l.b16 %v231
    %v1981 = vunpack.c.l.b16 %v233
    %v1982 = vunpack.c.h.b16 %v233
    %v1983 = vunpack.c.l.b16 %v234
    %v1984 = vunpack.c.l.b16 %v236
    %v1985 = vunpack.c.h.b16 %v236
    %v1986 = vunpack.c.l.b16 %v237
    %v1987 = vunpack.c.l.b16 %v239
    %v1988 = vunpack.c.h.b16 %v239
    %v1989 = vunpack.c.l.b16 %v240
    %v1990 = vunpack.c.l.b16 %v242
    %v1991 = vunpack.c.h.b16 %v242
    %v1992 = vunpack.c.l.b16 %v243
    %v1993 = vunpack.c.l.b16 %v245
    %v1994 = vunpack.c.h.b16 %v245
    %v1995 = vunpack.c.l.b16 %v246
    %v1996 = vunpack.c.l.b16 %v248
    %v1997 = vunpack.c.h.b16 %v248
    %v1998 = vunpack.c.l.b16 %v249
    %v1999 = vunpack.c.l.b16 %v251
    %v2000 = vunpack.c.h.b16 %v251
    %v2001 = vunpack.c.l.b16 %v252
    %v2002 = vunpack.c.l.b16 %v254
    %v2003 = vunpack.c.h.b16 %v254
    %v2004 = vunpack.c.l.b16 %v255
    %v2005 = vunpack.c.l.b16 %v257
    %v2006 = vunpack.c.h.b16 %v257
    %v2007 = vunpack.c.l.b16 %v258
    %v2008 = vunpack.c.l.b16 %v260
    %v2009 = vunpack.c.h.b16 %v260
    %v2010 = vunpack.c.l.b16 %v261
    %v2011 = vunpack.c.l.b16 %v263
    %v2012 = vunpack.c.h.b16 %v263
    %v2013 = vunpack.c.l.b16 %v264
    %v2014 = vunpack.c.l.b16 %v266
    %v2015 = vunpack.c.h.b16 %v266
    %v2016 = vunpack.c.l.b16 %v267
    %v2017 = vunpack.c.l.b16 %v269
    %v2018 = vunpack.c.h.b16 %v269
    %v2019 = vunpack.c.l.b16 %v270
    %v2020 = vunpack.c.l.b16 %v272
    %v2021 = vunpack.c.h.b16 %v272
    %v2022 = vunpack.c.l.b16 %v273
    %v2023 = vpack.c.b16 %v1978, %v1975
    %v2024 = vpack.c.b16 %v1979, %v1976
    %v2025 = vpack.c.b16 %v1980, %v1977
    %v2026 = vpack.c.b16 %v1984, %v1981
    %v2027 = vpack.c.b16 %v1985, %v1982
    %v2028 = vpack.c.b16 %v1986, %v1983
    %v2029 = vpack.c.b16 %v1990, %v1987
    %v2030 = vpack.c.b16 %v1991, %v1988
    %v2031 = vpack.c.b16 %v1992, %v1989
    %v2032 = vpack.c.b16 %v1996, %v1993
    %v2033 = vpack.c.b16 %v1997, %v1994
    %v2034 = vpack.c.b16 %v1998, %v1995
    %v2035 = vpack.c.b16 %v2002, %v1999
    %v2036 = vpack.c.b16 %v2003, %v2000
    %v2037 = vpack.c.b16 %v2004, %v2001
    %v2038 = vpack.c.b16 %v2008, %v2005
    %v2039 = vpack.c.b16 %v2009, %v2006
    %v2040 = vpack.c.b16 %v2010, %v2007
    %v2041 = vpack.c.b16 %v2014, %v2011
    %v2042 = vpack.c.b16 %v2015, %v2012
    %v2043 = vpack.c.b16 %v2016, %v2013
    %v2044 = vpack.c.b16 %v2020, %v2017
    %v2045 = vpack.c.b16 %v2021, %v2018
    %v2046 = vpack.c.b16 %v2022, %v2019
    %2071 = vmatpush.bf16.msra.mxu0 %v2044
    %2072 = vmatpush.bf16.msra.mxu0 %v2041
    %2073 = vmatpush.bf16.msra.mxu0 %v2038
    %2074 = vmatpush.bf16.msra.mxu0 %v2035
    %2075 = vmatpush.bf16.msra.mxu0 %v2032
    %2076 = vmatpush.bf16.msra.mxu0 %v2029
    %2077 = vmatpush.bf16.msra.mxu0 %v2026
    %2078 = vmatpush.bf16.msra.mxu0 %v2023
    %2079 = vmatmul.bf16.gmra.mxu0 %v1939
    %v2080 = vpop.f32.mrf.mxu0
    %v2081 = vadd.f32 %v1940, %v2080
    %v2082 = vpop.f32.mrf.mxu0
    %v2083 = vadd.f32 %v1940, %v2082
    %2084 = vdwg.mxu0
    %2085 = vmatpush.bf16.msra.mxu0 %v2045
    %2086 = vmatpush.bf16.msra.mxu0 %v2042
    %2087 = vmatpush.bf16.msra.mxu0 %v2039
    %2088 = vmatpush.bf16.msra.mxu0 %v2036
    %2089 = vmatpush.bf16.msra.mxu0 %v2033
    %2090 = vmatpush.bf16.msra.mxu0 %v2030
    %2091 = vmatpush.bf16.msra.mxu0 %v2027
    %2092 = vmatpush.bf16.msra.mxu0 %v2024
    %2093 = vmatmul.bf16.gmra.mxu0 %v1939
    %v2094 = vpop.f32.mrf.mxu0
    %v2095 = vadd.f32 %v1941, %v2094
    %v2096 = vpop.f32.mrf.mxu0
    %v2097 = vadd.f32 %v1941, %v2096
    %2098 = vdwg.mxu0
    %2099 = vmatpush.bf16.msra.mxu0 %v2046
    %2100 = vmatpush.bf16.msra.mxu0 %v2043
    %2101 = vmatpush.bf16.msra.mxu0 %v2040
    %2102 = vmatpush.bf16.msra.mxu0 %v2037
    %2103 = vmatpush.bf16.msra.mxu0 %v2034
    %2104 = vmatpush.bf16.msra.mxu0 %v2031
    %2105 = vmatpush.bf16.msra.mxu0 %v2028
    %2106 = vmatpush.bf16.msra.mxu0 %v2025
    %2107 = vmatmul.bf16.gmra.mxu0 %v1939
    %v2108 = vpop.f32.mrf.mxu0
    %v2109 = vadd.f32 %v1942, %v2108
    %v2110 = vpop.f32.mrf.mxu0
    %v2111 = vadd.f32 %v1942, %v2110
    %2112 = vdwg.mxu0
    %v2113 = vpack.c.bf16 %v2081, %v2081
    %v2114 = vpack.c.bf16 %v2083, %v2083
    %v2115 = vpack.c.bf16 %v2095, %v2095
    %v2116 = vpack.c.bf16 %v2097, %v2097
    %v2117 = vpack.c.bf16 %v2109, %v2109
    %v2118 = vpack.c.bf16 %v2111, %v2111
    %v2120 = vsel %vm362, %v2113, 0
    %v2123 = vsel %vm362, %v2115, 0
    %2125 = vmatpush.bf16.xpose.msra.mxu0 0
    %2126 = vmatpush.bf16.xpose.msra.mxu0 0
    %2127 = vmatpush.bf16.xpose.msra.mxu0 0
    %2128 = vmatpush.bf16.xpose.msra.mxu0 0
    %2129 = vmatpush.bf16.xpose.msra.mxu0 0
    %2130 = vmatpush.bf16.xpose.msra.mxu0 0
    %2131 = vmatpush.bf16.xpose.msra.mxu0 0
    %2132 = vmatpush.bf16.xpose.msra.mxu0 %v2123
    %2133 = vmatmul.bf16.gmra.mxu0 %v2120
    %v2134 = vpop.f32.mrf.mxu0
    %v2135 = vadd.f32 0.0, %v2134
    %v2136 = vpop.f32.mrf.mxu0
    %2137 = vdwg.mxu0
    %v2139 = vsel %vm362, %v2114, 0
    %v2142 = vsel %vm362, %v2116, 0
    %2144 = vmatpush.bf16.xpose.msra.mxu0 0
    %2145 = vmatpush.bf16.xpose.msra.mxu0 0
    %2146 = vmatpush.bf16.xpose.msra.mxu0 0
    %2147 = vmatpush.bf16.xpose.msra.mxu0 0
    %2148 = vmatpush.bf16.xpose.msra.mxu0 0
    %2149 = vmatpush.bf16.xpose.msra.mxu0 0
    %2150 = vmatpush.bf16.xpose.msra.mxu0 0
    %2151 = vmatpush.bf16.xpose.msra.mxu0 %v2142
    %2152 = vmatmul.bf16.gmra.mxu0 %v2139
    %v2153 = vpop.f32.mrf.mxu0
    %v2154 = vadd.f32 0.0, %v2153
    %v2155 = vpop.f32.mrf.mxu0
    %2156 = vdwg.mxu0
    %v2157 = vsel %vm600, %v2135, -inf
    %2158 = vmax.xlane.f32.xlu0 %v2157
    %v2159 = vpop.xlane.xlu0 %2158
    %v2160 = vsel %vm600, %v2154, -inf
    %2161 = vmax.xlane.f32.xlu0 %v2160
    %v2162 = vpop.xlane.xlu0 %2161
    %v2163 = vsub.f32 %v2135, %v2159
    %v2164 = vsub.f32 %v2154, %v2162
    %v2165 = vmul.f32 %v2163, 1.442695
    %v2166 = vpow.pop %v2165
    %v2167 = vmul.f32 %v2164, 1.442695
    %v2168 = vpow.pop %v2167
    %v2169 = vpack.c.bf16 %v2166, %v2166
    %v2170 = vpack.c.bf16 %v2168, %v2168
    %v2172 = vsel %vm600, %v2169, 0
    %v2175 = vsel %vm618, %v2117, 0
    %2177 = vmatpush.bf16.msra.mxu0 0
    %2178 = vmatpush.bf16.msra.mxu0 0
    %2179 = vmatpush.bf16.msra.mxu0 0
    %2180 = vmatpush.bf16.msra.mxu0 0
    %2181 = vmatpush.bf16.msra.mxu0 0
    %2182 = vmatpush.bf16.msra.mxu0 0
    %2183 = vmatpush.bf16.msra.mxu0 0
    %2184 = vmatpush.bf16.msra.mxu0 %v2175
    %2185 = vmatmul.bf16.gmra.mxu0 %v2172
    %v2186 = vpop.f32.mrf.mxu0
    %v2187 = vadd.f32 0.0, %v2186
    %v2188 = vpop.f32.mrf.mxu0
    %2189 = vdwg.mxu0
    %v2191 = vsel %vm600, %v2170, 0
    %v2194 = vsel %vm618, %v2118, 0
    %2196 = vmatpush.bf16.msra.mxu0 0
    %2197 = vmatpush.bf16.msra.mxu0 0
    %2198 = vmatpush.bf16.msra.mxu0 0
    %2199 = vmatpush.bf16.msra.mxu0 0
    %2200 = vmatpush.bf16.msra.mxu0 0
    %2201 = vmatpush.bf16.msra.mxu0 0
    %2202 = vmatpush.bf16.msra.mxu0 0
    %2203 = vmatpush.bf16.msra.mxu0 %v2194
    %2204 = vmatmul.bf16.gmra.mxu0 %v2191
    %v2205 = vpop.f32.mrf.mxu0
    %v2206 = vadd.f32 0.0, %v2205
    %v2207 = vpop.f32.mrf.mxu0
    %2208 = vdwg.mxu0
    %v2209 = vsel %vm600, %v2166, 0.0
    %2210 = vadd.xlane.f32.xlu0 %v2209
    %v2211 = vpop.xlane.xlu0 %2210
    %v2212 = vsel %vm600, %v2168, 0.0
    %2213 = vadd.xlane.f32.xlu0 %v2212
    %v2214 = vpop.xlane.xlu0 %2213
    %v2215 = vrcp.pop %v2211
    %v2216 = vrcp.pop %v2214
    %v2217 = vmul.f32 %v2187, %v2215
    %v2218 = vmul.f32 %v2206, %v2216
    %v2220 = vunpack.c.l.b16 %v2113
    %v2221 = vpack.c.b16 %v2220, %v2220
    %2222 = vrot.lane.b32.xlu0 %v2221, 112
    %v2223 = vpop.permute.xlu0 %2222
    %v2225 = vunpack.c.l.b16 %v2115
    %v2226 = vpack.c.b16 %v2225, %v2225
    %2227 = vrot.lane.b32.xlu0 %v2226, 112
    %v2228 = vpop.permute.xlu0 %2227
    %v2230 = vsel %vm362, %v2223, 0
    %v2233 = vsel %vm362, %v2228, 0
    %2235 = vmatpush.bf16.xpose.msra.mxu0 0
    %2236 = vmatpush.bf16.xpose.msra.mxu0 0
    %2237 = vmatpush.bf16.xpose.msra.mxu0 0
    %2238 = vmatpush.bf16.xpose.msra.mxu0 0
    %2239 = vmatpush.bf16.xpose.msra.mxu0 0
    %2240 = vmatpush.bf16.xpose.msra.mxu0 0
    %2241 = vmatpush.bf16.xpose.msra.mxu0 0
    %2242 = vmatpush.bf16.xpose.msra.mxu0 %v2233
    %2243 = vmatmul.bf16.gmra.mxu0 %v2230
    %v2244 = vpop.f32.mrf.mxu0
    %v2245 = vadd.f32 0.0, %v2244
    %v2246 = vpop.f32.mrf.mxu0
    %2247 = vdwg.mxu0
    %v2249 = vunpack.c.l.b16 %v2114
    %v2250 = vpack.c.b16 %v2249, %v2249
    %2251 = vrot.lane.b32.xlu0 %v2250, 112
    %v2252 = vpop.permute.xlu0 %2251
    %v2254 = vunpack.c.l.b16 %v2116
    %v2255 = vpack.c.b16 %v2254, %v2254
    %2256 = vrot.lane.b32.xlu0 %v2255, 112
    %v2257 = vpop.permute.xlu0 %2256
    %v2259 = vsel %vm362, %v2252, 0
    %v2262 = vsel %vm362, %v2257, 0
    %2264 = vmatpush.bf16.xpose.msra.mxu0 0
    %2265 = vmatpush.bf16.xpose.msra.mxu0 0
    %2266 = vmatpush.bf16.xpose.msra.mxu0 0
    %2267 = vmatpush.bf16.xpose.msra.mxu0 0
    %2268 = vmatpush.bf16.xpose.msra.mxu0 0
    %2269 = vmatpush.bf16.xpose.msra.mxu0 0
    %2270 = vmatpush.bf16.xpose.msra.mxu0 0
    %2271 = vmatpush.bf16.xpose.msra.mxu0 %v2262
    %2272 = vmatmul.bf16.gmra.mxu0 %v2259
    %v2273 = vpop.f32.mrf.mxu0
    %v2274 = vadd.f32 0.0, %v2273
    %v2275 = vpop.f32.mrf.mxu0
    %2276 = vdwg.mxu0
    %v2277 = vsel %vm600, %v2245, -inf
    %2278 = vmax.xlane.f32.xlu0 %v2277
    %v2279 = vpop.xlane.xlu0 %2278
    %v2280 = vsel %vm600, %v2274, -inf
    %2281 = vmax.xlane.f32.xlu0 %v2280
    %v2282 = vpop.xlane.xlu0 %2281
    %v2283 = vsub.f32 %v2245, %v2279
    %v2284 = vsub.f32 %v2274, %v2282
    %v2285 = vmul.f32 %v2283, 1.442695
    %v2286 = vpow.pop %v2285
    %v2287 = vmul.f32 %v2284, 1.442695
    %v2288 = vpow.pop %v2287
    %v2289 = vpack.c.bf16 %v2286, %v2286
    %v2290 = vpack.c.bf16 %v2288, %v2288
    %v2292 = vunpack.c.l.b16 %v2117
    %v2293 = vpack.c.b16 %v2292, %v2292
    %2294 = vrot.lane.b32.xlu0 %v2293, 112
    %v2295 = vpop.permute.xlu0 %2294
    %v2297 = vsel %vm600, %v2289, 0
    %v2300 = vsel %vm618, %v2295, 0
    %2302 = vmatpush.bf16.msra.mxu0 0
    %2303 = vmatpush.bf16.msra.mxu0 0
    %2304 = vmatpush.bf16.msra.mxu0 0
    %2305 = vmatpush.bf16.msra.mxu0 0
    %2306 = vmatpush.bf16.msra.mxu0 0
    %2307 = vmatpush.bf16.msra.mxu0 0
    %2308 = vmatpush.bf16.msra.mxu0 0
    %2309 = vmatpush.bf16.msra.mxu0 %v2300
    %2310 = vmatmul.bf16.gmra.mxu0 %v2297
    %v2311 = vpop.f32.mrf.mxu0
    %v2312 = vadd.f32 0.0, %v2311
    %v2313 = vpop.f32.mrf.mxu0
    %2314 = vdwg.mxu0
    %v2316 = vunpack.c.l.b16 %v2118
    %v2317 = vpack.c.b16 %v2316, %v2316
    %2318 = vrot.lane.b32.xlu0 %v2317, 112
    %v2319 = vpop.permute.xlu0 %2318
    %v2321 = vsel %vm600, %v2290, 0
    %v2324 = vsel %vm618, %v2319, 0
    %2326 = vmatpush.bf16.msra.mxu0 0
    %2327 = vmatpush.bf16.msra.mxu0 0
    %2328 = vmatpush.bf16.msra.mxu0 0
    %2329 = vmatpush.bf16.msra.mxu0 0
    %2330 = vmatpush.bf16.msra.mxu0 0
    %2331 = vmatpush.bf16.msra.mxu0 0
    %2332 = vmatpush.bf16.msra.mxu0 0
    %2333 = vmatpush.bf16.msra.mxu0 %v2324
    %2334 = vmatmul.bf16.gmra.mxu0 %v2321
    %v2335 = vpop.f32.mrf.mxu0
    %v2336 = vadd.f32 0.0, %v2335
    %v2337 = vpop.f32.mrf.mxu0
    %2338 = vdwg.mxu0
    %v2339 = vsel %vm600, %v2286, 0.0
    %2340 = vadd.xlane.f32.xlu0 %v2339
    %v2341 = vpop.xlane.xlu0 %2340
    %v2342 = vsel %vm600, %v2288, 0.0
    %2343 = vadd.xlane.f32.xlu0 %v2342
    %v2344 = vpop.xlane.xlu0 %2343
    %v2345 = vrcp.pop %v2341
    %v2346 = vrcp.pop %v2344
    %v2347 = vmul.f32 %v2312, %v2345
    %v2348 = vmul.f32 %v2336, %v2346
    %2349 = vrot.lane.b32.xlu0 %v2221, 96
    %v2350 = vpop.permute.xlu0 %2349
    %2351 = vrot.lane.b32.xlu0 %v2226, 96
    %v2352 = vpop.permute.xlu0 %2351
    %v2354 = vsel %vm362, %v2350, 0
    %v2357 = vsel %vm362, %v2352, 0
    %2359 = vmatpush.bf16.xpose.msra.mxu0 0
    %2360 = vmatpush.bf16.xpose.msra.mxu0 0
    %2361 = vmatpush.bf16.xpose.msra.mxu0 0
    %2362 = vmatpush.bf16.xpose.msra.mxu0 0
    %2363 = vmatpush.bf16.xpose.msra.mxu0 0
    %2364 = vmatpush.bf16.xpose.msra.mxu0 0
    %2365 = vmatpush.bf16.xpose.msra.mxu0 0
    %2366 = vmatpush.bf16.xpose.msra.mxu0 %v2357
    %2367 = vmatmul.bf16.gmra.mxu0 %v2354
    %v2368 = vpop.f32.mrf.mxu0
    %v2369 = vadd.f32 0.0, %v2368
    %v2370 = vpop.f32.mrf.mxu0
    %2371 = vdwg.mxu0
    %2372 = vrot.lane.b32.xlu0 %v2250, 96
    %v2373 = vpop.permute.xlu0 %2372
    %2374 = vrot.lane.b32.xlu0 %v2255, 96
    %v2375 = vpop.permute.xlu0 %2374
    %v2377 = vsel %vm362, %v2373, 0
    %v2380 = vsel %vm362, %v2375, 0
    %2382 = vmatpush.bf16.xpose.msra.mxu0 0
    %2383 = vmatpush.bf16.xpose.msra.mxu0 0
    %2384 = vmatpush.bf16.xpose.msra.mxu0 0
    %2385 = vmatpush.bf16.xpose.msra.mxu0 0
    %2386 = vmatpush.bf16.xpose.msra.mxu0 0
    %2387 = vmatpush.bf16.xpose.msra.mxu0 0
    %2388 = vmatpush.bf16.xpose.msra.mxu0 0
    %2389 = vmatpush.bf16.xpose.msra.mxu0 %v2380
    %2390 = vmatmul.bf16.gmra.mxu0 %v2377
    %v2391 = vpop.f32.mrf.mxu0
    %v2392 = vadd.f32 0.0, %v2391
    %v2393 = vpop.f32.mrf.mxu0
    %2394 = vdwg.mxu0
    %v2395 = vsel %vm600, %v2369, -inf
    %2396 = vmax.xlane.f32.xlu0 %v2395
    %v2397 = vpop.xlane.xlu0 %2396
    %v2398 = vsel %vm600, %v2392, -inf
    %2399 = vmax.xlane.f32.xlu0 %v2398
    %v2400 = vpop.xlane.xlu0 %2399
    %v2401 = vsub.f32 %v2369, %v2397
    %v2402 = vsub.f32 %v2392, %v2400
    %v2403 = vmul.f32 %v2401, 1.442695
    %v2404 = vpow.pop %v2403
    %v2405 = vmul.f32 %v2402, 1.442695
    %v2406 = vpow.pop %v2405
    %v2407 = vpack.c.bf16 %v2404, %v2404
    %v2408 = vpack.c.bf16 %v2406, %v2406
    %2409 = vrot.lane.b32.xlu0 %v2293, 96
    %v2410 = vpop.permute.xlu0 %2409
    %v2412 = vsel %vm600, %v2407, 0
    %v2415 = vsel %vm618, %v2410, 0
    %2417 = vmatpush.bf16.msra.mxu0 0
    %2418 = vmatpush.bf16.msra.mxu0 0
    %2419 = vmatpush.bf16.msra.mxu0 0
    %2420 = vmatpush.bf16.msra.mxu0 0
    %2421 = vmatpush.bf16.msra.mxu0 0
    %2422 = vmatpush.bf16.msra.mxu0 0
    %2423 = vmatpush.bf16.msra.mxu0 0
    %2424 = vmatpush.bf16.msra.mxu0 %v2415
    %2425 = vmatmul.bf16.gmra.mxu0 %v2412
    %v2426 = vpop.f32.mrf.mxu0
    %v2427 = vadd.f32 0.0, %v2426
    %v2428 = vpop.f32.mrf.mxu0
    %2429 = vdwg.mxu0
    %2430 = vrot.lane.b32.xlu0 %v2317, 96
    %v2431 = vpop.permute.xlu0 %2430
    %v2433 = vsel %vm600, %v2408, 0
    %v2436 = vsel %vm618, %v2431, 0
    %2438 = vmatpush.bf16.msra.mxu0 0
    %2439 = vmatpush.bf16.msra.mxu0 0
    %2440 = vmatpush.bf16.msra.mxu0 0
    %2441 = vmatpush.bf16.msra.mxu0 0
    %2442 = vmatpush.bf16.msra.mxu0 0
    %2443 = vmatpush.bf16.msra.mxu0 0
    %2444 = vmatpush.bf16.msra.mxu0 0
    %2445 = vmatpush.bf16.msra.mxu0 %v2436
    %2446 = vmatmul.bf16.gmra.mxu0 %v2433
    %v2447 = vpop.f32.mrf.mxu0
    %v2448 = vadd.f32 0.0, %v2447
    %v2449 = vpop.f32.mrf.mxu0
    %2450 = vdwg.mxu0
    %v2451 = vsel %vm600, %v2404, 0.0
    %2452 = vadd.xlane.f32.xlu0 %v2451
    %v2453 = vpop.xlane.xlu0 %2452
    %v2454 = vsel %vm600, %v2406, 0.0
    %2455 = vadd.xlane.f32.xlu0 %v2454
    %v2456 = vpop.xlane.xlu0 %2455
    %v2457 = vrcp.pop %v2453
    %v2458 = vrcp.pop %v2456
    %v2459 = vmul.f32 %v2427, %v2457
    %v2460 = vmul.f32 %v2448, %v2458
    %2461 = vrot.lane.b32.xlu0 %v2221, 80
    %v2462 = vpop.permute.xlu0 %2461
    %2463 = vrot.lane.b32.xlu0 %v2226, 80
    %v2464 = vpop.permute.xlu0 %2463
    %v2466 = vsel %vm362, %v2462, 0
    %v2469 = vsel %vm362, %v2464, 0
    %2471 = vmatpush.bf16.xpose.msra.mxu0 0
    %2472 = vmatpush.bf16.xpose.msra.mxu0 0
    %2473 = vmatpush.bf16.xpose.msra.mxu0 0
    %2474 = vmatpush.bf16.xpose.msra.mxu0 0
    %2475 = vmatpush.bf16.xpose.msra.mxu0 0
    %2476 = vmatpush.bf16.xpose.msra.mxu0 0
    %2477 = vmatpush.bf16.xpose.msra.mxu0 0
    %2478 = vmatpush.bf16.xpose.msra.mxu0 %v2469
    %2479 = vmatmul.bf16.gmra.mxu0 %v2466
    %v2480 = vpop.f32.mrf.mxu0
    %v2481 = vadd.f32 0.0, %v2480
    %v2482 = vpop.f32.mrf.mxu0
    %2483 = vdwg.mxu0
    %2484 = vrot.lane.b32.xlu0 %v2250, 80
    %v2485 = vpop.permute.xlu0 %2484
    %2486 = vrot.lane.b32.xlu0 %v2255, 80
    %v2487 = vpop.permute.xlu0 %2486
    %v2489 = vsel %vm362, %v2485, 0
    %v2492 = vsel %vm362, %v2487, 0
    %2494 = vmatpush.bf16.xpose.msra.mxu0 0
    %2495 = vmatpush.bf16.xpose.msra.mxu0 0
    %2496 = vmatpush.bf16.xpose.msra.mxu0 0
    %2497 = vmatpush.bf16.xpose.msra.mxu0 0
    %2498 = vmatpush.bf16.xpose.msra.mxu0 0
    %2499 = vmatpush.bf16.xpose.msra.mxu0 0
    %2500 = vmatpush.bf16.xpose.msra.mxu0 0
    %2501 = vmatpush.bf16.xpose.msra.mxu0 %v2492
    %2502 = vmatmul.bf16.gmra.mxu0 %v2489
    %v2503 = vpop.f32.mrf.mxu0
    %v2504 = vadd.f32 0.0, %v2503
    %v2505 = vpop.f32.mrf.mxu0
    %2506 = vdwg.mxu0
    %v2507 = vsel %vm600, %v2481, -inf
    %2508 = vmax.xlane.f32.xlu0 %v2507
    %v2509 = vpop.xlane.xlu0 %2508
    %v2510 = vsel %vm600, %v2504, -inf
    %2511 = vmax.xlane.f32.xlu0 %v2510
    %v2512 = vpop.xlane.xlu0 %2511
    %v2513 = vsub.f32 %v2481, %v2509
    %v2514 = vsub.f32 %v2504, %v2512
    %v2515 = vmul.f32 %v2513, 1.442695
    %v2516 = vpow.pop %v2515
    %v2517 = vmul.f32 %v2514, 1.442695
    %v2518 = vpow.pop %v2517
    %v2519 = vpack.c.bf16 %v2516, %v2516
    %v2520 = vpack.c.bf16 %v2518, %v2518
    %2521 = vrot.lane.b32.xlu0 %v2293, 80
    %v2522 = vpop.permute.xlu0 %2521
    %v2524 = vsel %vm600, %v2519, 0
    %v2527 = vsel %vm618, %v2522, 0
    %2529 = vmatpush.bf16.msra.mxu0 0
    %2530 = vmatpush.bf16.msra.mxu0 0
    %2531 = vmatpush.bf16.msra.mxu0 0
    %2532 = vmatpush.bf16.msra.mxu0 0
    %2533 = vmatpush.bf16.msra.mxu0 0
    %2534 = vmatpush.bf16.msra.mxu0 0
    %2535 = vmatpush.bf16.msra.mxu0 0
    %2536 = vmatpush.bf16.msra.mxu0 %v2527
    %2537 = vmatmul.bf16.gmra.mxu0 %v2524
    %v2538 = vpop.f32.mrf.mxu0
    %v2539 = vadd.f32 0.0, %v2538
    %v2540 = vpop.f32.mrf.mxu0
    %2541 = vdwg.mxu0
    %2542 = vrot.lane.b32.xlu0 %v2317, 80
    %v2543 = vpop.permute.xlu0 %2542
    %v2545 = vsel %vm600, %v2520, 0
    %v2548 = vsel %vm618, %v2543, 0
    %2550 = vmatpush.bf16.msra.mxu0 0
    %2551 = vmatpush.bf16.msra.mxu0 0
    %2552 = vmatpush.bf16.msra.mxu0 0
    %2553 = vmatpush.bf16.msra.mxu0 0
    %2554 = vmatpush.bf16.msra.mxu0 0
    %2555 = vmatpush.bf16.msra.mxu0 0
    %2556 = vmatpush.bf16.msra.mxu0 0
    %2557 = vmatpush.bf16.msra.mxu0 %v2548
    %2558 = vmatmul.bf16.gmra.mxu0 %v2545
    %v2559 = vpop.f32.mrf.mxu0
    %v2560 = vadd.f32 0.0, %v2559
    %v2561 = vpop.f32.mrf.mxu0
    %2562 = vdwg.mxu0
    %v2563 = vsel %vm600, %v2516, 0.0
    %2564 = vadd.xlane.f32.xlu0 %v2563
    %v2565 = vpop.xlane.xlu0 %2564
    %v2566 = vsel %vm600, %v2518, 0.0
    %2567 = vadd.xlane.f32.xlu0 %v2566
    %v2568 = vpop.xlane.xlu0 %2567
    %v2569 = vrcp.pop %v2565
    %v2570 = vrcp.pop %v2568
    %v2571 = vmul.f32 %v2539, %v2569
    %v2572 = vmul.f32 %v2560, %v2570
    %2573 = vrot.lane.b32.xlu0 %v2221, 64
    %v2574 = vpop.permute.xlu0 %2573
    %2575 = vrot.lane.b32.xlu0 %v2226, 64
    %v2576 = vpop.permute.xlu0 %2575
    %v2578 = vsel %vm362, %v2574, 0
    %v2581 = vsel %vm362, %v2576, 0
    %2583 = vmatpush.bf16.xpose.msra.mxu0 0
    %2584 = vmatpush.bf16.xpose.msra.mxu0 0
    %2585 = vmatpush.bf16.xpose.msra.mxu0 0
    %2586 = vmatpush.bf16.xpose.msra.mxu0 0
    %2587 = vmatpush.bf16.xpose.msra.mxu0 0
    %2588 = vmatpush.bf16.xpose.msra.mxu0 0
    %2589 = vmatpush.bf16.xpose.msra.mxu0 0
    %2590 = vmatpush.bf16.xpose.msra.mxu0 %v2581
    %2591 = vmatmul.bf16.gmra.mxu0 %v2578
    %v2592 = vpop.f32.mrf.mxu0
    %v2593 = vadd.f32 0.0, %v2592
    %v2594 = vpop.f32.mrf.mxu0
    %2595 = vdwg.mxu0
    %2596 = vrot.lane.b32.xlu0 %v2250, 64
    %v2597 = vpop.permute.xlu0 %2596
    %2598 = vrot.lane.b32.xlu0 %v2255, 64
    %v2599 = vpop.permute.xlu0 %2598
    %v2601 = vsel %vm362, %v2597, 0
    %v2604 = vsel %vm362, %v2599, 0
    %2606 = vmatpush.bf16.xpose.msra.mxu0 0
    %2607 = vmatpush.bf16.xpose.msra.mxu0 0
    %2608 = vmatpush.bf16.xpose.msra.mxu0 0
    %2609 = vmatpush.bf16.xpose.msra.mxu0 0
    %2610 = vmatpush.bf16.xpose.msra.mxu0 0
    %2611 = vmatpush.bf16.xpose.msra.mxu0 0
    %2612 = vmatpush.bf16.xpose.msra.mxu0 0
    %2613 = vmatpush.bf16.xpose.msra.mxu0 %v2604
    %2614 = vmatmul.bf16.gmra.mxu0 %v2601
    %v2615 = vpop.f32.mrf.mxu0
    %v2616 = vadd.f32 0.0, %v2615
    %v2617 = vpop.f32.mrf.mxu0
    %2618 = vdwg.mxu0
    %v2619 = vsel %vm600, %v2593, -inf
    %2620 = vmax.xlane.f32.xlu0 %v2619
    %v2621 = vpop.xlane.xlu0 %2620
    %v2622 = vsel %vm600, %v2616, -inf
    %2623 = vmax.xlane.f32.xlu0 %v2622
    %v2624 = vpop.xlane.xlu0 %2623
    %v2625 = vsub.f32 %v2593, %v2621
    %v2626 = vsub.f32 %v2616, %v2624
    %v2627 = vmul.f32 %v2625, 1.442695
    %v2628 = vpow.pop %v2627
    %v2629 = vmul.f32 %v2626, 1.442695
    %v2630 = vpow.pop %v2629
    %v2631 = vpack.c.bf16 %v2628, %v2628
    %v2632 = vpack.c.bf16 %v2630, %v2630
    %2633 = vrot.lane.b32.xlu0 %v2293, 64
    %v2634 = vpop.permute.xlu0 %2633
    %v2636 = vsel %vm600, %v2631, 0
    %v2639 = vsel %vm618, %v2634, 0
    %2641 = vmatpush.bf16.msra.mxu0 0
    %2642 = vmatpush.bf16.msra.mxu0 0
    %2643 = vmatpush.bf16.msra.mxu0 0
    %2644 = vmatpush.bf16.msra.mxu0 0
    %2645 = vmatpush.bf16.msra.mxu0 0
    %2646 = vmatpush.bf16.msra.mxu0 0
    %2647 = vmatpush.bf16.msra.mxu0 0
    %2648 = vmatpush.bf16.msra.mxu0 %v2639
    %2649 = vmatmul.bf16.gmra.mxu0 %v2636
    %v2650 = vpop.f32.mrf.mxu0
    %v2651 = vadd.f32 0.0, %v2650
    %v2652 = vpop.f32.mrf.mxu0
    %2653 = vdwg.mxu0
    %2654 = vrot.lane.b32.xlu0 %v2317, 64
    %v2655 = vpop.permute.xlu0 %2654
    %v2657 = vsel %vm600, %v2632, 0
    %v2660 = vsel %vm618, %v2655, 0
    %2662 = vmatpush.bf16.msra.mxu0 0
    %2663 = vmatpush.bf16.msra.mxu0 0
    %2664 = vmatpush.bf16.msra.mxu0 0
    %2665 = vmatpush.bf16.msra.mxu0 0
    %2666 = vmatpush.bf16.msra.mxu0 0
    %2667 = vmatpush.bf16.msra.mxu0 0
    %2668 = vmatpush.bf16.msra.mxu0 0
    %2669 = vmatpush.bf16.msra.mxu0 %v2660
    %2670 = vmatmul.bf16.gmra.mxu0 %v2657
    %v2671 = vpop.f32.mrf.mxu0
    %v2672 = vadd.f32 0.0, %v2671
    %v2673 = vpop.f32.mrf.mxu0
    %2674 = vdwg.mxu0
    %v2675 = vsel %vm600, %v2628, 0.0
    %2676 = vadd.xlane.f32.xlu0 %v2675
    %v2677 = vpop.xlane.xlu0 %2676
    %v2678 = vsel %vm600, %v2630, 0.0
    %2679 = vadd.xlane.f32.xlu0 %v2678
    %v2680 = vpop.xlane.xlu0 %2679
    %v2681 = vrcp.pop %v2677
    %v2682 = vrcp.pop %v2680
    %v2683 = vmul.f32 %v2651, %v2681
    %v2684 = vmul.f32 %v2672, %v2682
    %2685 = vrot.lane.b32.xlu0 %v2221, 48
    %v2686 = vpop.permute.xlu0 %2685
    %2687 = vrot.lane.b32.xlu0 %v2226, 48
    %v2688 = vpop.permute.xlu0 %2687
    %v2690 = vsel %vm362, %v2686, 0
    %v2693 = vsel %vm362, %v2688, 0
    %2695 = vmatpush.bf16.xpose.msra.mxu0 0
    %2696 = vmatpush.bf16.xpose.msra.mxu0 0
    %2697 = vmatpush.bf16.xpose.msra.mxu0 0
    %2698 = vmatpush.bf16.xpose.msra.mxu0 0
    %2699 = vmatpush.bf16.xpose.msra.mxu0 0
    %2700 = vmatpush.bf16.xpose.msra.mxu0 0
    %2701 = vmatpush.bf16.xpose.msra.mxu0 0
    %2702 = vmatpush.bf16.xpose.msra.mxu0 %v2693
    %2703 = vmatmul.bf16.gmra.mxu0 %v2690
    %v2704 = vpop.f32.mrf.mxu0
    %v2705 = vadd.f32 0.0, %v2704
    %v2706 = vpop.f32.mrf.mxu0
    %2707 = vdwg.mxu0
    %2708 = vrot.lane.b32.xlu0 %v2250, 48
    %v2709 = vpop.permute.xlu0 %2708
    %2710 = vrot.lane.b32.xlu0 %v2255, 48
    %v2711 = vpop.permute.xlu0 %2710
    %v2713 = vsel %vm362, %v2709, 0
    %v2716 = vsel %vm362, %v2711, 0
    %2718 = vmatpush.bf16.xpose.msra.mxu0 0
    %2719 = vmatpush.bf16.xpose.msra.mxu0 0
    %2720 = vmatpush.bf16.xpose.msra.mxu0 0
    %2721 = vmatpush.bf16.xpose.msra.mxu0 0
    %2722 = vmatpush.bf16.xpose.msra.mxu0 0
    %2723 = vmatpush.bf16.xpose.msra.mxu0 0
    %2724 = vmatpush.bf16.xpose.msra.mxu0 0
    %2725 = vmatpush.bf16.xpose.msra.mxu0 %v2716
    %2726 = vmatmul.bf16.gmra.mxu0 %v2713
    %v2727 = vpop.f32.mrf.mxu0
    %v2728 = vadd.f32 0.0, %v2727
    %v2729 = vpop.f32.mrf.mxu0
    %2730 = vdwg.mxu0
    %v2731 = vsel %vm600, %v2705, -inf
    %2732 = vmax.xlane.f32.xlu0 %v2731
    %v2733 = vpop.xlane.xlu0 %2732
    %v2734 = vsel %vm600, %v2728, -inf
    %2735 = vmax.xlane.f32.xlu0 %v2734
    %v2736 = vpop.xlane.xlu0 %2735
    %v2737 = vsub.f32 %v2705, %v2733
    %v2738 = vsub.f32 %v2728, %v2736
    %v2739 = vmul.f32 %v2737, 1.442695
    %v2740 = vpow.pop %v2739
    %v2741 = vmul.f32 %v2738, 1.442695
    %v2742 = vpow.pop %v2741
    %v2743 = vpack.c.bf16 %v2740, %v2740
    %v2744 = vpack.c.bf16 %v2742, %v2742
    %2745 = vrot.lane.b32.xlu0 %v2293, 48
    %v2746 = vpop.permute.xlu0 %2745
    %v2748 = vsel %vm600, %v2743, 0
    %v2751 = vsel %vm618, %v2746, 0
    %2753 = vmatpush.bf16.msra.mxu0 0
    %2754 = vmatpush.bf16.msra.mxu0 0
    %2755 = vmatpush.bf16.msra.mxu0 0
    %2756 = vmatpush.bf16.msra.mxu0 0
    %2757 = vmatpush.bf16.msra.mxu0 0
    %2758 = vmatpush.bf16.msra.mxu0 0
    %2759 = vmatpush.bf16.msra.mxu0 0
    %2760 = vmatpush.bf16.msra.mxu0 %v2751
    %2761 = vmatmul.bf16.gmra.mxu0 %v2748
    %v2762 = vpop.f32.mrf.mxu0
    %v2763 = vadd.f32 0.0, %v2762
    %v2764 = vpop.f32.mrf.mxu0
    %2765 = vdwg.mxu0
    %2766 = vrot.lane.b32.xlu0 %v2317, 48
    %v2767 = vpop.permute.xlu0 %2766
    %v2769 = vsel %vm600, %v2744, 0
    %v2772 = vsel %vm618, %v2767, 0
    %2774 = vmatpush.bf16.msra.mxu0 0
    %2775 = vmatpush.bf16.msra.mxu0 0
    %2776 = vmatpush.bf16.msra.mxu0 0
    %2777 = vmatpush.bf16.msra.mxu0 0
    %2778 = vmatpush.bf16.msra.mxu0 0
    %2779 = vmatpush.bf16.msra.mxu0 0
    %2780 = vmatpush.bf16.msra.mxu0 0
    %2781 = vmatpush.bf16.msra.mxu0 %v2772
    %2782 = vmatmul.bf16.gmra.mxu0 %v2769
    %v2783 = vpop.f32.mrf.mxu0
    %v2784 = vadd.f32 0.0, %v2783
    %v2785 = vpop.f32.mrf.mxu0
    %2786 = vdwg.mxu0
    %v2787 = vsel %vm600, %v2740, 0.0
    %2788 = vadd.xlane.f32.xlu0 %v2787
    %v2789 = vpop.xlane.xlu0 %2788
    %v2790 = vsel %vm600, %v2742, 0.0
    %2791 = vadd.xlane.f32.xlu0 %v2790
    %v2792 = vpop.xlane.xlu0 %2791
    %v2793 = vrcp.pop %v2789
    %v2794 = vrcp.pop %v2792
    %v2795 = vmul.f32 %v2763, %v2793
    %v2796 = vmul.f32 %v2784, %v2794
    %2797 = vrot.lane.b32.xlu0 %v2221, 32
    %v2798 = vpop.permute.xlu0 %2797
    %2799 = vrot.lane.b32.xlu0 %v2226, 32
    %v2800 = vpop.permute.xlu0 %2799
    %v2802 = vsel %vm362, %v2798, 0
    %v2805 = vsel %vm362, %v2800, 0
    %2807 = vmatpush.bf16.xpose.msra.mxu0 0
    %2808 = vmatpush.bf16.xpose.msra.mxu0 0
    %2809 = vmatpush.bf16.xpose.msra.mxu0 0
    %2810 = vmatpush.bf16.xpose.msra.mxu0 0
    %2811 = vmatpush.bf16.xpose.msra.mxu0 0
    %2812 = vmatpush.bf16.xpose.msra.mxu0 0
    %2813 = vmatpush.bf16.xpose.msra.mxu0 0
    %2814 = vmatpush.bf16.xpose.msra.mxu0 %v2805
    %2815 = vmatmul.bf16.gmra.mxu0 %v2802
    %v2816 = vpop.f32.mrf.mxu0
    %v2817 = vadd.f32 0.0, %v2816
    %v2818 = vpop.f32.mrf.mxu0
    %2819 = vdwg.mxu0
    %2820 = vrot.lane.b32.xlu0 %v2250, 32
    %v2821 = vpop.permute.xlu0 %2820
    %2822 = vrot.lane.b32.xlu0 %v2255, 32
    %v2823 = vpop.permute.xlu0 %2822
    %v2825 = vsel %vm362, %v2821, 0
    %v2828 = vsel %vm362, %v2823, 0
    %2830 = vmatpush.bf16.xpose.msra.mxu0 0
    %2831 = vmatpush.bf16.xpose.msra.mxu0 0
    %2832 = vmatpush.bf16.xpose.msra.mxu0 0
    %2833 = vmatpush.bf16.xpose.msra.mxu0 0
    %2834 = vmatpush.bf16.xpose.msra.mxu0 0
    %2835 = vmatpush.bf16.xpose.msra.mxu0 0
    %2836 = vmatpush.bf16.xpose.msra.mxu0 0
    %2837 = vmatpush.bf16.xpose.msra.mxu0 %v2828
    %2838 = vmatmul.bf16.gmra.mxu0 %v2825
    %v2839 = vpop.f32.mrf.mxu0
    %v2840 = vadd.f32 0.0, %v2839
    %v2841 = vpop.f32.mrf.mxu0
    %2842 = vdwg.mxu0
    %v2843 = vsel %vm600, %v2817, -inf
    %2844 = vmax.xlane.f32.xlu0 %v2843
    %v2845 = vpop.xlane.xlu0 %2844
    %v2846 = vsel %vm600, %v2840, -inf
    %2847 = vmax.xlane.f32.xlu0 %v2846
    %v2848 = vpop.xlane.xlu0 %2847
    %v2849 = vsub.f32 %v2817, %v2845
    %v2850 = vsub.f32 %v2840, %v2848
    %v2851 = vmul.f32 %v2849, 1.442695
    %v2852 = vpow.pop %v2851
    %v2853 = vmul.f32 %v2850, 1.442695
    %v2854 = vpow.pop %v2853
    %v2855 = vpack.c.bf16 %v2852, %v2852
    %v2856 = vpack.c.bf16 %v2854, %v2854
    %2857 = vrot.lane.b32.xlu0 %v2293, 32
    %v2858 = vpop.permute.xlu0 %2857
    %v2860 = vsel %vm600, %v2855, 0
    %v2863 = vsel %vm618, %v2858, 0
    %2865 = vmatpush.bf16.msra.mxu0 0
    %2866 = vmatpush.bf16.msra.mxu0 0
    %2867 = vmatpush.bf16.msra.mxu0 0
    %2868 = vmatpush.bf16.msra.mxu0 0
    %2869 = vmatpush.bf16.msra.mxu0 0
    %2870 = vmatpush.bf16.msra.mxu0 0
    %2871 = vmatpush.bf16.msra.mxu0 0
    %2872 = vmatpush.bf16.msra.mxu0 %v2863
    %2873 = vmatmul.bf16.gmra.mxu0 %v2860
    %v2874 = vpop.f32.mrf.mxu0
    %v2875 = vadd.f32 0.0, %v2874
    %v2876 = vpop.f32.mrf.mxu0
    %2877 = vdwg.mxu0
    %2878 = vrot.lane.b32.xlu0 %v2317, 32
    %v2879 = vpop.permute.xlu0 %2878
    %v2881 = vsel %vm600, %v2856, 0
    %v2884 = vsel %vm618, %v2879, 0
    %2886 = vmatpush.bf16.msra.mxu0 0
    %2887 = vmatpush.bf16.msra.mxu0 0
    %2888 = vmatpush.bf16.msra.mxu0 0
    %2889 = vmatpush.bf16.msra.mxu0 0
    %2890 = vmatpush.bf16.msra.mxu0 0
    %2891 = vmatpush.bf16.msra.mxu0 0
    %2892 = vmatpush.bf16.msra.mxu0 0
    %2893 = vmatpush.bf16.msra.mxu0 %v2884
    %2894 = vmatmul.bf16.gmra.mxu0 %v2881
    %v2895 = vpop.f32.mrf.mxu0
    %v2896 = vadd.f32 0.0, %v2895
    %v2897 = vpop.f32.mrf.mxu0
    %2898 = vdwg.mxu0
    %v2899 = vsel %vm600, %v2852, 0.0
    %2900 = vadd.xlane.f32.xlu0 %v2899
    %v2901 = vpop.xlane.xlu0 %2900
    %v2902 = vsel %vm600, %v2854, 0.0
    %2903 = vadd.xlane.f32.xlu0 %v2902
    %v2904 = vpop.xlane.xlu0 %2903
    %v2905 = vrcp.pop %v2901
    %v2906 = vrcp.pop %v2904
    %v2907 = vmul.f32 %v2875, %v2905
    %v2908 = vmul.f32 %v2896, %v2906
    %2909 = vrot.lane.b32.xlu0 %v2221, 16
    %v2910 = vpop.permute.xlu0 %2909
    %2911 = vrot.lane.b32.xlu0 %v2226, 16
    %v2912 = vpop.permute.xlu0 %2911
    %v2914 = vsel %vm362, %v2910, 0
    %v2917 = vsel %vm362, %v2912, 0
    %2919 = vmatpush.bf16.xpose.msra.mxu0 0
    %2920 = vmatpush.bf16.xpose.msra.mxu0 0
    %2921 = vmatpush.bf16.xpose.msra.mxu0 0
    %2922 = vmatpush.bf16.xpose.msra.mxu0 0
    %2923 = vmatpush.bf16.xpose.msra.mxu0 0
    %2924 = vmatpush.bf16.xpose.msra.mxu0 0
    %2925 = vmatpush.bf16.xpose.msra.mxu0 0
    %2926 = vmatpush.bf16.xpose.msra.mxu0 %v2917
    %2927 = vmatmul.bf16.gmra.mxu0 %v2914
    %v2928 = vpop.f32.mrf.mxu0
    %v2929 = vadd.f32 0.0, %v2928
    %v2930 = vpop.f32.mrf.mxu0
    %2931 = vdwg.mxu0
    %2932 = vrot.lane.b32.xlu0 %v2250, 16
    %v2933 = vpop.permute.xlu0 %2932
    %2934 = vrot.lane.b32.xlu0 %v2255, 16
    %v2935 = vpop.permute.xlu0 %2934
    %v2937 = vsel %vm362, %v2933, 0
    %v2940 = vsel %vm362, %v2935, 0
    %2942 = vmatpush.bf16.xpose.msra.mxu0 0
    %2943 = vmatpush.bf16.xpose.msra.mxu0 0
    %2944 = vmatpush.bf16.xpose.msra.mxu0 0
    %2945 = vmatpush.bf16.xpose.msra.mxu0 0
    %2946 = vmatpush.bf16.xpose.msra.mxu0 0
    %2947 = vmatpush.bf16.xpose.msra.mxu0 0
    %2948 = vmatpush.bf16.xpose.msra.mxu0 0
    %2949 = vmatpush.bf16.xpose.msra.mxu0 %v2940
    %2950 = vmatmul.bf16.gmra.mxu0 %v2937
    %v2951 = vpop.f32.mrf.mxu0
    %v2952 = vadd.f32 0.0, %v2951
    %v2953 = vpop.f32.mrf.mxu0
    %2954 = vdwg.mxu0
    %v2955 = vsel %vm600, %v2929, -inf
    %2956 = vmax.xlane.f32.xlu0 %v2955
    %v2957 = vpop.xlane.xlu0 %2956
    %v2958 = vsel %vm600, %v2952, -inf
    %2959 = vmax.xlane.f32.xlu0 %v2958
    %v2960 = vpop.xlane.xlu0 %2959
    %v2961 = vsub.f32 %v2929, %v2957
    %v2962 = vsub.f32 %v2952, %v2960
    %v2963 = vmul.f32 %v2961, 1.442695
    %v2964 = vpow.pop %v2963
    %v2965 = vmul.f32 %v2962, 1.442695
    %v2966 = vpow.pop %v2965
    %v2967 = vpack.c.bf16 %v2964, %v2964
    %v2968 = vpack.c.bf16 %v2966, %v2966
    %2969 = vrot.lane.b32.xlu0 %v2293, 16
    %v2970 = vpop.permute.xlu0 %2969
    %v2972 = vsel %vm600, %v2967, 0
    %v2975 = vsel %vm618, %v2970, 0
    %2977 = vmatpush.bf16.msra.mxu0 0
    %2978 = vmatpush.bf16.msra.mxu0 0
    %2979 = vmatpush.bf16.msra.mxu0 0
    %2980 = vmatpush.bf16.msra.mxu0 0
    %2981 = vmatpush.bf16.msra.mxu0 0
    %2982 = vmatpush.bf16.msra.mxu0 0
    %2983 = vmatpush.bf16.msra.mxu0 0
    %2984 = vmatpush.bf16.msra.mxu0 %v2975
    %2985 = vmatmul.bf16.gmra.mxu0 %v2972
    %v2986 = vpop.f32.mrf.mxu0
    %v2987 = vadd.f32 0.0, %v2986
    %v2988 = vpop.f32.mrf.mxu0
    %2989 = vdwg.mxu0
    %2990 = vrot.lane.b32.xlu0 %v2317, 16
    %v2991 = vpop.permute.xlu0 %2990
    %v2993 = vsel %vm600, %v2968, 0
    %v2996 = vsel %vm618, %v2991, 0
    %2998 = vmatpush.bf16.msra.mxu0 0
    %2999 = vmatpush.bf16.msra.mxu0 0
    %3000 = vmatpush.bf16.msra.mxu0 0
    %3001 = vmatpush.bf16.msra.mxu0 0
    %3002 = vmatpush.bf16.msra.mxu0 0
    %3003 = vmatpush.bf16.msra.mxu0 0
    %3004 = vmatpush.bf16.msra.mxu0 0
    %3005 = vmatpush.bf16.msra.mxu0 %v2996
    %3006 = vmatmul.bf16.gmra.mxu0 %v2993
    %v3007 = vpop.f32.mrf.mxu0
    %v3008 = vadd.f32 0.0, %v3007
    %v3009 = vpop.f32.mrf.mxu0
    %3010 = vdwg.mxu0
    %v3011 = vsel %vm600, %v2964, 0.0
    %3012 = vadd.xlane.f32.xlu0 %v3011
    %v3013 = vpop.xlane.xlu0 %3012
    %v3014 = vsel %vm600, %v2966, 0.0
    %3015 = vadd.xlane.f32.xlu0 %v3014
    %v3016 = vpop.xlane.xlu0 %3015
    %v3017 = vrcp.pop %v3013
    %v3018 = vrcp.pop %v3016
    %v3019 = vmul.f32 %v2987, %v3017
    %v3020 = vmul.f32 %v3008, %v3018
    %3023 = vrot.lane.b32.xlu0 %v2347, 16
    %v3024 = vpop.permute.xlu0 %3023
    %3025 = vrot.lane.b32.xlu0 %v2348, 16
    %v3026 = vpop.permute.xlu0 %3025
    %3031 = vrot.lane.b32.xlu0 %v2459, 32
    %v3032 = vpop.permute.xlu0 %3031
    %3033 = vrot.lane.b32.xlu0 %v2460, 32
    %v3034 = vpop.permute.xlu0 %3033
    %3039 = vrot.lane.b32.xlu0 %v2571, 48
    %v3040 = vpop.permute.xlu0 %3039
    %3041 = vrot.lane.b32.xlu0 %v2572, 48
    %v3042 = vpop.permute.xlu0 %3041
    %3047 = vrot.lane.b32.xlu0 %v2683, 64
    %v3048 = vpop.permute.xlu0 %3047
    %3049 = vrot.lane.b32.xlu0 %v2684, 64
    %v3050 = vpop.permute.xlu0 %3049
    %3055 = vrot.lane.b32.xlu0 %v2795, 80
    %v3056 = vpop.permute.xlu0 %3055
    %3057 = vrot.lane.b32.xlu0 %v2796, 80
    %v3058 = vpop.permute.xlu0 %3057
    %3063 = vrot.lane.b32.xlu0 %v2907, 96
    %v3064 = vpop.permute.xlu0 %3063
    %3065 = vrot.lane.b32.xlu0 %v2908, 96
    %v3066 = vpop.permute.xlu0 %3065
    %3071 = vrot.lane.b32.xlu0 %v3019, 112
    %v3072 = vpop.permute.xlu0 %3071
    %3073 = vrot.lane.b32.xlu0 %v3020, 112
    %v3074 = vpop.permute.xlu0 %3073
    %v3077 = vsel %vm362, %v2217, %v3024
    %v3078 = vsel %vm362, %v2218, %v3026
    %v3079 = vsel %vm1524, %v3077, %v3032
    %v3080 = vsel %vm1524, %v3078, %v3034
    %v3081 = vsel %vm1527, %v3079, %v3040
    %v3082 = vsel %vm1527, %v3080, %v3042
    %v3083 = vsel %vm1530, %v3081, %v3048
    %v3084 = vsel %vm1530, %v3082, %v3050
    %v3085 = vsel %vm1533, %v3083, %v3056
    %v3086 = vsel %vm1533, %v3084, %v3058
    %v3087 = vsel %vm1536, %v3085, %v3064
    %v3088 = vsel %vm1536, %v3086, %v3066
    %v3089 = vsel %vm1539, %v3087, %v3072
    %v3090 = vsel %vm1539, %v3088, %v3074
    %v3091 = vpack.c.bf16 %v3090, %v3089
    %v3092 = vunpack.c.h.b16 %v228
    %v3093 = vunpack.c.h.b16 %v231
    %v3094 = vunpack.c.h.b16 %v234
    %v3095 = vunpack.c.h.b16 %v237
    %v3096 = vunpack.c.h.b16 %v240
    %v3097 = vunpack.c.h.b16 %v243
    %v3098 = vunpack.c.h.b16 %v246
    %v3099 = vunpack.c.h.b16 %v249
    %v3100 = vunpack.c.h.b16 %v252
    %v3101 = vunpack.c.h.b16 %v255
    %v3102 = vunpack.c.h.b16 %v258
    %v3103 = vunpack.c.h.b16 %v261
    %v3104 = vunpack.c.h.b16 %v264
    %v3105 = vunpack.c.h.b16 %v267
    %v3106 = vunpack.c.h.b16 %v270
    %v3107 = vunpack.c.h.b16 %v273
    %v3108 = vpack.c.b16 %v3093, %v3092
    %v3109 = vpack.c.b16 %v3095, %v3094
    %v3110 = vpack.c.b16 %v3097, %v3096
    %v3111 = vpack.c.b16 %v3099, %v3098
    %v3112 = vpack.c.b16 %v3101, %v3100
    %v3113 = vpack.c.b16 %v3103, %v3102
    %v3114 = vpack.c.b16 %v3105, %v3104
    %v3115 = vpack.c.b16 %v3107, %v3106
    %3124 = vmatpush.bf16.msra.mxu0 %v3115
    %3125 = vmatpush.bf16.msra.mxu0 %v3114
    %3126 = vmatpush.bf16.msra.mxu0 %v3113
    %3127 = vmatpush.bf16.msra.mxu0 %v3112
    %3128 = vmatpush.bf16.msra.mxu0 %v3111
    %3129 = vmatpush.bf16.msra.mxu0 %v3110
    %3130 = vmatpush.bf16.msra.mxu0 %v3109
    %3131 = vmatpush.bf16.msra.mxu0 %v3108
    %3132 = vmatmul.bf16.gmra.mxu0 %v3091
    %v3133 = vpop.f32.mrf.mxu0
    %v3134 = vadd.f32 0.0, %v3133
    %v3135 = vpop.f32.mrf.mxu0
    %v3136 = vadd.f32 0.0, %v3135
    %3137 = vdwg.mxu0
    %v3138 = vadd.f32 %v1937, %v3134
    %v3139 = vadd.f32 %v1938, %v3136
    %v3140 = vperm.slane %v309, 1
    %v3141 = vadd.f32 %v3138, %v3140
    %v3142 = vadd.f32 %v3139, %v3140
    %3143 = vadd.xlane.f32.xlu0 %v3141
    %v3144 = vpop.xlane.xlu0 %3143
    %3145 = vadd.xlane.f32.xlu0 %v3142
    %v3146 = vpop.xlane.xlu0 %3145
    %v3147 = vmul.f32 %v3144, %v1604
    %v3148 = vmul.f32 %v3146, %v1604
    %v3149 = vsub.f32 %v3141, %v3147
    %v3150 = vsub.f32 %v3142, %v3148
    %v3151 = vmul.f32 %v3149, %v3149
    %v3152 = vmul.f32 %v3150, %v3150
    %3153 = vadd.xlane.f32.xlu0 %v3151
    %v3154 = vpop.xlane.xlu0 %3153
    %3155 = vadd.xlane.f32.xlu0 %v3152
    %v3156 = vpop.xlane.xlu0 %3155
    %v3157 = vmul.f32 %v3154, %v1604
    %v3158 = vmul.f32 %v3156, %v1604
    %v3159 = vadd.f32 %v3157, 1e-05
    %v3160 = vadd.f32 %v3158, 1e-05
    %v3161 = vrsqrt.pop %v3159
    %v3162 = vmul.f32 %v3161, %v3159
    %v3163 = vmul.f32 %v3162, %v3161
    %v3164 = vmul.f32 0.5, %v3163
    %v3165 = vsub.f32 1.5, %v3164
    %v3166 = vmul.f32 %v3161, %v3165
    %vm3167 = vweird.f32 %v3159
    %vm3168 = vweird.f32 %v3161
    %vm3169 = vmor %vm3167, %vm3168
    %v3170 = vsel %vm3169, %v3161, %v3166
    %v3171 = vrsqrt.pop %v3160
    %v3172 = vmul.f32 %v3171, %v3160
    %v3173 = vmul.f32 %v3172, %v3171
    %v3174 = vmul.f32 0.5, %v3173
    %v3175 = vsub.f32 1.5, %v3174
    %v3176 = vmul.f32 %v3171, %v3175
    %vm3177 = vweird.f32 %v3160
    %vm3178 = vweird.f32 %v3171
    %vm3179 = vmor %vm3177, %vm3178
    %v3180 = vsel %vm3179, %v3171, %v3176
    %v3181 = vmul.f32 %v3149, %v3170
    %v3182 = vmul.f32 %v3150, %v3180
    %v3183 = vperm.slane %v309, 4
    %v3184 = vmul.f32 %v3181, %v3183
    %v3185 = vmul.f32 %v3182, %v3183
    %v3186 = vperm.slane %v309, 5
    %v3187 = vadd.f32 %v3184, %v3186
    %v3188 = vadd.f32 %v3185, %v3186
    %v3189 = vpack.c.bf16 %v3188, %v3187
    %v3190 = vperm.slane %v309, 2
    %v3191 = vperm.slane %v310, 2
    %v3208 = vunpack.c.l.b16 %v229
    %v3209 = vunpack.c.h.b16 %v229
    %v3210 = vunpack.c.l.b16 %v232
    %v3211 = vunpack.c.h.b16 %v232
    %v3212 = vunpack.c.l.b16 %v235
    %v3213 = vunpack.c.h.b16 %v235
    %v3214 = vunpack.c.l.b16 %v238
    %v3215 = vunpack.c.h.b16 %v238
    %v3216 = vunpack.c.l.b16 %v241
    %v3217 = vunpack.c.h.b16 %v241
    %v3218 = vunpack.c.l.b16 %v244
    %v3219 = vunpack.c.h.b16 %v244
    %v3220 = vunpack.c.l.b16 %v247
    %v3221 = vunpack.c.h.b16 %v247
    %v3222 = vunpack.c.l.b16 %v250
    %v3223 = vunpack.c.h.b16 %v250
    %v3224 = vunpack.c.l.b16 %v253
    %v3225 = vunpack.c.h.b16 %v253
    %v3226 = vunpack.c.l.b16 %v256
    %v3227 = vunpack.c.h.b16 %v256
    %v3228 = vunpack.c.l.b16 %v259
    %v3229 = vunpack.c.h.b16 %v259
    %v3230 = vunpack.c.l.b16 %v262
    %v3231 = vunpack.c.h.b16 %v262
    %v3232 = vunpack.c.l.b16 %v265
    %v3233 = vunpack.c.h.b16 %v265
    %v3234 = vunpack.c.l.b16 %v268
    %v3235 = vunpack.c.h.b16 %v268
    %v3236 = vunpack.c.l.b16 %v271
    %v3237 = vunpack.c.h.b16 %v271
    %v3238 = vunpack.c.l.b16 %v274
    %v3239 = vunpack.c.h.b16 %v274
    %v3240 = vpack.c.b16 %v3210, %v3208
    %v3241 = vpack.c.b16 %v3211, %v3209
    %v3242 = vpack.c.b16 %v3214, %v3212
    %v3243 = vpack.c.b16 %v3215, %v3213
    %v3244 = vpack.c.b16 %v3218, %v3216
    %v3245 = vpack.c.b16 %v3219, %v3217
    %v3246 = vpack.c.b16 %v3222, %v3220
    %v3247 = vpack.c.b16 %v3223, %v3221
    %v3248 = vpack.c.b16 %v3226, %v3224
    %v3249 = vpack.c.b16 %v3227, %v3225
    %v3250 = vpack.c.b16 %v3230, %v3228
    %v3251 = vpack.c.b16 %v3231, %v3229
    %v3252 = vpack.c.b16 %v3234, %v3232
    %v3253 = vpack.c.b16 %v3235, %v3233
    %v3254 = vpack.c.b16 %v3238, %v3236
    %v3255 = vpack.c.b16 %v3239, %v3237
    %3272 = vmatpush.bf16.msra.mxu0 %v3254
    %3273 = vmatpush.bf16.msra.mxu0 %v3252
    %3274 = vmatpush.bf16.msra.mxu0 %v3250
    %3275 = vmatpush.bf16.msra.mxu0 %v3248
    %3276 = vmatpush.bf16.msra.mxu0 %v3246
    %3277 = vmatpush.bf16.msra.mxu0 %v3244
    %3278 = vmatpush.bf16.msra.mxu0 %v3242
    %3279 = vmatpush.bf16.msra.mxu0 %v3240
    %3280 = vmatmul.bf16.gmra.mxu0 %v3189
    %v3281 = vpop.f32.mrf.mxu0
    %v3282 = vadd.f32 %v3190, %v3281
    %v3283 = vpop.f32.mrf.mxu0
    %v3284 = vadd.f32 %v3190, %v3283
    %3285 = vdwg.mxu0
    %3286 = vmatpush.bf16.msra.mxu0 %v3255
    %3287 = vmatpush.bf16.msra.mxu0 %v3253
    %3288 = vmatpush.bf16.msra.mxu0 %v3251
    %3289 = vmatpush.bf16.msra.mxu0 %v3249
    %3290 = vmatpush.bf16.msra.mxu0 %v3247
    %3291 = vmatpush.bf16.msra.mxu0 %v3245
    %3292 = vmatpush.bf16.msra.mxu0 %v3243
    %3293 = vmatpush.bf16.msra.mxu0 %v3241
    %3294 = vmatmul.bf16.gmra.mxu0 %v3189
    %v3295 = vpop.f32.mrf.mxu0
    %v3296 = vadd.f32 %v3191, %v3295
    %v3297 = vpop.f32.mrf.mxu0
    %v3298 = vadd.f32 %v3191, %v3297
    %3299 = vdwg.mxu0
    %v3300 = vmax.f32 %v3282, 0.0
    %v3301 = vmax.f32 %v3296, 0.0
    %v3302 = vmax.f32 %v3284, 0.0
    %v3303 = vmax.f32 %v3298, 0.0
    %v3304 = vpack.c.bf16 %v3302, %v3300
    %v3305 = vpack.c.bf16 %v3303, %v3301
    %v3338 = vunpack.c.l.b16 %v276
    %v3339 = vunpack.c.l.b16 %v277
    %v3340 = vunpack.c.l.b16 %v278
    %v3341 = vunpack.c.l.b16 %v279
    %v3342 = vunpack.c.l.b16 %v280
    %v3343 = vunpack.c.l.b16 %v281
    %v3344 = vunpack.c.l.b16 %v282
    %v3345 = vunpack.c.l.b16 %v283
    %v3346 = vunpack.c.l.b16 %v284
    %v3347 = vunpack.c.l.b16 %v285
    %v3348 = vunpack.c.l.b16 %v286
    %v3349 = vunpack.c.l.b16 %v287
    %v3350 = vunpack.c.l.b16 %v288
    %v3351 = vunpack.c.l.b16 %v289
    %v3352 = vunpack.c.l.b16 %v290
    %v3353 = vunpack.c.l.b16 %v291
    %v3354 = vunpack.c.l.b16 %v292
    %v3355 = vunpack.c.l.b16 %v293
    %v3356 = vunpack.c.l.b16 %v294
    %v3357 = vunpack.c.l.b16 %v295
    %v3358 = vunpack.c.l.b16 %v296
    %v3359 = vunpack.c.l.b16 %v297
    %v3360 = vunpack.c.l.b16 %v298
    %v3361 = vunpack.c.l.b16 %v299
    %v3362 = vunpack.c.l.b16 %v300
    %v3363 = vunpack.c.l.b16 %v301
    %v3364 = vunpack.c.l.b16 %v302
    %v3365 = vunpack.c.l.b16 %v303
    %v3366 = vunpack.c.l.b16 %v304
    %v3367 = vunpack.c.l.b16 %v305
    %v3368 = vunpack.c.l.b16 %v306
    %v3369 = vunpack.c.l.b16 %v307
    %v3370 = vpack.c.b16 %v3339, %v3338
    %v3371 = vpack.c.b16 %v3341, %v3340
    %v3372 = vpack.c.b16 %v3343, %v3342
    %v3373 = vpack.c.b16 %v3345, %v3344
    %v3374 = vpack.c.b16 %v3347, %v3346
    %v3375 = vpack.c.b16 %v3349, %v3348
    %v3376 = vpack.c.b16 %v3351, %v3350
    %v3377 = vpack.c.b16 %v3353, %v3352
    %v3378 = vpack.c.b16 %v3355, %v3354
    %v3379 = vpack.c.b16 %v3357, %v3356
    %v3380 = vpack.c.b16 %v3359, %v3358
    %v3381 = vpack.c.b16 %v3361, %v3360
    %v3382 = vpack.c.b16 %v3363, %v3362
    %v3383 = vpack.c.b16 %v3365, %v3364
    %v3384 = vpack.c.b16 %v3367, %v3366
    %v3385 = vpack.c.b16 %v3369, %v3368
    %3402 = vmatpush.bf16.msra.mxu0 %v3377
    %3403 = vmatpush.bf16.msra.mxu0 %v3376
    %3404 = vmatpush.bf16.msra.mxu0 %v3375
    %3405 = vmatpush.bf16.msra.mxu0 %v3374
    %3406 = vmatpush.bf16.msra.mxu0 %v3373
    %3407 = vmatpush.bf16.msra.mxu0 %v3372
    %3408 = vmatpush.bf16.msra.mxu0 %v3371
    %3409 = vmatpush.bf16.msra.mxu0 %v3370
    %3410 = vmatmul.bf16.gmra.mxu0 %v3304
    %v3411 = vpop.f32.mrf.mxu0
    %v3412 = vadd.f32 0.0, %v3411
    %v3413 = vpop.f32.mrf.mxu0
    %v3414 = vadd.f32 0.0, %v3413
    %3415 = vdwg.mxu0
    %3416 = vmatpush.bf16.msra.mxu0 %v3385
    %3417 = vmatpush.bf16.msra.mxu0 %v3384
    %3418 = vmatpush.bf16.msra.mxu0 %v3383
    %3419 = vmatpush.bf16.msra.mxu0 %v3382
    %3420 = vmatpush.bf16.msra.mxu0 %v3381
    %3421 = vmatpush.bf16.msra.mxu0 %v3380
    %3422 = vmatpush.bf16.msra.mxu0 %v3379
    %3423 = vmatpush.bf16.msra.mxu0 %v3378
    %3424 = vmatmul.bf16.gmra.mxu0 %v3305
    %v3425 = vpop.f32.mrf.mxu0
    %v3426 = vadd.f32 %v3412, %v3425
    %v3427 = vpop.f32.mrf.mxu0
    %v3428 = vadd.f32 %v3414, %v3427
    %3429 = vdwg.mxu0
    %v3430 = vadd.f32 %v3187, %v3426
    %v3431 = vadd.f32 %v3188, %v3428
    %v3432 = vperm.slane %v309, 3
    %v3433 = vadd.f32 %v3430, %v3432
    %v3434 = vadd.f32 %v3431, %v3432
    %3435 = vadd.xlane.f32.xlu0 %v3433
    %v3436 = vpop.xlane.xlu0 %3435
    %3437 = vadd.xlane.f32.xlu0 %v3434
    %v3438 = vpop.xlane.xlu0 %3437
    %v3439 = vmul.f32 %v3436, %v1604
    %v3440 = vmul.f32 %v3438, %v1604
    %v3441 = vsub.f32 %v3433, %v3439
    %v3442 = vsub.f32 %v3434, %v3440
    %v3443 = vmul.f32 %v3441, %v3441
    %v3444 = vmul.f32 %v3442, %v3442
    %3445 = vadd.xlane.f32.xlu0 %v3443
    %v3446 = vpop.xlane.xlu0 %3445
    %3447 = vadd.xlane.f32.xlu0 %v3444
    %v3448 = vpop.xlane.xlu0 %3447
    %v3449 = vmul.f32 %v3446, %v1604
    %v3450 = vmul.f32 %v3448, %v1604
    %v3451 = vadd.f32 %v3449, 1e-05
    %v3452 = vadd.f32 %v3450, 1e-05
    %v3453 = vrsqrt.pop %v3451
    %v3454 = vmul.f32 %v3453, %v3451
    %v3455 = vmul.f32 %v3454, %v3453
    %v3456 = vmul.f32 0.5, %v3455
    %v3457 = vsub.f32 1.5, %v3456
    %v3458 = vmul.f32 %v3453, %v3457
    %vm3459 = vweird.f32 %v3451
    %vm3460 = vweird.f32 %v3453
    %vm3461 = vmor %vm3459, %vm3460
    %v3462 = vsel %vm3461, %v3453, %v3458
    %v3463 = vrsqrt.pop %v3452
    %v3464 = vmul.f32 %v3463, %v3452
    %v3465 = vmul.f32 %v3464, %v3463
    %v3466 = vmul.f32 0.5, %v3465
    %v3467 = vsub.f32 1.5, %v3466
    %v3468 = vmul.f32 %v3463, %v3467
    %vm3469 = vweird.f32 %v3452
    %vm3470 = vweird.f32 %v3463
    %vm3471 = vmor %vm3469, %vm3470
    %v3472 = vsel %vm3471, %v3463, %v3468
    %v3473 = vmul.f32 %v3441, %v3462
    %v3474 = vmul.f32 %v3442, %v3472
    %v3475 = vperm.slane %v309, 6
    %v3476 = vmul.f32 %v3473, %v3475
    %v3477 = vmul.f32 %v3474, %v3475
    %v3478 = vperm.slane %v309, 7
    %v3479 = vadd.f32 %v3476, %v3478
    %v3480 = vadd.f32 %v3477, %v3478
    %v3481 = vrot.slane %v3479, 4
    %v3482 = vadd.f32 %v3479, %v3481
    %v3483 = vrot.slane %v3482, 2
    %v3484 = vadd.f32 %v3482, %v3483
    %v3485 = vrot.slane %v3484, 1
    %v3486 = vadd.f32 %v3484, %v3485
    %v3487 = vrot.slane %v3480, 4
    %v3488 = vadd.f32 %v3480, %v3487
    %v3489 = vrot.slane %v3488, 2
    %v3490 = vadd.f32 %v3488, %v3489
    %v3491 = vrot.slane %v3490, 1
    %v3492 = vadd.f32 %v3490, %v3491
    %v3493 = vrcp.pop 8.0
    %v3494 = vmul.f32 8.0, %v3493
    %v3495 = vsub.f32 1.0, %v3494
    %v3496 = vmul.f32 %v3493, %v3495
    %v3497 = vadd.f32 %v3493, %v3496
    %vm3498 = vweird.f32 %v3493
    %v3499 = vsel %vm3498, %v3493, %v3497
    %v3500 = vmul.f32 %v3486, %v3499
    %v3501 = vmul.f32 %v3492, %v3499
    %v3502 = vpack.c.bf16 %v3500, %v3500
    %v3503 = vpack.c.bf16 %v3501, %v3501
    %v3504 = vperm.slane %v351, 0
    %v3507 = vunpack.c.l.b16 %v3502
    %v3508 = vunpack.c.l.b16 %v3503
    %vm3509 = vcmask 1041409
    %v3510 = vsel %vm3509, %v3508, %v3507
    %v3511 = vpack.c.b16 %v3510, %v3510
    %v3529 = vunpack.c.l.b16 %v319
    %v3530 = vunpack.c.l.b16 %v320
    %v3531 = vunpack.c.l.b16 %v321
    %v3532 = vunpack.c.l.b16 %v322
    %v3533 = vunpack.c.l.b16 %v323
    %v3534 = vunpack.c.l.b16 %v324
    %v3535 = vunpack.c.l.b16 %v325
    %v3536 = vunpack.c.l.b16 %v326
    %v3537 = vunpack.c.l.b16 %v327
    %v3538 = vunpack.c.l.b16 %v328
    %v3539 = vunpack.c.l.b16 %v329
    %v3540 = vunpack.c.l.b16 %v330
    %v3541 = vunpack.c.l.b16 %v331
    %v3542 = vunpack.c.l.b16 %v332
    %v3543 = vunpack.c.l.b16 %v333
    %v3544 = vunpack.c.l.b16 %v334
    %v3545 = vpack.c.b16 %v3530, %v3529
    %v3546 = vpack.c.b16 %v3532, %v3531
    %v3547 = vpack.c.b16 %v3534, %v3533
    %v3548 = vpack.c.b16 %v3536, %v3535
    %v3549 = vpack.c.b16 %v3538, %v3537
    %v3550 = vpack.c.b16 %v3540, %v3539
    %v3551 = vpack.c.b16 %v3542, %v3541
    %v3552 = vpack.c.b16 %v3544, %v3543
    %3561 = vmatpush.bf16.msra.mxu0 %v3552
    %3562 = vmatpush.bf16.msra.mxu0 %v3551
    %3563 = vmatpush.bf16.msra.mxu0 %v3550
    %3564 = vmatpush.bf16.msra.mxu0 %v3549
    %3565 = vmatpush.bf16.msra.mxu0 %v3548
    %3566 = vmatpush.bf16.msra.mxu0 %v3547
    %3567 = vmatpush.bf16.msra.mxu0 %v3546
    %3568 = vmatpush.bf16.msra.mxu0 %v3545
    %3569 = vmatmul.bf16.gmra.mxu0 %v3511
    %v3570 = vpop.f32.mrf.mxu0
    %v3571 = vadd.f32 %v3504, %v3570
    %v3572 = vpop.f32.mrf.mxu0
    %3573 = vdwg.mxu0
    %v3574 = vmax.f32 %v3571, 0.0
    %v3575 = vpack.c.bf16 %v3574, %v3574
    %v3576 = vperm.slane %v351, 1
    %v3593 = vunpack.c.l.b16 %v335
    %v3594 = vunpack.c.l.b16 %v336
    %v3595 = vunpack.c.l.b16 %v337
    %v3596 = vunpack.c.l.b16 %v338
    %v3597 = vunpack.c.l.b16 %v339
    %v3598 = vunpack.c.l.b16 %v340
    %v3599 = vunpack.c.l.b16 %v341
    %v3600 = vunpack.c.l.b16 %v342
    %v3601 = vunpack.c.l.b16 %v343
    %v3602 = vunpack.c.l.b16 %v344
    %v3603 = vunpack.c.l.b16 %v345
    %v3604 = vunpack.c.l.b16 %v346
    %v3605 = vunpack.c.l.b16 %v347
    %v3606 = vunpack.c.l.b16 %v348
    %v3607 = vunpack.c.l.b16 %v349
    %v3608 = vunpack.c.l.b16 %v350
    %v3609 = vpack.c.b16 %v3594, %v3593
    %v3610 = vpack.c.b16 %v3596, %v3595
    %v3611 = vpack.c.b16 %v3598, %v3597
    %v3612 = vpack.c.b16 %v3600, %v3599
    %v3613 = vpack.c.b16 %v3602, %v3601
    %v3614 = vpack.c.b16 %v3604, %v3603
    %v3615 = vpack.c.b16 %v3606, %v3605
    %v3616 = vpack.c.b16 %v3608, %v3607
    %3625 = vmatpush.bf16.msra.mxu0 %v3616
    %3626 = vmatpush.bf16.msra.mxu0 %v3615
    %3627 = vmatpush.bf16.msra.mxu0 %v3614
    %3628 = vmatpush.bf16.msra.mxu0 %v3613
    %3629 = vmatpush.bf16.msra.mxu0 %v3612
    %3630 = vmatpush.bf16.msra.mxu0 %v3611
    %3631 = vmatpush.bf16.msra.mxu0 %v3610
    %3632 = vmatpush.bf16.msra.mxu0 %v3609
    %3633 = vmatmul.bf16.gmra.mxu0 %v3575
    %v3634 = vpop.f32.mrf.mxu0
    %v3635 = vadd.f32 %v3576, %v3634
    %v3636 = vpop.f32.mrf.mxu0
    %3637 = vdwg.mxu0
    %v3638 = vxor.u32 %v3635, 2147483648
    %v3639 = vmul.f32 %v3638, 1.442695
    %v3640 = vpow.pop %v3639
    %v3641 = vadd.f32 %v3640, 1.0
    %v3642 = vrcp.pop %v3641
    %v3643 = vmul.f32 %v3641, %v3642
    %v3644 = vsub.f32 1.0, %v3643
    %v3645 = vmul.f32 %v3642, %v3644
    %v3646 = vadd.f32 %v3642, %v3645
    %vm3647 = vweird.f32 %v3641
    %vm3648 = vweird.f32 %v3642
    %vm3649 = vmor %vm3647, %vm3648
    %v3650 = vsel %vm3649, %v3642, %v3646
    %v3651 = vand.u32 2147483647, %v3641
    %vm3652 = vcmp.eq.f32.partialorder %v3651, 8.507059e+37
    %v3653 = vand.u32 %v3641, 2147483648
    %v3654 = vor.u32 1.1754944e-38, %v3653
    %v3655 = vsel %vm3652, %v3654, %v3650
    %v3656 = vmul.f32 1.0, %v3655
    %3657 = vst [vmem:[#allocation14] sm:$0x3] %v3656
    // Predicated region
    $region66: #{tpu_custom_call.1} parent=1 // pred_check
      _
    $region67: #{tpu_custom_call.1} parent=1 // pred_check_branch
      %3659 = sbr.rel (0) target = $region69
    $region68: #{tpu_custom_call.1} parent=1 // pred_region
      %3661 = vsyncadd [#allocation4], 0
      %s3663 = sshll.u32 [#allocation14], 4
      %s3664 = int_to_ptr.vmem [resolvable:$true] %s3663
      %s3665 = sshll.u32 %s9, 4
      %s3666 = int_to_ptr.hbm [resolvable:$true] %s3665
      %3668 = dma.vmem_to_hbm [thread:$0]  %s3664, 32, %s3666, [#allocation4]
    $region69: #{tpu_custom_call.1} parent=1 // pred_fallthru
      _
    // Predicated region
    $region70: #{tpu_custom_call.1} parent=1 // pred_check
      _
    $region71: #{tpu_custom_call.1} parent=1 // pred_check_branch
      %3670 = sbr.rel (0) target = $region73
    $region72: #{tpu_custom_call.1} parent=1 // pred_region
      %3672 = dma.done [#allocation4], 32
    $region73: #{tpu_custom_call.1} parent=1 // pred_fallthru
      _
    %3673 = vsyncpa [#allocation3], 1
    %3674 = vsyncpa [#allocation6], 1
    %3675 = vsyncpa [#allocation9], 1
    %3676 = vsyncpa [#allocation12], 1
    %3677 = vsyncpa [#allocation4], 1

// kernel: tpu_custom_call.1
$region0: #{tpu_custom_call.1}
  #allocation0 [shape = 'u32[]', space=smem, size = 0x4, offset = 0x4, fixed_abs, tag = 'smem constant byte address 0x4 - core index']
  #allocation1 [shape = 'u32[72,128]{1,0:T(1,128)}', space=vmem, size = 0x9000, scoped, tag = 'internal scratch']
  %s0 = inlined_call_operand.hbm [shape: f32[16,16], index: 0, kind: input, shape index: {}]
  %s1 = inlined_call_operand.hbm [shape: f32[16,128], index: 1, kind: input, shape index: {}]
  %s2 = inlined_call_operand.hbm [shape: bf16[16,128], index: 2, kind: input, shape index: {}]
  %s3 = inlined_call_operand.vmem [shape: f32[1,128], index: 3, kind: input, shape index: {}]
  %s4 = inlined_call_operand.hbm [shape: bf16[2,128,768], index: 4, kind: input, shape index: {}]
  %s5 = inlined_call_operand.hbm [shape: bf16[2,256,128], index: 5, kind: input, shape index: {}]
  %s6 = inlined_call_operand.hbm [shape: f32[2,8,384], index: 6, kind: input, shape index: {}]
  %s7 = inlined_call_operand.hbm [shape: bf16[2,128,128], index: 7, kind: input, shape index: {}]
  %s8 = inlined_call_operand.vmem [shape: f32[2,128], index: 8, kind: input, shape index: {}]
  %s9 = inlined_call_operand.hbm [shape: f32[1,2,128], index: 9, kind: output, shape index: {}]
  %s10 = sld [smem:[#allocation0]]
  $region74: #{tpu_custom_call.1} parent=0
    _
  %s12 = ssub.s32 1, %s10
  %s13 = scalar_select 0, %s12, %s10
  $region1: #{tpu_custom_call.1} parent=0
    #allocation2 [shape = 'u8[8192]{0}', space=vmem, size = 0x2000, scoped, tag = 'input window, operand 0, single buffered']
    #allocation3 [shape = 's32[1]{0}', space=sflag, size = 0x4, scoped, tag = 'scoped memory for tpu_custom_call.1']
    #allocation4 [shape = 's32[1]{0}', space=sflag, size = 0x4, scoped, tag = 'scoped memory for tpu_custom_call.1']
    #allocation5 [shape = 'u8[8192]{0}', space=vmem, size = 0x2000, scoped, tag = 'input window, operand 1, single buffered']
    #allocation6 [shape = 's32[1]{0}', space=sflag, size = 0x4, scoped, tag = 'scoped memory for tpu_custom_call.1']
    #allocation7 [shape = 'u8[4096]{0}', space=vmem, size = 0x1000, scoped, tag = 'input window, operand 2, single buffered']
    #allocation8 [shape = 'u8[393216]{0}', space=vmem, size = 0x60000, scoped, tag = 'input window, operand 4, single buffered']
    #allocation9 [shape = 's32[1]{0}', space=sflag, size = 0x4, scoped, tag = 'scoped memory for tpu_custom_call.1']
    #allocation10 [shape = 'u8[131072]{0}', space=vmem, size = 0x20000, scoped, tag = 'input window, operand 5, single buffered']
    #allocation11 [shape = 'u8[24576]{0}', space=vmem, size = 0x6000, scoped, tag = 'input window, operand 6, single buffered']
    #allocation12 [shape = 's32[1]{0}', space=sflag, size = 0x4, scoped, tag = 'scoped memory for tpu_custom_call.1']
    #allocation13 [shape = 'u8[65536]{0}', space=vmem, size = 0x10000, scoped, tag = 'input window, operand 7, single buffered']
    #allocation14 [shape = 'u8[1024]{0}', space=vmem, size = 0x400, scoped, tag = 'output window, operand 0, single buffered']
    %14 = vsyncpa [#allocation3], 0
    %15 = vsyncpa [#allocation6], 0
    %16 = vsyncpa [#allocation9], 0
    %17 = vsyncpa [#allocation12], 0
    %18 = vsyncpa [#allocation4], 0
    // Predicated region
    $region2: #{tpu_custom_call.1} parent=1 // pred_check
      _
    $region3: #{tpu_custom_call.1} parent=1 // pred_check_branch
      %20 = sbr.rel (0) target = $region5
    $region4: #{tpu_custom_call.1} parent=1 // pred_region
      %22 = vsyncadd [#allocation3], 0
      %s23 = sshll.u32 %s0, 4
      %s24 = int_to_ptr.hbm [resolvable:$true] %s23
      %s25 = sshll.u32 [#allocation2], 4
      %s26 = int_to_ptr.vmem [resolvable:$true] %s25
      %31 = dma.hbm_to_vmem [thread:$0]  %s24, 256, %s26, [#allocation3], 128, 128, 8
    $region5: #{tpu_custom_call.1} parent=1 // pred_fallthru
      _
    // Predicated region
    $region6: #{tpu_custom_call.1} parent=1 // pred_check
      _
    $region7: #{tpu_custom_call.1} parent=1 // pred_check_branch
      %33 = sbr.rel (0) target = $region9
    $region8: #{tpu_custom_call.1} parent=1 // pred_region
      %35 = vsyncadd [#allocation6], 0
      %s36 = sshll.u32 %s1, 4
      %s37 = int_to_ptr.hbm [resolvable:$true] %s36
      %s38 = sshll.u32 [#allocation5], 4
      %s39 = int_to_ptr.vmem [resolvable:$true] %s38
      %44 = dma.hbm_to_vmem [thread:$0]  %s37, 256, %s39, [#allocation6], 128, 128, 8
    $region9: #{tpu_custom_call.1} parent=1 // pred_fallthru
      _
    // Predicated region
    $region10: #{tpu_custom_call.1} parent=1 // pred_check
      _
    $region11: #{tpu_custom_call.1} parent=1 // pred_check_branch
      %46 = sbr.rel (0) target = $region13
    $region12: #{tpu_custom_call.1} parent=1 // pred_region
      %48 = vsyncadd [#allocation6], 0
      %s49 = sshll.u32 %s2, 4
      %s50 = int_to_ptr.hbm [resolvable:$true] %s49
      %s51 = sshll.u32 [#allocation7], 4
      %s52 = int_to_ptr.vmem [resolvable:$true] %s51
      %57 = dma.hbm_to_vmem [thread:$0]  %s50, 128, %s52, [#allocation6], 64, 64, 4
    $region13: #{tpu_custom_call.1} parent=1 // pred_fallthru
      _
    // Predicated region
    $region14: #{tpu_custom_call.1} parent=1 // pred_check
      _
    $region15: #{tpu_custom_call.1} parent=1 // pred_check_branch
      %59 = sbr.rel (0) target = $region17
    $region16: #{tpu_custom_call.1} parent=1 // pred_region
      _
    $region17: #{tpu_custom_call.1} parent=1 // pred_fallthru
      _
    // Predicated region
    $region18: #{tpu_custom_call.1} parent=1 // pred_check
      _
    $region19: #{tpu_custom_call.1} parent=1 // pred_check_branch
      %61 = sbr.rel (0) target = $region21
    $region20: #{tpu_custom_call.1} parent=1 // pred_region
      %63 = vsyncadd [#allocation9], 0
      %s64 = sshll.u32 %s4, 4
      %s65 = int_to_ptr.hbm [resolvable:$true] %s64
      %s66 = sshll.u32 [#allocation8], 4
      %s67 = int_to_ptr.vmem [resolvable:$true] %s66
      %72 = dma.hbm_to_vmem [thread:$0]  %s65, 12288, %s67, [#allocation9], 384, 384, 24
    $region21: #{tpu_custom_call.1} parent=1 // pred_fallthru
      _
    // Predicated region
    $region22: #{tpu_custom_call.1} parent=1 // pred_check
      _
    $region23: #{tpu_custom_call.1} parent=1 // pred_check_branch
      %74 = sbr.rel (0) target = $region25
    $region24: #{tpu_custom_call.1} parent=1 // pred_region
      %76 = vsyncadd [#allocation9], 0
      %s77 = sshll.u32 %s5, 4
      %s78 = int_to_ptr.hbm [resolvable:$true] %s77
      %s79 = sshll.u32 [#allocation10], 4
      %s80 = int_to_ptr.vmem [resolvable:$true] %s79
      %85 = dma.hbm_to_vmem [thread:$0]  %s78, 4096, %s80, [#allocation9], 64, 64, 4
    $region25: #{tpu_custom_call.1} parent=1 // pred_fallthru
      _
    // Predicated region
    $region26: #{tpu_custom_call.1} parent=1 // pred_check
      _
    $region27: #{tpu_custom_call.1} parent=1 // pred_check_branch
      %87 = sbr.rel (0) target = $region29
    $region28: #{tpu_custom_call.1} parent=1 // pred_region
      %89 = vsyncadd [#allocation12], 0
      %s90 = sshll.u32 %s6, 4
      %s91 = int_to_ptr.hbm [resolvable:$true] %s90
      %s92 = sshll.u32 [#allocation11], 4
      %s93 = int_to_ptr.vmem [resolvable:$true] %s92
      %98 = dma.hbm_to_vmem [thread:$0]  %s91, 768, %s93, [#allocation12], 384, 384, 24
    $region29: #{tpu_custom_call.1} parent=1 // pred_fallthru
      _
    // Predicated region
    $region30: #{tpu_custom_call.1} parent=1 // pred_check
      _
    $region31: #{tpu_custom_call.1} parent=1 // pred_check_branch
      %100 = sbr.rel (0) target = $region33
    $region32: #{tpu_custom_call.1} parent=1 // pred_region
      %102 = vsyncadd [#allocation12], 0
      %s103 = sshll.u32 %s7, 4
      %s104 = int_to_ptr.hbm [resolvable:$true] %s103
      %s105 = sshll.u32 [#allocation13], 4
      %s106 = int_to_ptr.vmem [resolvable:$true] %s105
      %111 = dma.hbm_to_vmem [thread:$0]  %s104, 2048, %s106, [#allocation12], 64, 64, 4
    $region33: #{tpu_custom_call.1} parent=1 // pred_fallthru
      _
    // Predicated region
    $region34: #{tpu_custom_call.1} parent=1 // pred_check
      _
    $region35: #{tpu_custom_call.1} parent=1 // pred_check_branch
      %113 = sbr.rel (0) target = $region37
    $region36: #{tpu_custom_call.1} parent=1 // pred_region
      _
    $region37: #{tpu_custom_call.1} parent=1 // pred_fallthru
      _
    // Predicated region
    $region38: #{tpu_custom_call.1} parent=1 // pred_check
      _
    $region39: #{tpu_custom_call.1} parent=1 // pred_check_branch
      %115 = sbr.rel (0) target = $region41
    $region40: #{tpu_custom_call.1} parent=1 // pred_region
      %117 = dma.done [#allocation3], 256
    $region41: #{tpu_custom_call.1} parent=1 // pred_fallthru
      _
    // Predicated region
    $region42: #{tpu_custom_call.1} parent=1 // pred_check
      _
    $region43: #{tpu_custom_call.1} parent=1 // pred_check_branch
      %119 = sbr.rel (0) target = $region45
    $region44: #{tpu_custom_call.1} parent=1 // pred_region
      %121 = dma.done [#allocation6], 256
    $region45: #{tpu_custom_call.1} parent=1 // pred_fallthru
      _
    // Predicated region
    $region46: #{tpu_custom_call.1} parent=1 // pred_check
      _
    $region47: #{tpu_custom_call.1} parent=1 // pred_check_branch
      %123 = sbr.rel (0) target = $region49
    $region48: #{tpu_custom_call.1} parent=1 // pred_region
      %125 = dma.done [#allocation6], 128
    $region49: #{tpu_custom_call.1} parent=1 // pred_fallthru
      _
    // Predicated region
    $region50: #{tpu_custom_call.1} parent=1 // pred_check
      _
    $region51: #{tpu_custom_call.1} parent=1 // pred_check_branch
      %127 = sbr.rel (0) target = $region53
    $region52: #{tpu_custom_call.1} parent=1 // pred_region
      %129 = dma.done [#allocation9], 12288
    $region53: #{tpu_custom_call.1} parent=1 // pred_fallthru
      _
    // Predicated region
    $region54: #{tpu_custom_call.1} parent=1 // pred_check
      _
    $region55: #{tpu_custom_call.1} parent=1 // pred_check_branch
      %131 = sbr.rel (0) target = $region57
    $region56: #{tpu_custom_call.1} parent=1 // pred_region
      %133 = dma.done [#allocation9], 4096
    $region57: #{tpu_custom_call.1} parent=1 // pred_fallthru
      _
    // Predicated region
    $region58: #{tpu_custom_call.1} parent=1 // pred_check
      _
    $region59: #{tpu_custom_call.1} parent=1 // pred_check_branch
      %135 = sbr.rel (0) target = $region61
    $region60: #{tpu_custom_call.1} parent=1 // pred_region
      %137 = dma.done [#allocation12], 768
    $region61: #{tpu_custom_call.1} parent=1 // pred_fallthru
      _
    // Predicated region
    $region62: #{tpu_custom_call.1} parent=1 // pred_check
      _
    $region63: #{tpu_custom_call.1} parent=1 // pred_check_branch
      %139 = sbr.rel (0) target = $region65
    $region64: #{tpu_custom_call.1} parent=1 // pred_region
      %141 = dma.done [#allocation12], 2048
    $region65: #{tpu_custom_call.1} parent=1 // pred_fallthru
      _
    %v143 = vld [vmem:[#allocation8] sm:$0xff]
    %v144 = vld [vmem:[#allocation8 + $0x8] sm:$0xff]
    %v145 = vld [vmem:[#allocation8 + $0x10] sm:$0xff]
    %v146 = vld [vmem:[#allocation8 + $0x18] sm:$0xff]
    %v147 = vld [vmem:[#allocation8 + $0x20] sm:$0xff]
    %v148 = vld [vmem:[#allocation8 + $0x28] sm:$0xff]
    %v149 = vld [vmem:[#allocation8 + $0x30] sm:$0xff]
    %v150 = vld [vmem:[#allocation8 + $0x38] sm:$0xff]
    %v151 = vld [vmem:[#allocation8 + $0x40] sm:$0xff]
    %v152 = vld [vmem:[#allocation8 + $0x48] sm:$0xff]
    %v153 = vld [vmem:[#allocation8 + $0x50] sm:$0xff]
    %v154 = vld [vmem:[#allocation8 + $0x58] sm:$0xff]
    %v155 = vld [vmem:[#allocation8 + $0x60] sm:$0xff]
    %v156 = vld [vmem:[#allocation8 + $0x68] sm:$0xff]
    %v157 = vld [vmem:[#allocation8 + $0x70] sm:$0xff]
    %v158 = vld [vmem:[#allocation8 + $0x78] sm:$0xff]
    %v159 = vld [vmem:[#allocation8 + $0x80] sm:$0xff]
    %v160 = vld [vmem:[#allocation8 + $0x88] sm:$0xff]
    %v161 = vld [vmem:[#allocation8 + $0x90] sm:$0xff]
    %v162 = vld [vmem:[#allocation8 + $0x98] sm:$0xff]
    %v163 = vld [vmem:[#allocation8 + $0xa0] sm:$0xff]
    %v164 = vld [vmem:[#allocation8 + $0xa8] sm:$0xff]
    %v165 = vld [vmem:[#allocation8 + $0xb0] sm:$0xff]
    %v166 = vld [vmem:[#allocation8 + $0xb8] sm:$0xff]
    %v167 = vld [vmem:[#allocation8 + $0xc0] sm:$0xff]
    %v168 = vld [vmem:[#allocation8 + $0xc8] sm:$0xff]
    %v169 = vld [vmem:[#allocation8 + $0xd0] sm:$0xff]
    %v170 = vld [vmem:[#allocation8 + $0xd8] sm:$0xff]
    %v171 = vld [vmem:[#allocation8 + $0xe0] sm:$0xff]
    %v172 = vld [vmem:[#allocation8 + $0xe8] sm:$0xff]
    %v173 = vld [vmem:[#allocation8 + $0xf0] sm:$0xff]
    %v174 = vld [vmem:[#allocation8 + $0xf8] sm:$0xff]
    %v175 = vld [vmem:[#allocation8 + $0x100] sm:$0xff]
    %v176 = vld [vmem:[#allocation8 + $0x108] sm:$0xff]
    %v177 = vld [vmem:[#allocation8 + $0x110] sm:$0xff]
    %v178 = vld [vmem:[#allocation8 + $0x118] sm:$0xff]
    %v179 = vld [vmem:[#allocation8 + $0x120] sm:$0xff]
    %v180 = vld [vmem:[#allocation8 + $0x128] sm:$0xff]
    %v181 = vld [vmem:[#allocation8 + $0x130] sm:$0xff]
    %v182 = vld [vmem:[#allocation8 + $0x138] sm:$0xff]
    %v183 = vld [vmem:[#allocation8 + $0x140] sm:$0xff]
    %v184 = vld [vmem:[#allocation8 + $0x148] sm:$0xff]
    %v185 = vld [vmem:[#allocation8 + $0x150] sm:$0xff]
    %v186 = vld [vmem:[#allocation8 + $0x158] sm:$0xff]
    %v187 = vld [vmem:[#allocation8 + $0x160] sm:$0xff]
    %v188 = vld [vmem:[#allocation8 + $0x168] sm:$0xff]
    %v189 = vld [vmem:[#allocation8 + $0x170] sm:$0xff]
    %v190 = vld [vmem:[#allocation8 + $0x178] sm:$0xff]
    %v191 = vld [vmem:[#allocation10] sm:$0xf]
    %v192 = vld [vmem:[#allocation10 + $0x4] sm:$0xf]
    %v193 = vld [vmem:[#allocation10 + $0x8] sm:$0xf]
    %v194 = vld [vmem:[#allocation10 + $0xc] sm:$0xf]
    %v195 = vld [vmem:[#allocation10 + $0x10] sm:$0xf]
    %v196 = vld [vmem:[#allocation10 + $0x14] sm:$0xf]
    %v197 = vld [vmem:[#allocation10 + $0x18] sm:$0xf]
    %v198 = vld [vmem:[#allocation10 + $0x1c] sm:$0xf]
    %v199 = vld [vmem:[#allocation10 + $0x20] sm:$0xf]
    %v200 = vld [vmem:[#allocation10 + $0x24] sm:$0xf]
    %v201 = vld [vmem:[#allocation10 + $0x28] sm:$0xf]
    %v202 = vld [vmem:[#allocation10 + $0x2c] sm:$0xf]
    %v203 = vld [vmem:[#allocation10 + $0x30] sm:$0xf]
    %v204 = vld [vmem:[#allocation10 + $0x34] sm:$0xf]
    %v205 = vld [vmem:[#allocation10 + $0x38] sm:$0xf]
    %v206 = vld [vmem:[#allocation10 + $0x3c] sm:$0xf]
    %v207 = vld [vmem:[#allocation10 + $0x40] sm:$0xf]
    %v208 = vld [vmem:[#allocation10 + $0x44] sm:$0xf]
    %v209 = vld [vmem:[#allocation10 + $0x48] sm:$0xf]
    %v210 = vld [vmem:[#allocation10 + $0x4c] sm:$0xf]
    %v211 = vld [vmem:[#allocation10 + $0x50] sm:$0xf]
    %v212 = vld [vmem:[#allocation10 + $0x54] sm:$0xf]
    %v213 = vld [vmem:[#allocation10 + $0x58] sm:$0xf]
    %v214 = vld [vmem:[#allocation10 + $0x5c] sm:$0xf]
    %v215 = vld [vmem:[#allocation10 + $0x60] sm:$0xf]
    %v216 = vld [vmem:[#allocation10 + $0x64] sm:$0xf]
    %v217 = vld [vmem:[#allocation10 + $0x68] sm:$0xf]
    %v218 = vld [vmem:[#allocation10 + $0x6c] sm:$0xf]
    %v219 = vld [vmem:[#allocation10 + $0x70] sm:$0xf]
    %v220 = vld [vmem:[#allocation10 + $0x74] sm:$0xf]
    %v221 = vld [vmem:[#allocation10 + $0x78] sm:$0xf]
    %v222 = vld [vmem:[#allocation10 + $0x7c] sm:$0xf]
    %v223 = vld [vmem:[#allocation11] sm:$0xff]
    %v224 = vld [vmem:[#allocation11 + $0x8] sm:$0xff]
    %v225 = vld [vmem:[#allocation11 + $0x10] sm:$0xff]
    %s226 = scalar_lea.vmem [#allocation8], 384
    %v227 = vld [vmem:[%s226] sm:$0xff]
    %v228 = vld [vmem:[%s226 + $0x8] sm:$0xff]
    %v229 = vld [vmem:[%s226 + $0x10] sm:$0xff]
    %v230 = vld [vmem:[%s226 + $0x18] sm:$0xff]
    %v231 = vld [vmem:[%s226 + $0x20] sm:$0xff]
    %v232 = vld [vmem:[%s226 + $0x28] sm:$0xff]
    %v233 = vld [vmem:[%s226 + $0x30] sm:$0xff]
    %v234 = vld [vmem:[%s226 + $0x38] sm:$0xff]
    %v235 = vld [vmem:[%s226 + $0x40] sm:$0xff]
    %v236 = vld [vmem:[%s226 + $0x48] sm:$0xff]
    %v237 = vld [vmem:[%s226 + $0x50] sm:$0xff]
    %v238 = vld [vmem:[%s226 + $0x58] sm:$0xff]
    %v239 = vld [vmem:[%s226 + $0x60] sm:$0xff]
    %v240 = vld [vmem:[%s226 + $0x68] sm:$0xff]
    %v241 = vld [vmem:[%s226 + $0x70] sm:$0xff]
    %v242 = vld [vmem:[%s226 + $0x78] sm:$0xff]
    %v243 = vld [vmem:[%s226 + $0x80] sm:$0xff]
    %v244 = vld [vmem:[%s226 + $0x88] sm:$0xff]
    %v245 = vld [vmem:[%s226 + $0x90] sm:$0xff]
    %v246 = vld [vmem:[%s226 + $0x98] sm:$0xff]
    %v247 = vld [vmem:[%s226 + $0xa0] sm:$0xff]
    %v248 = vld [vmem:[%s226 + $0xa8] sm:$0xff]
    %v249 = vld [vmem:[%s226 + $0xb0] sm:$0xff]
    %v250 = vld [vmem:[%s226 + $0xb8] sm:$0xff]
    %v251 = vld [vmem:[%s226 + $0xc0] sm:$0xff]
    %v252 = vld [vmem:[%s226 + $0xc8] sm:$0xff]
    %v253 = vld [vmem:[%s226 + $0xd0] sm:$0xff]
    %v254 = vld [vmem:[%s226 + $0xd8] sm:$0xff]
    %v255 = vld [vmem:[%s226 + $0xe0] sm:$0xff]
    %v256 = vld [vmem:[%s226 + $0xe8] sm:$0xff]
    %v257 = vld [vmem:[%s226 + $0xf0] sm:$0xff]
    %v258 = vld [vmem:[%s226 + $0xf8] sm:$0xff]
    %v259 = vld [vmem:[%s226 + $0x100] sm:$0xff]
    %v260 = vld [vmem:[%s226 + $0x108] sm:$0xff]
    %v261 = vld [vmem:[%s226 + $0x110] sm:$0xff]
    %v262 = vld [vmem:[%s226 + $0x118] sm:$0xff]
    %v263 = vld [vmem:[%s226 + $0x120] sm:$0xff]
    %v264 = vld [vmem:[%s226 + $0x128] sm:$0xff]
    %v265 = vld [vmem:[%s226 + $0x130] sm:$0xff]
    %v266 = vld [vmem:[%s226 + $0x138] sm:$0xff]
    %v267 = vld [vmem:[%s226 + $0x140] sm:$0xff]
    %v268 = vld [vmem:[%s226 + $0x148] sm:$0xff]
    %v269 = vld [vmem:[%s226 + $0x150] sm:$0xff]
    %v270 = vld [vmem:[%s226 + $0x158] sm:$0xff]
    %v271 = vld [vmem:[%s226 + $0x160] sm:$0xff]
    %v272 = vld [vmem:[%s226 + $0x168] sm:$0xff]
    %v273 = vld [vmem:[%s226 + $0x170] sm:$0xff]
    %v274 = vld [vmem:[%s226 + $0x178] sm:$0xff]
    %s275 = scalar_lea.vmem [#allocation10], 128
    %v276 = vld [vmem:[%s275] sm:$0xf]
    %v277 = vld [vmem:[%s275 + $0x4] sm:$0xf]
    %v278 = vld [vmem:[%s275 + $0x8] sm:$0xf]
    %v279 = vld [vmem:[%s275 + $0xc] sm:$0xf]
    %v280 = vld [vmem:[%s275 + $0x10] sm:$0xf]
    %v281 = vld [vmem:[%s275 + $0x14] sm:$0xf]
    %v282 = vld [vmem:[%s275 + $0x18] sm:$0xf]
    %v283 = vld [vmem:[%s275 + $0x1c] sm:$0xf]
    %v284 = vld [vmem:[%s275 + $0x20] sm:$0xf]
    %v285 = vld [vmem:[%s275 + $0x24] sm:$0xf]
    %v286 = vld [vmem:[%s275 + $0x28] sm:$0xf]
    %v287 = vld [vmem:[%s275 + $0x2c] sm:$0xf]
    %v288 = vld [vmem:[%s275 + $0x30] sm:$0xf]
    %v289 = vld [vmem:[%s275 + $0x34] sm:$0xf]
    %v290 = vld [vmem:[%s275 + $0x38] sm:$0xf]
    %v291 = vld [vmem:[%s275 + $0x3c] sm:$0xf]
    %v292 = vld [vmem:[%s275 + $0x40] sm:$0xf]
    %v293 = vld [vmem:[%s275 + $0x44] sm:$0xf]
    %v294 = vld [vmem:[%s275 + $0x48] sm:$0xf]
    %v295 = vld [vmem:[%s275 + $0x4c] sm:$0xf]
    %v296 = vld [vmem:[%s275 + $0x50] sm:$0xf]
    %v297 = vld [vmem:[%s275 + $0x54] sm:$0xf]
    %v298 = vld [vmem:[%s275 + $0x58] sm:$0xf]
    %v299 = vld [vmem:[%s275 + $0x5c] sm:$0xf]
    %v300 = vld [vmem:[%s275 + $0x60] sm:$0xf]
    %v301 = vld [vmem:[%s275 + $0x64] sm:$0xf]
    %v302 = vld [vmem:[%s275 + $0x68] sm:$0xf]
    %v303 = vld [vmem:[%s275 + $0x6c] sm:$0xf]
    %v304 = vld [vmem:[%s275 + $0x70] sm:$0xf]
    %v305 = vld [vmem:[%s275 + $0x74] sm:$0xf]
    %v306 = vld [vmem:[%s275 + $0x78] sm:$0xf]
    %v307 = vld [vmem:[%s275 + $0x7c] sm:$0xf]
    %s308 = scalar_lea.vmem [#allocation11], 24
    %v309 = vld [vmem:[%s308] sm:$0xff]
    %v310 = vld [vmem:[%s308 + $0x8] sm:$0xff]
    %v311 = vld [vmem:[%s308 + $0x10] sm:$0xff]
    %v312 = vld [vmem:[#allocation2] sm:$0xff]
    %v313 = vld [vmem:[#allocation2 + $0x8] sm:$0xff]
    %v314 = vld [vmem:[#allocation5] sm:$0xff]
    %v315 = vld [vmem:[#allocation5 + $0x8] sm:$0xff]
    %v316 = vld [vmem:[#allocation7] sm:$0xf]
    %v317 = vld [vmem:[#allocation7 + $0x4] sm:$0xf]
    %v318 = vld [vmem:[%s3] sm:$0x1]
    %v319 = vld [vmem:[#allocation13] sm:$0xf]
    %v320 = vld [vmem:[#allocation13 + $0x4] sm:$0xf]
    %v321 = vld [vmem:[#allocation13 + $0x8] sm:$0xf]
    %v322 = vld [vmem:[#allocation13 + $0xc] sm:$0xf]
    %v323 = vld [vmem:[#allocation13 + $0x10] sm:$0xf]
    %v324 = vld [vmem:[#allocation13 + $0x14] sm:$0xf]
    %v325 = vld [vmem:[#allocation13 + $0x18] sm:$0xf]
    %v326 = vld [vmem:[#allocation13 + $0x1c] sm:$0xf]
    %v327 = vld [vmem:[#allocation13 + $0x20] sm:$0xf]
    %v328 = vld [vmem:[#allocation13 + $0x24] sm:$0xf]
    %v329 = vld [vmem:[#allocation13 + $0x28] sm:$0xf]
    %v330 = vld [vmem:[#allocation13 + $0x2c] sm:$0xf]
    %v331 = vld [vmem:[#allocation13 + $0x30] sm:$0xf]
    %v332 = vld [vmem:[#allocation13 + $0x34] sm:$0xf]
    %v333 = vld [vmem:[#allocation13 + $0x38] sm:$0xf]
    %v334 = vld [vmem:[#allocation13 + $0x3c] sm:$0xf]
    %v335 = vld [vmem:[#allocation13 + $0x40] sm:$0xf]
    %v336 = vld [vmem:[#allocation13 + $0x44] sm:$0xf]
    %v337 = vld [vmem:[#allocation13 + $0x48] sm:$0xf]
    %v338 = vld [vmem:[#allocation13 + $0x4c] sm:$0xf]
    %v339 = vld [vmem:[#allocation13 + $0x50] sm:$0xf]
    %v340 = vld [vmem:[#allocation13 + $0x54] sm:$0xf]
    %v341 = vld [vmem:[#allocation13 + $0x58] sm:$0xf]
    %v342 = vld [vmem:[#allocation13 + $0x5c] sm:$0xf]
    %v343 = vld [vmem:[#allocation13 + $0x60] sm:$0xf]
    %v344 = vld [vmem:[#allocation13 + $0x64] sm:$0xf]
    %v345 = vld [vmem:[#allocation13 + $0x68] sm:$0xf]
    %v346 = vld [vmem:[#allocation13 + $0x6c] sm:$0xf]
    %v347 = vld [vmem:[#allocation13 + $0x70] sm:$0xf]
    %v348 = vld [vmem:[#allocation13 + $0x74] sm:$0xf]
    %v349 = vld [vmem:[#allocation13 + $0x78] sm:$0xf]
    %v350 = vld [vmem:[#allocation13 + $0x7c] sm:$0xf]
    %v351 = vld [vmem:[%s8] sm:$0x3]
    %v352 = vpack.c.bf16 %v313, %v312
    %v354 = vperm.slane %v318, 0
    %v358 = vunpack.c.l.b16 %v316
    %v359 = vunpack.c.l.b16 %v317
    %v360 = vpack.c.b16 %v359, %v358
    %vm362 = vcmask 130048
    %v364 = vsel %vm362, %v352, 0
    %366 = vmatpush.bf16.msra.mxu0 0
    %367 = vmatpush.bf16.msra.mxu0 0
    %368 = vmatpush.bf16.msra.mxu0 0
    %369 = vmatpush.bf16.msra.mxu0 0
    %370 = vmatpush.bf16.msra.mxu0 0
    %371 = vmatpush.bf16.msra.mxu0 0
    %372 = vmatpush.bf16.msra.mxu0 0
    %373 = vmatpush.bf16.msra.mxu0 %v360
    %374 = vmatmul.bf16.gmra.mxu0 %v364
    %v375 = vpop.f32.mrf.mxu0
    %v376 = vadd.f32 %v354, %v375
    %v377 = vpop.f32.mrf.mxu0
    %v378 = vadd.f32 %v354, %v377
    %379 = vdwg.mxu0
    %v380 = vadd.f32 %v376, %v314
    %v381 = vadd.f32 %v378, %v315
    %v382 = vpack.c.bf16 %v381, %v380
    %v383 = vperm.slane %v223, 0
    %v384 = vperm.slane %v224, 0
    %v385 = vperm.slane %v225, 0
    %v418 = vunpack.c.l.b16 %v143
    %v419 = vunpack.c.h.b16 %v143
    %v420 = vunpack.c.l.b16 %v144
    %v421 = vunpack.c.l.b16 %v146
    %v422 = vunpack.c.h.b16 %v146
    %v423 = vunpack.c.l.b16 %v147
    %v424 = vunpack.c.l.b16 %v149
    %v425 = vunpack.c.h.b16 %v149
    %v426 = vunpack.c.l.b16 %v150
    %v427 = vunpack.c.l.b16 %v152
    %v428 = vunpack.c.h.b16 %v152
    %v429 = vunpack.c.l.b16 %v153
    %v430 = vunpack.c.l.b16 %v155
    %v431 = vunpack.c.h.b16 %v155
    %v432 = vunpack.c.l.b16 %v156
    %v433 = vunpack.c.l.b16 %v158
    %v434 = vunpack.c.h.b16 %v158
    %v435 = vunpack.c.l.b16 %v159
    %v436 = vunpack.c.l.b16 %v161
    %v437 = vunpack.c.h.b16 %v161
    %v438 = vunpack.c.l.b16 %v162
    %v439 = vunpack.c.l.b16 %v164
    %v440 = vunpack.c.h.b16 %v164
    %v441 = vunpack.c.l.b16 %v165
    %v442 = vunpack.c.l.b16 %v167
    %v443 = vunpack.c.h.b16 %v167
    %v444 = vunpack.c.l.b16 %v168
    %v445 = vunpack.c.l.b16 %v170
    %v446 = vunpack.c.h.b16 %v170
    %v447 = vunpack.c.l.b16 %v171
    %v448 = vunpack.c.l.b16 %v173
    %v449 = vunpack.c.h.b16 %v173
    %v450 = vunpack.c.l.b16 %v174
    %v451 = vunpack.c.l.b16 %v176
    %v452 = vunpack.c.h.b16 %v176
    %v453 = vunpack.c.l.b16 %v177
    %v454 = vunpack.c.l.b16 %v179
    %v455 = vunpack.c.h.b16 %v179
    %v456 = vunpack.c.l.b16 %v180
    %v457 = vunpack.c.l.b16 %v182
    %v458 = vunpack.c.h.b16 %v182
    %v459 = vunpack.c.l.b16 %v183
    %v460 = vunpack.c.l.b16 %v185
    %v461 = vunpack.c.h.b16 %v185
    %v462 = vunpack.c.l.b16 %v186
    %v463 = vunpack.c.l.b16 %v188
    %v464 = vunpack.c.h.b16 %v188
    %v465 = vunpack.c.l.b16 %v189
    %v466 = vpack.c.b16 %v421, %v418
    %v467 = vpack.c.b16 %v422, %v419
    %v468 = vpack.c.b16 %v423, %v420
    %v469 = vpack.c.b16 %v427, %v424
    %v470 = vpack.c.b16 %v428, %v425
    %v471 = vpack.c.b16 %v429, %v426
    %v472 = vpack.c.b16 %v433, %v430
    %v473 = vpack.c.b16 %v434, %v431
    %v474 = vpack.c.b16 %v435, %v432
    %v475 = vpack.c.b16 %v439, %v436
    %v476 = vpack.c.b16 %v440, %v437
    %v477 = vpack.c.b16 %v441, %v438
    %v478 = vpack.c.b16 %v445, %v442
    %v479 = vpack.c.b16 %v446, %v443
    %v480 = vpack.c.b16 %v447, %v444
    %v481 = vpack.c.b16 %v451, %v448
    %v482 = vpack.c.b16 %v452, %v449
    %v483 = vpack.c.b16 %v453, %v450
    %v484 = vpack.c.b16 %v457, %v454
    %v485 = vpack.c.b16 %v458, %v455
    %v486 = vpack.c.b16 %v459, %v456
    %v487 = vpack.c.b16 %v463, %v460
    %v488 = vpack.c.b16 %v464, %v461
    %v489 = vpack.c.b16 %v465, %v462
    %514 = vmatpush.bf16.msra.mxu0 %v487
    %515 = vmatpush.bf16.msra.mxu0 %v484
    %516 = vmatpush.bf16.msra.mxu0 %v481
    %517 = vmatpush.bf16.msra.mxu0 %v478
    %518 = vmatpush.bf16.msra.mxu0 %v475
    %519 = vmatpush.bf16.msra.mxu0 %v472
    %520 = vmatpush.bf16.msra.mxu0 %v469
    %521 = vmatpush.bf16.msra.mxu0 %v466
    %522 = vmatmul.bf16.gmra.mxu0 %v382
    %v523 = vpop.f32.mrf.mxu0
    %v524 = vadd.f32 %v383, %v523
    %v525 = vpop.f32.mrf.mxu0
    %v526 = vadd.f32 %v383, %v525
    %527 = vdwg.mxu0
    %528 = vmatpush.bf16.msra.mxu0 %v488
    %529 = vmatpush.bf16.msra.mxu0 %v485
    %530 = vmatpush.bf16.msra.mxu0 %v482
    %531 = vmatpush.bf16.msra.mxu0 %v479
    %532 = vmatpush.bf16.msra.mxu0 %v476
    %533 = vmatpush.bf16.msra.mxu0 %v473
    %534 = vmatpush.bf16.msra.mxu0 %v470
    %535 = vmatpush.bf16.msra.mxu0 %v467
    %536 = vmatmul.bf16.gmra.mxu0 %v382
    %v537 = vpop.f32.mrf.mxu0
    %v538 = vadd.f32 %v384, %v537
    %v539 = vpop.f32.mrf.mxu0
    %v540 = vadd.f32 %v384, %v539
    %541 = vdwg.mxu0
    %542 = vmatpush.bf16.msra.mxu0 %v489
    %543 = vmatpush.bf16.msra.mxu0 %v486
    %544 = vmatpush.bf16.msra.mxu0 %v483
    %545 = vmatpush.bf16.msra.mxu0 %v480
    %546 = vmatpush.bf16.msra.mxu0 %v477
    %547 = vmatpush.bf16.msra.mxu0 %v474
    %548 = vmatpush.bf16.msra.mxu0 %v471
    %549 = vmatpush.bf16.msra.mxu0 %v468
    %550 = vmatmul.bf16.gmra.mxu0 %v382
    %v551 = vpop.f32.mrf.mxu0
    %v552 = vadd.f32 %v385, %v551
    %v553 = vpop.f32.mrf.mxu0
    %v554 = vadd.f32 %v385, %v553
    %555 = vdwg.mxu0
    %v556 = vpack.c.bf16 %v524, %v524
    %v557 = vpack.c.bf16 %v526, %v526
    %v558 = vpack.c.bf16 %v538, %v538
    %v559 = vpack.c.bf16 %v540, %v540
    %v560 = vpack.c.bf16 %v552, %v552
    %v561 = vpack.c.bf16 %v554, %v554
    %v563 = vsel %vm362, %v556, 0
    %v566 = vsel %vm362, %v558, 0
    %568 = vmatpush.bf16.xpose.msra.mxu0 0
    %569 = vmatpush.bf16.xpose.msra.mxu0 0
    %570 = vmatpush.bf16.xpose.msra.mxu0 0
    %571 = vmatpush.bf16.xpose.msra.mxu0 0
    %572 = vmatpush.bf16.xpose.msra.mxu0 0
    %573 = vmatpush.bf16.xpose.msra.mxu0 0
    %574 = vmatpush.bf16.xpose.msra.mxu0 0
    %575 = vmatpush.bf16.xpose.msra.mxu0 %v566
    %576 = vmatmul.bf16.gmra.mxu0 %v563
    %v577 = vpop.f32.mrf.mxu0
    %v578 = vadd.f32 0.0, %v577
    %v579 = vpop.f32.mrf.mxu0
    %580 = vdwg.mxu0
    %v582 = vsel %vm362, %v557, 0
    %v585 = vsel %vm362, %v559, 0
    %587 = vmatpush.bf16.xpose.msra.mxu0 0
    %588 = vmatpush.bf16.xpose.msra.mxu0 0
    %589 = vmatpush.bf16.xpose.msra.mxu0 0
    %590 = vmatpush.bf16.xpose.msra.mxu0 0
    %591 = vmatpush.bf16.xpose.msra.mxu0 0
    %592 = vmatpush.bf16.xpose.msra.mxu0 0
    %593 = vmatpush.bf16.xpose.msra.mxu0 0
    %594 = vmatpush.bf16.xpose.msra.mxu0 %v585
    %595 = vmatmul.bf16.gmra.mxu0 %v582
    %v596 = vpop.f32.mrf.mxu0
    %v597 = vadd.f32 0.0, %v596
    %v598 = vpop.f32.mrf.mxu0
    %599 = vdwg.mxu0
    %vm600 = vcmask 64512
    %v601 = vsel %vm600, %v578, -inf
    %602 = vmax.xlane.f32.xlu0 %v601
    %v603 = vpop.xlane.xlu0 %602
    %v604 = vsel %vm600, %v597, -inf
    %605 = vmax.xlane.f32.xlu0 %v604
    %v606 = vpop.xlane.xlu0 %605
    %v607 = vsub.f32 %v578, %v603
    %v608 = vsub.f32 %v597, %v606
    %v609 = vmul.f32 %v607, 1.442695
    %v610 = vpow.pop %v609
    %v611 = vmul.f32 %v608, 1.442695
    %v612 = vpow.pop %v611
    %v613 = vpack.c.bf16 %v610, %v610
    %v614 = vpack.c.bf16 %v612, %v612
    %v616 = vsel %vm600, %v613, 0
    %vm618 = vcmask 1043456
    %v620 = vsel %vm618, %v560, 0
    %622 = vmatpush.bf16.msra.mxu0 0
    %623 = vmatpush.bf16.msra.mxu0 0
    %624 = vmatpush.bf16.msra.mxu0 0
    %625 = vmatpush.bf16.msra.mxu0 0
    %626 = vmatpush.bf16.msra.mxu0 0
    %627 = vmatpush.bf16.msra.mxu0 0
    %628 = vmatpush.bf16.msra.mxu0 0
    %629 = vmatpush.bf16.msra.mxu0 %v620
    %630 = vmatmul.bf16.gmra.mxu0 %v616
    %v631 = vpop.f32.mrf.mxu0
    %v632 = vadd.f32 0.0, %v631
    %v633 = vpop.f32.mrf.mxu0
    %634 = vdwg.mxu0
    %v636 = vsel %vm600, %v614, 0
    %v639 = vsel %vm618, %v561, 0
    %641 = vmatpush.bf16.msra.mxu0 0
    %642 = vmatpush.bf16.msra.mxu0 0
    %643 = vmatpush.bf16.msra.mxu0 0
    %644 = vmatpush.bf16.msra.mxu0 0
    %645 = vmatpush.bf16.msra.mxu0 0
    %646 = vmatpush.bf16.msra.mxu0 0
    %647 = vmatpush.bf16.msra.mxu0 0
    %648 = vmatpush.bf16.msra.mxu0 %v639
    %649 = vmatmul.bf16.gmra.mxu0 %v636
    %v650 = vpop.f32.mrf.mxu0
    %v651 = vadd.f32 0.0, %v650
    %v652 = vpop.f32.mrf.mxu0
    %653 = vdwg.mxu0
    %v654 = vsel %vm600, %v610, 0.0
    %655 = vadd.xlane.f32.xlu0 %v654
    %v656 = vpop.xlane.xlu0 %655
    %v657 = vsel %vm600, %v612, 0.0
    %658 = vadd.xlane.f32.xlu0 %v657
    %v659 = vpop.xlane.xlu0 %658
    %v660 = vrcp.pop %v656
    %v661 = vrcp.pop %v659
    %v662 = vmul.f32 %v632, %v660
    %v663 = vmul.f32 %v651, %v661
    %v665 = vunpack.c.l.b16 %v556
    %v666 = vpack.c.b16 %v665, %v665
    %667 = vrot.lane.b32.xlu0 %v666, 112
    %v668 = vpop.permute.xlu0 %667
    %v670 = vunpack.c.l.b16 %v558
    %v671 = vpack.c.b16 %v670, %v670
    %672 = vrot.lane.b32.xlu0 %v671, 112
    %v673 = vpop.permute.xlu0 %672
    %v675 = vsel %vm362, %v668, 0
    %v678 = vsel %vm362, %v673, 0
    %680 = vmatpush.bf16.xpose.msra.mxu0 0
    %681 = vmatpush.bf16.xpose.msra.mxu0 0
    %682 = vmatpush.bf16.xpose.msra.mxu0 0
    %683 = vmatpush.bf16.xpose.msra.mxu0 0
    %684 = vmatpush.bf16.xpose.msra.mxu0 0
    %685 = vmatpush.bf16.xpose.msra.mxu0 0
    %686 = vmatpush.bf16.xpose.msra.mxu0 0
    %687 = vmatpush.bf16.xpose.msra.mxu0 %v678
    %688 = vmatmul.bf16.gmra.mxu0 %v675
    %v689 = vpop.f32.mrf.mxu0
    %v690 = vadd.f32 0.0, %v689
    %v691 = vpop.f32.mrf.mxu0
    %692 = vdwg.mxu0
    %v694 = vunpack.c.l.b16 %v557
    %v695 = vpack.c.b16 %v694, %v694
    %696 = vrot.lane.b32.xlu0 %v695, 112
    %v697 = vpop.permute.xlu0 %696
    %v699 = vunpack.c.l.b16 %v559
    %v700 = vpack.c.b16 %v699, %v699
    %701 = vrot.lane.b32.xlu0 %v700, 112
    %v702 = vpop.permute.xlu0 %701
    %v704 = vsel %vm362, %v697, 0
    %v707 = vsel %vm362, %v702, 0
    %709 = vmatpush.bf16.xpose.msra.mxu0 0
    %710 = vmatpush.bf16.xpose.msra.mxu0 0
    %711 = vmatpush.bf16.xpose.msra.mxu0 0
    %712 = vmatpush.bf16.xpose.msra.mxu0 0
    %713 = vmatpush.bf16.xpose.msra.mxu0 0
    %714 = vmatpush.bf16.xpose.msra.mxu0 0
    %715 = vmatpush.bf16.xpose.msra.mxu0 0
    %716 = vmatpush.bf16.xpose.msra.mxu0 %v707
    %717 = vmatmul.bf16.gmra.mxu0 %v704
    %v718 = vpop.f32.mrf.mxu0
    %v719 = vadd.f32 0.0, %v718
    %v720 = vpop.f32.mrf.mxu0
    %721 = vdwg.mxu0
    %v722 = vsel %vm600, %v690, -inf
    %723 = vmax.xlane.f32.xlu0 %v722
    %v724 = vpop.xlane.xlu0 %723
    %v725 = vsel %vm600, %v719, -inf
    %726 = vmax.xlane.f32.xlu0 %v725
    %v727 = vpop.xlane.xlu0 %726
    %v728 = vsub.f32 %v690, %v724
    %v729 = vsub.f32 %v719, %v727
    %v730 = vmul.f32 %v728, 1.442695
    %v731 = vpow.pop %v730
    %v732 = vmul.f32 %v729, 1.442695
    %v733 = vpow.pop %v732
    %v734 = vpack.c.bf16 %v731, %v731
    %v735 = vpack.c.bf16 %v733, %v733
    %v737 = vunpack.c.l.b16 %v560
    %v738 = vpack.c.b16 %v737, %v737
    %739 = vrot.lane.b32.xlu0 %v738, 112
    %v740 = vpop.permute.xlu0 %739
    %v742 = vsel %vm600, %v734, 0
    %v745 = vsel %vm618, %v740, 0
    %747 = vmatpush.bf16.msra.mxu0 0
    %748 = vmatpush.bf16.msra.mxu0 0
    %749 = vmatpush.bf16.msra.mxu0 0
    %750 = vmatpush.bf16.msra.mxu0 0
    %751 = vmatpush.bf16.msra.mxu0 0
    %752 = vmatpush.bf16.msra.mxu0 0
    %753 = vmatpush.bf16.msra.mxu0 0
    %754 = vmatpush.bf16.msra.mxu0 %v745
    %755 = vmatmul.bf16.gmra.mxu0 %v742
    %v756 = vpop.f32.mrf.mxu0
    %v757 = vadd.f32 0.0, %v756
    %v758 = vpop.f32.mrf.mxu0
    %759 = vdwg.mxu0
    %v761 = vunpack.c.l.b16 %v561
    %v762 = vpack.c.b16 %v761, %v761
    %763 = vrot.lane.b32.xlu0 %v762, 112
    %v764 = vpop.permute.xlu0 %763
    %v766 = vsel %vm600, %v735, 0
    %v769 = vsel %vm618, %v764, 0
    %771 = vmatpush.bf16.msra.mxu0 0
    %772 = vmatpush.bf16.msra.mxu0 0
    %773 = vmatpush.bf16.msra.mxu0 0
    %774 = vmatpush.bf16.msra.mxu0 0
    %775 = vmatpush.bf16.msra.mxu0 0
    %776 = vmatpush.bf16.msra.mxu0 0
    %777 = vmatpush.bf16.msra.mxu0 0
    %778 = vmatpush.bf16.msra.mxu0 %v769
    %779 = vmatmul.bf16.gmra.mxu0 %v766
    %v780 = vpop.f32.mrf.mxu0
    %v781 = vadd.f32 0.0, %v780
    %v782 = vpop.f32.mrf.mxu0
    %783 = vdwg.mxu0
    %v784 = vsel %vm600, %v731, 0.0
    %785 = vadd.xlane.f32.xlu0 %v784
    %v786 = vpop.xlane.xlu0 %785
    %v787 = vsel %vm600, %v733, 0.0
    %788 = vadd.xlane.f32.xlu0 %v787
    %v789 = vpop.xlane.xlu0 %788
    %v790 = vrcp.pop %v786
    %v791 = vrcp.pop %v789
    %v792 = vmul.f32 %v757, %v790
    %v793 = vmul.f32 %v781, %v791
    %794 = vrot.lane.b32.xlu0 %v666, 96
    %v795 = vpop.permute.xlu0 %794
    %796 = vrot.lane.b32.xlu0 %v671, 96
    %v797 = vpop.permute.xlu0 %796
    %v799 = vsel %vm362, %v795, 0
    %v802 = vsel %vm362, %v797, 0
    %804 = vmatpush.bf16.xpose.msra.mxu0 0
    %805 = vmatpush.bf16.xpose.msra.mxu0 0
    %806 = vmatpush.bf16.xpose.msra.mxu0 0
    %807 = vmatpush.bf16.xpose.msra.mxu0 0
    %808 = vmatpush.bf16.xpose.msra.mxu0 0
    %809 = vmatpush.bf16.xpose.msra.mxu0 0
    %810 = vmatpush.bf16.xpose.msra.mxu0 0
    %811 = vmatpush.bf16.xpose.msra.mxu0 %v802
    %812 = vmatmul.bf16.gmra.mxu0 %v799
    %v813 = vpop.f32.mrf.mxu0
    %v814 = vadd.f32 0.0, %v813
    %v815 = vpop.f32.mrf.mxu0
    %816 = vdwg.mxu0
    %817 = vrot.lane.b32.xlu0 %v695, 96
    %v818 = vpop.permute.xlu0 %817
    %819 = vrot.lane.b32.xlu0 %v700, 96
    %v820 = vpop.permute.xlu0 %819
    %v822 = vsel %vm362, %v818, 0
    %v825 = vsel %vm362, %v820, 0
    %827 = vmatpush.bf16.xpose.msra.mxu0 0
    %828 = vmatpush.bf16.xpose.msra.mxu0 0
    %829 = vmatpush.bf16.xpose.msra.mxu0 0
    %830 = vmatpush.bf16.xpose.msra.mxu0 0
    %831 = vmatpush.bf16.xpose.msra.mxu0 0
    %832 = vmatpush.bf16.xpose.msra.mxu0 0
    %833 = vmatpush.bf16.xpose.msra.mxu0 0
    %834 = vmatpush.bf16.xpose.msra.mxu0 %v825
    %835 = vmatmul.bf16.gmra.mxu0 %v822
    %v836 = vpop.f32.mrf.mxu0
    %v837 = vadd.f32 0.0, %v836
    %v838 = vpop.f32.mrf.mxu0
    %839 = vdwg.mxu0
    %v840 = vsel %vm600, %v814, -inf
    %841 = vmax.xlane.f32.xlu0 %v840
    %v842 = vpop.xlane.xlu0 %841
    %v843 = vsel %vm600, %v837, -inf
    %844 = vmax.xlane.f32.xlu0 %v843
    %v845 = vpop.xlane.xlu0 %844
    %v846 = vsub.f32 %v814, %v842
    %v847 = vsub.f32 %v837, %v845
    %v848 = vmul.f32 %v846, 1.442695
    %v849 = vpow.pop %v848
    %v850 = vmul.f32 %v847, 1.442695
    %v851 = vpow.pop %v850
    %v852 = vpack.c.bf16 %v849, %v849
    %v853 = vpack.c.bf16 %v851, %v851
    %854 = vrot.lane.b32.xlu0 %v738, 96
    %v855 = vpop.permute.xlu0 %854
    %v857 = vsel %vm600, %v852, 0
    %v860 = vsel %vm618, %v855, 0
    %862 = vmatpush.bf16.msra.mxu0 0
    %863 = vmatpush.bf16.msra.mxu0 0
    %864 = vmatpush.bf16.msra.mxu0 0
    %865 = vmatpush.bf16.msra.mxu0 0
    %866 = vmatpush.bf16.msra.mxu0 0
    %867 = vmatpush.bf16.msra.mxu0 0
    %868 = vmatpush.bf16.msra.mxu0 0
    %869 = vmatpush.bf16.msra.mxu0 %v860
    %870 = vmatmul.bf16.gmra.mxu0 %v857
    %v871 = vpop.f32.mrf.mxu0
    %v872 = vadd.f32 0.0, %v871
    %v873 = vpop.f32.mrf.mxu0
    %874 = vdwg.mxu0
    %875 = vrot.lane.b32.xlu0 %v762, 96
    %v876 = vpop.permute.xlu0 %875
    %v878 = vsel %vm600, %v853, 0
    %v881 = vsel %vm618, %v876, 0
    %883 = vmatpush.bf16.msra.mxu0 0
    %884 = vmatpush.bf16.msra.mxu0 0
    %885 = vmatpush.bf16.msra.mxu0 0
    %886 = vmatpush.bf16.msra.mxu0 0
    %887 = vmatpush.bf16.msra.mxu0 0
    %888 = vmatpush.bf16.msra.mxu0 0
    %889 = vmatpush.bf16.msra.mxu0 0
    %890 = vmatpush.bf16.msra.mxu0 %v881
    %891 = vmatmul.bf16.gmra.mxu0 %v878
    %v892 = vpop.f32.mrf.mxu0
    %v893 = vadd.f32 0.0, %v892
    %v894 = vpop.f32.mrf.mxu0
    %895 = vdwg.mxu0
    %v896 = vsel %vm600, %v849, 0.0
    %897 = vadd.xlane.f32.xlu0 %v896
    %v898 = vpop.xlane.xlu0 %897
    %v899 = vsel %vm600, %v851, 0.0
    %900 = vadd.xlane.f32.xlu0 %v899
    %v901 = vpop.xlane.xlu0 %900
    %v902 = vrcp.pop %v898
    %v903 = vrcp.pop %v901
    %v904 = vmul.f32 %v872, %v902
    %v905 = vmul.f32 %v893, %v903
    %906 = vrot.lane.b32.xlu0 %v666, 80
    %v907 = vpop.permute.xlu0 %906
    %908 = vrot.lane.b32.xlu0 %v671, 80
    %v909 = vpop.permute.xlu0 %908
    %v911 = vsel %vm362, %v907, 0
    %v914 = vsel %vm362, %v909, 0
    %916 = vmatpush.bf16.xpose.msra.mxu0 0
    %917 = vmatpush.bf16.xpose.msra.mxu0 0
    %918 = vmatpush.bf16.xpose.msra.mxu0 0
    %919 = vmatpush.bf16.xpose.msra.mxu0 0
    %920 = vmatpush.bf16.xpose.msra.mxu0 0
    %921 = vmatpush.bf16.xpose.msra.mxu0 0
    %922 = vmatpush.bf16.xpose.msra.mxu0 0
    %923 = vmatpush.bf16.xpose.msra.mxu0 %v914
    %924 = vmatmul.bf16.gmra.mxu0 %v911
    %v925 = vpop.f32.mrf.mxu0
    %v926 = vadd.f32 0.0, %v925
    %v927 = vpop.f32.mrf.mxu0
    %928 = vdwg.mxu0
    %929 = vrot.lane.b32.xlu0 %v695, 80
    %v930 = vpop.permute.xlu0 %929
    %931 = vrot.lane.b32.xlu0 %v700, 80
    %v932 = vpop.permute.xlu0 %931
    %v934 = vsel %vm362, %v930, 0
    %v937 = vsel %vm362, %v932, 0
    %939 = vmatpush.bf16.xpose.msra.mxu0 0
    %940 = vmatpush.bf16.xpose.msra.mxu0 0
    %941 = vmatpush.bf16.xpose.msra.mxu0 0
    %942 = vmatpush.bf16.xpose.msra.mxu0 0
    %943 = vmatpush.bf16.xpose.msra.mxu0 0
    %944 = vmatpush.bf16.xpose.msra.mxu0 0
    %945 = vmatpush.bf16.xpose.msra.mxu0 0
    %946 = vmatpush.bf16.xpose.msra.mxu0 %v937
    %947 = vmatmul.bf16.gmra.mxu0 %v934
    %v948 = vpop.f32.mrf.mxu0
    %v949 = vadd.f32 0.0, %v948
    %v950 = vpop.f32.mrf.mxu0
    %951 = vdwg.mxu0
    %v952 = vsel %vm600, %v926, -inf
    %953 = vmax.xlane.f32.xlu0 %v952
    %v954 = vpop.xlane.xlu0 %953
    %v955 = vsel %vm600, %v949, -inf
    %956 = vmax.xlane.f32.xlu0 %v955
    %v957 = vpop.xlane.xlu0 %956
    %v958 = vsub.f32 %v926, %v954
    %v959 = vsub.f32 %v949, %v957
    %v960 = vmul.f32 %v958, 1.442695
    %v961 = vpow.pop %v960
    %v962 = vmul.f32 %v959, 1.442695
    %v963 = vpow.pop %v962
    %v964 = vpack.c.bf16 %v961, %v961
    %v965 = vpack.c.bf16 %v963, %v963
    %966 = vrot.lane.b32.xlu0 %v738, 80
    %v967 = vpop.permute.xlu0 %966
    %v969 = vsel %vm600, %v964, 0
    %v972 = vsel %vm618, %v967, 0
    %974 = vmatpush.bf16.msra.mxu0 0
    %975 = vmatpush.bf16.msra.mxu0 0
    %976 = vmatpush.bf16.msra.mxu0 0
    %977 = vmatpush.bf16.msra.mxu0 0
    %978 = vmatpush.bf16.msra.mxu0 0
    %979 = vmatpush.bf16.msra.mxu0 0
    %980 = vmatpush.bf16.msra.mxu0 0
    %981 = vmatpush.bf16.msra.mxu0 %v972
    %982 = vmatmul.bf16.gmra.mxu0 %v969
    %v983 = vpop.f32.mrf.mxu0
    %v984 = vadd.f32 0.0, %v983
    %v985 = vpop.f32.mrf.mxu0
    %986 = vdwg.mxu0
    %987 = vrot.lane.b32.xlu0 %v762, 80
    %v988 = vpop.permute.xlu0 %987
    %v990 = vsel %vm600, %v965, 0
    %v993 = vsel %vm618, %v988, 0
    %995 = vmatpush.bf16.msra.mxu0 0
    %996 = vmatpush.bf16.msra.mxu0 0
    %997 = vmatpush.bf16.msra.mxu0 0
    %998 = vmatpush.bf16.msra.mxu0 0
    %999 = vmatpush.bf16.msra.mxu0 0
    %1000 = vmatpush.bf16.msra.mxu0 0
    %1001 = vmatpush.bf16.msra.mxu0 0
    %1002 = vmatpush.bf16.msra.mxu0 %v993
    %1003 = vmatmul.bf16.gmra.mxu0 %v990
    %v1004 = vpop.f32.mrf.mxu0
    %v1005 = vadd.f32 0.0, %v1004
    %v1006 = vpop.f32.mrf.mxu0
    %1007 = vdwg.mxu0
    %v1008 = vsel %vm600, %v961, 0.0
    %1009 = vadd.xlane.f32.xlu0 %v1008
    %v1010 = vpop.xlane.xlu0 %1009
    %v1011 = vsel %vm600, %v963, 0.0
    %1012 = vadd.xlane.f32.xlu0 %v1011
    %v1013 = vpop.xlane.xlu0 %1012
    %v1014 = vrcp.pop %v1010
    %v1015 = vrcp.pop %v1013
    %v1016 = vmul.f32 %v984, %v1014
    %v1017 = vmul.f32 %v1005, %v1015
    %1018 = vrot.lane.b32.xlu0 %v666, 64
    %v1019 = vpop.permute.xlu0 %1018
    %1020 = vrot.lane.b32.xlu0 %v671, 64
    %v1021 = vpop.permute.xlu0 %1020
    %v1023 = vsel %vm362, %v1019, 0
    %v1026 = vsel %vm362, %v1021, 0
    %1028 = vmatpush.bf16.xpose.msra.mxu0 0
    %1029 = vmatpush.bf16.xpose.msra.mxu0 0
    %1030 = vmatpush.bf16.xpose.msra.mxu0 0
    %1031 = vmatpush.bf16.xpose.msra.mxu0 0
    %1032 = vmatpush.bf16.xpose.msra.mxu0 0
    %1033 = vmatpush.bf16.xpose.msra.mxu0 0
    %1034 = vmatpush.bf16.xpose.msra.mxu0 0
    %1035 = vmatpush.bf16.xpose.msra.mxu0 %v1026
    %1036 = vmatmul.bf16.gmra.mxu0 %v1023
    %v1037 = vpop.f32.mrf.mxu0
    %v1038 = vadd.f32 0.0, %v1037
    %v1039 = vpop.f32.mrf.mxu0
    %1040 = vdwg.mxu0
    %1041 = vrot.lane.b32.xlu0 %v695, 64
    %v1042 = vpop.permute.xlu0 %1041
    %1043 = vrot.lane.b32.xlu0 %v700, 64
    %v1044 = vpop.permute.xlu0 %1043
    %v1046 = vsel %vm362, %v1042, 0
    %v1049 = vsel %vm362, %v1044, 0
    %1051 = vmatpush.bf16.xpose.msra.mxu0 0
    %1052 = vmatpush.bf16.xpose.msra.mxu0 0
    %1053 = vmatpush.bf16.xpose.msra.mxu0 0
    %1054 = vmatpush.bf16.xpose.msra.mxu0 0
    %1055 = vmatpush.bf16.xpose.msra.mxu0 0
    %1056 = vmatpush.bf16.xpose.msra.mxu0 0
    %1057 = vmatpush.bf16.xpose.msra.mxu0 0
    %1058 = vmatpush.bf16.xpose.msra.mxu0 %v1049
    %1059 = vmatmul.bf16.gmra.mxu0 %v1046
    %v1060 = vpop.f32.mrf.mxu0
    %v1061 = vadd.f32 0.0, %v1060
    %v1062 = vpop.f32.mrf.mxu0
    %1063 = vdwg.mxu0
    %v1064 = vsel %vm600, %v1038, -inf
    %1065 = vmax.xlane.f32.xlu0 %v1064
    %v1066 = vpop.xlane.xlu0 %1065
    %v1067 = vsel %vm600, %v1061, -inf
    %1068 = vmax.xlane.f32.xlu0 %v1067
    %v1069 = vpop.xlane.xlu0 %1068
    %v1070 = vsub.f32 %v1038, %v1066
    %v1071 = vsub.f32 %v1061, %v1069
    %v1072 = vmul.f32 %v1070, 1.442695
    %v1073 = vpow.pop %v1072
    %v1074 = vmul.f32 %v1071, 1.442695
    %v1075 = vpow.pop %v1074
    %v1076 = vpack.c.bf16 %v1073, %v1073
    %v1077 = vpack.c.bf16 %v1075, %v1075
    %1078 = vrot.lane.b32.xlu0 %v738, 64
    %v1079 = vpop.permute.xlu0 %1078
    %v1081 = vsel %vm600, %v1076, 0
    %v1084 = vsel %vm618, %v1079, 0
    %1086 = vmatpush.bf16.msra.mxu0 0
    %1087 = vmatpush.bf16.msra.mxu0 0
    %1088 = vmatpush.bf16.msra.mxu0 0
    %1089 = vmatpush.bf16.msra.mxu0 0
    %1090 = vmatpush.bf16.msra.mxu0 0
    %1091 = vmatpush.bf16.msra.mxu0 0
    %1092 = vmatpush.bf16.msra.mxu0 0
    %1093 = vmatpush.bf16.msra.mxu0 %v1084
    %1094 = vmatmul.bf16.gmra.mxu0 %v1081
    %v1095 = vpop.f32.mrf.mxu0
    %v1096 = vadd.f32 0.0, %v1095
    %v1097 = vpop.f32.mrf.mxu0
    %1098 = vdwg.mxu0
    %1099 = vrot.lane.b32.xlu0 %v762, 64
    %v1100 = vpop.permute.xlu0 %1099
    %v1102 = vsel %vm600, %v1077, 0
    %v1105 = vsel %vm618, %v1100, 0
    %1107 = vmatpush.bf16.msra.mxu0 0
    %1108 = vmatpush.bf16.msra.mxu0 0
    %1109 = vmatpush.bf16.msra.mxu0 0
    %1110 = vmatpush.bf16.msra.mxu0 0
    %1111 = vmatpush.bf16.msra.mxu0 0
    %1112 = vmatpush.bf16.msra.mxu0 0
    %1113 = vmatpush.bf16.msra.mxu0 0
    %1114 = vmatpush.bf16.msra.mxu0 %v1105
    %1115 = vmatmul.bf16.gmra.mxu0 %v1102
    %v1116 = vpop.f32.mrf.mxu0
    %v1117 = vadd.f32 0.0, %v1116
    %v1118 = vpop.f32.mrf.mxu0
    %1119 = vdwg.mxu0
    %v1120 = vsel %vm600, %v1073, 0.0
    %1121 = vadd.xlane.f32.xlu0 %v1120
    %v1122 = vpop.xlane.xlu0 %1121
    %v1123 = vsel %vm600, %v1075, 0.0
    %1124 = vadd.xlane.f32.xlu0 %v1123
    %v1125 = vpop.xlane.xlu0 %1124
    %v1126 = vrcp.pop %v1122
    %v1127 = vrcp.pop %v1125
    %v1128 = vmul.f32 %v1096, %v1126
    %v1129 = vmul.f32 %v1117, %v1127
    %1130 = vrot.lane.b32.xlu0 %v666, 48
    %v1131 = vpop.permute.xlu0 %1130
    %1132 = vrot.lane.b32.xlu0 %v671, 48
    %v1133 = vpop.permute.xlu0 %1132
    %v1135 = vsel %vm362, %v1131, 0
    %v1138 = vsel %vm362, %v1133, 0
    %1140 = vmatpush.bf16.xpose.msra.mxu0 0
    %1141 = vmatpush.bf16.xpose.msra.mxu0 0
    %1142 = vmatpush.bf16.xpose.msra.mxu0 0
    %1143 = vmatpush.bf16.xpose.msra.mxu0 0
    %1144 = vmatpush.bf16.xpose.msra.mxu0 0
    %1145 = vmatpush.bf16.xpose.msra.mxu0 0
    %1146 = vmatpush.bf16.xpose.msra.mxu0 0
    %1147 = vmatpush.bf16.xpose.msra.mxu0 %v1138
    %1148 = vmatmul.bf16.gmra.mxu0 %v1135
    %v1149 = vpop.f32.mrf.mxu0
    %v1150 = vadd.f32 0.0, %v1149
    %v1151 = vpop.f32.mrf.mxu0
    %1152 = vdwg.mxu0
    %1153 = vrot.lane.b32.xlu0 %v695, 48
    %v1154 = vpop.permute.xlu0 %1153
    %1155 = vrot.lane.b32.xlu0 %v700, 48
    %v1156 = vpop.permute.xlu0 %1155
    %v1158 = vsel %vm362, %v1154, 0
    %v1161 = vsel %vm362, %v1156, 0
    %1163 = vmatpush.bf16.xpose.msra.mxu0 0
    %1164 = vmatpush.bf16.xpose.msra.mxu0 0
    %1165 = vmatpush.bf16.xpose.msra.mxu0 0
    %1166 = vmatpush.bf16.xpose.msra.mxu0 0
    %1167 = vmatpush.bf16.xpose.msra.mxu0 0
    %1168 = vmatpush.bf16.xpose.msra.mxu0 0
    %1169 = vmatpush.bf16.xpose.msra.mxu0 0
    %1170 = vmatpush.bf16.xpose.msra.mxu0 %v1161
    %1171 = vmatmul.bf16.gmra.mxu0 %v1158
    %v1172 = vpop.f32.mrf.mxu0
    %v1173 = vadd.f32 0.0, %v1172
    %v1174 = vpop.f32.mrf.mxu0
    %1175 = vdwg.mxu0
    %v1176 = vsel %vm600, %v1150, -inf
    %1177 = vmax.xlane.f32.xlu0 %v1176
    %v1178 = vpop.xlane.xlu0 %1177
    %v1179 = vsel %vm600, %v1173, -inf
    %1180 = vmax.xlane.f32.xlu0 %v1179
    %v1181 = vpop.xlane.xlu0 %1180
    %v1182 = vsub.f32 %v1150, %v1178
    %v1183 = vsub.f32 %v1173, %v1181
    %v1184 = vmul.f32 %v1182, 1.442695
    %v1185 = vpow.pop %v1184
    %v1186 = vmul.f32 %v1183, 1.442695
    %v1187 = vpow.pop %v1186
    %v1188 = vpack.c.bf16 %v1185, %v1185
    %v1189 = vpack.c.bf16 %v1187, %v1187
    %1190 = vrot.lane.b32.xlu0 %v738, 48
    %v1191 = vpop.permute.xlu0 %1190
    %v1193 = vsel %vm600, %v1188, 0
    %v1196 = vsel %vm618, %v1191, 0
    %1198 = vmatpush.bf16.msra.mxu0 0
    %1199 = vmatpush.bf16.msra.mxu0 0
    %1200 = vmatpush.bf16.msra.mxu0 0
    %1201 = vmatpush.bf16.msra.mxu0 0
    %1202 = vmatpush.bf16.msra.mxu0 0
    %1203 = vmatpush.bf16.msra.mxu0 0
    %1204 = vmatpush.bf16.msra.mxu0 0
    %1205 = vmatpush.bf16.msra.mxu0 %v1196
    %1206 = vmatmul.bf16.gmra.mxu0 %v1193
    %v1207 = vpop.f32.mrf.mxu0
    %v1208 = vadd.f32 0.0, %v1207
    %v1209 = vpop.f32.mrf.mxu0
    %1210 = vdwg.mxu0
    %1211 = vrot.lane.b32.xlu0 %v762, 48
    %v1212 = vpop.permute.xlu0 %1211
    %v1214 = vsel %vm600, %v1189, 0
    %v1217 = vsel %vm618, %v1212, 0
    %1219 = vmatpush.bf16.msra.mxu0 0
    %1220 = vmatpush.bf16.msra.mxu0 0
    %1221 = vmatpush.bf16.msra.mxu0 0
    %1222 = vmatpush.bf16.msra.mxu0 0
    %1223 = vmatpush.bf16.msra.mxu0 0
    %1224 = vmatpush.bf16.msra.mxu0 0
    %1225 = vmatpush.bf16.msra.mxu0 0
    %1226 = vmatpush.bf16.msra.mxu0 %v1217
    %1227 = vmatmul.bf16.gmra.mxu0 %v1214
    %v1228 = vpop.f32.mrf.mxu0
    %v1229 = vadd.f32 0.0, %v1228
    %v1230 = vpop.f32.mrf.mxu0
    %1231 = vdwg.mxu0
    %v1232 = vsel %vm600, %v1185, 0.0
    %1233 = vadd.xlane.f32.xlu0 %v1232
    %v1234 = vpop.xlane.xlu0 %1233
    %v1235 = vsel %vm600, %v1187, 0.0
    %1236 = vadd.xlane.f32.xlu0 %v1235
    %v1237 = vpop.xlane.xlu0 %1236
    %v1238 = vrcp.pop %v1234
    %v1239 = vrcp.pop %v1237
    %v1240 = vmul.f32 %v1208, %v1238
    %v1241 = vmul.f32 %v1229, %v1239
    %1242 = vrot.lane.b32.xlu0 %v666, 32
    %v1243 = vpop.permute.xlu0 %1242
    %1244 = vrot.lane.b32.xlu0 %v671, 32
    %v1245 = vpop.permute.xlu0 %1244
    %v1247 = vsel %vm362, %v1243, 0
    %v1250 = vsel %vm362, %v1245, 0
    %1252 = vmatpush.bf16.xpose.msra.mxu0 0
    %1253 = vmatpush.bf16.xpose.msra.mxu0 0
    %1254 = vmatpush.bf16.xpose.msra.mxu0 0
    %1255 = vmatpush.bf16.xpose.msra.mxu0 0
    %1256 = vmatpush.bf16.xpose.msra.mxu0 0
    %1257 = vmatpush.bf16.xpose.msra.mxu0 0
    %1258 = vmatpush.bf16.xpose.msra.mxu0 0
    %1259 = vmatpush.bf16.xpose.msra.mxu0 %v1250
    %1260 = vmatmul.bf16.gmra.mxu0 %v1247
    %v1261 = vpop.f32.mrf.mxu0
    %v1262 = vadd.f32 0.0, %v1261
    %v1263 = vpop.f32.mrf.mxu0
    %1264 = vdwg.mxu0
    %1265 = vrot.lane.b32.xlu0 %v695, 32
    %v1266 = vpop.permute.xlu0 %1265
    %1267 = vrot.lane.b32.xlu0 %v700, 32
    %v1268 = vpop.permute.xlu0 %1267
    %v1270 = vsel %vm362, %v1266, 0
    %v1273 = vsel %vm362, %v1268, 0
    %1275 = vmatpush.bf16.xpose.msra.mxu0 0
    %1276 = vmatpush.bf16.xpose.msra.mxu0 0
    %1277 = vmatpush.bf16.xpose.msra.mxu0 0
    %1278 = vmatpush.bf16.xpose.msra.mxu0 0
    %1279 = vmatpush.bf16.xpose.msra.mxu0 0
    %1280 = vmatpush.bf16.xpose.msra.mxu0 0
    %1281 = vmatpush.bf16.xpose.msra.mxu0 0
    %1282 = vmatpush.bf16.xpose.msra.mxu0 %v1273
    %1283 = vmatmul.bf16.gmra.mxu0 %v1270
    %v1284 = vpop.f32.mrf.mxu0
    %v1285 = vadd.f32 0.0, %v1284
    %v1286 = vpop.f32.mrf.mxu0
    %1287 = vdwg.mxu0
    %v1288 = vsel %vm600, %v1262, -inf
    %1289 = vmax.xlane.f32.xlu0 %v1288
    %v1290 = vpop.xlane.xlu0 %1289
    %v1291 = vsel %vm600, %v1285, -inf
    %1292 = vmax.xlane.f32.xlu0 %v1291
    %v1293 = vpop.xlane.xlu0 %1292
    %v1294 = vsub.f32 %v1262, %v1290
    %v1295 = vsub.f32 %v1285, %v1293
    %v1296 = vmul.f32 %v1294, 1.442695
    %v1297 = vpow.pop %v1296
    %v1298 = vmul.f32 %v1295, 1.442695
    %v1299 = vpow.pop %v1298
    %v1300 = vpack.c.bf16 %v1297, %v1297
    %v1301 = vpack.c.bf16 %v1299, %v1299
    %1302 = vrot.lane.b32.xlu0 %v738, 32
    %v1303 = vpop.permute.xlu0 %1302
    %v1305 = vsel %vm600, %v1300, 0
    %v1308 = vsel %vm618, %v1303, 0
    %1310 = vmatpush.bf16.msra.mxu0 0
    %1311 = vmatpush.bf16.msra.mxu0 0
    %1312 = vmatpush.bf16.msra.mxu0 0
    %1313 = vmatpush.bf16.msra.mxu0 0
    %1314 = vmatpush.bf16.msra.mxu0 0
    %1315 = vmatpush.bf16.msra.mxu0 0
    %1316 = vmatpush.bf16.msra.mxu0 0
    %1317 = vmatpush.bf16.msra.mxu0 %v1308
    %1318 = vmatmul.bf16.gmra.mxu0 %v1305
    %v1319 = vpop.f32.mrf.mxu0
    %v1320 = vadd.f32 0.0, %v1319
    %v1321 = vpop.f32.mrf.mxu0
    %1322 = vdwg.mxu0
    %1323 = vrot.lane.b32.xlu0 %v762, 32
    %v1324 = vpop.permute.xlu0 %1323
    %v1326 = vsel %vm600, %v1301, 0
    %v1329 = vsel %vm618, %v1324, 0
    %1331 = vmatpush.bf16.msra.mxu0 0
    %1332 = vmatpush.bf16.msra.mxu0 0
    %1333 = vmatpush.bf16.msra.mxu0 0
    %1334 = vmatpush.bf16.msra.mxu0 0
    %1335 = vmatpush.bf16.msra.mxu0 0
    %1336 = vmatpush.bf16.msra.mxu0 0
    %1337 = vmatpush.bf16.msra.mxu0 0
    %1338 = vmatpush.bf16.msra.mxu0 %v1329
    %1339 = vmatmul.bf16.gmra.mxu0 %v1326
    %v1340 = vpop.f32.mrf.mxu0
    %v1341 = vadd.f32 0.0, %v1340
    %v1342 = vpop.f32.mrf.mxu0
    %1343 = vdwg.mxu0
    %v1344 = vsel %vm600, %v1297, 0.0
    %1345 = vadd.xlane.f32.xlu0 %v1344
    %v1346 = vpop.xlane.xlu0 %1345
    %v1347 = vsel %vm600, %v1299, 0.0
    %1348 = vadd.xlane.f32.xlu0 %v1347
    %v1349 = vpop.xlane.xlu0 %1348
    %v1350 = vrcp.pop %v1346
    %v1351 = vrcp.pop %v1349
    %v1352 = vmul.f32 %v1320, %v1350
    %v1353 = vmul.f32 %v1341, %v1351
    %1354 = vrot.lane.b32.xlu0 %v666, 16
    %v1355 = vpop.permute.xlu0 %1354
    %1356 = vrot.lane.b32.xlu0 %v671, 16
    %v1357 = vpop.permute.xlu0 %1356
    %v1359 = vsel %vm362, %v1355, 0
    %v1362 = vsel %vm362, %v1357, 0
    %1364 = vmatpush.bf16.xpose.msra.mxu0 0
    %1365 = vmatpush.bf16.xpose.msra.mxu0 0
    %1366 = vmatpush.bf16.xpose.msra.mxu0 0
    %1367 = vmatpush.bf16.xpose.msra.mxu0 0
    %1368 = vmatpush.bf16.xpose.msra.mxu0 0
    %1369 = vmatpush.bf16.xpose.msra.mxu0 0
    %1370 = vmatpush.bf16.xpose.msra.mxu0 0
    %1371 = vmatpush.bf16.xpose.msra.mxu0 %v1362
    %1372 = vmatmul.bf16.gmra.mxu0 %v1359
    %v1373 = vpop.f32.mrf.mxu0
    %v1374 = vadd.f32 0.0, %v1373
    %v1375 = vpop.f32.mrf.mxu0
    %1376 = vdwg.mxu0
    %1377 = vrot.lane.b32.xlu0 %v695, 16
    %v1378 = vpop.permute.xlu0 %1377
    %1379 = vrot.lane.b32.xlu0 %v700, 16
    %v1380 = vpop.permute.xlu0 %1379
    %v1382 = vsel %vm362, %v1378, 0
    %v1385 = vsel %vm362, %v1380, 0
    %1387 = vmatpush.bf16.xpose.msra.mxu0 0
    %1388 = vmatpush.bf16.xpose.msra.mxu0 0
    %1389 = vmatpush.bf16.xpose.msra.mxu0 0
    %1390 = vmatpush.bf16.xpose.msra.mxu0 0
    %1391 = vmatpush.bf16.xpose.msra.mxu0 0
    %1392 = vmatpush.bf16.xpose.msra.mxu0 0
    %1393 = vmatpush.bf16.xpose.msra.mxu0 0
    %1394 = vmatpush.bf16.xpose.msra.mxu0 %v1385
    %1395 = vmatmul.bf16.gmra.mxu0 %v1382
    %v1396 = vpop.f32.mrf.mxu0
    %v1397 = vadd.f32 0.0, %v1396
    %v1398 = vpop.f32.mrf.mxu0
    %1399 = vdwg.mxu0
    %v1400 = vsel %vm600, %v1374, -inf
    %1401 = vmax.xlane.f32.xlu0 %v1400
    %v1402 = vpop.xlane.xlu0 %1401
    %v1403 = vsel %vm600, %v1397, -inf
    %1404 = vmax.xlane.f32.xlu0 %v1403
    %v1405 = vpop.xlane.xlu0 %1404
    %v1406 = vsub.f32 %v1374, %v1402
    %v1407 = vsub.f32 %v1397, %v1405
    %v1408 = vmul.f32 %v1406, 1.442695
    %v1409 = vpow.pop %v1408
    %v1410 = vmul.f32 %v1407, 1.442695
    %v1411 = vpow.pop %v1410
    %v1412 = vpack.c.bf16 %v1409, %v1409
    %v1413 = vpack.c.bf16 %v1411, %v1411
    %1414 = vrot.lane.b32.xlu0 %v738, 16
    %v1415 = vpop.permute.xlu0 %1414
    %v1417 = vsel %vm600, %v1412, 0
    %v1420 = vsel %vm618, %v1415, 0
    %1422 = vmatpush.bf16.msra.mxu0 0
    %1423 = vmatpush.bf16.msra.mxu0 0
    %1424 = vmatpush.bf16.msra.mxu0 0
    %1425 = vmatpush.bf16.msra.mxu0 0
    %1426 = vmatpush.bf16.msra.mxu0 0
    %1427 = vmatpush.bf16.msra.mxu0 0
    %1428 = vmatpush.bf16.msra.mxu0 0
    %1429 = vmatpush.bf16.msra.mxu0 %v1420
    %1430 = vmatmul.bf16.gmra.mxu0 %v1417
    %v1431 = vpop.f32.mrf.mxu0
    %v1432 = vadd.f32 0.0, %v1431
    %v1433 = vpop.f32.mrf.mxu0
    %1434 = vdwg.mxu0
    %1435 = vrot.lane.b32.xlu0 %v762, 16
    %v1436 = vpop.permute.xlu0 %1435
    %v1438 = vsel %vm600, %v1413, 0
    %v1441 = vsel %vm618, %v1436, 0
    %1443 = vmatpush.bf16.msra.mxu0 0
    %1444 = vmatpush.bf16.msra.mxu0 0
    %1445 = vmatpush.bf16.msra.mxu0 0
    %1446 = vmatpush.bf16.msra.mxu0 0
    %1447 = vmatpush.bf16.msra.mxu0 0
    %1448 = vmatpush.bf16.msra.mxu0 0
    %1449 = vmatpush.bf16.msra.mxu0 0
    %1450 = vmatpush.bf16.msra.mxu0 %v1441
    %1451 = vmatmul.bf16.gmra.mxu0 %v1438
    %v1452 = vpop.f32.mrf.mxu0
    %v1453 = vadd.f32 0.0, %v1452
    %v1454 = vpop.f32.mrf.mxu0
    %1455 = vdwg.mxu0
    %v1456 = vsel %vm600, %v1409, 0.0
    %1457 = vadd.xlane.f32.xlu0 %v1456
    %v1458 = vpop.xlane.xlu0 %1457
    %v1459 = vsel %vm600, %v1411, 0.0
    %1460 = vadd.xlane.f32.xlu0 %v1459
    %v1461 = vpop.xlane.xlu0 %1460
    %v1462 = vrcp.pop %v1458
    %v1463 = vrcp.pop %v1461
    %v1464 = vmul.f32 %v1432, %v1462
    %v1465 = vmul.f32 %v1453, %v1463
    %1468 = vrot.lane.b32.xlu0 %v792, 16
    %v1469 = vpop.permute.xlu0 %1468
    %1470 = vrot.lane.b32.xlu0 %v793, 16
    %v1471 = vpop.permute.xlu0 %1470
    %1476 = vrot.lane.b32.xlu0 %v904, 32
    %v1477 = vpop.permute.xlu0 %1476
    %1478 = vrot.lane.b32.xlu0 %v905, 32
    %v1479 = vpop.permute.xlu0 %1478
    %1484 = vrot.lane.b32.xlu0 %v1016, 48
    %v1485 = vpop.permute.xlu0 %1484
    %1486 = vrot.lane.b32.xlu0 %v1017, 48
    %v1487 = vpop.permute.xlu0 %1486
    %1492 = vrot.lane.b32.xlu0 %v1128, 64
    %v1493 = vpop.permute.xlu0 %1492
    %1494 = vrot.lane.b32.xlu0 %v1129, 64
    %v1495 = vpop.permute.xlu0 %1494
    %1500 = vrot.lane.b32.xlu0 %v1240, 80
    %v1501 = vpop.permute.xlu0 %1500
    %1502 = vrot.lane.b32.xlu0 %v1241, 80
    %v1503 = vpop.permute.xlu0 %1502
    %1508 = vrot.lane.b32.xlu0 %v1352, 96
    %v1509 = vpop.permute.xlu0 %1508
    %1510 = vrot.lane.b32.xlu0 %v1353, 96
    %v1511 = vpop.permute.xlu0 %1510
    %1516 = vrot.lane.b32.xlu0 %v1464, 112
    %v1517 = vpop.permute.xlu0 %1516
    %1518 = vrot.lane.b32.xlu0 %v1465, 112
    %v1519 = vpop.permute.xlu0 %1518
    %v1522 = vsel %vm362, %v662, %v1469
    %v1523 = vsel %vm362, %v663, %v1471
    %vm1524 = vcmask 261120
    %v1525 = vsel %vm1524, %v1522, %v1477
    %v1526 = vsel %vm1524, %v1523, %v1479
    %vm1527 = vcmask 392192
    %v1528 = vsel %vm1527, %v1525, %v1485
    %v1529 = vsel %vm1527, %v1526, %v1487
    %vm1530 = vcmask 523264
    %v1531 = vsel %vm1530, %v1528, %v1493
    %v1532 = vsel %vm1530, %v1529, %v1495
    %vm1533 = vcmask 654336
    %v1534 = vsel %vm1533, %v1531, %v1501
    %v1535 = vsel %vm1533, %v1532, %v1503
    %vm1536 = vcmask 785408
    %v1537 = vsel %vm1536, %v1534, %v1509
    %v1538 = vsel %vm1536, %v1535, %v1511
    %vm1539 = vcmask 916480
    %v1540 = vsel %vm1539, %v1537, %v1517
    %v1541 = vsel %vm1539, %v1538, %v1519
    %v1542 = vpack.c.bf16 %v1541, %v1540
    %v1543 = vunpack.c.h.b16 %v144
    %v1544 = vunpack.c.h.b16 %v147
    %v1545 = vunpack.c.h.b16 %v150
    %v1546 = vunpack.c.h.b16 %v153
    %v1547 = vunpack.c.h.b16 %v156
    %v1548 = vunpack.c.h.b16 %v159
    %v1549 = vunpack.c.h.b16 %v162
    %v1550 = vunpack.c.h.b16 %v165
    %v1551 = vunpack.c.h.b16 %v168
    %v1552 = vunpack.c.h.b16 %v171
    %v1553 = vunpack.c.h.b16 %v174
    %v1554 = vunpack.c.h.b16 %v177
    %v1555 = vunpack.c.h.b16 %v180
    %v1556 = vunpack.c.h.b16 %v183
    %v1557 = vunpack.c.h.b16 %v186
    %v1558 = vunpack.c.h.b16 %v189
    %v1559 = vpack.c.b16 %v1544, %v1543
    %v1560 = vpack.c.b16 %v1546, %v1545
    %v1561 = vpack.c.b16 %v1548, %v1547
    %v1562 = vpack.c.b16 %v1550, %v1549
    %v1563 = vpack.c.b16 %v1552, %v1551
    %v1564 = vpack.c.b16 %v1554, %v1553
    %v1565 = vpack.c.b16 %v1556, %v1555
    %v1566 = vpack.c.b16 %v1558, %v1557
    %1575 = vmatpush.bf16.msra.mxu0 %v1566
    %1576 = vmatpush.bf16.msra.mxu0 %v1565
    %1577 = vmatpush.bf16.msra.mxu0 %v1564
    %1578 = vmatpush.bf16.msra.mxu0 %v1563
    %1579 = vmatpush.bf16.msra.mxu0 %v1562
    %1580 = vmatpush.bf16.msra.mxu0 %v1561
    %1581 = vmatpush.bf16.msra.mxu0 %v1560
    %1582 = vmatpush.bf16.msra.mxu0 %v1559
    %1583 = vmatmul.bf16.gmra.mxu0 %v1542
    %v1584 = vpop.f32.mrf.mxu0
    %v1585 = vadd.f32 0.0, %v1584
    %v1586 = vpop.f32.mrf.mxu0
    %v1587 = vadd.f32 0.0, %v1586
    %1588 = vdwg.mxu0
    %v1589 = vadd.f32 %v380, %v1585
    %v1590 = vadd.f32 %v381, %v1587
    %v1591 = vperm.slane %v223, 1
    %v1592 = vadd.f32 %v1589, %v1591
    %v1593 = vadd.f32 %v1590, %v1591
    %1594 = vadd.xlane.f32.xlu0 %v1592
    %v1595 = vpop.xlane.xlu0 %1594
    %1596 = vadd.xlane.f32.xlu0 %v1593
    %v1597 = vpop.xlane.xlu0 %1596
    %v1598 = vrcp.pop 128.0
    %v1599 = vmul.f32 128.0, %v1598
    %v1600 = vsub.f32 1.0, %v1599
    %v1601 = vmul.f32 %v1598, %v1600
    %v1602 = vadd.f32 %v1598, %v1601
    %vm1603 = vweird.f32 %v1598
    %v1604 = vsel %vm1603, %v1598, %v1602
    %v1605 = vmul.f32 %v1595, %v1604
    %v1606 = vmul.f32 %v1597, %v1604
    %v1607 = vsub.f32 %v1592, %v1605
    %v1608 = vsub.f32 %v1593, %v1606
    %v1609 = vmul.f32 %v1607, %v1607
    %v1610 = vmul.f32 %v1608, %v1608
    %1611 = vadd.xlane.f32.xlu0 %v1609
    %v1612 = vpop.xlane.xlu0 %1611
    %1613 = vadd.xlane.f32.xlu0 %v1610
    %v1614 = vpop.xlane.xlu0 %1613
    %v1615 = vmul.f32 %v1612, %v1604
    %v1616 = vmul.f32 %v1614, %v1604
    %v1617 = vadd.f32 %v1615, 1e-05
    %v1618 = vadd.f32 %v1616, 1e-05
    %v1619 = vrsqrt.pop %v1617
    %v1620 = vmul.f32 %v1619, %v1617
    %v1621 = vmul.f32 %v1620, %v1619
    %v1622 = vmul.f32 0.5, %v1621
    %v1623 = vsub.f32 1.5, %v1622
    %v1624 = vmul.f32 %v1619, %v1623
    %vm1625 = vweird.f32 %v1617
    %vm1626 = vweird.f32 %v1619
    %vm1627 = vmor %vm1625, %vm1626
    %v1628 = vsel %vm1627, %v1619, %v1624
    %v1629 = vrsqrt.pop %v1618
    %v1630 = vmul.f32 %v1629, %v1618
    %v1631 = vmul.f32 %v1630, %v1629
    %v1632 = vmul.f32 0.5, %v1631
    %v1633 = vsub.f32 1.5, %v1632
    %v1634 = vmul.f32 %v1629, %v1633
    %vm1635 = vweird.f32 %v1618
    %vm1636 = vweird.f32 %v1629
    %vm1637 = vmor %vm1635, %vm1636
    %v1638 = vsel %vm1637, %v1629, %v1634
    %v1639 = vmul.f32 %v1607, %v1628
    %v1640 = vmul.f32 %v1608, %v1638
    %v1641 = vperm.slane %v223, 4
    %v1642 = vmul.f32 %v1639, %v1641
    %v1643 = vmul.f32 %v1640, %v1641
    %v1644 = vperm.slane %v223, 5
    %v1645 = vadd.f32 %v1642, %v1644
    %v1646 = vadd.f32 %v1643, %v1644
    %v1647 = vpack.c.bf16 %v1646, %v1645
    %v1648 = vperm.slane %v223, 2
    %v1649 = vperm.slane %v224, 2
    %v1666 = vunpack.c.l.b16 %v145
    %v1667 = vunpack.c.h.b16 %v145
    %v1668 = vunpack.c.l.b16 %v148
    %v1669 = vunpack.c.h.b16 %v148
    %v1670 = vunpack.c.l.b16 %v151
    %v1671 = vunpack.c.h.b16 %v151
    %v1672 = vunpack.c.l.b16 %v154
    %v1673 = vunpack.c.h.b16 %v154
    %v1674 = vunpack.c.l.b16 %v157
    %v1675 = vunpack.c.h.b16 %v157
    %v1676 = vunpack.c.l.b16 %v160
    %v1677 = vunpack.c.h.b16 %v160
    %v1678 = vunpack.c.l.b16 %v163
    %v1679 = vunpack.c.h.b16 %v163
    %v1680 = vunpack.c.l.b16 %v166
    %v1681 = vunpack.c.h.b16 %v166
    %v1682 = vunpack.c.l.b16 %v169
    %v1683 = vunpack.c.h.b16 %v169
    %v1684 = vunpack.c.l.b16 %v172
    %v1685 = vunpack.c.h.b16 %v172
    %v1686 = vunpack.c.l.b16 %v175
    %v1687 = vunpack.c.h.b16 %v175
    %v1688 = vunpack.c.l.b16 %v178
    %v1689 = vunpack.c.h.b16 %v178
    %v1690 = vunpack.c.l.b16 %v181
    %v1691 = vunpack.c.h.b16 %v181
    %v1692 = vunpack.c.l.b16 %v184
    %v1693 = vunpack.c.h.b16 %v184
    %v1694 = vunpack.c.l.b16 %v187
    %v1695 = vunpack.c.h.b16 %v187
    %v1696 = vunpack.c.l.b16 %v190
    %v1697 = vunpack.c.h.b16 %v190
    %v1698 = vpack.c.b16 %v1668, %v1666
    %v1699 = vpack.c.b16 %v1669, %v1667
    %v1700 = vpack.c.b16 %v1672, %v1670
    %v1701 = vpack.c.b16 %v1673, %v1671
    %v1702 = vpack.c.b16 %v1676, %v1674
    %v1703 = vpack.c.b16 %v1677, %v1675
    %v1704 = vpack.c.b16 %v1680, %v1678
    %v1705 = vpack.c.b16 %v1681, %v1679
    %v1706 = vpack.c.b16 %v1684, %v1682
    %v1707 = vpack.c.b16 %v1685, %v1683
    %v1708 = vpack.c.b16 %v1688, %v1686
    %v1709 = vpack.c.b16 %v1689, %v1687
    %v1710 = vpack.c.b16 %v1692, %v1690
    %v1711 = vpack.c.b16 %v1693, %v1691
    %v1712 = vpack.c.b16 %v1696, %v1694
    %v1713 = vpack.c.b16 %v1697, %v1695
    %1730 = vmatpush.bf16.msra.mxu0 %v1712
    %1731 = vmatpush.bf16.msra.mxu0 %v1710
    %1732 = vmatpush.bf16.msra.mxu0 %v1708
    %1733 = vmatpush.bf16.msra.mxu0 %v1706
    %1734 = vmatpush.bf16.msra.mxu0 %v1704
    %1735 = vmatpush.bf16.msra.mxu0 %v1702
    %1736 = vmatpush.bf16.msra.mxu0 %v1700
    %1737 = vmatpush.bf16.msra.mxu0 %v1698
    %1738 = vmatmul.bf16.gmra.mxu0 %v1647
    %v1739 = vpop.f32.mrf.mxu0
    %v1740 = vadd.f32 %v1648, %v1739
    %v1741 = vpop.f32.mrf.mxu0
    %v1742 = vadd.f32 %v1648, %v1741
    %1743 = vdwg.mxu0
    %1744 = vmatpush.bf16.msra.mxu0 %v1713
    %1745 = vmatpush.bf16.msra.mxu0 %v1711
    %1746 = vmatpush.bf16.msra.mxu0 %v1709
    %1747 = vmatpush.bf16.msra.mxu0 %v1707
    %1748 = vmatpush.bf16.msra.mxu0 %v1705
    %1749 = vmatpush.bf16.msra.mxu0 %v1703
    %1750 = vmatpush.bf16.msra.mxu0 %v1701
    %1751 = vmatpush.bf16.msra.mxu0 %v1699
    %1752 = vmatmul.bf16.gmra.mxu0 %v1647
    %v1753 = vpop.f32.mrf.mxu0
    %v1754 = vadd.f32 %v1649, %v1753
    %v1755 = vpop.f32.mrf.mxu0
    %v1756 = vadd.f32 %v1649, %v1755
    %1757 = vdwg.mxu0
    %v1758 = vmax.f32 %v1740, 0.0
    %v1759 = vmax.f32 %v1754, 0.0
    %v1760 = vmax.f32 %v1742, 0.0
    %v1761 = vmax.f32 %v1756, 0.0
    %v1762 = vpack.c.bf16 %v1760, %v1758
    %v1763 = vpack.c.bf16 %v1761, %v1759
    %v1796 = vunpack.c.l.b16 %v191
    %v1797 = vunpack.c.l.b16 %v192
    %v1798 = vunpack.c.l.b16 %v193
    %v1799 = vunpack.c.l.b16 %v194
    %v1800 = vunpack.c.l.b16 %v195
    %v1801 = vunpack.c.l.b16 %v196
    %v1802 = vunpack.c.l.b16 %v197
    %v1803 = vunpack.c.l.b16 %v198
    %v1804 = vunpack.c.l.b16 %v199
    %v1805 = vunpack.c.l.b16 %v200
    %v1806 = vunpack.c.l.b16 %v201
    %v1807 = vunpack.c.l.b16 %v202
    %v1808 = vunpack.c.l.b16 %v203
    %v1809 = vunpack.c.l.b16 %v204
    %v1810 = vunpack.c.l.b16 %v205
    %v1811 = vunpack.c.l.b16 %v206
    %v1812 = vunpack.c.l.b16 %v207
    %v1813 = vunpack.c.l.b16 %v208
    %v1814 = vunpack.c.l.b16 %v209
    %v1815 = vunpack.c.l.b16 %v210
    %v1816 = vunpack.c.l.b16 %v211
    %v1817 = vunpack.c.l.b16 %v212
    %v1818 = vunpack.c.l.b16 %v213
    %v1819 = vunpack.c.l.b16 %v214
    %v1820 = vunpack.c.l.b16 %v215
    %v1821 = vunpack.c.l.b16 %v216
    %v1822 = vunpack.c.l.b16 %v217
    %v1823 = vunpack.c.l.b16 %v218
    %v1824 = vunpack.c.l.b16 %v219
    %v1825 = vunpack.c.l.b16 %v220
    %v1826 = vunpack.c.l.b16 %v221
    %v1827 = vunpack.c.l.b16 %v222
    %v1828 = vpack.c.b16 %v1797, %v1796
    %v1829 = vpack.c.b16 %v1799, %v1798
    %v1830 = vpack.c.b16 %v1801, %v1800
    %v1831 = vpack.c.b16 %v1803, %v1802
    %v1832 = vpack.c.b16 %v1805, %v1804
    %v1833 = vpack.c.b16 %v1807, %v1806
    %v1834 = vpack.c.b16 %v1809, %v1808
    %v1835 = vpack.c.b16 %v1811, %v1810
    %v1836 = vpack.c.b16 %v1813, %v1812
    %v1837 = vpack.c.b16 %v1815, %v1814
    %v1838 = vpack.c.b16 %v1817, %v1816
    %v1839 = vpack.c.b16 %v1819, %v1818
    %v1840 = vpack.c.b16 %v1821, %v1820
    %v1841 = vpack.c.b16 %v1823, %v1822
    %v1842 = vpack.c.b16 %v1825, %v1824
    %v1843 = vpack.c.b16 %v1827, %v1826
    %1860 = vmatpush.bf16.msra.mxu0 %v1835
    %1861 = vmatpush.bf16.msra.mxu0 %v1834
    %1862 = vmatpush.bf16.msra.mxu0 %v1833
    %1863 = vmatpush.bf16.msra.mxu0 %v1832
    %1864 = vmatpush.bf16.msra.mxu0 %v1831
    %1865 = vmatpush.bf16.msra.mxu0 %v1830
    %1866 = vmatpush.bf16.msra.mxu0 %v1829
    %1867 = vmatpush.bf16.msra.mxu0 %v1828
    %1868 = vmatmul.bf16.gmra.mxu0 %v1762
    %v1869 = vpop.f32.mrf.mxu0
    %v1870 = vadd.f32 0.0, %v1869
    %v1871 = vpop.f32.mrf.mxu0
    %v1872 = vadd.f32 0.0, %v1871
    %1873 = vdwg.mxu0
    %1874 = vmatpush.bf16.msra.mxu0 %v1843
    %1875 = vmatpush.bf16.msra.mxu0 %v1842
    %1876 = vmatpush.bf16.msra.mxu0 %v1841
    %1877 = vmatpush.bf16.msra.mxu0 %v1840
    %1878 = vmatpush.bf16.msra.mxu0 %v1839
    %1879 = vmatpush.bf16.msra.mxu0 %v1838
    %1880 = vmatpush.bf16.msra.mxu0 %v1837
    %1881 = vmatpush.bf16.msra.mxu0 %v1836
    %1882 = vmatmul.bf16.gmra.mxu0 %v1763
    %v1883 = vpop.f32.mrf.mxu0
    %v1884 = vadd.f32 %v1870, %v1883
    %v1885 = vpop.f32.mrf.mxu0
    %v1886 = vadd.f32 %v1872, %v1885
    %1887 = vdwg.mxu0
    %v1888 = vadd.f32 %v1645, %v1884
    %v1889 = vadd.f32 %v1646, %v1886
    %v1890 = vperm.slane %v223, 3
    %v1891 = vadd.f32 %v1888, %v1890
    %v1892 = vadd.f32 %v1889, %v1890
    %1893 = vadd.xlane.f32.xlu0 %v1891
    %v1894 = vpop.xlane.xlu0 %1893
    %1895 = vadd.xlane.f32.xlu0 %v1892
    %v1896 = vpop.xlane.xlu0 %1895
    %v1897 = vmul.f32 %v1894, %v1604
    %v1898 = vmul.f32 %v1896, %v1604
    %v1899 = vsub.f32 %v1891, %v1897
    %v1900 = vsub.f32 %v1892, %v1898
    %v1901 = vmul.f32 %v1899, %v1899
    %v1902 = vmul.f32 %v1900, %v1900
    %1903 = vadd.xlane.f32.xlu0 %v1901
    %v1904 = vpop.xlane.xlu0 %1903
    %1905 = vadd.xlane.f32.xlu0 %v1902
    %v1906 = vpop.xlane.xlu0 %1905
    %v1907 = vmul.f32 %v1904, %v1604
    %v1908 = vmul.f32 %v1906, %v1604
    %v1909 = vadd.f32 %v1907, 1e-05
    %v1910 = vadd.f32 %v1908, 1e-05
    %v1911 = vrsqrt.pop %v1909
    %v1912 = vmul.f32 %v1911, %v1909
    %v1913 = vmul.f32 %v1912, %v1911
    %v1914 = vmul.f32 0.5, %v1913
    %v1915 = vsub.f32 1.5, %v1914
    %v1916 = vmul.f32 %v1911, %v1915
    %vm1917 = vweird.f32 %v1909
    %vm1918 = vweird.f32 %v1911
    %vm1919 = vmor %vm1917, %vm1918
    %v1920 = vsel %vm1919, %v1911, %v1916
    %v1921 = vrsqrt.pop %v1910
    %v1922 = vmul.f32 %v1921, %v1910
    %v1923 = vmul.f32 %v1922, %v1921
    %v1924 = vmul.f32 0.5, %v1923
    %v1925 = vsub.f32 1.5, %v1924
    %v1926 = vmul.f32 %v1921, %v1925
    %vm1927 = vweird.f32 %v1910
    %vm1928 = vweird.f32 %v1921
    %vm1929 = vmor %vm1927, %vm1928
    %v1930 = vsel %vm1929, %v1921, %v1926
    %v1931 = vmul.f32 %v1899, %v1920
    %v1932 = vmul.f32 %v1900, %v1930
    %v1933 = vperm.slane %v223, 6
    %v1934 = vmul.f32 %v1931, %v1933
    %v1935 = vmul.f32 %v1932, %v1933
    %v1936 = vperm.slane %v223, 7
    %v1937 = vadd.f32 %v1934, %v1936
    %v1938 = vadd.f32 %v1935, %v1936
    %v1939 = vpack.c.bf16 %v1938, %v1937
    %v1940 = vperm.slane %v309, 0
    %v1941 = vperm.slane %v310, 0
    %v1942 = vperm.slane %v311, 0
    %v1975 = vunpack.c.l.b16 %v227
    %v1976 = vunpack.c.h.b16 %v227
    %v1977 = vunpack.c.l.b16 %v228
    %v1978 = vunpack.c.l.b16 %v230
    %v1979 = vunpack.c.h.b16 %v230
    %v1980 = vunpack.c.l.b16 %v231
    %v1981 = vunpack.c.l.b16 %v233
    %v1982 = vunpack.c.h.b16 %v233
    %v1983 = vunpack.c.l.b16 %v234
    %v1984 = vunpack.c.l.b16 %v236
    %v1985 = vunpack.c.h.b16 %v236
    %v1986 = vunpack.c.l.b16 %v237
    %v1987 = vunpack.c.l.b16 %v239
    %v1988 = vunpack.c.h.b16 %v239
    %v1989 = vunpack.c.l.b16 %v240
    %v1990 = vunpack.c.l.b16 %v242
    %v1991 = vunpack.c.h.b16 %v242
    %v1992 = vunpack.c.l.b16 %v243
    %v1993 = vunpack.c.l.b16 %v245
    %v1994 = vunpack.c.h.b16 %v245
    %v1995 = vunpack.c.l.b16 %v246
    %v1996 = vunpack.c.l.b16 %v248
    %v1997 = vunpack.c.h.b16 %v248
    %v1998 = vunpack.c.l.b16 %v249
    %v1999 = vunpack.c.l.b16 %v251
    %v2000 = vunpack.c.h.b16 %v251
    %v2001 = vunpack.c.l.b16 %v252
    %v2002 = vunpack.c.l.b16 %v254
    %v2003 = vunpack.c.h.b16 %v254
    %v2004 = vunpack.c.l.b16 %v255
    %v2005 = vunpack.c.l.b16 %v257
    %v2006 = vunpack.c.h.b16 %v257
    %v2007 = vunpack.c.l.b16 %v258
    %v2008 = vunpack.c.l.b16 %v260
    %v2009 = vunpack.c.h.b16 %v260
    %v2010 = vunpack.c.l.b16 %v261
    %v2011 = vunpack.c.l.b16 %v263
    %v2012 = vunpack.c.h.b16 %v263
    %v2013 = vunpack.c.l.b16 %v264
    %v2014 = vunpack.c.l.b16 %v266
    %v2015 = vunpack.c.h.b16 %v266
    %v2016 = vunpack.c.l.b16 %v267
    %v2017 = vunpack.c.l.b16 %v269
    %v2018 = vunpack.c.h.b16 %v269
    %v2019 = vunpack.c.l.b16 %v270
    %v2020 = vunpack.c.l.b16 %v272
    %v2021 = vunpack.c.h.b16 %v272
    %v2022 = vunpack.c.l.b16 %v273
    %v2023 = vpack.c.b16 %v1978, %v1975
    %v2024 = vpack.c.b16 %v1979, %v1976
    %v2025 = vpack.c.b16 %v1980, %v1977
    %v2026 = vpack.c.b16 %v1984, %v1981
    %v2027 = vpack.c.b16 %v1985, %v1982
    %v2028 = vpack.c.b16 %v1986, %v1983
    %v2029 = vpack.c.b16 %v1990, %v1987
    %v2030 = vpack.c.b16 %v1991, %v1988
    %v2031 = vpack.c.b16 %v1992, %v1989
    %v2032 = vpack.c.b16 %v1996, %v1993
    %v2033 = vpack.c.b16 %v1997, %v1994
    %v2034 = vpack.c.b16 %v1998, %v1995
    %v2035 = vpack.c.b16 %v2002, %v1999
    %v2036 = vpack.c.b16 %v2003, %v2000
    %v2037 = vpack.c.b16 %v2004, %v2001
    %v2038 = vpack.c.b16 %v2008, %v2005
    %v2039 = vpack.c.b16 %v2009, %v2006
    %v2040 = vpack.c.b16 %v2010, %v2007
    %v2041 = vpack.c.b16 %v2014, %v2011
    %v2042 = vpack.c.b16 %v2015, %v2012
    %v2043 = vpack.c.b16 %v2016, %v2013
    %v2044 = vpack.c.b16 %v2020, %v2017
    %v2045 = vpack.c.b16 %v2021, %v2018
    %v2046 = vpack.c.b16 %v2022, %v2019
    %2071 = vmatpush.bf16.msra.mxu0 %v2044
    %2072 = vmatpush.bf16.msra.mxu0 %v2041
    %2073 = vmatpush.bf16.msra.mxu0 %v2038
    %2074 = vmatpush.bf16.msra.mxu0 %v2035
    %2075 = vmatpush.bf16.msra.mxu0 %v2032
    %2076 = vmatpush.bf16.msra.mxu0 %v2029
    %2077 = vmatpush.bf16.msra.mxu0 %v2026
    %2078 = vmatpush.bf16.msra.mxu0 %v2023
    %2079 = vmatmul.bf16.gmra.mxu0 %v1939
    %v2080 = vpop.f32.mrf.mxu0
    %v2081 = vadd.f32 %v1940, %v2080
    %v2082 = vpop.f32.mrf.mxu0
    %v2083 = vadd.f32 %v1940, %v2082
    %2084 = vdwg.mxu0
    %2085 = vmatpush.bf16.msra.mxu0 %v2045
    %2086 = vmatpush.bf16.msra.mxu0 %v2042
    %2087 = vmatpush.bf16.msra.mxu0 %v2039
    %2088 = vmatpush.bf16.msra.mxu0 %v2036
    %2089 = vmatpush.bf16.msra.mxu0 %v2033
    %2090 = vmatpush.bf16.msra.mxu0 %v2030
    %2091 = vmatpush.bf16.msra.mxu0 %v2027
    %2092 = vmatpush.bf16.msra.mxu0 %v2024
    %2093 = vmatmul.bf16.gmra.mxu0 %v1939
    %v2094 = vpop.f32.mrf.mxu0
    %v2095 = vadd.f32 %v1941, %v2094
    %v2096 = vpop.f32.mrf.mxu0
    %v2097 = vadd.f32 %v1941, %v2096
    %2098 = vdwg.mxu0
    %2099 = vmatpush.bf16.msra.mxu0 %v2046
    %2100 = vmatpush.bf16.msra.mxu0 %v2043
    %2101 = vmatpush.bf16.msra.mxu0 %v2040
    %2102 = vmatpush.bf16.msra.mxu0 %v2037
    %2103 = vmatpush.bf16.msra.mxu0 %v2034
    %2104 = vmatpush.bf16.msra.mxu0 %v2031
    %2105 = vmatpush.bf16.msra.mxu0 %v2028
    %2106 = vmatpush.bf16.msra.mxu0 %v2025
    %2107 = vmatmul.bf16.gmra.mxu0 %v1939
    %v2108 = vpop.f32.mrf.mxu0
    %v2109 = vadd.f32 %v1942, %v2108
    %v2110 = vpop.f32.mrf.mxu0
    %v2111 = vadd.f32 %v1942, %v2110
    %2112 = vdwg.mxu0
    %v2113 = vpack.c.bf16 %v2081, %v2081
    %v2114 = vpack.c.bf16 %v2083, %v2083
    %v2115 = vpack.c.bf16 %v2095, %v2095
    %v2116 = vpack.c.bf16 %v2097, %v2097
    %v2117 = vpack.c.bf16 %v2109, %v2109
    %v2118 = vpack.c.bf16 %v2111, %v2111
    %v2120 = vsel %vm362, %v2113, 0
    %v2123 = vsel %vm362, %v2115, 0
    %2125 = vmatpush.bf16.xpose.msra.mxu0 0
    %2126 = vmatpush.bf16.xpose.msra.mxu0 0
    %2127 = vmatpush.bf16.xpose.msra.mxu0 0
    %2128 = vmatpush.bf16.xpose.msra.mxu0 0
    %2129 = vmatpush.bf16.xpose.msra.mxu0 0
    %2130 = vmatpush.bf16.xpose.msra.mxu0 0
    %2131 = vmatpush.bf16.xpose.msra.mxu0 0
    %2132 = vmatpush.bf16.xpose.msra.mxu0 %v2123
    %2133 = vmatmul.bf16.gmra.mxu0 %v2120
    %v2134 = vpop.f32.mrf.mxu0
    %v2135 = vadd.f32 0.0, %v2134
    %v2136 = vpop.f32.mrf.mxu0
    %2137 = vdwg.mxu0
    %v2139 = vsel %vm362, %v2114, 0
    %v2142 = vsel %vm362, %v2116, 0
    %2144 = vmatpush.bf16.xpose.msra.mxu0 0
    %2145 = vmatpush.bf16.xpose.msra.mxu0 0
    %2146 = vmatpush.bf16.xpose.msra.mxu0 0
    %2147 = vmatpush.bf16.xpose.msra.mxu0 0
    %2148 = vmatpush.bf16.xpose.msra.mxu0 0
    %2149 = vmatpush.bf16.xpose.msra.mxu0 0
    %2150 = vmatpush.bf16.xpose.msra.mxu0 0
    %2151 = vmatpush.bf16.xpose.msra.mxu0 %v2142
    %2152 = vmatmul.bf16.gmra.mxu0 %v2139
    %v2153 = vpop.f32.mrf.mxu0
    %v2154 = vadd.f32 0.0, %v2153
    %v2155 = vpop.f32.mrf.mxu0
    %2156 = vdwg.mxu0
    %v2157 = vsel %vm600, %v2135, -inf
    %2158 = vmax.xlane.f32.xlu0 %v2157
    %v2159 = vpop.xlane.xlu0 %2158
    %v2160 = vsel %vm600, %v2154, -inf
    %2161 = vmax.xlane.f32.xlu0 %v2160
    %v2162 = vpop.xlane.xlu0 %2161
    %v2163 = vsub.f32 %v2135, %v2159
    %v2164 = vsub.f32 %v2154, %v2162
    %v2165 = vmul.f32 %v2163, 1.442695
    %v2166 = vpow.pop %v2165
    %v2167 = vmul.f32 %v2164, 1.442695
    %v2168 = vpow.pop %v2167
    %v2169 = vpack.c.bf16 %v2166, %v2166
    %v2170 = vpack.c.bf16 %v2168, %v2168
    %v2172 = vsel %vm600, %v2169, 0
    %v2175 = vsel %vm618, %v2117, 0
    %2177 = vmatpush.bf16.msra.mxu0 0
    %2178 = vmatpush.bf16.msra.mxu0 0
    %2179 = vmatpush.bf16.msra.mxu0 0
    %2180 = vmatpush.bf16.msra.mxu0 0
    %2181 = vmatpush.bf16.msra.mxu0 0
    %2182 = vmatpush.bf16.msra.mxu0 0
    %2183 = vmatpush.bf16.msra.mxu0 0
    %2184 = vmatpush.bf16.msra.mxu0 %v2175
    %2185 = vmatmul.bf16.gmra.mxu0 %v2172
    %v2186 = vpop.f32.mrf.mxu0
    %v2187 = vadd.f32 0.0, %v2186
    %v2188 = vpop.f32.mrf.mxu0
    %2189 = vdwg.mxu0
    %v2191 = vsel %vm600, %v2170, 0
    %v2194 = vsel %vm618, %v2118, 0
    %2196 = vmatpush.bf16.msra.mxu0 0
    %2197 = vmatpush.bf16.msra.mxu0 0
    %2198 = vmatpush.bf16.msra.mxu0 0
    %2199 = vmatpush.bf16.msra.mxu0 0
    %2200 = vmatpush.bf16.msra.mxu0 0
    %2201 = vmatpush.bf16.msra.mxu0 0
    %2202 = vmatpush.bf16.msra.mxu0 0
    %2203 = vmatpush.bf16.msra.mxu0 %v2194
    %2204 = vmatmul.bf16.gmra.mxu0 %v2191
    %v2205 = vpop.f32.mrf.mxu0
    %v2206 = vadd.f32 0.0, %v2205
    %v2207 = vpop.f32.mrf.mxu0
    %2208 = vdwg.mxu0
    %v2209 = vsel %vm600, %v2166, 0.0
    %2210 = vadd.xlane.f32.xlu0 %v2209
    %v2211 = vpop.xlane.xlu0 %2210
    %v2212 = vsel %vm600, %v2168, 0.0
    %2213 = vadd.xlane.f32.xlu0 %v2212
    %v2214 = vpop.xlane.xlu0 %2213
    %v2215 = vrcp.pop %v2211
    %v2216 = vrcp.pop %v2214
    %v2217 = vmul.f32 %v2187, %v2215
    %v2218 = vmul.f32 %v2206, %v2216
    %v2220 = vunpack.c.l.b16 %v2113
    %v2221 = vpack.c.b16 %v2220, %v2220
    %2222 = vrot.lane.b32.xlu0 %v2221, 112
    %v2223 = vpop.permute.xlu0 %2222
    %v2225 = vunpack.c.l.b16 %v2115
    %v2226 = vpack.c.b16 %v2225, %v2225
    %2227 = vrot.lane.b32.xlu0 %v2226, 112
    %v2228 = vpop.permute.xlu0 %2227
    %v2230 = vsel %vm362, %v2223, 0
    %v2233 = vsel %vm362, %v2228, 0
    %2235 = vmatpush.bf16.xpose.msra.mxu0 0
    %2236 = vmatpush.bf16.xpose.msra.mxu0 0
    %2237 = vmatpush.bf16.xpose.msra.mxu0 0
    %2238 = vmatpush.bf16.xpose.msra.mxu0 0
    %2239 = vmatpush.bf16.xpose.msra.mxu0 0
    %2240 = vmatpush.bf16.xpose.msra.mxu0 0
    %2241 = vmatpush.bf16.xpose.msra.mxu0 0
    %2242 = vmatpush.bf16.xpose.msra.mxu0 %v2233
    %2243 = vmatmul.bf16.gmra.mxu0 %v2230
    %v2244 = vpop.f32.mrf.mxu0
    %v2245 = vadd.f32 0.0, %v2244
    %v2246 = vpop.f32.mrf.mxu0
    %2247 = vdwg.mxu0
    %v2249 = vunpack.c.l.b16 %v2114
    %v2250 = vpack.c.b16 %v2249, %v2249
    %2251 = vrot.lane.b32.xlu0 %v2250, 112
    %v2252 = vpop.permute.xlu0 %2251
    %v2254 = vunpack.c.l.b16 %v2116
    %v2255 = vpack.c.b16 %v2254, %v2254
    %2256 = vrot.lane.b32.xlu0 %v2255, 112
    %v2257 = vpop.permute.xlu0 %2256
    %v2259 = vsel %vm362, %v2252, 0
    %v2262 = vsel %vm362, %v2257, 0
    %2264 = vmatpush.bf16.xpose.msra.mxu0 0
    %2265 = vmatpush.bf16.xpose.msra.mxu0 0
    %2266 = vmatpush.bf16.xpose.msra.mxu0 0
    %2267 = vmatpush.bf16.xpose.msra.mxu0 0
    %2268 = vmatpush.bf16.xpose.msra.mxu0 0
    %2269 = vmatpush.bf16.xpose.msra.mxu0 0
    %2270 = vmatpush.bf16.xpose.msra.mxu0 0
    %2271 = vmatpush.bf16.xpose.msra.mxu0 %v2262
    %2272 = vmatmul.bf16.gmra.mxu0 %v2259
    %v2273 = vpop.f32.mrf.mxu0
    %v2274 = vadd.f32 0.0, %v2273
    %v2275 = vpop.f32.mrf.mxu0
    %2276 = vdwg.mxu0
    %v2277 = vsel %vm600, %v2245, -inf
    %2278 = vmax.xlane.f32.xlu0 %v2277
    %v2279 = vpop.xlane.xlu0 %2278
    %v2280 = vsel %vm600, %v2274, -inf
    %2281 = vmax.xlane.f32.xlu0 %v2280
    %v2282 = vpop.xlane.xlu0 %2281
    %v2283 = vsub.f32 %v2245, %v2279
    %v2284 = vsub.f32 %v2274, %v2282
    %v2285 = vmul.f32 %v2283, 1.442695
    %v2286 = vpow.pop %v2285
    %v2287 = vmul.f32 %v2284, 1.442695
    %v2288 = vpow.pop %v2287
    %v2289 = vpack.c.bf16 %v2286, %v2286
    %v2290 = vpack.c.bf16 %v2288, %v2288
    %v2292 = vunpack.c.l.b16 %v2117
    %v2293 = vpack.c.b16 %v2292, %v2292
    %2294 = vrot.lane.b32.xlu0 %v2293, 112
    %v2295 = vpop.permute.xlu0 %2294
    %v2297 = vsel %vm600, %v2289, 0
    %v2300 = vsel %vm618, %v2295, 0
    %2302 = vmatpush.bf16.msra.mxu0 0
    %2303 = vmatpush.bf16.msra.mxu0 0
    %2304 = vmatpush.bf16.msra.mxu0 0
    %2305 = vmatpush.bf16.msra.mxu0 0
    %2306 = vmatpush.bf16.msra.mxu0 0
    %2307 = vmatpush.bf16.msra.mxu0 0
    %2308 = vmatpush.bf16.msra.mxu0 0
    %2309 = vmatpush.bf16.msra.mxu0 %v2300
    %2310 = vmatmul.bf16.gmra.mxu0 %v2297
    %v2311 = vpop.f32.mrf.mxu0
    %v2312 = vadd.f32 0.0, %v2311
    %v2313 = vpop.f32.mrf.mxu0
    %2314 = vdwg.mxu0
    %v2316 = vunpack.c.l.b16 %v2118
    %v2317 = vpack.c.b16 %v2316, %v2316
    %2318 = vrot.lane.b32.xlu0 %v2317, 112
    %v2319 = vpop.permute.xlu0 %2318
    %v2321 = vsel %vm600, %v2290, 0
    %v2324 = vsel %vm618, %v2319, 0
    %2326 = vmatpush.bf16.msra.mxu0 0
    %2327 = vmatpush.bf16.msra.mxu0 0
    %2328 = vmatpush.bf16.msra.mxu0 0
    %2329 = vmatpush.bf16.msra.mxu0 0
    %2330 = vmatpush.bf16.msra.mxu0 0
    %2331 = vmatpush.bf16.msra.mxu0 0
    %2332 = vmatpush.bf16.msra.mxu0 0
    %2333 = vmatpush.bf16.msra.mxu0 %v2324
    %2334 = vmatmul.bf16.gmra.mxu0 %v2321
    %v2335 = vpop.f32.mrf.mxu0
    %v2336 = vadd.f32 0.0, %v2335
    %v2337 = vpop.f32.mrf.mxu0
    %2338 = vdwg.mxu0
    %v2339 = vsel %vm600, %v2286, 0.0
    %2340 = vadd.xlane.f32.xlu0 %v2339
    %v2341 = vpop.xlane.xlu0 %2340
    %v2342 = vsel %vm600, %v2288, 0.0
    %2343 = vadd.xlane.f32.xlu0 %v2342
    %v2344 = vpop.xlane.xlu0 %2343
    %v2345 = vrcp.pop %v2341
    %v2346 = vrcp.pop %v2344
    %v2347 = vmul.f32 %v2312, %v2345
    %v2348 = vmul.f32 %v2336, %v2346
    %2349 = vrot.lane.b32.xlu0 %v2221, 96
    %v2350 = vpop.permute.xlu0 %2349
    %2351 = vrot.lane.b32.xlu0 %v2226, 96
    %v2352 = vpop.permute.xlu0 %2351
    %v2354 = vsel %vm362, %v2350, 0
    %v2357 = vsel %vm362, %v2352, 0
    %2359 = vmatpush.bf16.xpose.msra.mxu0 0
    %2360 = vmatpush.bf16.xpose.msra.mxu0 0
    %2361 = vmatpush.bf16.xpose.msra.mxu0 0
    %2362 = vmatpush.bf16.xpose.msra.mxu0 0
    %2363 = vmatpush.bf16.xpose.msra.mxu0 0
    %2364 = vmatpush.bf16.xpose.msra.mxu0 0
    %2365 = vmatpush.bf16.xpose.msra.mxu0 0
    %2366 = vmatpush.bf16.xpose.msra.mxu0 %v2357
    %2367 = vmatmul.bf16.gmra.mxu0 %v2354
    %v2368 = vpop.f32.mrf.mxu0
    %v2369 = vadd.f32 0.0, %v2368
    %v2370 = vpop.f32.mrf.mxu0
    %2371 = vdwg.mxu0
    %2372 = vrot.lane.b32.xlu0 %v2250, 96
    %v2373 = vpop.permute.xlu0 %2372
    %2374 = vrot.lane.b32.xlu0 %v2255, 96
    %v2375 = vpop.permute.xlu0 %2374
    %v2377 = vsel %vm362, %v2373, 0
    %v2380 = vsel %vm362, %v2375, 0
    %2382 = vmatpush.bf16.xpose.msra.mxu0 0
    %2383 = vmatpush.bf16.xpose.msra.mxu0 0
    %2384 = vmatpush.bf16.xpose.msra.mxu0 0
    %2385 = vmatpush.bf16.xpose.msra.mxu0 0
    %2386 = vmatpush.bf16.xpose.msra.mxu0 0
    %2387 = vmatpush.bf16.xpose.msra.mxu0 0
    %2388 = vmatpush.bf16.xpose.msra.mxu0 0
    %2389 = vmatpush.bf16.xpose.msra.mxu0 %v2380
    %2390 = vmatmul.bf16.gmra.mxu0 %v2377
    %v2391 = vpop.f32.mrf.mxu0
    %v2392 = vadd.f32 0.0, %v2391
    %v2393 = vpop.f32.mrf.mxu0
    %2394 = vdwg.mxu0
    %v2395 = vsel %vm600, %v2369, -inf
    %2396 = vmax.xlane.f32.xlu0 %v2395
    %v2397 = vpop.xlane.xlu0 %2396
    %v2398 = vsel %vm600, %v2392, -inf
    %2399 = vmax.xlane.f32.xlu0 %v2398
    %v2400 = vpop.xlane.xlu0 %2399
    %v2401 = vsub.f32 %v2369, %v2397
    %v2402 = vsub.f32 %v2392, %v2400
    %v2403 = vmul.f32 %v2401, 1.442695
    %v2404 = vpow.pop %v2403
    %v2405 = vmul.f32 %v2402, 1.442695
    %v2406 = vpow.pop %v2405
    %v2407 = vpack.c.bf16 %v2404, %v2404
    %v2408 = vpack.c.bf16 %v2406, %v2406
    %2409 = vrot.lane.b32.xlu0 %v2293, 96
    %v2410 = vpop.permute.xlu0 %2409
    %v2412 = vsel %vm600, %v2407, 0
    %v2415 = vsel %vm618, %v2410, 0
    %2417 = vmatpush.bf16.msra.mxu0 0
    %2418 = vmatpush.bf16.msra.mxu0 0
    %2419 = vmatpush.bf16.msra.mxu0 0
    %2420 = vmatpush.bf16.msra.mxu0 0
    %2421 = vmatpush.bf16.msra.mxu0 0
    %2422 = vmatpush.bf16.msra.mxu0 0
    %2423 = vmatpush.bf16.msra.mxu0 0
    %2424 = vmatpush.bf16.msra.mxu0 %v2415
    %2425 = vmatmul.bf16.gmra.mxu0 %v2412
    %v2426 = vpop.f32.mrf.mxu0
    %v2427 = vadd.f32 0.0, %v2426
    %v2428 = vpop.f32.mrf.mxu0
    %2429 = vdwg.mxu0
    %2430 = vrot.lane.b32.xlu0 %v2317, 96
    %v2431 = vpop.permute.xlu0 %2430
    %v2433 = vsel %vm600, %v2408, 0
    %v2436 = vsel %vm618, %v2431, 0
    %2438 = vmatpush.bf16.msra.mxu0 0
    %2439 = vmatpush.bf16.msra.mxu0 0
    %2440 = vmatpush.bf16.msra.mxu0 0
    %2441 = vmatpush.bf16.msra.mxu0 0
    %2442 = vmatpush.bf16.msra.mxu0 0
    %2443 = vmatpush.bf16.msra.mxu0 0
    %2444 = vmatpush.bf16.msra.mxu0 0
    %2445 = vmatpush.bf16.msra.mxu0 %v2436
    %2446 = vmatmul.bf16.gmra.mxu0 %v2433
    %v2447 = vpop.f32.mrf.mxu0
    %v2448 = vadd.f32 0.0, %v2447
    %v2449 = vpop.f32.mrf.mxu0
    %2450 = vdwg.mxu0
    %v2451 = vsel %vm600, %v2404, 0.0
    %2452 = vadd.xlane.f32.xlu0 %v2451
    %v2453 = vpop.xlane.xlu0 %2452
    %v2454 = vsel %vm600, %v2406, 0.0
    %2455 = vadd.xlane.f32.xlu0 %v2454
    %v2456 = vpop.xlane.xlu0 %2455
    %v2457 = vrcp.pop %v2453
    %v2458 = vrcp.pop %v2456
    %v2459 = vmul.f32 %v2427, %v2457
    %v2460 = vmul.f32 %v2448, %v2458
    %2461 = vrot.lane.b32.xlu0 %v2221, 80
    %v2462 = vpop.permute.xlu0 %2461
    %2463 = vrot.lane.b32.xlu0 %v2226, 80
    %v2464 = vpop.permute.xlu0 %2463
    %v2466 = vsel %vm362, %v2462, 0
    %v2469 = vsel %vm362, %v2464, 0
    %2471 = vmatpush.bf16.xpose.msra.mxu0 0
    %2472 = vmatpush.bf16.xpose.msra.mxu0 0
    %2473 = vmatpush.bf16.xpose.msra.mxu0 0
    %2474 = vmatpush.bf16.xpose.msra.mxu0 0
    %2475 = vmatpush.bf16.xpose.msra.mxu0 0
    %2476 = vmatpush.bf16.xpose.msra.mxu0 0
    %2477 = vmatpush.bf16.xpose.msra.mxu0 0
    %2478 = vmatpush.bf16.xpose.msra.mxu0 %v2469
    %2479 = vmatmul.bf16.gmra.mxu0 %v2466
    %v2480 = vpop.f32.mrf.mxu0
    %v2481 = vadd.f32 0.0, %v2480
    %v2482 = vpop.f32.mrf.mxu0
    %2483 = vdwg.mxu0
    %2484 = vrot.lane.b32.xlu0 %v2250, 80
    %v2485 = vpop.permute.xlu0 %2484
    %2486 = vrot.lane.b32.xlu0 %v2255, 80
    %v2487 = vpop.permute.xlu0 %2486
    %v2489 = vsel %vm362, %v2485, 0
    %v2492 = vsel %vm362, %v2487, 0
    %2494 = vmatpush.bf16.xpose.msra.mxu0 0
    %2495 = vmatpush.bf16.xpose.msra.mxu0 0
    %2496 = vmatpush.bf16.xpose.msra.mxu0 0
    %2497 = vmatpush.bf16.xpose.msra.mxu0 0
    %2498 = vmatpush.bf16.xpose.msra.mxu0 0
    %2499 = vmatpush.bf16.xpose.msra.mxu0 0
    %2500 = vmatpush.bf16.xpose.msra.mxu0 0
    %2501 = vmatpush.bf16.xpose.msra.mxu0 %v2492
    %2502 = vmatmul.bf16.gmra.mxu0 %v2489
    %v2503 = vpop.f32.mrf.mxu0
    %v2504 = vadd.f32 0.0, %v2503
    %v2505 = vpop.f32.mrf.mxu0
    %2506 = vdwg.mxu0
    %v2507 = vsel %vm600, %v2481, -inf
    %2508 = vmax.xlane.f32.xlu0 %v2507
    %v2509 = vpop.xlane.xlu0 %2508
    %v2510 = vsel %vm600, %v2504, -inf
    %2511 = vmax.xlane.f32.xlu0 %v2510
    %v2512 = vpop.xlane.xlu0 %2511
    %v2513 = vsub.f32 %v2481, %v2509
    %v2514 = vsub.f32 %v2504, %v2512
    %v2515 = vmul.f32 %v2513, 1.442695
    %v2516 = vpow.pop %v2515
    %v2517 = vmul.f32 %v2514, 1.442695
    %v2518 = vpow.pop %v2517
    %v2519 = vpack.c.bf16 %v2516, %v2516
    %v2520 = vpack.c.bf16 %v2518, %v2518
    %2521 = vrot.lane.b32.xlu0 %v2293, 80
    %v2522 = vpop.permute.xlu0 %2521
    %v2524 = vsel %vm600, %v2519, 0
    %v2527 = vsel %vm618, %v2522, 0
    %2529 = vmatpush.bf16.msra.mxu0 0
    %2530 = vmatpush.bf16.msra.mxu0 0
    %2531 = vmatpush.bf16.msra.mxu0 0
    %2532 = vmatpush.bf16.msra.mxu0 0
    %2533 = vmatpush.bf16.msra.mxu0 0
    %2534 = vmatpush.bf16.msra.mxu0 0
    %2535 = vmatpush.bf16.msra.mxu0 0
    %2536 = vmatpush.bf16.msra.mxu0 %v2527
    %2537 = vmatmul.bf16.gmra.mxu0 %v2524
    %v2538 = vpop.f32.mrf.mxu0
    %v2539 = vadd.f32 0.0, %v2538
    %v2540 = vpop.f32.mrf.mxu0
    %2541 = vdwg.mxu0
    %2542 = vrot.lane.b32.xlu0 %v2317, 80
    %v2543 = vpop.permute.xlu0 %2542
    %v2545 = vsel %vm600, %v2520, 0
    %v2548 = vsel %vm618, %v2543, 0
    %2550 = vmatpush.bf16.msra.mxu0 0
    %2551 = vmatpush.bf16.msra.mxu0 0
    %2552 = vmatpush.bf16.msra.mxu0 0
    %2553 = vmatpush.bf16.msra.mxu0 0
    %2554 = vmatpush.bf16.msra.mxu0 0
    %2555 = vmatpush.bf16.msra.mxu0 0
    %2556 = vmatpush.bf16.msra.mxu0 0
    %2557 = vmatpush.bf16.msra.mxu0 %v2548
    %2558 = vmatmul.bf16.gmra.mxu0 %v2545
    %v2559 = vpop.f32.mrf.mxu0
    %v2560 = vadd.f32 0.0, %v2559
    %v2561 = vpop.f32.mrf.mxu0
    %2562 = vdwg.mxu0
    %v2563 = vsel %vm600, %v2516, 0.0
    %2564 = vadd.xlane.f32.xlu0 %v2563
    %v2565 = vpop.xlane.xlu0 %2564
    %v2566 = vsel %vm600, %v2518, 0.0
    %2567 = vadd.xlane.f32.xlu0 %v2566
    %v2568 = vpop.xlane.xlu0 %2567
    %v2569 = vrcp.pop %v2565
    %v2570 = vrcp.pop %v2568
    %v2571 = vmul.f32 %v2539, %v2569
    %v2572 = vmul.f32 %v2560, %v2570
    %2573 = vrot.lane.b32.xlu0 %v2221, 64
    %v2574 = vpop.permute.xlu0 %2573
    %2575 = vrot.lane.b32.xlu0 %v2226, 64
    %v2576 = vpop.permute.xlu0 %2575
    %v2578 = vsel %vm362, %v2574, 0
    %v2581 = vsel %vm362, %v2576, 0
    %2583 = vmatpush.bf16.xpose.msra.mxu0 0
    %2584 = vmatpush.bf16.xpose.msra.mxu0 0
    %2585 = vmatpush.bf16.xpose.msra.mxu0 0
    %2586 = vmatpush.bf16.xpose.msra.mxu0 0
    %2587 = vmatpush.bf16.xpose.msra.mxu0 0
    %2588 = vmatpush.bf16.xpose.msra.mxu0 0
    %2589 = vmatpush.bf16.xpose.msra.mxu0 0
    %2590 = vmatpush.bf16.xpose.msra.mxu0 %v2581
    %2591 = vmatmul.bf16.gmra.mxu0 %v2578
    %v2592 = vpop.f32.mrf.mxu0
    %v2593 = vadd.f32 0.0, %v2592
    %v2594 = vpop.f32.mrf.mxu0
    %2595 = vdwg.mxu0
    %2596 = vrot.lane.b32.xlu0 %v2250, 64
    %v2597 = vpop.permute.xlu0 %2596
    %2598 = vrot.lane.b32.xlu0 %v2255, 64
    %v2599 = vpop.permute.xlu0 %2598
    %v2601 = vsel %vm362, %v2597, 0
    %v2604 = vsel %vm362, %v2599, 0
    %2606 = vmatpush.bf16.xpose.msra.mxu0 0
    %2607 = vmatpush.bf16.xpose.msra.mxu0 0
    %2608 = vmatpush.bf16.xpose.msra.mxu0 0
    %2609 = vmatpush.bf16.xpose.msra.mxu0 0
    %2610 = vmatpush.bf16.xpose.msra.mxu0 0
    %2611 = vmatpush.bf16.xpose.msra.mxu0 0
    %2612 = vmatpush.bf16.xpose.msra.mxu0 0
    %2613 = vmatpush.bf16.xpose.msra.mxu0 %v2604
    %2614 = vmatmul.bf16.gmra.mxu0 %v2601
    %v2615 = vpop.f32.mrf.mxu0
    %v2616 = vadd.f32 0.0, %v2615
    %v2617 = vpop.f32.mrf.mxu0
    %2618 = vdwg.mxu0
    %v2619 = vsel %vm600, %v2593, -inf
    %2620 = vmax.xlane.f32.xlu0 %v2619
    %v2621 = vpop.xlane.xlu0 %2620
    %v2622 = vsel %vm600, %v2616, -inf
    %2623 = vmax.xlane.f32.xlu0 %v2622
    %v2624 = vpop.xlane.xlu0 %2623
    %v2625 = vsub.f32 %v2593, %v2621
    %v2626 = vsub.f32 %v2616, %v2624
    %v2627 = vmul.f32 %v2625, 1.442695
    %v2628 = vpow.pop %v2627
    %v2629 = vmul.f32 %v2626, 1.442695
    %v2630 = vpow.pop %v2629
    %v2631 = vpack.c.bf16 %v2628, %v2628
    %v2632 = vpack.c.bf16 %v2630, %v2630
    %2633 = vrot.lane.b32.xlu0 %v2293, 64
    %v2634 = vpop.permute.xlu0 %2633
    %v2636 = vsel %vm600, %v2631, 0
    %v2639 = vsel %vm618, %v2634, 0
    %2641 = vmatpush.bf16.msra.mxu0 0
    %2642 = vmatpush.bf16.msra.mxu0 0
    %2643 = vmatpush.bf16.msra.mxu0 0
    %2644 = vmatpush.bf16.msra.mxu0 0
    %2645 = vmatpush.bf16.msra.mxu0 0
    %2646 = vmatpush.bf16.msra.mxu0 0
    %2647 = vmatpush.bf16.msra.mxu0 0
    %2648 = vmatpush.bf16.msra.mxu0 %v2639
    %2649 = vmatmul.bf16.gmra.mxu0 %v2636
    %v2650 = vpop.f32.mrf.mxu0
    %v2651 = vadd.f32 0.0, %v2650
    %v2652 = vpop.f32.mrf.mxu0
    %2653 = vdwg.mxu0
    %2654 = vrot.lane.b32.xlu0 %v2317, 64
    %v2655 = vpop.permute.xlu0 %2654
    %v2657 = vsel %vm600, %v2632, 0
    %v2660 = vsel %vm618, %v2655, 0
    %2662 = vmatpush.bf16.msra.mxu0 0
    %2663 = vmatpush.bf16.msra.mxu0 0
    %2664 = vmatpush.bf16.msra.mxu0 0
    %2665 = vmatpush.bf16.msra.mxu0 0
    %2666 = vmatpush.bf16.msra.mxu0 0
    %2667 = vmatpush.bf16.msra.mxu0 0
    %2668 = vmatpush.bf16.msra.mxu0 0
    %2669 = vmatpush.bf16.msra.mxu0 %v2660
    %2670 = vmatmul.bf16.gmra.mxu0 %v2657
    %v2671 = vpop.f32.mrf.mxu0
    %v2672 = vadd.f32 0.0, %v2671
    %v2673 = vpop.f32.mrf.mxu0
    %2674 = vdwg.mxu0
    %v2675 = vsel %vm600, %v2628, 0.0
    %2676 = vadd.xlane.f32.xlu0 %v2675
    %v2677 = vpop.xlane.xlu0 %2676
    %v2678 = vsel %vm600, %v2630, 0.0
    %2679 = vadd.xlane.f32.xlu0 %v2678
    %v2680 = vpop.xlane.xlu0 %2679
    %v2681 = vrcp.pop %v2677
    %v2682 = vrcp.pop %v2680
    %v2683 = vmul.f32 %v2651, %v2681
    %v2684 = vmul.f32 %v2672, %v2682
    %2685 = vrot.lane.b32.xlu0 %v2221, 48
    %v2686 = vpop.permute.xlu0 %2685
    %2687 = vrot.lane.b32.xlu0 %v2226, 48
    %v2688 = vpop.permute.xlu0 %2687
    %v2690 = vsel %vm362, %v2686, 0
    %v2693 = vsel %vm362, %v2688, 0
    %2695 = vmatpush.bf16.xpose.msra.mxu0 0
    %2696 = vmatpush.bf16.xpose.msra.mxu0 0
    %2697 = vmatpush.bf16.xpose.msra.mxu0 0
    %2698 = vmatpush.bf16.xpose.msra.mxu0 0
    %2699 = vmatpush.bf16.xpose.msra.mxu0 0
    %2700 = vmatpush.bf16.xpose.msra.mxu0 0
    %2701 = vmatpush.bf16.xpose.msra.mxu0 0
    %2702 = vmatpush.bf16.xpose.msra.mxu0 %v2693
    %2703 = vmatmul.bf16.gmra.mxu0 %v2690
    %v2704 = vpop.f32.mrf.mxu0
    %v2705 = vadd.f32 0.0, %v2704
    %v2706 = vpop.f32.mrf.mxu0
    %2707 = vdwg.mxu0
    %2708 = vrot.lane.b32.xlu0 %v2250, 48
    %v2709 = vpop.permute.xlu0 %2708
    %2710 = vrot.lane.b32.xlu0 %v2255, 48
    %v2711 = vpop.permute.xlu0 %2710
    %v2713 = vsel %vm362, %v2709, 0
    %v2716 = vsel %vm362, %v2711, 0
    %2718 = vmatpush.bf16.xpose.msra.mxu0 0
    %2719 = vmatpush.bf16.xpose.msra.mxu0 0
    %2720 = vmatpush.bf16.xpose.msra.mxu0 0
    %2721 = vmatpush.bf16.xpose.msra.mxu0 0
    %2722 = vmatpush.bf16.xpose.msra.mxu0 0
    %2723 = vmatpush.bf16.xpose.msra.mxu0 0
    %2724 = vmatpush.bf16.xpose.msra.mxu0 0
    %2725 = vmatpush.bf16.xpose.msra.mxu0 %v2716
    %2726 = vmatmul.bf16.gmra.mxu0 %v2713
    %v2727 = vpop.f32.mrf.mxu0
    %v2728 = vadd.f32 0.0, %v2727
    %v2729 = vpop.f32.mrf.mxu0
    %2730 = vdwg.mxu0
    %v2731 = vsel %vm600, %v2705, -inf
    %2732 = vmax.xlane.f32.xlu0 %v2731
    %v2733 = vpop.xlane.xlu0 %2732
    %v2734 = vsel %vm600, %v2728, -inf
    %2735 = vmax.xlane.f32.xlu0 %v2734
    %v2736 = vpop.xlane.xlu0 %2735
    %v2737 = vsub.f32 %v2705, %v2733
    %v2738 = vsub.f32 %v2728, %v2736
    %v2739 = vmul.f32 %v2737, 1.442695
    %v2740 = vpow.pop %v2739
    %v2741 = vmul.f32 %v2738, 1.442695
    %v2742 = vpow.pop %v2741
    %v2743 = vpack.c.bf16 %v2740, %v2740
    %v2744 = vpack.c.bf16 %v2742, %v2742
    %2745 = vrot.lane.b32.xlu0 %v2293, 48
    %v2746 = vpop.permute.xlu0 %2745
    %v2748 = vsel %vm600, %v2743, 0
    %v2751 = vsel %vm618, %v2746, 0
    %2753 = vmatpush.bf16.msra.mxu0 0
    %2754 = vmatpush.bf16.msra.mxu0 0
    %2755 = vmatpush.bf16.msra.mxu0 0
    %2756 = vmatpush.bf16.msra.mxu0 0
    %2757 = vmatpush.bf16.msra.mxu0 0
    %2758 = vmatpush.bf16.msra.mxu0 0
    %2759 = vmatpush.bf16.msra.mxu0 0
    %2760 = vmatpush.bf16.msra.mxu0 %v2751
    %2761 = vmatmul.bf16.gmra.mxu0 %v2748
    %v2762 = vpop.f32.mrf.mxu0
    %v2763 = vadd.f32 0.0, %v2762
    %v2764 = vpop.f32.mrf.mxu0
    %2765 = vdwg.mxu0
    %2766 = vrot.lane.b32.xlu0 %v2317, 48
    %v2767 = vpop.permute.xlu0 %2766
    %v2769 = vsel %vm600, %v2744, 0
    %v2772 = vsel %vm618, %v2767, 0
    %2774 = vmatpush.bf16.msra.mxu0 0
    %2775 = vmatpush.bf16.msra.mxu0 0
    %2776 = vmatpush.bf16.msra.mxu0 0
    %2777 = vmatpush.bf16.msra.mxu0 0
    %2778 = vmatpush.bf16.msra.mxu0 0
    %2779 = vmatpush.bf16.msra.mxu0 0
    %2780 = vmatpush.bf16.msra.mxu0 0
    %2781 = vmatpush.bf16.msra.mxu0 %v2772
    %2782 = vmatmul.bf16.gmra.mxu0 %v2769
    %v2783 = vpop.f32.mrf.mxu0
    %v2784 = vadd.f32 0.0, %v2783
    %v2785 = vpop.f32.mrf.mxu0
    %2786 = vdwg.mxu0
    %v2787 = vsel %vm600, %v2740, 0.0
    %2788 = vadd.xlane.f32.xlu0 %v2787
    %v2789 = vpop.xlane.xlu0 %2788
    %v2790 = vsel %vm600, %v2742, 0.0
    %2791 = vadd.xlane.f32.xlu0 %v2790
    %v2792 = vpop.xlane.xlu0 %2791
    %v2793 = vrcp.pop %v2789
    %v2794 = vrcp.pop %v2792
    %v2795 = vmul.f32 %v2763, %v2793
    %v2796 = vmul.f32 %v2784, %v2794
    %2797 = vrot.lane.b32.xlu0 %v2221, 32
    %v2798 = vpop.permute.xlu0 %2797
    %2799 = vrot.lane.b32.xlu0 %v2226, 32
    %v2800 = vpop.permute.xlu0 %2799
    %v2802 = vsel %vm362, %v2798, 0
    %v2805 = vsel %vm362, %v2800, 0
    %2807 = vmatpush.bf16.xpose.msra.mxu0 0
    %2808 = vmatpush.bf16.xpose.msra.mxu0 0
    %2809 = vmatpush.bf16.xpose.msra.mxu0 0
    %2810 = vmatpush.bf16.xpose.msra.mxu0 0
    %2811 = vmatpush.bf16.xpose.msra.mxu0 0
    %2812 = vmatpush.bf16.xpose.msra.mxu0 0
    %2813 = vmatpush.bf16.xpose.msra.mxu0 0
    %2814 = vmatpush.bf16.xpose.msra.mxu0 %v2805
    %2815 = vmatmul.bf16.gmra.mxu0 %v2802
    %v2816 = vpop.f32.mrf.mxu0
    %v2817 = vadd.f32 0.0, %v2816
    %v2818 = vpop.f32.mrf.mxu0
    %2819 = vdwg.mxu0
    %2820 = vrot.lane.b32.xlu0 %v2250, 32
    %v2821 = vpop.permute.xlu0 %2820
    %2822 = vrot.lane.b32.xlu0 %v2255, 32
    %v2823 = vpop.permute.xlu0 %2822
    %v2825 = vsel %vm362, %v2821, 0
    %v2828 = vsel %vm362, %v2823, 0
    %2830 = vmatpush.bf16.xpose.msra.mxu0 0
    %2831 = vmatpush.bf16.xpose.msra.mxu0 0
    %2832 = vmatpush.bf16.xpose.msra.mxu0 0
    %2833 = vmatpush.bf16.xpose.msra.mxu0 0
    %2834 = vmatpush.bf16.xpose.msra.mxu0 0
    %2835 = vmatpush.bf16.xpose.msra.mxu0 0
    %2836 = vmatpush.bf16.xpose.msra.mxu0 0
    %2837 = vmatpush.bf16.xpose.msra.mxu0 %v2828
    %2838 = vmatmul.bf16.gmra.mxu0 %v2825
    %v2839 = vpop.f32.mrf.mxu0
    %v2840 = vadd.f32 0.0, %v2839
    %v2841 = vpop.f32.mrf.mxu0
    %2842 = vdwg.mxu0
    %v2843 = vsel %vm600, %v2817, -inf
    %2844 = vmax.xlane.f32.xlu0 %v2843
    %v2845 = vpop.xlane.xlu0 %2844
    %v2846 = vsel %vm600, %v2840, -inf
    %2847 = vmax.xlane.f32.xlu0 %v2846
    %v2848 = vpop.xlane.xlu0 %2847
    %v2849 = vsub.f32 %v2817, %v2845
    %v2850 = vsub.f32 %v2840, %v2848
    %v2851 = vmul.f32 %v2849, 1.442695
    %v2852 = vpow.pop %v2851
    %v2853 = vmul.f32 %v2850, 1.442695
    %v2854 = vpow.pop %v2853
    %v2855 = vpack.c.bf16 %v2852, %v2852
    %v2856 = vpack.c.bf16 %v2854, %v2854
    %2857 = vrot.lane.b32.xlu0 %v2293, 32
    %v2858 = vpop.permute.xlu0 %2857
    %v2860 = vsel %vm600, %v2855, 0
    %v2863 = vsel %vm618, %v2858, 0
    %2865 = vmatpush.bf16.msra.mxu0 0
    %2866 = vmatpush.bf16.msra.mxu0 0
    %2867 = vmatpush.bf16.msra.mxu0 0
    %2868 = vmatpush.bf16.msra.mxu0 0
    %2869 = vmatpush.bf16.msra.mxu0 0
    %2870 = vmatpush.bf16.msra.mxu0 0
    %2871 = vmatpush.bf16.msra.mxu0 0
    %2872 = vmatpush.bf16.msra.mxu0 %v2863
    %2873 = vmatmul.bf16.gmra.mxu0 %v2860
    %v2874 = vpop.f32.mrf.mxu0
    %v2875 = vadd.f32 0.0, %v2874
    %v2876 = vpop.f32.mrf.mxu0
    %2877 = vdwg.mxu0
    %2878 = vrot.lane.b32.xlu0 %v2317, 32
    %v2879 = vpop.permute.xlu0 %2878
    %v2881 = vsel %vm600, %v2856, 0
    %v2884 = vsel %vm618, %v2879, 0
    %2886 = vmatpush.bf16.msra.mxu0 0
    %2887 = vmatpush.bf16.msra.mxu0 0
    %2888 = vmatpush.bf16.msra.mxu0 0
    %2889 = vmatpush.bf16.msra.mxu0 0
    %2890 = vmatpush.bf16.msra.mxu0 0
    %2891 = vmatpush.bf16.msra.mxu0 0
    %2892 = vmatpush.bf16.msra.mxu0 0
    %2893 = vmatpush.bf16.msra.mxu0 %v2884
    %2894 = vmatmul.bf16.gmra.mxu0 %v2881
    %v2895 = vpop.f32.mrf.mxu0
    %v2896 = vadd.f32 0.0, %v2895
    %v2897 = vpop.f32.mrf.mxu0
    %2898 = vdwg.mxu0
    %v2899 = vsel %vm600, %v2852, 0.0
    %2900 = vadd.xlane.f32.xlu0 %v2899
    %v2901 = vpop.xlane.xlu0 %2900
    %v2902 = vsel %vm600, %v2854, 0.0
    %2903 = vadd.xlane.f32.xlu0 %v2902
    %v2904 = vpop.xlane.xlu0 %2903
    %v2905 = vrcp.pop %v2901
    %v2906 = vrcp.pop %v2904
    %v2907 = vmul.f32 %v2875, %v2905
    %v2908 = vmul.f32 %v2896, %v2906
    %2909 = vrot.lane.b32.xlu0 %v2221, 16
    %v2910 = vpop.permute.xlu0 %2909
    %2911 = vrot.lane.b32.xlu0 %v2226, 16
    %v2912 = vpop.permute.xlu0 %2911
    %v2914 = vsel %vm362, %v2910, 0
    %v2917 = vsel %vm362, %v2912, 0
    %2919 = vmatpush.bf16.xpose.msra.mxu0 0
    %2920 = vmatpush.bf16.xpose.msra.mxu0 0
    %2921 = vmatpush.bf16.xpose.msra.mxu0 0
    %2922 = vmatpush.bf16.xpose.msra.mxu0 0
    %2923 = vmatpush.bf16.xpose.msra.mxu0 0
    %2924 = vmatpush.bf16.xpose.msra.mxu0 0
    %2925 = vmatpush.bf16.xpose.msra.mxu0 0
    %2926 = vmatpush.bf16.xpose.msra.mxu0 %v2917
    %2927 = vmatmul.bf16.gmra.mxu0 %v2914
    %v2928 = vpop.f32.mrf.mxu0
    %v2929 = vadd.f32 0.0, %v2928
    %v2930 = vpop.f32.mrf.mxu0
    %2931 = vdwg.mxu0
    %2932 = vrot.lane.b32.xlu0 %v2250, 16
    %v2933 = vpop.permute.xlu0 %2932
    %2934 = vrot.lane.b32.xlu0 %v2255, 16
    %v2935 = vpop.permute.xlu0 %2934
    %v2937 = vsel %vm362, %v2933, 0
    %v2940 = vsel %vm362, %v2935, 0
    %2942 = vmatpush.bf16.xpose.msra.mxu0 0
    %2943 = vmatpush.bf16.xpose.msra.mxu0 0
    %2944 = vmatpush.bf16.xpose.msra.mxu0 0
    %2945 = vmatpush.bf16.xpose.msra.mxu0 0
    %2946 = vmatpush.bf16.xpose.msra.mxu0 0
    %2947 = vmatpush.bf16.xpose.msra.mxu0 0
    %2948 = vmatpush.bf16.xpose.msra.mxu0 0
    %2949 = vmatpush.bf16.xpose.msra.mxu0 %v2940
    %2950 = vmatmul.bf16.gmra.mxu0 %v2937
    %v2951 = vpop.f32.mrf.mxu0
    %v2952 = vadd.f32 0.0, %v2951
    %v2953 = vpop.f32.mrf.mxu0
    %2954 = vdwg.mxu0
    %v2955 = vsel %vm600, %v2929, -inf
    %2956 = vmax.xlane.f32.xlu0 %v2955
    %v2957 = vpop.xlane.xlu0 %2956
    %v2958 = vsel %vm600, %v2952, -inf
    %2959 = vmax.xlane.f32.xlu0 %v2958
    %v2960 = vpop.xlane.xlu0 %2959
    %v2961 = vsub.f32 %v2929, %v2957
    %v2962 = vsub.f32 %v2952, %v2960
    %v2963 = vmul.f32 %v2961, 1.442695
    %v2964 = vpow.pop %v2963
    %v2965 = vmul.f32 %v2962, 1.442695
    %v2966 = vpow.pop %v2965
    %v2967 = vpack.c.bf16 %v2964, %v2964
    %v2968 = vpack.c.bf16 %v2966, %v2966
    %2969 = vrot.lane.b32.xlu0 %v2293, 16
    %v2970 = vpop.permute.xlu0 %2969
    %v2972 = vsel %vm600, %v2967, 0
    %v2975 = vsel %vm618, %v2970, 0
    %2977 = vmatpush.bf16.msra.mxu0 0
    %2978 = vmatpush.bf16.msra.mxu0 0
    %2979 = vmatpush.bf16.msra.mxu0 0
    %2980 = vmatpush.bf16.msra.mxu0 0
    %2981 = vmatpush.bf16.msra.mxu0 0
    %2982 = vmatpush.bf16.msra.mxu0 0
    %2983 = vmatpush.bf16.msra.mxu0 0
    %2984 = vmatpush.bf16.msra.mxu0 %v2975
    %2985 = vmatmul.bf16.gmra.mxu0 %v2972
    %v2986 = vpop.f32.mrf.mxu0
    %v2987 = vadd.f32 0.0, %v2986
    %v2988 = vpop.f32.mrf.mxu0
    %2989 = vdwg.mxu0
    %2990 = vrot.lane.b32.xlu0 %v2317, 16
    %v2991 = vpop.permute.xlu0 %2990
    %v2993 = vsel %vm600, %v2968, 0
    %v2996 = vsel %vm618, %v2991, 0
    %2998 = vmatpush.bf16.msra.mxu0 0
    %2999 = vmatpush.bf16.msra.mxu0 0
    %3000 = vmatpush.bf16.msra.mxu0 0
    %3001 = vmatpush.bf16.msra.mxu0 0
    %3002 = vmatpush.bf16.msra.mxu0 0
    %3003 = vmatpush.bf16.msra.mxu0 0
    %3004 = vmatpush.bf16.msra.mxu0 0
    %3005 = vmatpush.bf16.msra.mxu0 %v2996
    %3006 = vmatmul.bf16.gmra.mxu0 %v2993
    %v3007 = vpop.f32.mrf.mxu0
    %v3008 = vadd.f32 0.0, %v3007
    %v3009 = vpop.f32.mrf.mxu0
    %3010 = vdwg.mxu0
    %v3011 = vsel %vm600, %v2964, 0.0
    %3012 = vadd.xlane.f32.xlu0 %v3011
    %v3013 = vpop.xlane.xlu0 %3012
    %v3014 = vsel %vm600, %v2966, 0.0
    %3015 = vadd.xlane.f32.xlu0 %v3014
    %v3016 = vpop.xlane.xlu0 %3015
    %v3017 = vrcp.pop %v3013
    %v3018 = vrcp.pop %v3016
    %v3019 = vmul.f32 %v2987, %v3017
    %v3020 = vmul.f32 %v3008, %v3018
    %3023 = vrot.lane.b32.xlu0 %v2347, 16
    %v3024 = vpop.permute.xlu0 %3023
    %3025 = vrot.lane.b32.xlu0 %v2348, 16
    %v3026 = vpop.permute.xlu0 %3025
    %3031 = vrot.lane.b32.xlu0 %v2459, 32
    %v3032 = vpop.permute.xlu0 %3031
    %3033 = vrot.lane.b32.xlu0 %v2460, 32
    %v3034 = vpop.permute.xlu0 %3033
    %3039 = vrot.lane.b32.xlu0 %v2571, 48
    %v3040 = vpop.permute.xlu0 %3039
    %3041 = vrot.lane.b32.xlu0 %v2572, 48
    %v3042 = vpop.permute.xlu0 %3041
    %3047 = vrot.lane.b32.xlu0 %v2683, 64
    %v3048 = vpop.permute.xlu0 %3047
    %3049 = vrot.lane.b32.xlu0 %v2684, 64
    %v3050 = vpop.permute.xlu0 %3049
    %3055 = vrot.lane.b32.xlu0 %v2795, 80
    %v3056 = vpop.permute.xlu0 %3055
    %3057 = vrot.lane.b32.xlu0 %v2796, 80
    %v3058 = vpop.permute.xlu0 %3057
    %3063 = vrot.lane.b32.xlu0 %v2907, 96
    %v3064 = vpop.permute.xlu0 %3063
    %3065 = vrot.lane.b32.xlu0 %v2908, 96
    %v3066 = vpop.permute.xlu0 %3065
    %3071 = vrot.lane.b32.xlu0 %v3019, 112
    %v3072 = vpop.permute.xlu0 %3071
    %3073 = vrot.lane.b32.xlu0 %v3020, 112
    %v3074 = vpop.permute.xlu0 %3073
    %v3077 = vsel %vm362, %v2217, %v3024
    %v3078 = vsel %vm362, %v2218, %v3026
    %v3079 = vsel %vm1524, %v3077, %v3032
    %v3080 = vsel %vm1524, %v3078, %v3034
    %v3081 = vsel %vm1527, %v3079, %v3040
    %v3082 = vsel %vm1527, %v3080, %v3042
    %v3083 = vsel %vm1530, %v3081, %v3048
    %v3084 = vsel %vm1530, %v3082, %v3050
    %v3085 = vsel %vm1533, %v3083, %v3056
    %v3086 = vsel %vm1533, %v3084, %v3058
    %v3087 = vsel %vm1536, %v3085, %v3064
    %v3088 = vsel %vm1536, %v3086, %v3066
    %v3089 = vsel %vm1539, %v3087, %v3072
    %v3090 = vsel %vm1539, %v3088, %v3074
    %v3091 = vpack.c.bf16 %v3090, %v3089
    %v3092 = vunpack.c.h.b16 %v228
    %v3093 = vunpack.c.h.b16 %v231
    %v3094 = vunpack.c.h.b16 %v234
    %v3095 = vunpack.c.h.b16 %v237
    %v3096 = vunpack.c.h.b16 %v240
    %v3097 = vunpack.c.h.b16 %v243
    %v3098 = vunpack.c.h.b16 %v246
    %v3099 = vunpack.c.h.b16 %v249
    %v3100 = vunpack.c.h.b16 %v252
    %v3101 = vunpack.c.h.b16 %v255
    %v3102 = vunpack.c.h.b16 %v258
    %v3103 = vunpack.c.h.b16 %v261
    %v3104 = vunpack.c.h.b16 %v264
    %v3105 = vunpack.c.h.b16 %v267
    %v3106 = vunpack.c.h.b16 %v270
    %v3107 = vunpack.c.h.b16 %v273
    %v3108 = vpack.c.b16 %v3093, %v3092
    %v3109 = vpack.c.b16 %v3095, %v3094
    %v3110 = vpack.c.b16 %v3097, %v3096
    %v3111 = vpack.c.b16 %v3099, %v3098
    %v3112 = vpack.c.b16 %v3101, %v3100
    %v3113 = vpack.c.b16 %v3103, %v3102
    %v3114 = vpack.c.b16 %v3105, %v3104
    %v3115 = vpack.c.b16 %v3107, %v3106
    %3124 = vmatpush.bf16.msra.mxu0 %v3115
    %3125 = vmatpush.bf16.msra.mxu0 %v3114
    %3126 = vmatpush.bf16.msra.mxu0 %v3113
    %3127 = vmatpush.bf16.msra.mxu0 %v3112
    %3128 = vmatpush.bf16.msra.mxu0 %v3111
    %3129 = vmatpush.bf16.msra.mxu0 %v3110
    %3130 = vmatpush.bf16.msra.mxu0 %v3109
    %3131 = vmatpush.bf16.msra.mxu0 %v3108
    %3132 = vmatmul.bf16.gmra.mxu0 %v3091
    %v3133 = vpop.f32.mrf.mxu0
    %v3134 = vadd.f32 0.0, %v3133
    %v3135 = vpop.f32.mrf.mxu0
    %v3136 = vadd.f32 0.0, %v3135
    %3137 = vdwg.mxu0
    %v3138 = vadd.f32 %v1937, %v3134
    %v3139 = vadd.f32 %v1938, %v3136
    %v3140 = vperm.slane %v309, 1
    %v3141 = vadd.f32 %v3138, %v3140
    %v3142 = vadd.f32 %v3139, %v3140
    %3143 = vadd.xlane.f32.xlu0 %v3141
    %v3144 = vpop.xlane.xlu0 %3143
    %3145 = vadd.xlane.f32.xlu0 %v3142
    %v3146 = vpop.xlane.xlu0 %3145
    %v3147 = vmul.f32 %v3144, %v1604
    %v3148 = vmul.f32 %v3146, %v1604
    %v3149 = vsub.f32 %v3141, %v3147
    %v3150 = vsub.f32 %v3142, %v3148
    %v3151 = vmul.f32 %v3149, %v3149
    %v3152 = vmul.f32 %v3150, %v3150
    %3153 = vadd.xlane.f32.xlu0 %v3151
    %v3154 = vpop.xlane.xlu0 %3153
    %3155 = vadd.xlane.f32.xlu0 %v3152
    %v3156 = vpop.xlane.xlu0 %3155
    %v3157 = vmul.f32 %v3154, %v1604
    %v3158 = vmul.f32 %v3156, %v1604
    %v3159 = vadd.f32 %v3157, 1e-05
    %v3160 = vadd.f32 %v3158, 1e-05
    %v3161 = vrsqrt.pop %v3159
    %v3162 = vmul.f32 %v3161, %v3159
    %v3163 = vmul.f32 %v3162, %v3161
    %v3164 = vmul.f32 0.5, %v3163
    %v3165 = vsub.f32 1.5, %v3164
    %v3166 = vmul.f32 %v3161, %v3165
    %vm3167 = vweird.f32 %v3159
    %vm3168 = vweird.f32 %v3161
    %vm3169 = vmor %vm3167, %vm3168
    %v3170 = vsel %vm3169, %v3161, %v3166
    %v3171 = vrsqrt.pop %v3160
    %v3172 = vmul.f32 %v3171, %v3160
    %v3173 = vmul.f32 %v3172, %v3171
    %v3174 = vmul.f32 0.5, %v3173
    %v3175 = vsub.f32 1.5, %v3174
    %v3176 = vmul.f32 %v3171, %v3175
    %vm3177 = vweird.f32 %v3160
    %vm3178 = vweird.f32 %v3171
    %vm3179 = vmor %vm3177, %vm3178
    %v3180 = vsel %vm3179, %v3171, %v3176
    %v3181 = vmul.f32 %v3149, %v3170
    %v3182 = vmul.f32 %v3150, %v3180
    %v3183 = vperm.slane %v309, 4
    %v3184 = vmul.f32 %v3181, %v3183
    %v3185 = vmul.f32 %v3182, %v3183
    %v3186 = vperm.slane %v309, 5
    %v3187 = vadd.f32 %v3184, %v3186
    %v3188 = vadd.f32 %v3185, %v3186
    %v3189 = vpack.c.bf16 %v3188, %v3187
    %v3190 = vperm.slane %v309, 2
    %v3191 = vperm.slane %v310, 2
    %v3208 = vunpack.c.l.b16 %v229
    %v3209 = vunpack.c.h.b16 %v229
    %v3210 = vunpack.c.l.b16 %v232
    %v3211 = vunpack.c.h.b16 %v232
    %v3212 = vunpack.c.l.b16 %v235
    %v3213 = vunpack.c.h.b16 %v235
    %v3214 = vunpack.c.l.b16 %v238
    %v3215 = vunpack.c.h.b16 %v238
    %v3216 = vunpack.c.l.b16 %v241
    %v3217 = vunpack.c.h.b16 %v241
    %v3218 = vunpack.c.l.b16 %v244
    %v3219 = vunpack.c.h.b16 %v244
    %v3220 = vunpack.c.l.b16 %v247
    %v3221 = vunpack.c.h.b16 %v247
    %v3222 = vunpack.c.l.b16 %v250
    %v3223 = vunpack.c.h.b16 %v250
    %v3224 = vunpack.c.l.b16 %v253
    %v3225 = vunpack.c.h.b16 %v253
    %v3226 = vunpack.c.l.b16 %v256
    %v3227 = vunpack.c.h.b16 %v256
    %v3228 = vunpack.c.l.b16 %v259
    %v3229 = vunpack.c.h.b16 %v259
    %v3230 = vunpack.c.l.b16 %v262
    %v3231 = vunpack.c.h.b16 %v262
    %v3232 = vunpack.c.l.b16 %v265
    %v3233 = vunpack.c.h.b16 %v265
    %v3234 = vunpack.c.l.b16 %v268
    %v3235 = vunpack.c.h.b16 %v268
    %v3236 = vunpack.c.l.b16 %v271
    %v3237 = vunpack.c.h.b16 %v271
    %v3238 = vunpack.c.l.b16 %v274
    %v3239 = vunpack.c.h.b16 %v274
    %v3240 = vpack.c.b16 %v3210, %v3208
    %v3241 = vpack.c.b16 %v3211, %v3209
    %v3242 = vpack.c.b16 %v3214, %v3212
    %v3243 = vpack.c.b16 %v3215, %v3213
    %v3244 = vpack.c.b16 %v3218, %v3216
    %v3245 = vpack.c.b16 %v3219, %v3217
    %v3246 = vpack.c.b16 %v3222, %v3220
    %v3247 = vpack.c.b16 %v3223, %v3221
    %v3248 = vpack.c.b16 %v3226, %v3224
    %v3249 = vpack.c.b16 %v3227, %v3225
    %v3250 = vpack.c.b16 %v3230, %v3228
    %v3251 = vpack.c.b16 %v3231, %v3229
    %v3252 = vpack.c.b16 %v3234, %v3232
    %v3253 = vpack.c.b16 %v3235, %v3233
    %v3254 = vpack.c.b16 %v3238, %v3236
    %v3255 = vpack.c.b16 %v3239, %v3237
    %3272 = vmatpush.bf16.msra.mxu0 %v3254
    %3273 = vmatpush.bf16.msra.mxu0 %v3252
    %3274 = vmatpush.bf16.msra.mxu0 %v3250
    %3275 = vmatpush.bf16.msra.mxu0 %v3248
    %3276 = vmatpush.bf16.msra.mxu0 %v3246
    %3277 = vmatpush.bf16.msra.mxu0 %v3244
    %3278 = vmatpush.bf16.msra.mxu0 %v3242
    %3279 = vmatpush.bf16.msra.mxu0 %v3240
    %3280 = vmatmul.bf16.gmra.mxu0 %v3189
    %v3281 = vpop.f32.mrf.mxu0
    %v3282 = vadd.f32 %v3190, %v3281
    %v3283 = vpop.f32.mrf.mxu0
    %v3284 = vadd.f32 %v3190, %v3283
    %3285 = vdwg.mxu0
    %3286 = vmatpush.bf16.msra.mxu0 %v3255
    %3287 = vmatpush.bf16.msra.mxu0 %v3253
    %3288 = vmatpush.bf16.msra.mxu0 %v3251
    %3289 = vmatpush.bf16.msra.mxu0 %v3249
    %3290 = vmatpush.bf16.msra.mxu0 %v3247
    %3291 = vmatpush.bf16.msra.mxu0 %v3245
    %3292 = vmatpush.bf16.msra.mxu0 %v3243
    %3293 = vmatpush.bf16.msra.mxu0 %v3241
    %3294 = vmatmul.bf16.gmra.mxu0 %v3189
    %v3295 = vpop.f32.mrf.mxu0
    %v3296 = vadd.f32 %v3191, %v3295
    %v3297 = vpop.f32.mrf.mxu0
    %v3298 = vadd.f32 %v3191, %v3297
    %3299 = vdwg.mxu0
    %v3300 = vmax.f32 %v3282, 0.0
    %v3301 = vmax.f32 %v3296, 0.0
    %v3302 = vmax.f32 %v3284, 0.0
    %v3303 = vmax.f32 %v3298, 0.0
    %v3304 = vpack.c.bf16 %v3302, %v3300
    %v3305 = vpack.c.bf16 %v3303, %v3301
    %v3338 = vunpack.c.l.b16 %v276
    %v3339 = vunpack.c.l.b16 %v277
    %v3340 = vunpack.c.l.b16 %v278
    %v3341 = vunpack.c.l.b16 %v279
    %v3342 = vunpack.c.l.b16 %v280
    %v3343 = vunpack.c.l.b16 %v281
    %v3344 = vunpack.c.l.b16 %v282
    %v3345 = vunpack.c.l.b16 %v283
    %v3346 = vunpack.c.l.b16 %v284
    %v3347 = vunpack.c.l.b16 %v285
    %v3348 = vunpack.c.l.b16 %v286
    %v3349 = vunpack.c.l.b16 %v287
    %v3350 = vunpack.c.l.b16 %v288
    %v3351 = vunpack.c.l.b16 %v289
    %v3352 = vunpack.c.l.b16 %v290
    %v3353 = vunpack.c.l.b16 %v291
    %v3354 = vunpack.c.l.b16 %v292
    %v3355 = vunpack.c.l.b16 %v293
    %v3356 = vunpack.c.l.b16 %v294
    %v3357 = vunpack.c.l.b16 %v295
    %v3358 = vunpack.c.l.b16 %v296
    %v3359 = vunpack.c.l.b16 %v297
    %v3360 = vunpack.c.l.b16 %v298
    %v3361 = vunpack.c.l.b16 %v299
    %v3362 = vunpack.c.l.b16 %v300
    %v3363 = vunpack.c.l.b16 %v301
    %v3364 = vunpack.c.l.b16 %v302
    %v3365 = vunpack.c.l.b16 %v303
    %v3366 = vunpack.c.l.b16 %v304
    %v3367 = vunpack.c.l.b16 %v305
    %v3368 = vunpack.c.l.b16 %v306
    %v3369 = vunpack.c.l.b16 %v307
    %v3370 = vpack.c.b16 %v3339, %v3338
    %v3371 = vpack.c.b16 %v3341, %v3340
    %v3372 = vpack.c.b16 %v3343, %v3342
    %v3373 = vpack.c.b16 %v3345, %v3344
    %v3374 = vpack.c.b16 %v3347, %v3346
    %v3375 = vpack.c.b16 %v3349, %v3348
    %v3376 = vpack.c.b16 %v3351, %v3350
    %v3377 = vpack.c.b16 %v3353, %v3352
    %v3378 = vpack.c.b16 %v3355, %v3354
    %v3379 = vpack.c.b16 %v3357, %v3356
    %v3380 = vpack.c.b16 %v3359, %v3358
    %v3381 = vpack.c.b16 %v3361, %v3360
    %v3382 = vpack.c.b16 %v3363, %v3362
    %v3383 = vpack.c.b16 %v3365, %v3364
    %v3384 = vpack.c.b16 %v3367, %v3366
    %v3385 = vpack.c.b16 %v3369, %v3368
    %3402 = vmatpush.bf16.msra.mxu0 %v3377
    %3403 = vmatpush.bf16.msra.mxu0 %v3376
    %3404 = vmatpush.bf16.msra.mxu0 %v3375
    %3405 = vmatpush.bf16.msra.mxu0 %v3374
    %3406 = vmatpush.bf16.msra.mxu0 %v3373
    %3407 = vmatpush.bf16.msra.mxu0 %v3372
    %3408 = vmatpush.bf16.msra.mxu0 %v3371
    %3409 = vmatpush.bf16.msra.mxu0 %v3370
    %3410 = vmatmul.bf16.gmra.mxu0 %v3304
    %v3411 = vpop.f32.mrf.mxu0
    %v3412 = vadd.f32 0.0, %v3411
    %v3413 = vpop.f32.mrf.mxu0
    %v3414 = vadd.f32 0.0, %v3413
    %3415 = vdwg.mxu0
    %3416 = vmatpush.bf16.msra.mxu0 %v3385
    %3417 = vmatpush.bf16.msra.mxu0 %v3384
    %3418 = vmatpush.bf16.msra.mxu0 %v3383
    %3419 = vmatpush.bf16.msra.mxu0 %v3382
    %3420 = vmatpush.bf16.msra.mxu0 %v3381
    %3421 = vmatpush.bf16.msra.mxu0 %v3380
    %3422 = vmatpush.bf16.msra.mxu0 %v3379
    %3423 = vmatpush.bf16.msra.mxu0 %v3378
    %3424 = vmatmul.bf16.gmra.mxu0 %v3305
    %v3425 = vpop.f32.mrf.mxu0
    %v3426 = vadd.f32 %v3412, %v3425
    %v3427 = vpop.f32.mrf.mxu0
    %v3428 = vadd.f32 %v3414, %v3427
    %3429 = vdwg.mxu0
    %v3430 = vadd.f32 %v3187, %v3426
    %v3431 = vadd.f32 %v3188, %v3428
    %v3432 = vperm.slane %v309, 3
    %v3433 = vadd.f32 %v3430, %v3432
    %v3434 = vadd.f32 %v3431, %v3432
    %3435 = vadd.xlane.f32.xlu0 %v3433
    %v3436 = vpop.xlane.xlu0 %3435
    %3437 = vadd.xlane.f32.xlu0 %v3434
    %v3438 = vpop.xlane.xlu0 %3437
    %v3439 = vmul.f32 %v3436, %v1604
    %v3440 = vmul.f32 %v3438, %v1604
    %v3441 = vsub.f32 %v3433, %v3439
    %v3442 = vsub.f32 %v3434, %v3440
    %v3443 = vmul.f32 %v3441, %v3441
    %v3444 = vmul.f32 %v3442, %v3442
    %3445 = vadd.xlane.f32.xlu0 %v3443
    %v3446 = vpop.xlane.xlu0 %3445
    %3447 = vadd.xlane.f32.xlu0 %v3444
    %v3448 = vpop.xlane.xlu0 %3447
    %v3449 = vmul.f32 %v3446, %v1604
    %v3450 = vmul.f32 %v3448, %v1604
    %v3451 = vadd.f32 %v3449, 1e-05
    %v3452 = vadd.f32 %v3450, 1e-05
    %v3453 = vrsqrt.pop %v3451
    %v3454 = vmul.f32 %v3453, %v3451
    %v3455 = vmul.f32 %v3454, %v3453
    %v3456 = vmul.f32 0.5, %v3455
    %v3457 = vsub.f32 1.5, %v3456
    %v3458 = vmul.f32 %v3453, %v3457
    %vm3459 = vweird.f32 %v3451
    %vm3460 = vweird.f32 %v3453
    %vm3461 = vmor %vm3459, %vm3460
    %v3462 = vsel %vm3461, %v3453, %v3458
    %v3463 = vrsqrt.pop %v3452
    %v3464 = vmul.f32 %v3463, %v3452
    %v3465 = vmul.f32 %v3464, %v3463
    %v3466 = vmul.f32 0.5, %v3465
    %v3467 = vsub.f32 1.5, %v3466
    %v3468 = vmul.f32 %v3463, %v3467
    %vm3469 = vweird.f32 %v3452
    %vm3470 = vweird.f32 %v3463
    %vm3471 = vmor %vm3469, %vm3470
    %v3472 = vsel %vm3471, %v3463, %v3468
    %v3473 = vmul.f32 %v3441, %v3462
    %v3474 = vmul.f32 %v3442, %v3472
    %v3475 = vperm.slane %v309, 6
    %v3476 = vmul.f32 %v3473, %v3475
    %v3477 = vmul.f32 %v3474, %v3475
    %v3478 = vperm.slane %v309, 7
    %v3479 = vadd.f32 %v3476, %v3478
    %v3480 = vadd.f32 %v3477, %v3478
    %v3481 = vrot.slane %v3479, 4
    %v3482 = vadd.f32 %v3479, %v3481
    %v3483 = vrot.slane %v3482, 2
    %v3484 = vadd.f32 %v3482, %v3483
    %v3485 = vrot.slane %v3484, 1
    %v3486 = vadd.f32 %v3484, %v3485
    %v3487 = vrot.slane %v3480, 4
    %v3488 = vadd.f32 %v3480, %v3487
    %v3489 = vrot.slane %v3488, 2
    %v3490 = vadd.f32 %v3488, %v3489
    %v3491 = vrot.slane %v3490, 1
    %v3492 = vadd.f32 %v3490, %v3491
    %v3493 = vrcp.pop 8.0
    %v3494 = vmul.f32 8.0, %v3493
    %v3495 = vsub.f32 1.0, %v3494
    %v3496 = vmul.f32 %v3493, %v3495
    %v3497 = vadd.f32 %v3493, %v3496
    %vm3498 = vweird.f32 %v3493
    %v3499 = vsel %vm3498, %v3493, %v3497
    %v3500 = vmul.f32 %v3486, %v3499
    %v3501 = vmul.f32 %v3492, %v3499
    %v3502 = vpack.c.bf16 %v3500, %v3500
    %v3503 = vpack.c.bf16 %v3501, %v3501
    %v3504 = vperm.slane %v351, 0
    %v3507 = vunpack.c.l.b16 %v3502
    %v3508 = vunpack.c.l.b16 %v3503
    %vm3509 = vcmask 1041409
    %v3510 = vsel %vm3509, %v3508, %v3507
    %v3511 = vpack.c.b16 %v3510, %v3510
    %v3529 = vunpack.c.l.b16 %v319
    %v3530 = vunpack.c.l.b16 %v320
    %v3531 = vunpack.c.l.b16 %v321
    %v3532 = vunpack.c.l.b16 %v322
    %v3533 = vunpack.c.l.b16 %v323
    %v3534 = vunpack.c.l.b16 %v324
    %v3535 = vunpack.c.l.b16 %v325
    %v3536 = vunpack.c.l.b16 %v326
    %v3537 = vunpack.c.l.b16 %v327
    %v3538 = vunpack.c.l.b16 %v328
    %v3539 = vunpack.c.l.b16 %v329
    %v3540 = vunpack.c.l.b16 %v330
    %v3541 = vunpack.c.l.b16 %v331
    %v3542 = vunpack.c.l.b16 %v332
    %v3543 = vunpack.c.l.b16 %v333
    %v3544 = vunpack.c.l.b16 %v334
    %v3545 = vpack.c.b16 %v3530, %v3529
    %v3546 = vpack.c.b16 %v3532, %v3531
    %v3547 = vpack.c.b16 %v3534, %v3533
    %v3548 = vpack.c.b16 %v3536, %v3535
    %v3549 = vpack.c.b16 %v3538, %v3537
    %v3550 = vpack.c.b16 %v3540, %v3539
    %v3551 = vpack.c.b16 %v3542, %v3541
    %v3552 = vpack.c.b16 %v3544, %v3543
    %3561 = vmatpush.bf16.msra.mxu0 %v3552
    %3562 = vmatpush.bf16.msra.mxu0 %v3551
    %3563 = vmatpush.bf16.msra.mxu0 %v3550
    %3564 = vmatpush.bf16.msra.mxu0 %v3549
    %3565 = vmatpush.bf16.msra.mxu0 %v3548
    %3566 = vmatpush.bf16.msra.mxu0 %v3547
    %3567 = vmatpush.bf16.msra.mxu0 %v3546
    %3568 = vmatpush.bf16.msra.mxu0 %v3545
    %3569 = vmatmul.bf16.gmra.mxu0 %v3511
    %v3570 = vpop.f32.mrf.mxu0
    %v3571 = vadd.f32 %v3504, %v3570
    %v3572 = vpop.f32.mrf.mxu0
    %3573 = vdwg.mxu0
    %v3574 = vmax.f32 %v3571, 0.0
    %v3575 = vpack.c.bf16 %v3574, %v3574
    %v3576 = vperm.slane %v351, 1
    %v3593 = vunpack.c.l.b16 %v335
    %v3594 = vunpack.c.l.b16 %v336
    %v3595 = vunpack.c.l.b16 %v337
    %v3596 = vunpack.c.l.b16 %v338
    %v3597 = vunpack.c.l.b16 %v339
    %v3598 = vunpack.c.l.b16 %v340
    %v3599 = vunpack.c.l.b16 %v341
    %v3600 = vunpack.c.l.b16 %v342
    %v3601 = vunpack.c.l.b16 %v343
    %v3602 = vunpack.c.l.b16 %v344
    %v3603 = vunpack.c.l.b16 %v345
    %v3604 = vunpack.c.l.b16 %v346
    %v3605 = vunpack.c.l.b16 %v347
    %v3606 = vunpack.c.l.b16 %v348
    %v3607 = vunpack.c.l.b16 %v349
    %v3608 = vunpack.c.l.b16 %v350
    %v3609 = vpack.c.b16 %v3594, %v3593
    %v3610 = vpack.c.b16 %v3596, %v3595
    %v3611 = vpack.c.b16 %v3598, %v3597
    %v3612 = vpack.c.b16 %v3600, %v3599
    %v3613 = vpack.c.b16 %v3602, %v3601
    %v3614 = vpack.c.b16 %v3604, %v3603
    %v3615 = vpack.c.b16 %v3606, %v3605
    %v3616 = vpack.c.b16 %v3608, %v3607
    %3625 = vmatpush.bf16.msra.mxu0 %v3616
    %3626 = vmatpush.bf16.msra.mxu0 %v3615
    %3627 = vmatpush.bf16.msra.mxu0 %v3614
    %3628 = vmatpush.bf16.msra.mxu0 %v3613
    %3629 = vmatpush.bf16.msra.mxu0 %v3612
    %3630 = vmatpush.bf16.msra.mxu0 %v3611
    %3631 = vmatpush.bf16.msra.mxu0 %v3610
    %3632 = vmatpush.bf16.msra.mxu0 %v3609
    %3633 = vmatmul.bf16.gmra.mxu0 %v3575
    %v3634 = vpop.f32.mrf.mxu0
    %v3635 = vadd.f32 %v3576, %v3634
    %v3636 = vpop.f32.mrf.mxu0
    %3637 = vdwg.mxu0
    %v3638 = vxor.u32 %v3635, 2147483648
    %v3639 = vmul.f32 %v3638, 1.442695
    %v3640 = vpow.pop %v3639
    %v3641 = vadd.f32 %v3640, 1.0
    %v3642 = vrcp.pop %v3641
    %v3643 = vmul.f32 %v3641, %v3642
    %v3644 = vsub.f32 1.0, %v3643
    %v3645 = vmul.f32 %v3642, %v3644
    %v3646 = vadd.f32 %v3642, %v3645
    %vm3647 = vweird.f32 %v3641
    %vm3648 = vweird.f32 %v3642
    %vm3649 = vmor %vm3647, %vm3648
    %v3650 = vsel %vm3649, %v3642, %v3646
    %v3651 = vand.u32 2147483647, %v3641
    %vm3652 = vcmp.eq.f32.partialorder %v3651, 8.507059e+37
    %v3653 = vand.u32 %v3641, 2147483648
    %v3654 = vor.u32 1.1754944e-38, %v3653
    %v3655 = vsel %vm3652, %v3654, %v3650
    %v3656 = vmul.f32 1.0, %v3655
    %3657 = vst [vmem:[#allocation14] sm:$0x3] %v3656
    // Predicated region
    $region66: #{tpu_custom_call.1} parent=1 // pred_check
      _
    $region67: #{tpu_custom_call.1} parent=1 // pred_check_branch
      %3659 = sbr.rel (0) target = $region69
    $region68: #{tpu_custom_call.1} parent=1 // pred_region
      %3661 = vsyncadd [#allocation4], 0
      %s3663 = sshll.u32 [#allocation14], 4
      %s3664 = int_to_ptr.vmem [resolvable:$true] %s3663
      %s3665 = sshll.u32 %s9, 4
      %s3666 = int_to_ptr.hbm [resolvable:$true] %s3665
      %3668 = dma.vmem_to_hbm [thread:$0]  %s3664, 32, %s3666, [#allocation4]
    $region69: #{tpu_custom_call.1} parent=1 // pred_fallthru
      _
    // Predicated region
    $region70: #{tpu_custom_call.1} parent=1 // pred_check
      _
    $region71: #{tpu_custom_call.1} parent=1 // pred_check_branch
      %3670 = sbr.rel (0) target = $region73
    $region72: #{tpu_custom_call.1} parent=1 // pred_region
      %3672 = dma.done [#allocation4], 32
    $region73: #{tpu_custom_call.1} parent=1 // pred_fallthru
      _
    %3673 = vsyncpa [#allocation3], 1
    %3674 = vsyncpa [#allocation6], 1
    %3675 = vsyncpa [#allocation9], 1
    %3676 = vsyncpa [#allocation12], 1
    %3677 = vsyncpa [#allocation4], 1

</llo_original>
